<compile_context>
chip_gen: v7x
topology: tpu7x:2x2x1
jax: 0.10.0
libtpu: 0.0.40
codegen_flags: <defaults>
</compile_context>

<pallas_src>
import math

import jax
import jax.numpy as jnp
from jax import lax
from jax.experimental import pallas as pl
from jax.experimental.pallas import tpu as pltpu

# ----------------------------- model config ---------------------------------
VOCAB    = 40
D_MODEL  = 32          # config.linear_input
N_MEL    = 16          # config.linear_mel
N_HEADS  = 2
D_HEAD   = D_MODEL // N_HEADS
CONV_HID = 64          # FFT-block conv hidden
DP_HID   = 32          # duration-predictor hidden
KSIZE    = 3
MAX_DUR  = 3
T_IN     = 8           # phoneme length (power of two)
T_OUT    = 16          # fixed (padded) mel length after length regulation (power of two)
EPS      = 1e-5
DTYPE    = jnp.float32
FOLD     = 8           # sequences folded into one block (enc 64 rows, dec 128 rows)

# --------------------- constant-slab row layout ------------------------------
# FFT-block group layout (8 rows): bqkv, bo, ln1_g, ln1_b, bc1, bc2, ln2_g, ln2_b
O_BQKV, O_BO, O_LN1G, O_LN1B, O_BC1, O_BC2, O_LN2G, O_LN2B = range(8)
R_E_BASE  = 0          # encoder FFT block rows 0..7
R_DP_B1   = 8
R_DP_LN1G = 9
R_DP_LN1B = 10
R_DP_B2   = 11
R_DP_LN2G = 12
R_DP_LN2B = 13
R_DP_W3   = 14
R_DP_B3   = 15
R_D_BASE  = 16         # decoder FFT block rows 16..23
R_FC_B    = 24
CONST_ROWS  = 32
CONST_LANES = 128


# ----------------------------- in-kernel helpers -----------------------------
def _row(c_ref, row, width):
    """One packed constant: a (1, width) slice of the const slab."""
    return c_ref[row:row + 1, 0:width]


def _layernorm(x, g, b):
    mu = jnp.mean(x, axis=-1, keepdims=True)
    xc = x - mu
    var = jnp.mean(xc * xc, axis=-1, keepdims=True)
    return xc * lax.rsqrt(var + EPS) * g + b


def _edge_masks(rows, t):
    """(rows,1) {0,1} masks: not-first-frame / not-last-frame of each length-t
    sequence (zero pads the out-of-sequence conv taps).  t is a power of two."""
    r = lax.broadcasted_iota(jnp.int32, (rows, 1), 0)
    m = jnp.bitwise_and(r, t - 1)
    not_first = (m != 0).astype(jnp.float32)
    not_last = (m != (t - 1)).astype(jnp.float32)
    return not_first, not_last


def _conv3(x, w_ref, bias, not_first, not_last, relu):
    """'same' 1-D conv (k=3) as ONE matmul: shifted taps via pltpu.roll (XLU),
    concatenated along lanes, against a (3*Cin, Cout) packed weight."""
    rows = x.shape[0]
    x_prev = pltpu.roll(x, shift=1, axis=0) * not_first
    x_next = pltpu.roll(x, shift=rows - 1, axis=0) * not_last
    xc = jnp.concatenate([x_prev, x, x_next], axis=-1)
    y = jnp.dot(xc, w_ref[...], preferred_element_type=jnp.float32) + bias
    if relu:
        y = jnp.maximum(y, 0.0)
    return y


def _mhsa(x, wqkv_ref, wo_ref, bqkv, bo, mask_add):
    """Multi-head self-attention: fused QKV projection, per-head score/context
    matmuls on lane slices, contexts concatenated for one output projection.
    mask_add is an additive (rows, rows) mask (block-diag / key validity)."""
    qkv = jnp.dot(x, wqkv_ref[...], preferred_element_type=jnp.float32) + bqkv
    scale = 1.0 / math.sqrt(D_HEAD)
    ctxs = []
    for h in range(N_HEADS):
        q = qkv[:, h * D_HEAD:(h + 1) * D_HEAD]
        k = qkv[:, D_MODEL + h * D_HEAD:D_MODEL + (h + 1) * D_HEAD]
        v = qkv[:, 2 * D_MODEL + h * D_HEAD:2 * D_MODEL + (h + 1) * D_HEAD]
        s = lax.dot_general(q, k, (((1,), (1,)), ((), ())),
                            preferred_element_type=jnp.float32) * scale + mask_add
        m = jnp.max(s, axis=-1, keepdims=True)
        p = jnp.exp(s - m)
        # approx reciprocal: EUP path, fine for inference (not bit-exact vs torch)
        p = p * pl.reciprocal(jnp.sum(p, axis=-1, keepdims=True), approx=True)
        ctxs.append(jnp.dot(p, v, preferred_element_type=jnp.float32))
    ctx = jnp.concatenate(ctxs, axis=-1)
    return jnp.dot(ctx, wo_ref[...], preferred_element_type=jnp.float32) + bo


def _fft_block(x, wqkv_ref, wo_ref, wc1_ref, wc2_ref, c_ref, base, mask_add,
               not_first, not_last):
    """FastSpeech FFT block: MHSA + residual/LN, conv-FFN + residual/LN."""
    attn = _mhsa(x, wqkv_ref, wo_ref,
                 _row(c_ref, base + O_BQKV, 3 * D_MODEL),
                 _row(c_ref, base + O_BO, D_MODEL), mask_add)
    h = _layernorm(attn + x, _row(c_ref, base + O_LN1G, D_MODEL),
                   _row(c_ref, base + O_LN1B, D_MODEL))
    f = _conv3(h, wc1_ref, _row(c_ref, base + O_BC1, CONV_HID), not_first, not_last, relu=True)
    f = _conv3(f, wc2_ref, _row(c_ref, base + O_BC2, D_MODEL), not_first, not_last, relu=False)
    return _layernorm(f + h, _row(c_ref, base + O_LN2G, D_MODEL),
                      _row(c_ref, base + O_LN2B, D_MODEL))


# ----------------------------- fused kernel ----------------------------------
def _fastspeech_kernel(x_ref, dec_pe_ref, enc_mask_ref, dec_mask_ref, tri_ref, pos_ref,
                       e_wqkv_ref, e_wo_ref, e_wc1_ref, e_wc2_ref,
                       dp_w1_ref, dp_w2_ref,
                       d_wqkv_ref, d_wo_ref, d_wc1_ref, d_wc2_ref,
                       fc_w_ref, c_ref, mel_ref):
    x = x_ref[...]                                 # (er, D)  = FOLD seqs folded in rows
    er = x.shape[0]
    dr = dec_pe_ref.shape[0]

    nf_e, nl_e = _edge_masks(er, T_IN)
    nf_d, nl_d = _edge_masks(dr, T_OUT)

    # ---------------- encoder FFT block ----------------
    h = _fft_block(x, e_wqkv_ref, e_wo_ref, e_wc1_ref, e_wc2_ref, c_ref, R_E_BASE,
                   enc_mask_ref[...], nf_e, nl_e)

    # ---------------- duration predictor ----------------
    d = _conv3(h, dp_w1_ref, _row(c_ref, R_DP_B1, DP_HID), nf_e, nl_e, relu=True)
    d = _layernorm(d, _row(c_ref, R_DP_LN1G, DP_HID), _row(c_ref, R_DP_LN1B, DP_HID))
    d = _conv3(d, dp_w2_ref, _row(c_ref, R_DP_B2, DP_HID), nf_e, nl_e, relu=True)
    d = _layernorm(d, _row(c_ref, R_DP_LN2G, DP_HID), _row(c_ref, R_DP_LN2B, DP_HID))
    # final linear -> 1 channel, produced directly as a (1, er) lane vector (no transpose)
    dur_log = lax.dot_general(_row(c_ref, R_DP_W3, DP_HID), d,
                              (((1,), (1,)), ((), ())),
                              preferred_element_type=jnp.float32) + _row(c_ref, R_DP_B3, 1)

    # ---------------- length regulator (one-hot expansion matmul) ----------------
    # TODO(synk): duration = clip(floor(exp(log_d) - 0.5), 1, MAX_DUR) with a fixed
    #             T_OUT truncation is a simplification of the reference LengthRegulator.
    dur = jnp.clip(jnp.floor(jnp.exp(dur_log) - 0.5), 1.0, float(MAX_DUR))       # (1, er)
    ends = lax.dot_general(dur, tri_ref[...], (((1,), (1,)), ((), ())),
                           preferred_element_type=jnp.float32)                    # per-seq cumsum
    starts = ends - dur
    pos = pos_ref[...]                                                            # (dr, er)
    ex = (pos >= starts).astype(jnp.float32) * (pos < ends).astype(jnp.float32)   # one-hot expand
    valid = jnp.sum(ex, axis=-1, keepdims=True)                                   # (dr, 1) in {0,1}
    y = jnp.dot(ex, h, preferred_element_type=jnp.float32) + dec_pe_ref[...] * valid

    # decoder attention mask: block-diagonal + mask out padded (invalid) key frames
    vm = lax.dot_general(jnp.ones((dr, 1), jnp.float32), valid,
                         (((1,), (1,)), ((), ())),
                         preferred_element_type=jnp.float32)                      # vm[i,j]=valid[j]
    dec_mask = dec_mask_ref[...] + (vm - 1.0) * 1e9

    # ---------------- decoder FFT block + mel projection ----------------
    g = _fft_block(y, d_wqkv_ref, d_wo_ref, d_wc1_ref, d_wc2_ref, c_ref, R_D_BASE,
                   dec_mask, nf_d, nl_d)
    mel = jnp.dot(g, fc_w_ref[...], preferred_element_type=jnp.float32) + _row(c_ref, R_FC_B, N_MEL)
    mel_ref[...] = (mel * valid).astype(mel_ref.dtype)


# ----------------------------- pallas_call wrapper ----------------------------
def _full_spec(a):
    n = a.ndim
    return pl.BlockSpec(a.shape, lambda b, _n=n: (0,) * _n)


def run_fastspeech(x, p, fold, tables):
    er = fold * T_IN
    dr = fold * T_OUT
    n_blk = x.shape[0] // er
    dec_pe, enc_mask, dec_mask, tri, pos = tables
    consts = [dec_pe, enc_mask, dec_mask, tri, pos,
              p["e_wqkv"], p["e_wo"], p["e_wc1"], p["e_wc2"],
              p["dp_w1"], p["dp_w2"],
              p["d_wqkv"], p["d_wo"], p["d_wc1"], p["d_wc2"],
              p["fc_w"], p["consts"]]
    return pl.pallas_call(
        _fastspeech_kernel,
        out_shape=jax.ShapeDtypeStruct((n_blk * dr, N_MEL), DTYPE),
        grid=(n_blk,),
        in_specs=[pl.BlockSpec((er, D_MODEL), lambda b: (b, 0))]
                 + [_full_spec(a) for a in consts],
        out_specs=pl.BlockSpec((dr, N_MEL), lambda b: (b, 0)),
        compiler_params=pltpu.CompilerParams(dimension_semantics=("parallel",)),
    )(x, *consts)


# ----------------------------- JAX glue ---------------------------------------
def sinusoid_pos(T, D):
    pos = jnp.arange(T, dtype=jnp.float32)[:, None]
    i = jnp.arange(D, dtype=jnp.float32)[None, :]
    angle = pos / jnp.power(10000.0, (2.0 * jnp.floor(i / 2.0)) / D)
    pe = jnp.where((jnp.arange(D) % 2) == 0, jnp.sin(angle), jnp.cos(angle))
    return pe.astype(DTYPE)


def _static_tables(fold):
    """Static per-fold tables passed once as small VMEM constants."""
    er, dr = fold * T_IN, fold * T_OUT
    dec_pe = jnp.tile(sinusoid_pos(T_OUT, D_MODEL), (fold, 1))                     # (dr, D)
    r_e = jnp.arange(er)
    r_d = jnp.arange(dr)
    same_e = (r_e[:, None] // T_IN) == (r_e[None, :] // T_IN)
    enc_mask = jnp.where(same_e, 0.0, -1e9).astype(DTYPE)                          # (er, er)
    same_d = (r_d[:, None] // T_OUT) == (r_d[None, :] // T_OUT)
    dec_mask = jnp.where(same_d, 0.0, -1e9).astype(DTYPE)                          # (dr, dr)
    tri = (same_e & (r_e[None, :] <= r_e[:, None])).astype(DTYPE)                  # per-seq cumsum
    same_de = (r_d[:, None] // T_OUT) == (r_e[None, :] // T_IN)
    pos_in_seq = (r_d % T_OUT).astype(DTYPE)[:, None]
    pos = jnp.where(same_de, pos_in_seq, -1e9).astype(DTYPE)                       # (dr, er)
    return dec_pe, enc_mask, dec_mask, tri, pos


def fastspeech_forward(params, sequence, seq_length=None):
    """Inference path of FastSpeech.forward. sequence: (B, T_IN) int32 -> (B, N_MEL, T_OUT)."""
    B, T = sequence.shape
    assert T == T_IN
    fold = min(B, FOLD)
    n_blk = -(-B // fold)
    b_pad = n_blk * fold
    seq_p = jnp.pad(sequence, ((0, b_pad - B), (0, 0)))
    # embedding lookup + encoder positional encoding (data-dependent gather; XLA fuses the add)
    x = (params["emb"][seq_p] + sinusoid_pos(T_IN, D_MODEL)[None]).reshape(b_pad * T_IN, D_MODEL)
    # TODO(synk): seq_length accepted but unused; the reference LengthRegulator may rescale
    #             predicted durations with it at inference.
    mel = run_fastspeech(x, params, fold, _static_tables(fold))      # (b_pad*T_OUT, N_MEL)
    mel = mel.reshape(b_pad, T_OUT, N_MEL)[:B]
    return mel.transpose(0, 2, 1)                                    # (B, N_MEL, T_OUT)


# ----------------------------- parameter init ---------------------------------
def init_params(key):
    ks = jax.random.split(key, 13)
    s = 0.02
    rnd = lambda k, shape: jax.random.normal(k, shape, DTYPE) * s

    p = {
        "emb":    rnd(ks[0], (VOCAB, D_MODEL)),
        # fused QKV: columns = [Q(h0|h1) | K(h0|h1) | V(h0|h1)]
        "e_wqkv": rnd(ks[1], (D_MODEL, 3 * D_MODEL)),
        "e_wo":   rnd(ks[2], (D_MODEL, D_MODEL)),
        # conv weights packed as taps [prev; center; next] along rows
        "e_wc1":  rnd(ks[3], (KSIZE * D_MODEL, CONV_HID)),
        "e_wc2":  rnd(ks[4], (KSIZE * CONV_HID, D_MODEL)),
        "dp_w1":  rnd(ks[5], (KSIZE * D_MODEL, DP_HID)),
        "dp_w2":  rnd(ks[6], (KSIZE * DP_HID, DP_HID)),
        "d_wqkv": rnd(ks[7], (D_MODEL, 3 * D_MODEL)),
        "d_wo":   rnd(ks[8], (D_MODEL, D_MODEL)),
        "d_wc1":  rnd(ks[9], (KSIZE * D_MODEL, CONV_HID)),
        "d_wc2":  rnd(ks[10], (KSIZE * CONV_HID, D_MODEL)),
        "fc_w":   rnd(ks[11], (D_MODEL, N_MEL)),
    }
    dp_w3 = rnd(ks[12], (DP_HID,))

    def pad_row(v):
        v = jnp.asarray(v, DTYPE).reshape(-1)
        return jnp.pad(v, (0, CONST_LANES - v.shape[0]))

    z = lambda n: jnp.zeros((n,), DTYPE)
    o = lambda n: jnp.ones((n,), DTYPE)

    def fft_bias_rows():
        return [pad_row(z(3 * D_MODEL)),                        # bqkv
                pad_row(z(D_MODEL)),                            # bo
                pad_row(o(D_MODEL)), pad_row(z(D_MODEL)),       # ln1 gamma / beta
                pad_row(z(CONV_HID)),                           # conv1 bias
                pad_row(z(D_MODEL)),                            # conv2 bias
                pad_row(o(D_MODEL)), pad_row(z(D_MODEL))]       # ln2 gamma / beta

    rows = fft_bias_rows()                                      # encoder rows 0..7
    rows += [pad_row(z(DP_HID)),                                # dp conv1 bias     (8)
             pad_row(o(DP_HID)), pad_row(z(DP_HID)),            # dp ln1            (9,10)
             pad_row(z(DP_HID)),                                # dp conv2 bias     (11)
             pad_row(o(DP_HID)), pad_row(z(DP_HID)),            # dp ln2            (12,13)
             pad_row(dp_w3),                                    # dp linear weight  (14)
             pad_row(z(1))]                                     # dp linear bias    (15)
    rows += fft_bias_rows()                                     # decoder rows 16..23
    rows += [pad_row(z(N_MEL))]                                 # fc bias           (24)
    while len(rows) < CONST_ROWS:
        rows.append(jnp.zeros((CONST_LANES,), DTYPE))
    p["consts"] = jnp.stack(rows)
    return p


# ----------------------------- main -------------------------------------------
if __name__ == "__main__":
    root = jax.random.PRNGKey(0)
    pkey, skey = jax.random.split(root)
    params = init_params(pkey)

    B = 8
    sequence = jax.random.randint(skey, (B, T_IN), 0, VOCAB, dtype=jnp.int32)
    seq_length = jnp.full((B,), T_OUT, dtype=jnp.int32)

    fwd = jax.jit(fastspeech_forward)
    mel = fwd(params, sequence, seq_length)
    jax.block_until_ready(mel)

    assert mel.shape == (B, N_MEL, T_OUT), mel.shape
    assert mel.dtype == DTYPE
    assert bool(jnp.all(jnp.isfinite(mel)))
    print("KERNEL_OK")
</pallas_src>

<mosaic_0001>
module attributes {stable_mosaic.version = 11 : i64} {
  func.func @_fastspeech_kernel(%arg0: i32, %arg1: memref<64x32xf32, #tpu.memory_space<vmem>>, %arg2: memref<128x32xf32, #tpu.memory_space<vmem>>, %arg3: memref<64x64xf32, #tpu.memory_space<vmem>>, %arg4: memref<128x128xf32, #tpu.memory_space<vmem>>, %arg5: memref<64x64xf32, #tpu.memory_space<vmem>>, %arg6: memref<128x64xf32, #tpu.memory_space<vmem>>, %arg7: memref<32x96xf32, #tpu.memory_space<vmem>>, %arg8: memref<32x32xf32, #tpu.memory_space<vmem>>, %arg9: memref<96x64xf32, #tpu.memory_space<vmem>>, %arg10: memref<192x32xf32, #tpu.memory_space<vmem>>, %arg11: memref<96x32xf32, #tpu.memory_space<vmem>>, %arg12: memref<96x32xf32, #tpu.memory_space<vmem>>, %arg13: memref<32x96xf32, #tpu.memory_space<vmem>>, %arg14: memref<32x32xf32, #tpu.memory_space<vmem>>, %arg15: memref<96x64xf32, #tpu.memory_space<vmem>>, %arg16: memref<192x32xf32, #tpu.memory_space<vmem>>, %arg17: memref<32x16xf32, #tpu.memory_space<vmem>>, %arg18: memref<32x128xf32, #tpu.memory_space<vmem>>, %arg19: memref<128x16xf32, #tpu.memory_space<vmem>>) attributes {dimension_semantics = [#tpu.dimension_semantics<parallel>], iteration_bounds = array<i64: 1>, scalar_prefetch = 0 : i64, scratch_operands = 0 : i64, tpu.core_type = #tpu.core_type<tc>, window_params = [{transform_indices = @transform_0, window_bounds = array<i64: 64, 32>}, {pipeline_mode = #tpu.pipeline_mode<synchronous>, transform_indices = @transform_1, window_bounds = array<i64: 128, 32>}, {pipeline_mode = #tpu.pipeline_mode<synchronous>, transform_indices = @transform_2, window_bounds = array<i64: 64, 64>}, {pipeline_mode = #tpu.pipeline_mode<synchronous>, transform_indices = @transform_3, window_bounds = array<i64: 128, 128>}, {pipeline_mode = #tpu.pipeline_mode<synchronous>, transform_indices = @transform_4, window_bounds = array<i64: 64, 64>}, {pipeline_mode = #tpu.pipeline_mode<synchronous>, transform_indices = @transform_5, window_bounds = array<i64: 128, 64>}, {pipeline_mode = #tpu.pipeline_mode<synchronous>, transform_indices = @transform_6, window_bounds = array<i64: 32, 96>}, {pipeline_mode = #tpu.pipeline_mode<synchronous>, transform_indices = @transform_7, window_bounds = array<i64: 32, 32>}, {pipeline_mode = #tpu.pipeline_mode<synchronous>, transform_indices = @transform_8, window_bounds = array<i64: 96, 64>}, {pipeline_mode = #tpu.pipeline_mode<synchronous>, transform_indices = @transform_9, window_bounds = array<i64: 192, 32>}, {pipeline_mode = #tpu.pipeline_mode<synchronous>, transform_indices = @transform_10, window_bounds = array<i64: 96, 32>}, {pipeline_mode = #tpu.pipeline_mode<synchronous>, transform_indices = @transform_11, window_bounds = array<i64: 96, 32>}, {pipeline_mode = #tpu.pipeline_mode<synchronous>, transform_indices = @transform_12, window_bounds = array<i64: 32, 96>}, {pipeline_mode = #tpu.pipeline_mode<synchronous>, transform_indices = @transform_13, window_bounds = array<i64: 32, 32>}, {pipeline_mode = #tpu.pipeline_mode<synchronous>, transform_indices = @transform_14, window_bounds = array<i64: 96, 64>}, {pipeline_mode = #tpu.pipeline_mode<synchronous>, transform_indices = @transform_15, window_bounds = array<i64: 192, 32>}, {pipeline_mode = #tpu.pipeline_mode<synchronous>, transform_indices = @transform_16, window_bounds = array<i64: 32, 16>}, {pipeline_mode = #tpu.pipeline_mode<synchronous>, transform_indices = @transform_17, window_bounds = array<i64: 32, 128>}, {transform_indices = @transform_18, window_bounds = array<i64: 128, 16>}]} {
    %c0 = arith.constant 0 : index
    %c0_0 = arith.constant 0 : index
    %0 = vector.load %arg1[%c0, %c0_0] : memref<64x32xf32, #tpu.memory_space<vmem>>, vector<64x32xf32>
    %1 = tpu.iota {dimensions = array<i32: 0>} : vector<64x1xi32>
    %c7_i32 = arith.constant 7 : i32
    %2 = vector.broadcast %c7_i32 : i32 to vector<64x1xi32>
    %3 = arith.andi %1, %2 : vector<64x1xi32>
    %c0_i32 = arith.constant 0 : i32
    %4 = vector.broadcast %c0_i32 : i32 to vector<64x1xi32>
    %5 = arith.cmpi ne, %3, %4 : vector<64x1xi32>
    %6 = arith.extui %5 : vector<64x1xi1> to vector<64x1xi32>
    %7 = arith.sitofp %6 : vector<64x1xi32> to vector<64x1xf32>
    %c7_i32_1 = arith.constant 7 : i32
    %8 = vector.broadcast %c7_i32_1 : i32 to vector<64x1xi32>
    %9 = arith.cmpi ne, %3, %8 : vector<64x1xi32>
    %10 = arith.extui %9 : vector<64x1xi1> to vector<64x1xi32>
    %11 = arith.sitofp %10 : vector<64x1xi32> to vector<64x1xf32>
    %12 = tpu.iota {dimensions = array<i32: 0>} : vector<128x1xi32>
    %c15_i32 = arith.constant 15 : i32
    %13 = vector.broadcast %c15_i32 : i32 to vector<128x1xi32>
    %14 = arith.andi %12, %13 : vector<128x1xi32>
    %c0_i32_2 = arith.constant 0 : i32
    %15 = vector.broadcast %c0_i32_2 : i32 to vector<128x1xi32>
    %16 = arith.cmpi ne, %14, %15 : vector<128x1xi32>
    %17 = arith.extui %16 : vector<128x1xi1> to vector<128x1xi32>
    %18 = arith.sitofp %17 : vector<128x1xi32> to vector<128x1xf32>
    %c15_i32_3 = arith.constant 15 : i32
    %19 = vector.broadcast %c15_i32_3 : i32 to vector<128x1xi32>
    %20 = arith.cmpi ne, %14, %19 : vector<128x1xi32>
    %21 = arith.extui %20 : vector<128x1xi1> to vector<128x1xi32>
    %22 = arith.sitofp %21 : vector<128x1xi32> to vector<128x1xf32>
    %c0_4 = arith.constant 0 : index
    %c0_5 = arith.constant 0 : index
    %23 = vector.load %arg3[%c0_4, %c0_5] : memref<64x64xf32, #tpu.memory_space<vmem>>, vector<64x64xf32>
    %c0_6 = arith.constant 0 : index
    %c0_7 = arith.constant 0 : index
    %24 = vector.load %arg18[%c0_6, %c0_7] : memref<32x128xf32, #tpu.memory_space<vmem>>, vector<1x96xf32>
    %c1 = arith.constant 1 : index
    %c0_8 = arith.constant 0 : index
    %25 = vector.load %arg18[%c1, %c0_8] : memref<32x128xf32, #tpu.memory_space<vmem>>, vector<1x32xf32>
    %c0_9 = arith.constant 0 : index
    %c0_10 = arith.constant 0 : index
    %26 = vector.load %arg7[%c0_9, %c0_10] : memref<32x96xf32, #tpu.memory_space<vmem>>, vector<32x96xf32>
    %cst = arith.constant dense<0.000000e+00> : vector<64x96xf32>
    %27 = tpu.matmul %0, %26, %cst {dimension_numbers = #tpu.dot_dimension_numbers<[1], [0], [0], [1], [0, 0, 1, 1], [], []>} : vector<64x32xf32>, vector<32x96xf32>, vector<64x96xf32> -> vector<64x96xf32>
    %28 = vector.broadcast %24 : vector<1x96xf32> to vector<64x96xf32>
    %29 = arith.addf %27, %28 : vector<64x96xf32>
    %30 = vector.extract_strided_slice %29 {offsets = [0, 0], sizes = [64, 16], strides = [1, 1]} : vector<64x96xf32> to vector<64x16xf32>
    %31 = vector.extract_strided_slice %29 {offsets = [0, 32], sizes = [64, 16], strides = [1, 1]} : vector<64x96xf32> to vector<64x16xf32>
    %32 = vector.extract_strided_slice %29 {offsets = [0, 64], sizes = [64, 16], strides = [1, 1]} : vector<64x96xf32> to vector<64x16xf32>
    %cst_11 = arith.constant dense<0.000000e+00> : vector<64x64xf32>
    %33 = tpu.matmul %30, %31, %cst_11 {dimension_numbers = #tpu.dot_dimension_numbers<[1], [1], [0], [0], [0, 0, 1, 0], [], []>} : vector<64x16xf32>, vector<64x16xf32>, vector<64x64xf32> -> vector<64x64xf32>
    %cst_12 = arith.constant 2.500000e-01 : f32
    %34 = vector.broadcast %cst_12 : f32 to vector<64x64xf32>
    %35 = arith.mulf %33, %34 : vector<64x64xf32>
    %36 = arith.addf %35, %23 : vector<64x64xf32>
    %cst_13 = arith.constant dense<0xFF800000> : vector<64xf32>
    %37 = vector.multi_reduction <maximumf>, %36, %cst_13 [1] : vector<64x64xf32> to vector<64xf32>
    %38 = vector.shape_cast %37 : vector<64xf32> to vector<64x1xf32>
    %39 = vector.broadcast %38 : vector<64x1xf32> to vector<64x64xf32>
    %40 = arith.subf %36, %39 : vector<64x64xf32>
    %41 = math.exp %40 : vector<64x64xf32>
    %cst_14 = arith.constant dense<0.000000e+00> : vector<64xf32>
    %42 = vector.multi_reduction <add>, %41, %cst_14 [1] : vector<64x64xf32> to vector<64xf32>
    %43 = vector.shape_cast %42 : vector<64xf32> to vector<64x1xf32>
    %44 = tpu.reciprocal %43 {approx = true} : vector<64x1xf32> -> vector<64x1xf32>
    %45 = vector.broadcast %44 : vector<64x1xf32> to vector<64x64xf32>
    %46 = arith.mulf %41, %45 : vector<64x64xf32>
    %cst_15 = arith.constant dense<0.000000e+00> : vector<64x16xf32>
    %47 = tpu.matmul %46, %32, %cst_15 {dimension_numbers = #tpu.dot_dimension_numbers<[1], [0], [0], [1], [0, 0, 1, 1], [], []>} : vector<64x64xf32>, vector<64x16xf32>, vector<64x16xf32> -> vector<64x16xf32>
    %48 = vector.extract_strided_slice %29 {offsets = [0, 16], sizes = [64, 16], strides = [1, 1]} : vector<64x96xf32> to vector<64x16xf32>
    %49 = vector.extract_strided_slice %29 {offsets = [0, 48], sizes = [64, 16], strides = [1, 1]} : vector<64x96xf32> to vector<64x16xf32>
    %50 = vector.extract_strided_slice %29 {offsets = [0, 80], sizes = [64, 16], strides = [1, 1]} : vector<64x96xf32> to vector<64x16xf32>
    %cst_16 = arith.constant dense<0.000000e+00> : vector<64x64xf32>
    %51 = tpu.matmul %48, %49, %cst_16 {dimension_numbers = #tpu.dot_dimension_numbers<[1], [1], [0], [0], [0, 0, 1, 0], [], []>} : vector<64x16xf32>, vector<64x16xf32>, vector<64x64xf32> -> vector<64x64xf32>
    %cst_17 = arith.constant 2.500000e-01 : f32
    %52 = vector.broadcast %cst_17 : f32 to vector<64x64xf32>
    %53 = arith.mulf %51, %52 : vector<64x64xf32>
    %54 = arith.addf %53, %23 : vector<64x64xf32>
    %cst_18 = arith.constant dense<0xFF800000> : vector<64xf32>
    %55 = vector.multi_reduction <maximumf>, %54, %cst_18 [1] : vector<64x64xf32> to vector<64xf32>
    %56 = vector.shape_cast %55 : vector<64xf32> to vector<64x1xf32>
    %57 = vector.broadcast %56 : vector<64x1xf32> to vector<64x64xf32>
    %58 = arith.subf %54, %57 : vector<64x64xf32>
    %59 = math.exp %58 : vector<64x64xf32>
    %cst_19 = arith.constant dense<0.000000e+00> : vector<64xf32>
    %60 = vector.multi_reduction <add>, %59, %cst_19 [1] : vector<64x64xf32> to vector<64xf32>
    %61 = vector.shape_cast %60 : vector<64xf32> to vector<64x1xf32>
    %62 = tpu.reciprocal %61 {approx = true} : vector<64x1xf32> -> vector<64x1xf32>
    %63 = vector.broadcast %62 : vector<64x1xf32> to vector<64x64xf32>
    %64 = arith.mulf %59, %63 : vector<64x64xf32>
    %cst_20 = arith.constant dense<0.000000e+00> : vector<64x16xf32>
    %65 = tpu.matmul %64, %50, %cst_20 {dimension_numbers = #tpu.dot_dimension_numbers<[1], [0], [0], [1], [0, 0, 1, 1], [], []>} : vector<64x64xf32>, vector<64x16xf32>, vector<64x16xf32> -> vector<64x16xf32>
    %66 = tpu.concatenate %47, %65 in 1 : vector<64x16xf32>, vector<64x16xf32> -> vector<64x32xf32>
    %c0_21 = arith.constant 0 : index
    %c0_22 = arith.constant 0 : index
    %67 = vector.load %arg8[%c0_21, %c0_22] : memref<32x32xf32, #tpu.memory_space<vmem>>, vector<32x32xf32>
    %cst_23 = arith.constant dense<0.000000e+00> : vector<64x32xf32>
    %68 = tpu.matmul %66, %67, %cst_23 {dimension_numbers = #tpu.dot_dimension_numbers<[1], [0], [0], [1], [0, 0, 1, 1], [], []>} : vector<64x32xf32>, vector<32x32xf32>, vector<64x32xf32> -> vector<64x32xf32>
    %69 = vector.broadcast %25 : vector<1x32xf32> to vector<64x32xf32>
    %70 = arith.addf %68, %69 : vector<64x32xf32>
    %71 = arith.addf %70, %0 : vector<64x32xf32>
    %c2 = arith.constant 2 : index
    %c0_24 = arith.constant 0 : index
    %72 = vector.load %arg18[%c2, %c0_24] : memref<32x128xf32, #tpu.memory_space<vmem>>, vector<1x32xf32>
    %c3 = arith.constant 3 : index
    %c0_25 = arith.constant 0 : index
    %73 = vector.load %arg18[%c3, %c0_25] : memref<32x128xf32, #tpu.memory_space<vmem>>, vector<1x32xf32>
    %cst_26 = arith.constant dense<0.000000e+00> : vector<64xf32>
    %74 = vector.multi_reduction <add>, %71, %cst_26 [1] : vector<64x32xf32> to vector<64xf32>
    %75 = vector.shape_cast %74 : vector<64xf32> to vector<64x1xf32>
    %cst_27 = arith.constant 3.200000e+01 : f32
    %76 = vector.broadcast %cst_27 : f32 to vector<64x1xf32>
    %77 = arith.divf %75, %76 : vector<64x1xf32>
    %78 = vector.broadcast %77 : vector<64x1xf32> to vector<64x32xf32>
    %79 = arith.subf %71, %78 : vector<64x32xf32>
    %80 = arith.mulf %79, %79 : vector<64x32xf32>
    %cst_28 = arith.constant dense<0.000000e+00> : vector<64xf32>
    %81 = vector.multi_reduction <add>, %80, %cst_28 [1] : vector<64x32xf32> to vector<64xf32>
    %82 = vector.shape_cast %81 : vector<64xf32> to vector<64x1xf32>
    %cst_29 = arith.constant 3.200000e+01 : f32
    %83 = vector.broadcast %cst_29 : f32 to vector<64x1xf32>
    %84 = arith.divf %82, %83 : vector<64x1xf32>
    %cst_30 = arith.constant 9.99999974E-6 : f32
    %85 = vector.broadcast %cst_30 : f32 to vector<64x1xf32>
    %86 = arith.addf %84, %85 : vector<64x1xf32>
    %87 = math.rsqrt %86 : vector<64x1xf32>
    %88 = vector.broadcast %87 : vector<64x1xf32> to vector<64x32xf32>
    %89 = arith.mulf %79, %88 : vector<64x32xf32>
    %90 = vector.broadcast %72 : vector<1x32xf32> to vector<64x32xf32>
    %91 = arith.mulf %89, %90 : vector<64x32xf32>
    %92 = vector.broadcast %73 : vector<1x32xf32> to vector<64x32xf32>
    %93 = arith.addf %91, %92 : vector<64x32xf32>
    %c4 = arith.constant 4 : index
    %c0_31 = arith.constant 0 : index
    %94 = vector.load %arg18[%c4, %c0_31] : memref<32x128xf32, #tpu.memory_space<vmem>>, vector<1x64xf32>
    %c1_i32 = arith.constant 1 : i32
    %95 = tpu.dynamic_rotate %93 by %c1_i32 dim 0 : vector<64x32xf32>, i32 -> vector<64x32xf32>
    %96 = vector.broadcast %7 : vector<64x1xf32> to vector<64x32xf32>
    %97 = arith.mulf %95, %96 : vector<64x32xf32>
    %c63_i32 = arith.constant 63 : i32
    %98 = tpu.dynamic_rotate %93 by %c63_i32 dim 0 : vector<64x32xf32>, i32 -> vector<64x32xf32>
    %99 = vector.broadcast %11 : vector<64x1xf32> to vector<64x32xf32>
    %100 = arith.mulf %98, %99 : vector<64x32xf32>
    %101 = tpu.concatenate %97, %93, %100 in 1 : vector<64x32xf32>, vector<64x32xf32>, vector<64x32xf32> -> vector<64x96xf32>
    %c0_32 = arith.constant 0 : index
    %c0_33 = arith.constant 0 : index
    %102 = vector.load %arg9[%c0_32, %c0_33] : memref<96x64xf32, #tpu.memory_space<vmem>>, vector<96x64xf32>
    %cst_34 = arith.constant dense<0.000000e+00> : vector<64x64xf32>
    %103 = tpu.matmul %101, %102, %cst_34 {dimension_numbers = #tpu.dot_dimension_numbers<[1], [0], [0], [1], [0, 0, 1, 1], [], []>} : vector<64x96xf32>, vector<96x64xf32>, vector<64x64xf32> -> vector<64x64xf32>
    %104 = vector.broadcast %94 : vector<1x64xf32> to vector<64x64xf32>
    %105 = arith.addf %103, %104 : vector<64x64xf32>
    %cst_35 = arith.constant 0.000000e+00 : f32
    %106 = vector.broadcast %cst_35 : f32 to vector<64x64xf32>
    %107 = arith.maximumf %105, %106 : vector<64x64xf32>
    %c5 = arith.constant 5 : index
    %c0_36 = arith.constant 0 : index
    %108 = vector.load %arg18[%c5, %c0_36] : memref<32x128xf32, #tpu.memory_space<vmem>>, vector<1x32xf32>
    %c1_i32_37 = arith.constant 1 : i32
    %109 = tpu.dynamic_rotate %107 by %c1_i32_37 dim 0 : vector<64x64xf32>, i32 -> vector<64x64xf32>
    %110 = vector.broadcast %7 : vector<64x1xf32> to vector<64x64xf32>
    %111 = arith.mulf %109, %110 : vector<64x64xf32>
    %c63_i32_38 = arith.constant 63 : i32
    %112 = tpu.dynamic_rotate %107 by %c63_i32_38 dim 0 : vector<64x64xf32>, i32 -> vector<64x64xf32>
    %113 = vector.broadcast %11 : vector<64x1xf32> to vector<64x64xf32>
    %114 = arith.mulf %112, %113 : vector<64x64xf32>
    %115 = tpu.concatenate %111, %107, %114 in 1 : vector<64x64xf32>, vector<64x64xf32>, vector<64x64xf32> -> vector<64x192xf32>
    %c0_39 = arith.constant 0 : index
    %c0_40 = arith.constant 0 : index
    %116 = vector.load %arg10[%c0_39, %c0_40] : memref<192x32xf32, #tpu.memory_space<vmem>>, vector<192x32xf32>
    %cst_41 = arith.constant dense<0.000000e+00> : vector<64x32xf32>
    %117 = tpu.matmul %115, %116, %cst_41 {dimension_numbers = #tpu.dot_dimension_numbers<[1], [0], [0], [1], [0, 0, 1, 1], [], []>} : vector<64x192xf32>, vector<192x32xf32>, vector<64x32xf32> -> vector<64x32xf32>
    %118 = vector.broadcast %108 : vector<1x32xf32> to vector<64x32xf32>
    %119 = arith.addf %117, %118 : vector<64x32xf32>
    %120 = arith.addf %119, %93 : vector<64x32xf32>
    %c6 = arith.constant 6 : index
    %c0_42 = arith.constant 0 : index
    %121 = vector.load %arg18[%c6, %c0_42] : memref<32x128xf32, #tpu.memory_space<vmem>>, vector<1x32xf32>
    %c7 = arith.constant 7 : index
    %c0_43 = arith.constant 0 : index
    %122 = vector.load %arg18[%c7, %c0_43] : memref<32x128xf32, #tpu.memory_space<vmem>>, vector<1x32xf32>
    %cst_44 = arith.constant dense<0.000000e+00> : vector<64xf32>
    %123 = vector.multi_reduction <add>, %120, %cst_44 [1] : vector<64x32xf32> to vector<64xf32>
    %124 = vector.shape_cast %123 : vector<64xf32> to vector<64x1xf32>
    %cst_45 = arith.constant 3.200000e+01 : f32
    %125 = vector.broadcast %cst_45 : f32 to vector<64x1xf32>
    %126 = arith.divf %124, %125 : vector<64x1xf32>
    %127 = vector.broadcast %126 : vector<64x1xf32> to vector<64x32xf32>
    %128 = arith.subf %120, %127 : vector<64x32xf32>
    %129 = arith.mulf %128, %128 : vector<64x32xf32>
    %cst_46 = arith.constant dense<0.000000e+00> : vector<64xf32>
    %130 = vector.multi_reduction <add>, %129, %cst_46 [1] : vector<64x32xf32> to vector<64xf32>
    %131 = vector.shape_cast %130 : vector<64xf32> to vector<64x1xf32>
    %cst_47 = arith.constant 3.200000e+01 : f32
    %132 = vector.broadcast %cst_47 : f32 to vector<64x1xf32>
    %133 = arith.divf %131, %132 : vector<64x1xf32>
    %cst_48 = arith.constant 9.99999974E-6 : f32
    %134 = vector.broadcast %cst_48 : f32 to vector<64x1xf32>
    %135 = arith.addf %133, %134 : vector<64x1xf32>
    %136 = math.rsqrt %135 : vector<64x1xf32>
    %137 = vector.broadcast %136 : vector<64x1xf32> to vector<64x32xf32>
    %138 = arith.mulf %128, %137 : vector<64x32xf32>
    %139 = vector.broadcast %121 : vector<1x32xf32> to vector<64x32xf32>
    %140 = arith.mulf %138, %139 : vector<64x32xf32>
    %141 = vector.broadcast %122 : vector<1x32xf32> to vector<64x32xf32>
    %142 = arith.addf %140, %141 : vector<64x32xf32>
    %c8 = arith.constant 8 : index
    %c0_49 = arith.constant 0 : index
    %143 = vector.load %arg18[%c8, %c0_49] : memref<32x128xf32, #tpu.memory_space<vmem>>, vector<1x32xf32>
    %c1_i32_50 = arith.constant 1 : i32
    %144 = tpu.dynamic_rotate %142 by %c1_i32_50 dim 0 : vector<64x32xf32>, i32 -> vector<64x32xf32>
    %145 = vector.broadcast %7 : vector<64x1xf32> to vector<64x32xf32>
    %146 = arith.mulf %144, %145 : vector<64x32xf32>
    %c63_i32_51 = arith.constant 63 : i32
    %147 = tpu.dynamic_rotate %142 by %c63_i32_51 dim 0 : vector<64x32xf32>, i32 -> vector<64x32xf32>
    %148 = vector.broadcast %11 : vector<64x1xf32> to vector<64x32xf32>
    %149 = arith.mulf %147, %148 : vector<64x32xf32>
    %150 = tpu.concatenate %146, %142, %149 in 1 : vector<64x32xf32>, vector<64x32xf32>, vector<64x32xf32> -> vector<64x96xf32>
    %c0_52 = arith.constant 0 : index
    %c0_53 = arith.constant 0 : index
    %151 = vector.load %arg11[%c0_52, %c0_53] : memref<96x32xf32, #tpu.memory_space<vmem>>, vector<96x32xf32>
    %cst_54 = arith.constant dense<0.000000e+00> : vector<64x32xf32>
    %152 = tpu.matmul %150, %151, %cst_54 {dimension_numbers = #tpu.dot_dimension_numbers<[1], [0], [0], [1], [0, 0, 1, 1], [], []>} : vector<64x96xf32>, vector<96x32xf32>, vector<64x32xf32> -> vector<64x32xf32>
    %153 = vector.broadcast %143 : vector<1x32xf32> to vector<64x32xf32>
    %154 = arith.addf %152, %153 : vector<64x32xf32>
    %cst_55 = arith.constant 0.000000e+00 : f32
    %155 = vector.broadcast %cst_55 : f32 to vector<64x32xf32>
    %156 = arith.maximumf %154, %155 : vector<64x32xf32>
    %c9 = arith.constant 9 : index
    %c0_56 = arith.constant 0 : index
    %157 = vector.load %arg18[%c9, %c0_56] : memref<32x128xf32, #tpu.memory_space<vmem>>, vector<1x32xf32>
    %c10 = arith.constant 10 : index
    %c0_57 = arith.constant 0 : index
    %158 = vector.load %arg18[%c10, %c0_57] : memref<32x128xf32, #tpu.memory_space<vmem>>, vector<1x32xf32>
    %cst_58 = arith.constant dense<0.000000e+00> : vector<64xf32>
    %159 = vector.multi_reduction <add>, %156, %cst_58 [1] : vector<64x32xf32> to vector<64xf32>
    %160 = vector.shape_cast %159 : vector<64xf32> to vector<64x1xf32>
    %cst_59 = arith.constant 3.200000e+01 : f32
    %161 = vector.broadcast %cst_59 : f32 to vector<64x1xf32>
    %162 = arith.divf %160, %161 : vector<64x1xf32>
    %163 = vector.broadcast %162 : vector<64x1xf32> to vector<64x32xf32>
    %164 = arith.subf %156, %163 : vector<64x32xf32>
    %165 = arith.mulf %164, %164 : vector<64x32xf32>
    %cst_60 = arith.constant dense<0.000000e+00> : vector<64xf32>
    %166 = vector.multi_reduction <add>, %165, %cst_60 [1] : vector<64x32xf32> to vector<64xf32>
    %167 = vector.shape_cast %166 : vector<64xf32> to vector<64x1xf32>
    %cst_61 = arith.constant 3.200000e+01 : f32
    %168 = vector.broadcast %cst_61 : f32 to vector<64x1xf32>
    %169 = arith.divf %167, %168 : vector<64x1xf32>
    %cst_62 = arith.constant 9.99999974E-6 : f32
    %170 = vector.broadcast %cst_62 : f32 to vector<64x1xf32>
    %171 = arith.addf %169, %170 : vector<64x1xf32>
    %172 = math.rsqrt %171 : vector<64x1xf32>
    %173 = vector.broadcast %172 : vector<64x1xf32> to vector<64x32xf32>
    %174 = arith.mulf %164, %173 : vector<64x32xf32>
    %175 = vector.broadcast %157 : vector<1x32xf32> to vector<64x32xf32>
    %176 = arith.mulf %174, %175 : vector<64x32xf32>
    %177 = vector.broadcast %158 : vector<1x32xf32> to vector<64x32xf32>
    %178 = arith.addf %176, %177 : vector<64x32xf32>
    %c11 = arith.constant 11 : index
    %c0_63 = arith.constant 0 : index
    %179 = vector.load %arg18[%c11, %c0_63] : memref<32x128xf32, #tpu.memory_space<vmem>>, vector<1x32xf32>
    %c1_i32_64 = arith.constant 1 : i32
    %180 = tpu.dynamic_rotate %178 by %c1_i32_64 dim 0 : vector<64x32xf32>, i32 -> vector<64x32xf32>
    %181 = vector.broadcast %7 : vector<64x1xf32> to vector<64x32xf32>
    %182 = arith.mulf %180, %181 : vector<64x32xf32>
    %c63_i32_65 = arith.constant 63 : i32
    %183 = tpu.dynamic_rotate %178 by %c63_i32_65 dim 0 : vector<64x32xf32>, i32 -> vector<64x32xf32>
    %184 = vector.broadcast %11 : vector<64x1xf32> to vector<64x32xf32>
    %185 = arith.mulf %183, %184 : vector<64x32xf32>
    %186 = tpu.concatenate %182, %178, %185 in 1 : vector<64x32xf32>, vector<64x32xf32>, vector<64x32xf32> -> vector<64x96xf32>
    %c0_66 = arith.constant 0 : index
    %c0_67 = arith.constant 0 : index
    %187 = vector.load %arg12[%c0_66, %c0_67] : memref<96x32xf32, #tpu.memory_space<vmem>>, vector<96x32xf32>
    %cst_68 = arith.constant dense<0.000000e+00> : vector<64x32xf32>
    %188 = tpu.matmul %186, %187, %cst_68 {dimension_numbers = #tpu.dot_dimension_numbers<[1], [0], [0], [1], [0, 0, 1, 1], [], []>} : vector<64x96xf32>, vector<96x32xf32>, vector<64x32xf32> -> vector<64x32xf32>
    %189 = vector.broadcast %179 : vector<1x32xf32> to vector<64x32xf32>
    %190 = arith.addf %188, %189 : vector<64x32xf32>
    %cst_69 = arith.constant 0.000000e+00 : f32
    %191 = vector.broadcast %cst_69 : f32 to vector<64x32xf32>
    %192 = arith.maximumf %190, %191 : vector<64x32xf32>
    %c12 = arith.constant 12 : index
    %c0_70 = arith.constant 0 : index
    %193 = vector.load %arg18[%c12, %c0_70] : memref<32x128xf32, #tpu.memory_space<vmem>>, vector<1x32xf32>
    %c13 = arith.constant 13 : index
    %c0_71 = arith.constant 0 : index
    %194 = vector.load %arg18[%c13, %c0_71] : memref<32x128xf32, #tpu.memory_space<vmem>>, vector<1x32xf32>
    %cst_72 = arith.constant dense<0.000000e+00> : vector<64xf32>
    %195 = vector.multi_reduction <add>, %192, %cst_72 [1] : vector<64x32xf32> to vector<64xf32>
    %196 = vector.shape_cast %195 : vector<64xf32> to vector<64x1xf32>
    %cst_73 = arith.constant 3.200000e+01 : f32
    %197 = vector.broadcast %cst_73 : f32 to vector<64x1xf32>
    %198 = arith.divf %196, %197 : vector<64x1xf32>
    %199 = vector.broadcast %198 : vector<64x1xf32> to vector<64x32xf32>
    %200 = arith.subf %192, %199 : vector<64x32xf32>
    %201 = arith.mulf %200, %200 : vector<64x32xf32>
    %cst_74 = arith.constant dense<0.000000e+00> : vector<64xf32>
    %202 = vector.multi_reduction <add>, %201, %cst_74 [1] : vector<64x32xf32> to vector<64xf32>
    %203 = vector.shape_cast %202 : vector<64xf32> to vector<64x1xf32>
    %cst_75 = arith.constant 3.200000e+01 : f32
    %204 = vector.broadcast %cst_75 : f32 to vector<64x1xf32>
    %205 = arith.divf %203, %204 : vector<64x1xf32>
    %cst_76 = arith.constant 9.99999974E-6 : f32
    %206 = vector.broadcast %cst_76 : f32 to vector<64x1xf32>
    %207 = arith.addf %205, %206 : vector<64x1xf32>
    %208 = math.rsqrt %207 : vector<64x1xf32>
    %209 = vector.broadcast %208 : vector<64x1xf32> to vector<64x32xf32>
    %210 = arith.mulf %200, %209 : vector<64x32xf32>
    %211 = vector.broadcast %193 : vector<1x32xf32> to vector<64x32xf32>
    %212 = arith.mulf %210, %211 : vector<64x32xf32>
    %213 = vector.broadcast %194 : vector<1x32xf32> to vector<64x32xf32>
    %214 = arith.addf %212, %213 : vector<64x32xf32>
    %c14 = arith.constant 14 : index
    %c0_77 = arith.constant 0 : index
    %215 = vector.load %arg18[%c14, %c0_77] : memref<32x128xf32, #tpu.memory_space<vmem>>, vector<1x32xf32>
    %cst_78 = arith.constant dense<0.000000e+00> : vector<1x64xf32>
    %216 = tpu.matmul %215, %214, %cst_78 {dimension_numbers = #tpu.dot_dimension_numbers<[1], [1], [0], [0], [0, 0, 1, 0], [], []>} : vector<1x32xf32>, vector<64x32xf32>, vector<1x64xf32> -> vector<1x64xf32>
    %c15 = arith.constant 15 : index
    %c0_79 = arith.constant 0 : index
    %217 = vector.load %arg18[%c15, %c0_79] : memref<32x128xf32, #tpu.memory_space<vmem>>, vector<1x1xf32>
    %218 = vector.broadcast %217 : vector<1x1xf32> to vector<1x64xf32>
    %219 = arith.addf %216, %218 : vector<1x64xf32>
    %220 = math.exp %219 : vector<1x64xf32>
    %cst_80 = arith.constant 5.000000e-01 : f32
    %221 = vector.broadcast %cst_80 : f32 to vector<1x64xf32>
    %222 = arith.subf %220, %221 : vector<1x64xf32>
    %223 = math.floor %222 : vector<1x64xf32>
    %cst_81 = arith.constant 1.000000e+00 : f32
    %cst_82 = arith.constant 3.000000e+00 : f32
    %224 = vector.broadcast %cst_81 : f32 to vector<1x64xf32>
    %225 = arith.maximumf %224, %223 : vector<1x64xf32>
    %226 = vector.broadcast %cst_82 : f32 to vector<1x64xf32>
    %227 = arith.minimumf %226, %225 : vector<1x64xf32>
    %c0_83 = arith.constant 0 : index
    %c0_84 = arith.constant 0 : index
    %228 = vector.load %arg5[%c0_83, %c0_84] : memref<64x64xf32, #tpu.memory_space<vmem>>, vector<64x64xf32>
    %cst_85 = arith.constant dense<0.000000e+00> : vector<1x64xf32>
    %229 = tpu.matmul %227, %228, %cst_85 {dimension_numbers = #tpu.dot_dimension_numbers<[1], [1], [0], [0], [0, 0, 1, 0], [], []>} : vector<1x64xf32>, vector<64x64xf32>, vector<1x64xf32> -> vector<1x64xf32>
    %230 = arith.subf %229, %227 : vector<1x64xf32>
    %c0_86 = arith.constant 0 : index
    %c0_87 = arith.constant 0 : index
    %231 = vector.load %arg6[%c0_86, %c0_87] : memref<128x64xf32, #tpu.memory_space<vmem>>, vector<128x64xf32>
    %232 = vector.broadcast %230 : vector<1x64xf32> to vector<128x64xf32>
    %233 = arith.cmpf oge, %231, %232 : vector<128x64xf32>
    %234 = arith.extui %233 : vector<128x64xi1> to vector<128x64xi32>
    %235 = arith.sitofp %234 : vector<128x64xi32> to vector<128x64xf32>
    %236 = vector.broadcast %229 : vector<1x64xf32> to vector<128x64xf32>
    %237 = arith.cmpf olt, %231, %236 : vector<128x64xf32>
    %238 = arith.extui %237 : vector<128x64xi1> to vector<128x64xi32>
    %239 = arith.sitofp %238 : vector<128x64xi32> to vector<128x64xf32>
    %240 = arith.mulf %235, %239 : vector<128x64xf32>
    %cst_88 = arith.constant dense<0.000000e+00> : vector<128xf32>
    %241 = vector.multi_reduction <add>, %240, %cst_88 [1] : vector<128x64xf32> to vector<128xf32>
    %242 = vector.shape_cast %241 : vector<128xf32> to vector<128x1xf32>
    %cst_89 = arith.constant dense<0.000000e+00> : vector<128x32xf32>
    %243 = tpu.matmul %240, %142, %cst_89 {dimension_numbers = #tpu.dot_dimension_numbers<[1], [0], [0], [1], [0, 0, 1, 1], [], []>} : vector<128x64xf32>, vector<64x32xf32>, vector<128x32xf32> -> vector<128x32xf32>
    %c0_90 = arith.constant 0 : index
    %c0_91 = arith.constant 0 : index
    %244 = vector.load %arg2[%c0_90, %c0_91] : memref<128x32xf32, #tpu.memory_space<vmem>>, vector<128x32xf32>
    %245 = vector.broadcast %242 : vector<128x1xf32> to vector<128x32xf32>
    %246 = arith.mulf %244, %245 : vector<128x32xf32>
    %247 = arith.addf %243, %246 : vector<128x32xf32>
    %cst_92 = arith.constant 1.000000e+00 : f32
    %248 = vector.broadcast %cst_92 : f32 to vector<128x1xf32>
    %cst_93 = arith.constant dense<0.000000e+00> : vector<128x128xf32>
    %249 = tpu.matmul %248, %242, %cst_93 {dimension_numbers = #tpu.dot_dimension_numbers<[1], [1], [0], [0], [0, 0, 1, 0], [], []>} : vector<128x1xf32>, vector<128x1xf32>, vector<128x128xf32> -> vector<128x128xf32>
    %c0_94 = arith.constant 0 : index
    %c0_95 = arith.constant 0 : index
    %250 = vector.load %arg4[%c0_94, %c0_95] : memref<128x128xf32, #tpu.memory_space<vmem>>, vector<128x128xf32>
    %cst_96 = arith.constant 1.000000e+00 : f32
    %251 = vector.broadcast %cst_96 : f32 to vector<128x128xf32>
    %252 = arith.subf %249, %251 : vector<128x128xf32>
    %cst_97 = arith.constant 1.000000e+09 : f32
    %253 = vector.broadcast %cst_97 : f32 to vector<128x128xf32>
    %254 = arith.mulf %252, %253 : vector<128x128xf32>
    %255 = arith.addf %250, %254 : vector<128x128xf32>
    %c16 = arith.constant 16 : index
    %c0_98 = arith.constant 0 : index
    %256 = vector.load %arg18[%c16, %c0_98] : memref<32x128xf32, #tpu.memory_space<vmem>>, vector<1x96xf32>
    %c17 = arith.constant 17 : index
    %c0_99 = arith.constant 0 : index
    %257 = vector.load %arg18[%c17, %c0_99] : memref<32x128xf32, #tpu.memory_space<vmem>>, vector<1x32xf32>
    %c0_100 = arith.constant 0 : index
    %c0_101 = arith.constant 0 : index
    %258 = vector.load %arg13[%c0_100, %c0_101] : memref<32x96xf32, #tpu.memory_space<vmem>>, vector<32x96xf32>
    %cst_102 = arith.constant dense<0.000000e+00> : vector<128x96xf32>
    %259 = tpu.matmul %247, %258, %cst_102 {dimension_numbers = #tpu.dot_dimension_numbers<[1], [0], [0], [1], [0, 0, 1, 1], [], []>} : vector<128x32xf32>, vector<32x96xf32>, vector<128x96xf32> -> vector<128x96xf32>
    %260 = vector.broadcast %256 : vector<1x96xf32> to vector<128x96xf32>
    %261 = arith.addf %259, %260 : vector<128x96xf32>
    %262 = vector.extract_strided_slice %261 {offsets = [0, 0], sizes = [128, 16], strides = [1, 1]} : vector<128x96xf32> to vector<128x16xf32>
    %263 = vector.extract_strided_slice %261 {offsets = [0, 32], sizes = [128, 16], strides = [1, 1]} : vector<128x96xf32> to vector<128x16xf32>
    %264 = vector.extract_strided_slice %261 {offsets = [0, 64], sizes = [128, 16], strides = [1, 1]} : vector<128x96xf32> to vector<128x16xf32>
    %cst_103 = arith.constant dense<0.000000e+00> : vector<128x128xf32>
    %265 = tpu.matmul %262, %263, %cst_103 {dimension_numbers = #tpu.dot_dimension_numbers<[1], [1], [0], [0], [0, 0, 1, 0], [], []>} : vector<128x16xf32>, vector<128x16xf32>, vector<128x128xf32> -> vector<128x128xf32>
    %cst_104 = arith.constant 2.500000e-01 : f32
    %266 = vector.broadcast %cst_104 : f32 to vector<128x128xf32>
    %267 = arith.mulf %265, %266 : vector<128x128xf32>
    %268 = arith.addf %267, %255 : vector<128x128xf32>
    %cst_105 = arith.constant dense<0xFF800000> : vector<128xf32>
    %269 = vector.multi_reduction <maximumf>, %268, %cst_105 [1] : vector<128x128xf32> to vector<128xf32>
    %270 = vector.shape_cast %269 : vector<128xf32> to vector<128x1xf32>
    %271 = vector.broadcast %270 : vector<128x1xf32> to vector<128x128xf32>
    %272 = arith.subf %268, %271 : vector<128x128xf32>
    %273 = math.exp %272 : vector<128x128xf32>
    %cst_106 = arith.constant dense<0.000000e+00> : vector<128xf32>
    %274 = vector.multi_reduction <add>, %273, %cst_106 [1] : vector<128x128xf32> to vector<128xf32>
    %275 = vector.shape_cast %274 : vector<128xf32> to vector<128x1xf32>
    %276 = tpu.reciprocal %275 {approx = true} : vector<128x1xf32> -> vector<128x1xf32>
    %277 = vector.broadcast %276 : vector<128x1xf32> to vector<128x128xf32>
    %278 = arith.mulf %273, %277 : vector<128x128xf32>
    %cst_107 = arith.constant dense<0.000000e+00> : vector<128x16xf32>
    %279 = tpu.matmul %278, %264, %cst_107 {dimension_numbers = #tpu.dot_dimension_numbers<[1], [0], [0], [1], [0, 0, 1, 1], [], []>} : vector<128x128xf32>, vector<128x16xf32>, vector<128x16xf32> -> vector<128x16xf32>
    %280 = vector.extract_strided_slice %261 {offsets = [0, 16], sizes = [128, 16], strides = [1, 1]} : vector<128x96xf32> to vector<128x16xf32>
    %281 = vector.extract_strided_slice %261 {offsets = [0, 48], sizes = [128, 16], strides = [1, 1]} : vector<128x96xf32> to vector<128x16xf32>
    %282 = vector.extract_strided_slice %261 {offsets = [0, 80], sizes = [128, 16], strides = [1, 1]} : vector<128x96xf32> to vector<128x16xf32>
    %cst_108 = arith.constant dense<0.000000e+00> : vector<128x128xf32>
    %283 = tpu.matmul %280, %281, %cst_108 {dimension_numbers = #tpu.dot_dimension_numbers<[1], [1], [0], [0], [0, 0, 1, 0], [], []>} : vector<128x16xf32>, vector<128x16xf32>, vector<128x128xf32> -> vector<128x128xf32>
    %cst_109 = arith.constant 2.500000e-01 : f32
    %284 = vector.broadcast %cst_109 : f32 to vector<128x128xf32>
    %285 = arith.mulf %283, %284 : vector<128x128xf32>
    %286 = arith.addf %285, %255 : vector<128x128xf32>
    %cst_110 = arith.constant dense<0xFF800000> : vector<128xf32>
    %287 = vector.multi_reduction <maximumf>, %286, %cst_110 [1] : vector<128x128xf32> to vector<128xf32>
    %288 = vector.shape_cast %287 : vector<128xf32> to vector<128x1xf32>
    %289 = vector.broadcast %288 : vector<128x1xf32> to vector<128x128xf32>
    %290 = arith.subf %286, %289 : vector<128x128xf32>
    %291 = math.exp %290 : vector<128x128xf32>
    %cst_111 = arith.constant dense<0.000000e+00> : vector<128xf32>
    %292 = vector.multi_reduction <add>, %291, %cst_111 [1] : vector<128x128xf32> to vector<128xf32>
    %293 = vector.shape_cast %292 : vector<128xf32> to vector<128x1xf32>
    %294 = tpu.reciprocal %293 {approx = true} : vector<128x1xf32> -> vector<128x1xf32>
    %295 = vector.broadcast %294 : vector<128x1xf32> to vector<128x128xf32>
    %296 = arith.mulf %291, %295 : vector<128x128xf32>
    %cst_112 = arith.constant dense<0.000000e+00> : vector<128x16xf32>
    %297 = tpu.matmul %296, %282, %cst_112 {dimension_numbers = #tpu.dot_dimension_numbers<[1], [0], [0], [1], [0, 0, 1, 1], [], []>} : vector<128x128xf32>, vector<128x16xf32>, vector<128x16xf32> -> vector<128x16xf32>
    %298 = tpu.concatenate %279, %297 in 1 : vector<128x16xf32>, vector<128x16xf32> -> vector<128x32xf32>
    %c0_113 = arith.constant 0 : index
    %c0_114 = arith.constant 0 : index
    %299 = vector.load %arg14[%c0_113, %c0_114] : memref<32x32xf32, #tpu.memory_space<vmem>>, vector<32x32xf32>
    %cst_115 = arith.constant dense<0.000000e+00> : vector<128x32xf32>
    %300 = tpu.matmul %298, %299, %cst_115 {dimension_numbers = #tpu.dot_dimension_numbers<[1], [0], [0], [1], [0, 0, 1, 1], [], []>} : vector<128x32xf32>, vector<32x32xf32>, vector<128x32xf32> -> vector<128x32xf32>
    %301 = vector.broadcast %257 : vector<1x32xf32> to vector<128x32xf32>
    %302 = arith.addf %300, %301 : vector<128x32xf32>
    %303 = arith.addf %302, %247 : vector<128x32xf32>
    %c18 = arith.constant 18 : index
    %c0_116 = arith.constant 0 : index
    %304 = vector.load %arg18[%c18, %c0_116] : memref<32x128xf32, #tpu.memory_space<vmem>>, vector<1x32xf32>
    %c19 = arith.constant 19 : index
    %c0_117 = arith.constant 0 : index
    %305 = vector.load %arg18[%c19, %c0_117] : memref<32x128xf32, #tpu.memory_space<vmem>>, vector<1x32xf32>
    %cst_118 = arith.constant dense<0.000000e+00> : vector<128xf32>
    %306 = vector.multi_reduction <add>, %303, %cst_118 [1] : vector<128x32xf32> to vector<128xf32>
    %307 = vector.shape_cast %306 : vector<128xf32> to vector<128x1xf32>
    %cst_119 = arith.constant 3.200000e+01 : f32
    %308 = vector.broadcast %cst_119 : f32 to vector<128x1xf32>
    %309 = arith.divf %307, %308 : vector<128x1xf32>
    %310 = vector.broadcast %309 : vector<128x1xf32> to vector<128x32xf32>
    %311 = arith.subf %303, %310 : vector<128x32xf32>
    %312 = arith.mulf %311, %311 : vector<128x32xf32>
    %cst_120 = arith.constant dense<0.000000e+00> : vector<128xf32>
    %313 = vector.multi_reduction <add>, %312, %cst_120 [1] : vector<128x32xf32> to vector<128xf32>
    %314 = vector.shape_cast %313 : vector<128xf32> to vector<128x1xf32>
    %cst_121 = arith.constant 3.200000e+01 : f32
    %315 = vector.broadcast %cst_121 : f32 to vector<128x1xf32>
    %316 = arith.divf %314, %315 : vector<128x1xf32>
    %cst_122 = arith.constant 9.99999974E-6 : f32
    %317 = vector.broadcast %cst_122 : f32 to vector<128x1xf32>
    %318 = arith.addf %316, %317 : vector<128x1xf32>
    %319 = math.rsqrt %318 : vector<128x1xf32>
    %320 = vector.broadcast %319 : vector<128x1xf32> to vector<128x32xf32>
    %321 = arith.mulf %311, %320 : vector<128x32xf32>
    %322 = vector.broadcast %304 : vector<1x32xf32> to vector<128x32xf32>
    %323 = arith.mulf %321, %322 : vector<128x32xf32>
    %324 = vector.broadcast %305 : vector<1x32xf32> to vector<128x32xf32>
    %325 = arith.addf %323, %324 : vector<128x32xf32>
    %c20 = arith.constant 20 : index
    %c0_123 = arith.constant 0 : index
    %326 = vector.load %arg18[%c20, %c0_123] : memref<32x128xf32, #tpu.memory_space<vmem>>, vector<1x64xf32>
    %c1_i32_124 = arith.constant 1 : i32
    %327 = tpu.dynamic_rotate %325 by %c1_i32_124 dim 0 : vector<128x32xf32>, i32 -> vector<128x32xf32>
    %328 = vector.broadcast %18 : vector<128x1xf32> to vector<128x32xf32>
    %329 = arith.mulf %327, %328 : vector<128x32xf32>
    %c127_i32 = arith.constant 127 : i32
    %330 = tpu.dynamic_rotate %325 by %c127_i32 dim 0 : vector<128x32xf32>, i32 -> vector<128x32xf32>
    %331 = vector.broadcast %22 : vector<128x1xf32> to vector<128x32xf32>
    %332 = arith.mulf %330, %331 : vector<128x32xf32>
    %333 = tpu.concatenate %329, %325, %332 in 1 : vector<128x32xf32>, vector<128x32xf32>, vector<128x32xf32> -> vector<128x96xf32>
    %c0_125 = arith.constant 0 : index
    %c0_126 = arith.constant 0 : index
    %334 = vector.load %arg15[%c0_125, %c0_126] : memref<96x64xf32, #tpu.memory_space<vmem>>, vector<96x64xf32>
    %cst_127 = arith.constant dense<0.000000e+00> : vector<128x64xf32>
    %335 = tpu.matmul %333, %334, %cst_127 {dimension_numbers = #tpu.dot_dimension_numbers<[1], [0], [0], [1], [0, 0, 1, 1], [], []>} : vector<128x96xf32>, vector<96x64xf32>, vector<128x64xf32> -> vector<128x64xf32>
    %336 = vector.broadcast %326 : vector<1x64xf32> to vector<128x64xf32>
    %337 = arith.addf %335, %336 : vector<128x64xf32>
    %cst_128 = arith.constant 0.000000e+00 : f32
    %338 = vector.broadcast %cst_128 : f32 to vector<128x64xf32>
    %339 = arith.maximumf %337, %338 : vector<128x64xf32>
    %c21 = arith.constant 21 : index
    %c0_129 = arith.constant 0 : index
    %340 = vector.load %arg18[%c21, %c0_129] : memref<32x128xf32, #tpu.memory_space<vmem>>, vector<1x32xf32>
    %c1_i32_130 = arith.constant 1 : i32
    %341 = tpu.dynamic_rotate %339 by %c1_i32_130 dim 0 : vector<128x64xf32>, i32 -> vector<128x64xf32>
    %342 = vector.broadcast %18 : vector<128x1xf32> to vector<128x64xf32>
    %343 = arith.mulf %341, %342 : vector<128x64xf32>
    %c127_i32_131 = arith.constant 127 : i32
    %344 = tpu.dynamic_rotate %339 by %c127_i32_131 dim 0 : vector<128x64xf32>, i32 -> vector<128x64xf32>
    %345 = vector.broadcast %22 : vector<128x1xf32> to vector<128x64xf32>
    %346 = arith.mulf %344, %345 : vector<128x64xf32>
    %347 = tpu.concatenate %343, %339, %346 in 1 : vector<128x64xf32>, vector<128x64xf32>, vector<128x64xf32> -> vector<128x192xf32>
    %c0_132 = arith.constant 0 : index
    %c0_133 = arith.constant 0 : index
    %348 = vector.load %arg16[%c0_132, %c0_133] : memref<192x32xf32, #tpu.memory_space<vmem>>, vector<192x32xf32>
    %cst_134 = arith.constant dense<0.000000e+00> : vector<128x32xf32>
    %349 = tpu.matmul %347, %348, %cst_134 {dimension_numbers = #tpu.dot_dimension_numbers<[1], [0], [0], [1], [0, 0, 1, 1], [], []>} : vector<128x192xf32>, vector<192x32xf32>, vector<128x32xf32> -> vector<128x32xf32>
    %350 = vector.broadcast %340 : vector<1x32xf32> to vector<128x32xf32>
    %351 = arith.addf %349, %350 : vector<128x32xf32>
    %352 = arith.addf %351, %325 : vector<128x32xf32>
    %c22 = arith.constant 22 : index
    %c0_135 = arith.constant 0 : index
    %353 = vector.load %arg18[%c22, %c0_135] : memref<32x128xf32, #tpu.memory_space<vmem>>, vector<1x32xf32>
    %c23 = arith.constant 23 : index
    %c0_136 = arith.constant 0 : index
    %354 = vector.load %arg18[%c23, %c0_136] : memref<32x128xf32, #tpu.memory_space<vmem>>, vector<1x32xf32>
    %cst_137 = arith.constant dense<0.000000e+00> : vector<128xf32>
    %355 = vector.multi_reduction <add>, %352, %cst_137 [1] : vector<128x32xf32> to vector<128xf32>
    %356 = vector.shape_cast %355 : vector<128xf32> to vector<128x1xf32>
    %cst_138 = arith.constant 3.200000e+01 : f32
    %357 = vector.broadcast %cst_138 : f32 to vector<128x1xf32>
    %358 = arith.divf %356, %357 : vector<128x1xf32>
    %359 = vector.broadcast %358 : vector<128x1xf32> to vector<128x32xf32>
    %360 = arith.subf %352, %359 : vector<128x32xf32>
    %361 = arith.mulf %360, %360 : vector<128x32xf32>
    %cst_139 = arith.constant dense<0.000000e+00> : vector<128xf32>
    %362 = vector.multi_reduction <add>, %361, %cst_139 [1] : vector<128x32xf32> to vector<128xf32>
    %363 = vector.shape_cast %362 : vector<128xf32> to vector<128x1xf32>
    %cst_140 = arith.constant 3.200000e+01 : f32
    %364 = vector.broadcast %cst_140 : f32 to vector<128x1xf32>
    %365 = arith.divf %363, %364 : vector<128x1xf32>
    %cst_141 = arith.constant 9.99999974E-6 : f32
    %366 = vector.broadcast %cst_141 : f32 to vector<128x1xf32>
    %367 = arith.addf %365, %366 : vector<128x1xf32>
    %368 = math.rsqrt %367 : vector<128x1xf32>
    %369 = vector.broadcast %368 : vector<128x1xf32> to vector<128x32xf32>
    %370 = arith.mulf %360, %369 : vector<128x32xf32>
    %371 = vector.broadcast %353 : vector<1x32xf32> to vector<128x32xf32>
    %372 = arith.mulf %370, %371 : vector<128x32xf32>
    %373 = vector.broadcast %354 : vector<1x32xf32> to vector<128x32xf32>
    %374 = arith.addf %372, %373 : vector<128x32xf32>
    %c0_142 = arith.constant 0 : index
    %c0_143 = arith.constant 0 : index
    %375 = vector.load %arg17[%c0_142, %c0_143] : memref<32x16xf32, #tpu.memory_space<vmem>>, vector<32x16xf32>
    %cst_144 = arith.constant dense<0.000000e+00> : vector<128x16xf32>
    %376 = tpu.matmul %374, %375, %cst_144 {dimension_numbers = #tpu.dot_dimension_numbers<[1], [0], [0], [1], [0, 0, 1, 1], [], []>} : vector<128x32xf32>, vector<32x16xf32>, vector<128x16xf32> -> vector<128x16xf32>
    %c24 = arith.constant 24 : index
    %c0_145 = arith.constant 0 : index
    %377 = vector.load %arg18[%c24, %c0_145] : memref<32x128xf32, #tpu.memory_space<vmem>>, vector<1x16xf32>
    %378 = vector.broadcast %377 : vector<1x16xf32> to vector<128x16xf32>
    %379 = arith.addf %376, %378 : vector<128x16xf32>
    %380 = vector.broadcast %242 : vector<128x1xf32> to vector<128x16xf32>
    %381 = arith.mulf %379, %380 : vector<128x16xf32>
    %c0_146 = arith.constant 0 : index
    %c0_147 = arith.constant 0 : index
    %382 = vector.load %arg19[%c0_146, %c0_147] : memref<128x16xf32, #tpu.memory_space<vmem>>, vector<128x16xf32>
    tpu.vector_store %arg19[%c0_146, %c0_147], %381 {strides = array<i32>} : memref<128x16xf32, #tpu.memory_space<vmem>>, vector<128x16xf32>,
    return
  }
  func.func @transform_0(%arg0: i32) -> (i32, i32) {
    %c0_i32 = arith.constant 0 : i32
    %c0_i32_0 = arith.constant 0 : i32
    return %arg0, %c0_i32 : i32, i32
  }
  func.func @transform_1(%arg0: i32) -> (i32, i32) {
    %c0_i32 = arith.constant 0 : i32
    %c0_i32_0 = arith.constant 0 : i32
    %c0_i32_1 = arith.constant 0 : i32
    return %c0_i32, %c0_i32_0 : i32, i32
  }
  func.func @transform_2(%arg0: i32) -> (i32, i32) {
    %c0_i32 = arith.constant 0 : i32
    %c0_i32_0 = arith.constant 0 : i32
    %c0_i32_1 = arith.constant 0 : i32
    return %c0_i32, %c0_i32_0 : i32, i32
  }
  func.func @transform_3(%arg0: i32) -> (i32, i32) {
    %c0_i32 = arith.constant 0 : i32
    %c0_i32_0 = arith.constant 0 : i32
    %c0_i32_1 = arith.constant 0 : i32
    return %c0_i32, %c0_i32_0 : i32, i32
  }
  func.func @transform_4(%arg0: i32) -> (i32, i32) {
    %c0_i32 = arith.constant 0 : i32
    %c0_i32_0 = arith.constant 0 : i32
    %c0_i32_1 = arith.constant 0 : i32
    return %c0_i32, %c0_i32_0 : i32, i32
  }
  func.func @transform_5(%arg0: i32) -> (i32, i32) {
    %c0_i32 = arith.constant 0 : i32
    %c0_i32_0 = arith.constant 0 : i32
    %c0_i32_1 = arith.constant 0 : i32
    return %c0_i32, %c0_i32_0 : i32, i32
  }
  func.func @transform_6(%arg0: i32) -> (i32, i32) {
    %c0_i32 = arith.constant 0 : i32
    %c0_i32_0 = arith.constant 0 : i32
    %c0_i32_1 = arith.constant 0 : i32
    return %c0_i32, %c0_i32_0 : i32, i32
  }
  func.func @transform_7(%arg0: i32) -> (i32, i32) {
    %c0_i32 = arith.constant 0 : i32
    %c0_i32_0 = arith.constant 0 : i32
    %c0_i32_1 = arith.constant 0 : i32
    return %c0_i32, %c0_i32_0 : i32, i32
  }
  func.func @transform_8(%arg0: i32) -> (i32, i32) {
    %c0_i32 = arith.constant 0 : i32
    %c0_i32_0 = arith.constant 0 : i32
    %c0_i32_1 = arith.constant 0 : i32
    return %c0_i32, %c0_i32_0 : i32, i32
  }
  func.func @transform_9(%arg0: i32) -> (i32, i32) {
    %c0_i32 = arith.constant 0 : i32
    %c0_i32_0 = arith.constant 0 : i32
    %c0_i32_1 = arith.constant 0 : i32
    return %c0_i32, %c0_i32_0 : i32, i32
  }
  func.func @transform_10(%arg0: i32) -> (i32, i32) {
    %c0_i32 = arith.constant 0 : i32
    %c0_i32_0 = arith.constant 0 : i32
    %c0_i32_1 = arith.constant 0 : i32
    return %c0_i32, %c0_i32_0 : i32, i32
  }
  func.func @transform_11(%arg0: i32) -> (i32, i32) {
    %c0_i32 = arith.constant 0 : i32
    %c0_i32_0 = arith.constant 0 : i32
    %c0_i32_1 = arith.constant 0 : i32
    return %c0_i32, %c0_i32_0 : i32, i32
  }
  func.func @transform_12(%arg0: i32) -> (i32, i32) {
    %c0_i32 = arith.constant 0 : i32
    %c0_i32_0 = arith.constant 0 : i32
    %c0_i32_1 = arith.constant 0 : i32
    return %c0_i32, %c0_i32_0 : i32, i32
  }
  func.func @transform_13(%arg0: i32) -> (i32, i32) {
    %c0_i32 = arith.constant 0 : i32
    %c0_i32_0 = arith.constant 0 : i32
    %c0_i32_1 = arith.constant 0 : i32
    return %c0_i32, %c0_i32_0 : i32, i32
  }
  func.func @transform_14(%arg0: i32) -> (i32, i32) {
    %c0_i32 = arith.constant 0 : i32
    %c0_i32_0 = arith.constant 0 : i32
    %c0_i32_1 = arith.constant 0 : i32
    return %c0_i32, %c0_i32_0 : i32, i32
  }
  func.func @transform_15(%arg0: i32) -> (i32, i32) {
    %c0_i32 = arith.constant 0 : i32
    %c0_i32_0 = arith.constant 0 : i32
    %c0_i32_1 = arith.constant 0 : i32
    return %c0_i32, %c0_i32_0 : i32, i32
  }
  func.func @transform_16(%arg0: i32) -> (i32, i32) {
    %c0_i32 = arith.constant 0 : i32
    %c0_i32_0 = arith.constant 0 : i32
    %c0_i32_1 = arith.constant 0 : i32
    return %c0_i32, %c0_i32_0 : i32, i32
  }
  func.func @transform_17(%arg0: i32) -> (i32, i32) {
    %c0_i32 = arith.constant 0 : i32
    %c0_i32_0 = arith.constant 0 : i32
    %c0_i32_1 = arith.constant 0 : i32
    return %c0_i32, %c0_i32_0 : i32, i32
  }
  func.func @transform_18(%arg0: i32) -> (i32, i32) {
    %c0_i32 = arith.constant 0 : i32
    %c0_i32_0 = arith.constant 0 : i32
    return %arg0, %c0_i32 : i32, i32
  }
}

</mosaic_0001>

<llo_original>
// kernel: fastspeech_forward.1
$region0: #{fastspeech_forward.1}
  #allocation0 [shape = 'u32[]', space=smem, size = 0x4, offset = 0x4, fixed_abs, tag = 'smem constant byte address 0x4 - core index']
  #allocation1 [shape = 'u32[144,128]{1,0:T(1,128)}', space=vmem, size = 0x12000, scoped, tag = 'internal scratch']
  %s0 = inlined_call_operand.vmem [shape: f32[64,32], index: 0, kind: input, shape index: {}]
  %s1 = inlined_call_operand.vmem [shape: f32[128,32], index: 1, kind: input, shape index: {}]
  %s2 = inlined_call_operand.vmem [shape: f32[64,64], index: 2, kind: input, shape index: {}]
  %s3 = inlined_call_operand.vmem [shape: f32[128,128], index: 3, kind: input, shape index: {}]
  %s4 = inlined_call_operand.vmem [shape: f32[64,64], index: 4, kind: input, shape index: {}]
  %s5 = inlined_call_operand.vmem [shape: f32[128,64], index: 5, kind: input, shape index: {}]
  %s6 = inlined_call_operand.vmem [shape: f32[32,96], index: 6, kind: input, shape index: {}]
  %s7 = inlined_call_operand.vmem [shape: f32[32,32], index: 7, kind: input, shape index: {}]
  %s8 = inlined_call_operand.vmem [shape: f32[96,64], index: 8, kind: input, shape index: {}]
  %s9 = inlined_call_operand.vmem [shape: f32[192,32], index: 9, kind: input, shape index: {}]
  %s10 = inlined_call_operand.vmem [shape: f32[96,32], index: 10, kind: input, shape index: {}]
  %s11 = inlined_call_operand.vmem [shape: f32[96,32], index: 11, kind: input, shape index: {}]
  %s12 = inlined_call_operand.vmem [shape: f32[32,96], index: 12, kind: input, shape index: {}]
  %s13 = inlined_call_operand.vmem [shape: f32[32,32], index: 13, kind: input, shape index: {}]
  %s14 = inlined_call_operand.vmem [shape: f32[96,64], index: 14, kind: input, shape index: {}]
  %s15 = inlined_call_operand.vmem [shape: f32[192,32], index: 15, kind: input, shape index: {}]
  %s16 = inlined_call_operand.vmem [shape: f32[32,16], index: 16, kind: input, shape index: {}]
  %s17 = inlined_call_operand.vmem [shape: f32[32,128], index: 17, kind: input, shape index: {}]
  %s18 = inlined_call_operand.vmem [shape: f32[128,16], index: 18, kind: output, shape index: {}]
  %s19 = sld [smem:[#allocation0]]
  $region82: #{fastspeech_forward.1} parent=0
    _
  %s21 = ssub.s32 1, %s19
  %s22 = scalar_select 0, %s21, %s19
  // Predicated region
  $region2: #{fastspeech_forward.1} parent=0 // pred_check
    _
  $region3: #{fastspeech_forward.1} parent=0 // pred_check_branch
    %24 = sbr.rel (0) target = $region5
  $region4: #{fastspeech_forward.1} parent=0 // pred_region
    _
  $region5: #{fastspeech_forward.1} parent=0 // pred_fallthru
    _
  // Predicated region
  $region6: #{fastspeech_forward.1} parent=0 // pred_check
    _
  $region7: #{fastspeech_forward.1} parent=0 // pred_check_branch
    %26 = sbr.rel (0) target = $region9
  $region8: #{fastspeech_forward.1} parent=0 // pred_region
    _
  $region9: #{fastspeech_forward.1} parent=0 // pred_fallthru
    _
  // Predicated region
  $region10: #{fastspeech_forward.1} parent=0 // pred_check
    _
  $region11: #{fastspeech_forward.1} parent=0 // pred_check_branch
    %28 = sbr.rel (0) target = $region13
  $region12: #{fastspeech_forward.1} parent=0 // pred_region
    _
  $region13: #{fastspeech_forward.1} parent=0 // pred_fallthru
    _
  // Predicated region
  $region14: #{fastspeech_forward.1} parent=0 // pred_check
    _
  $region15: #{fastspeech_forward.1} parent=0 // pred_check_branch
    %30 = sbr.rel (0) target = $region17
  $region16: #{fastspeech_forward.1} parent=0 // pred_region
    _
  $region17: #{fastspeech_forward.1} parent=0 // pred_fallthru
    _
  // Predicated region
  $region18: #{fastspeech_forward.1} parent=0 // pred_check
    _
  $region19: #{fastspeech_forward.1} parent=0 // pred_check_branch
    %32 = sbr.rel (0) target = $region21
  $region20: #{fastspeech_forward.1} parent=0 // pred_region
    _
  $region21: #{fastspeech_forward.1} parent=0 // pred_fallthru
    _
  // Predicated region
  $region22: #{fastspeech_forward.1} parent=0 // pred_check
    _
  $region23: #{fastspeech_forward.1} parent=0 // pred_check_branch
    %34 = sbr.rel (0) target = $region25
  $region24: #{fastspeech_forward.1} parent=0 // pred_region
    _
  $region25: #{fastspeech_forward.1} parent=0 // pred_fallthru
    _
  // Predicated region
  $region26: #{fastspeech_forward.1} parent=0 // pred_check
    _
  $region27: #{fastspeech_forward.1} parent=0 // pred_check_branch
    %36 = sbr.rel (0) target = $region29
  $region28: #{fastspeech_forward.1} parent=0 // pred_region
    _
  $region29: #{fastspeech_forward.1} parent=0 // pred_fallthru
    _
  // Predicated region
  $region30: #{fastspeech_forward.1} parent=0 // pred_check
    _
  $region31: #{fastspeech_forward.1} parent=0 // pred_check_branch
    %38 = sbr.rel (0) target = $region33
  $region32: #{fastspeech_forward.1} parent=0 // pred_region
    _
  $region33: #{fastspeech_forward.1} parent=0 // pred_fallthru
    _
  // Predicated region
  $region34: #{fastspeech_forward.1} parent=0 // pred_check
    _
  $region35: #{fastspeech_forward.1} parent=0 // pred_check_branch
    %40 = sbr.rel (0) target = $region37
  $region36: #{fastspeech_forward.1} parent=0 // pred_region
    _
  $region37: #{fastspeech_forward.1} parent=0 // pred_fallthru
    _
  // Predicated region
  $region38: #{fastspeech_forward.1} parent=0 // pred_check
    _
  $region39: #{fastspeech_forward.1} parent=0 // pred_check_branch
    %42 = sbr.rel (0) target = $region41
  $region40: #{fastspeech_forward.1} parent=0 // pred_region
    _
  $region41: #{fastspeech_forward.1} parent=0 // pred_fallthru
    _
  // Predicated region
  $region42: #{fastspeech_forward.1} parent=0 // pred_check
    _
  $region43: #{fastspeech_forward.1} parent=0 // pred_check_branch
    %44 = sbr.rel (0) target = $region45
  $region44: #{fastspeech_forward.1} parent=0 // pred_region
    _
  $region45: #{fastspeech_forward.1} parent=0 // pred_fallthru
    _
  // Predicated region
  $region46: #{fastspeech_forward.1} parent=0 // pred_check
    _
  $region47: #{fastspeech_forward.1} parent=0 // pred_check_branch
    %46 = sbr.rel (0) target = $region49
  $region48: #{fastspeech_forward.1} parent=0 // pred_region
    _
  $region49: #{fastspeech_forward.1} parent=0 // pred_fallthru
    _
  // Predicated region
  $region50: #{fastspeech_forward.1} parent=0 // pred_check
    _
  $region51: #{fastspeech_forward.1} parent=0 // pred_check_branch
    %48 = sbr.rel (0) target = $region53
  $region52: #{fastspeech_forward.1} parent=0 // pred_region
    _
  $region53: #{fastspeech_forward.1} parent=0 // pred_fallthru
    _
  // Predicated region
  $region54: #{fastspeech_forward.1} parent=0 // pred_check
    _
  $region55: #{fastspeech_forward.1} parent=0 // pred_check_branch
    %50 = sbr.rel (0) target = $region57
  $region56: #{fastspeech_forward.1} parent=0 // pred_region
    _
  $region57: #{fastspeech_forward.1} parent=0 // pred_fallthru
    _
  // Predicated region
  $region58: #{fastspeech_forward.1} parent=0 // pred_check
    _
  $region59: #{fastspeech_forward.1} parent=0 // pred_check_branch
    %52 = sbr.rel (0) target = $region61
  $region60: #{fastspeech_forward.1} parent=0 // pred_region
    _
  $region61: #{fastspeech_forward.1} parent=0 // pred_fallthru
    _
  // Predicated region
  $region62: #{fastspeech_forward.1} parent=0 // pred_check
    _
  $region63: #{fastspeech_forward.1} parent=0 // pred_check_branch
    %54 = sbr.rel (0) target = $region65
  $region64: #{fastspeech_forward.1} parent=0 // pred_region
    _
  $region65: #{fastspeech_forward.1} parent=0 // pred_fallthru
    _
  // Predicated region
  $region66: #{fastspeech_forward.1} parent=0 // pred_check
    _
  $region67: #{fastspeech_forward.1} parent=0 // pred_check_branch
    %56 = sbr.rel (0) target = $region69
  $region68: #{fastspeech_forward.1} parent=0 // pred_region
    _
  $region69: #{fastspeech_forward.1} parent=0 // pred_fallthru
    _
  // Predicated region
  $region70: #{fastspeech_forward.1} parent=0 // pred_check
    _
  $region71: #{fastspeech_forward.1} parent=0 // pred_check_branch
    %58 = sbr.rel (0) target = $region73
  $region72: #{fastspeech_forward.1} parent=0 // pred_region
    _
  $region73: #{fastspeech_forward.1} parent=0 // pred_fallthru
    _
  %v59 = vld [vmem:[%s0] sm:$0xff]
  %v60 = vld [vmem:[%s0 + $0x8] sm:$0xff]
  %v61 = vld [vmem:[%s0 + $0x10] sm:$0xff]
  %v62 = vld [vmem:[%s0 + $0x18] sm:$0xff]
  %v63 = vld [vmem:[%s0 + $0x20] sm:$0xff]
  %v64 = vld [vmem:[%s0 + $0x28] sm:$0xff]
  %v65 = vld [vmem:[%s0 + $0x30] sm:$0xff]
  %v66 = vld [vmem:[%s0 + $0x38] sm:$0xff]
  %v67 = vlaneseq
  %v68 = vshrl.u32 %v67, 7
  %v69 = vadd.s32 %v68, 8
  %v70 = vadd.s32 %v68, 16
  %v71 = vadd.s32 %v68, 24
  %v72 = vadd.s32 %v68, 32
  %v73 = vadd.s32 %v68, 40
  %v74 = vadd.s32 %v68, 48
  %v75 = vadd.s32 %v68, 56
  %v76 = vand.u32 %v68, 7
  %v77 = vand.u32 %v69, 7
  %v78 = vand.u32 %v70, 7
  %v79 = vand.u32 %v71, 7
  %v80 = vand.u32 %v72, 7
  %v81 = vand.u32 %v73, 7
  %v82 = vand.u32 %v74, 7
  %v83 = vand.u32 %v75, 7
  %vm84 = vcmp.ne.s32.totalorder %v76, 0
  %vm85 = vcmp.ne.s32.totalorder %v77, 0
  %vm86 = vcmp.ne.s32.totalorder %v78, 0
  %vm87 = vcmp.ne.s32.totalorder %v79, 0
  %vm88 = vcmp.ne.s32.totalorder %v80, 0
  %vm89 = vcmp.ne.s32.totalorder %v81, 0
  %vm90 = vcmp.ne.s32.totalorder %v82, 0
  %vm91 = vcmp.ne.s32.totalorder %v83, 0
  %v92 = vsel %vm84, 1, 0
  %v93 = vsel %vm85, 1, 0
  %v94 = vsel %vm86, 1, 0
  %v95 = vsel %vm87, 1, 0
  %v96 = vsel %vm88, 1, 0
  %v97 = vsel %vm89, 1, 0
  %v98 = vsel %vm90, 1, 0
  %v99 = vsel %vm91, 1, 0
  %v100 = vcvt.s32.f32 %v92
  %v101 = vcvt.s32.f32 %v93
  %v102 = vcvt.s32.f32 %v94
  %v103 = vcvt.s32.f32 %v95
  %v104 = vcvt.s32.f32 %v96
  %v105 = vcvt.s32.f32 %v97
  %v106 = vcvt.s32.f32 %v98
  %v107 = vcvt.s32.f32 %v99
  %vm108 = vcmp.ne.s32.totalorder %v76, 7
  %vm109 = vcmp.ne.s32.totalorder %v77, 7
  %vm110 = vcmp.ne.s32.totalorder %v78, 7
  %vm111 = vcmp.ne.s32.totalorder %v79, 7
  %vm112 = vcmp.ne.s32.totalorder %v80, 7
  %vm113 = vcmp.ne.s32.totalorder %v81, 7
  %vm114 = vcmp.ne.s32.totalorder %v82, 7
  %vm115 = vcmp.ne.s32.totalorder %v83, 7
  %v116 = vsel %vm108, 1, 0
  %v117 = vsel %vm109, 1, 0
  %v118 = vsel %vm110, 1, 0
  %v119 = vsel %vm111, 1, 0
  %v120 = vsel %vm112, 1, 0
  %v121 = vsel %vm113, 1, 0
  %v122 = vsel %vm114, 1, 0
  %v123 = vsel %vm115, 1, 0
  %v124 = vcvt.s32.f32 %v116
  %v125 = vcvt.s32.f32 %v117
  %v126 = vcvt.s32.f32 %v118
  %v127 = vcvt.s32.f32 %v119
  %v128 = vcvt.s32.f32 %v120
  %v129 = vcvt.s32.f32 %v121
  %v130 = vcvt.s32.f32 %v122
  %v131 = vcvt.s32.f32 %v123
  %v132 = vadd.s32 %v68, 64
  %v133 = vadd.s32 %v68, 72
  %v134 = vadd.s32 %v68, 80
  %v135 = vadd.s32 %v68, 88
  %v136 = vadd.s32 %v68, 96
  %v137 = vadd.s32 %v68, 104
  %v138 = vadd.s32 %v68, 112
  %v139 = vadd.s32 %v68, 120
  %v140 = vand.u32 %v68, 15
  %v141 = vand.u32 %v69, 15
  %v142 = vand.u32 %v70, 15
  %v143 = vand.u32 %v71, 15
  %v144 = vand.u32 %v72, 15
  %v145 = vand.u32 %v73, 15
  %v146 = vand.u32 %v74, 15
  %v147 = vand.u32 %v75, 15
  %v148 = vand.u32 %v132, 15
  %v149 = vand.u32 %v133, 15
  %v150 = vand.u32 %v134, 15
  %v151 = vand.u32 %v135, 15
  %v152 = vand.u32 %v136, 15
  %v153 = vand.u32 %v137, 15
  %v154 = vand.u32 %v138, 15
  %v155 = vand.u32 %v139, 15
  %vm156 = vcmp.ne.s32.totalorder %v140, 0
  %vm157 = vcmp.ne.s32.totalorder %v141, 0
  %vm158 = vcmp.ne.s32.totalorder %v142, 0
  %vm159 = vcmp.ne.s32.totalorder %v143, 0
  %vm160 = vcmp.ne.s32.totalorder %v144, 0
  %vm161 = vcmp.ne.s32.totalorder %v145, 0
  %vm162 = vcmp.ne.s32.totalorder %v146, 0
  %vm163 = vcmp.ne.s32.totalorder %v147, 0
  %vm164 = vcmp.ne.s32.totalorder %v148, 0
  %vm165 = vcmp.ne.s32.totalorder %v149, 0
  %vm166 = vcmp.ne.s32.totalorder %v150, 0
  %vm167 = vcmp.ne.s32.totalorder %v151, 0
  %vm168 = vcmp.ne.s32.totalorder %v152, 0
  %vm169 = vcmp.ne.s32.totalorder %v153, 0
  %vm170 = vcmp.ne.s32.totalorder %v154, 0
  %vm171 = vcmp.ne.s32.totalorder %v155, 0
  %v172 = vsel %vm156, 1, 0
  %v173 = vsel %vm157, 1, 0
  %v174 = vsel %vm158, 1, 0
  %v175 = vsel %vm159, 1, 0
  %v176 = vsel %vm160, 1, 0
  %v177 = vsel %vm161, 1, 0
  %v178 = vsel %vm162, 1, 0
  %v179 = vsel %vm163, 1, 0
  %v180 = vsel %vm164, 1, 0
  %v181 = vsel %vm165, 1, 0
  %v182 = vsel %vm166, 1, 0
  %v183 = vsel %vm167, 1, 0
  %v184 = vsel %vm168, 1, 0
  %v185 = vsel %vm169, 1, 0
  %v186 = vsel %vm170, 1, 0
  %v187 = vsel %vm171, 1, 0
  %v188 = vcvt.s32.f32 %v172
  %v189 = vcvt.s32.f32 %v173
  %v190 = vcvt.s32.f32 %v174
  %v191 = vcvt.s32.f32 %v175
  %v192 = vcvt.s32.f32 %v176
  %v193 = vcvt.s32.f32 %v177
  %v194 = vcvt.s32.f32 %v178
  %v195 = vcvt.s32.f32 %v179
  %v196 = vcvt.s32.f32 %v180
  %v197 = vcvt.s32.f32 %v181
  %v198 = vcvt.s32.f32 %v182
  %v199 = vcvt.s32.f32 %v183
  %v200 = vcvt.s32.f32 %v184
  %v201 = vcvt.s32.f32 %v185
  %v202 = vcvt.s32.f32 %v186
  %v203 = vcvt.s32.f32 %v187
  %vm204 = vcmp.ne.s32.totalorder %v140, 15
  %vm205 = vcmp.ne.s32.totalorder %v141, 15
  %vm206 = vcmp.ne.s32.totalorder %v142, 15
  %vm207 = vcmp.ne.s32.totalorder %v143, 15
  %vm208 = vcmp.ne.s32.totalorder %v144, 15
  %vm209 = vcmp.ne.s32.totalorder %v145, 15
  %vm210 = vcmp.ne.s32.totalorder %v146, 15
  %vm211 = vcmp.ne.s32.totalorder %v147, 15
  %vm212 = vcmp.ne.s32.totalorder %v148, 15
  %vm213 = vcmp.ne.s32.totalorder %v149, 15
  %vm214 = vcmp.ne.s32.totalorder %v150, 15
  %vm215 = vcmp.ne.s32.totalorder %v151, 15
  %vm216 = vcmp.ne.s32.totalorder %v152, 15
  %vm217 = vcmp.ne.s32.totalorder %v153, 15
  %vm218 = vcmp.ne.s32.totalorder %v154, 15
  %vm219 = vcmp.ne.s32.totalorder %v155, 15
  %v220 = vsel %vm204, 1, 0
  %v221 = vsel %vm205, 1, 0
  %v222 = vsel %vm206, 1, 0
  %v223 = vsel %vm207, 1, 0
  %v224 = vsel %vm208, 1, 0
  %v225 = vsel %vm209, 1, 0
  %v226 = vsel %vm210, 1, 0
  %v227 = vsel %vm211, 1, 0
  %v228 = vsel %vm212, 1, 0
  %v229 = vsel %vm213, 1, 0
  %v230 = vsel %vm214, 1, 0
  %v231 = vsel %vm215, 1, 0
  %v232 = vsel %vm216, 1, 0
  %v233 = vsel %vm217, 1, 0
  %v234 = vsel %vm218, 1, 0
  %v235 = vsel %vm219, 1, 0
  %v236 = vcvt.s32.f32 %v220
  %v237 = vcvt.s32.f32 %v221
  %v238 = vcvt.s32.f32 %v222
  %v239 = vcvt.s32.f32 %v223
  %v240 = vcvt.s32.f32 %v224
  %v241 = vcvt.s32.f32 %v225
  %v242 = vcvt.s32.f32 %v226
  %v243 = vcvt.s32.f32 %v227
  %v244 = vcvt.s32.f32 %v228
  %v245 = vcvt.s32.f32 %v229
  %v246 = vcvt.s32.f32 %v230
  %v247 = vcvt.s32.f32 %v231
  %v248 = vcvt.s32.f32 %v232
  %v249 = vcvt.s32.f32 %v233
  %v250 = vcvt.s32.f32 %v234
  %v251 = vcvt.s32.f32 %v235
  %v252 = vld [vmem:[%s2] sm:$0xff]
  %v253 = vld [vmem:[%s2 + $0x8] sm:$0xff]
  %v254 = vld [vmem:[%s2 + $0x10] sm:$0xff]
  %v255 = vld [vmem:[%s2 + $0x18] sm:$0xff]
  %v256 = vld [vmem:[%s2 + $0x20] sm:$0xff]
  %v257 = vld [vmem:[%s2 + $0x28] sm:$0xff]
  %v258 = vld [vmem:[%s2 + $0x30] sm:$0xff]
  %v259 = vld [vmem:[%s2 + $0x38] sm:$0xff]
  %v260 = vld [vmem:[%s17] sm:$0x1]
  %v261 = vld [vmem:[%s17 + $0x1] sm:$0x1]
  %v262 = vld [vmem:[%s6] sm:$0xff]
  %v263 = vld [vmem:[%s6 + $0x8] sm:$0xff]
  %v264 = vld [vmem:[%s6 + $0x10] sm:$0xff]
  %v265 = vld [vmem:[%s6 + $0x18] sm:$0xff]
  %v266 = vlaneseq
  %v267 = vshrl.u32 %v266, 7
  %v268 = vsub.s32 0, %v267
  %v269 = vrot.slane %v260, %v268
  %vm270 = vcmask 261120
  %v272 = vsel %vm270, %v59, 0
  %v275 = vsel %vm270, %v60, 0
  %v278 = vsel %vm270, %v61, 0
  %v281 = vsel %vm270, %v62, 0
  %v284 = vsel %vm270, %v63, 0
  %v287 = vsel %vm270, %v64, 0
  %v290 = vsel %vm270, %v65, 0
  %v293 = vsel %vm270, %v66, 0
  %295 = vmatprep.subr.mxu0 0.0
  %296 = vmatpush1.msra.mxu0 %v262
  %297 = vmatprep.subr.mxu0 0.0
  %298 = vmatpush1.msra.mxu0 %v263
  %299 = vmatprep.subr.mxu0 0.0
  %300 = vmatpush1.msra.mxu0 %v264
  %301 = vmatprep.subr.mxu0 0.0
  %302 = vmatpush1.msra.mxu0 %v265
  %303 = vmatprep.subr.mxu0 0.0
  %304 = vmatpush1.msra.mxu0 0.0
  %305 = vmatprep.subr.mxu0 0.0
  %306 = vmatpush1.msra.mxu0 0.0
  %307 = vmatprep.subr.mxu0 0.0
  %308 = vmatpush1.msra.mxu0 0.0
  %309 = vmatprep.subr.mxu0 0.0
  %310 = vmatpush1.msra.mxu0 0.0
  %311 = vmatprep.subr.mxu0 0.0
  %312 = vmatpush1.msra.mxu0 0.0
  %313 = vmatprep.subr.mxu0 0.0
  %314 = vmatpush1.msra.mxu0 0.0
  %315 = vmatprep.subr.mxu0 0.0
  %316 = vmatpush1.msra.mxu0 0.0
  %317 = vmatprep.subr.mxu0 0.0
  %318 = vmatpush1.msra.mxu0 0.0
  %319 = vmatprep.subr.mxu0 0.0
  %320 = vmatpush1.msra.mxu0 0.0
  %321 = vmatprep.subr.mxu0 0.0
  %322 = vmatpush1.msra.mxu0 0.0
  %323 = vmatprep.subr.mxu0 0.0
  %324 = vmatpush1.msra.mxu0 0.0
  %325 = vmatprep.subr.mxu0 0.0
  %326 = vmatpush1.msra.mxu0 0.0
  %327 = vmatprep.subr.mxu0 0.0
  %328 = vmatpush1.msra.mxu0 0.0
  %329 = vmatprep.subr.mxu0 0.0
  %330 = vmatpush1.msra.mxu0 0.0
  %331 = vmatprep.subr.mxu0 0.0
  %332 = vmatpush1.msra.mxu0 0.0
  %333 = vmatprep.subr.mxu0 0.0
  %334 = vmatpush1.msra.mxu0 0.0
  %335 = vmatprep.subr.mxu0 0.0
  %336 = vmatpush1.msra.mxu0 0.0
  %337 = vmatprep.subr.mxu0 0.0
  %338 = vmatpush1.msra.mxu0 0.0
  %339 = vmatprep.subr.mxu0 0.0
  %340 = vmatpush1.msra.mxu0 0.0
  %341 = vmatprep.subr.mxu0 0.0
  %342 = vmatpush1.msra.mxu0 0.0
  %343 = vmatprep.subr.mxu0 0.0
  %344 = vmatpush1.msra.mxu0 0.0
  %345 = vmatprep.subr.mxu0 0.0
  %346 = vmatpush1.msra.mxu0 0.0
  %347 = vmatprep.subr.mxu0 0.0
  %348 = vmatpush1.msra.mxu0 0.0
  %349 = vmatprep.subr.mxu0 0.0
  %350 = vmatpush1.msra.mxu0 0.0
  %351 = vmatprep.subr.mxu0 0.0
  %352 = vmatpush1.msra.mxu0 0.0
  %353 = vmatprep.subr.mxu0 0.0
  %354 = vmatpush1.msra.mxu0 0.0
  %355 = vmatprep.subr.mxu0 0.0
  %356 = vmatpush1.msra.mxu0 0.0
  %357 = vmatprep.subr.mxu0 0.0
  %358 = vmatpush1.msra.mxu0 0.0
  %359 = vmatprep.mubr.f32.mxu0 0.0
  %360 = vmatmul.mubr.f32.gmra.mrb[0].mxu0 %v272
  %v361 = vpop.f32.mrb[0].mxu0
  %v362 = vadd.f32 %v269, %v361
  %v363 = vpop.f32.mrb[0].mxu0
  %364 = vmatprep.mubr.f32.mxu0 0.0
  %365 = vmatmul.mubr.f32.gmra.mrb[0].mxu0 %v275
  %v366 = vpop.f32.mrb[0].mxu0
  %v367 = vadd.f32 %v269, %v366
  %v368 = vpop.f32.mrb[0].mxu0
  %369 = vmatprep.mubr.f32.mxu0 0.0
  %370 = vmatmul.mubr.f32.gmra.mrb[0].mxu0 %v278
  %v371 = vpop.f32.mrb[0].mxu0
  %v372 = vadd.f32 %v269, %v371
  %v373 = vpop.f32.mrb[0].mxu0
  %374 = vmatprep.mubr.f32.mxu0 0.0
  %375 = vmatmul.mubr.f32.gmra.mrb[0].mxu0 %v281
  %v376 = vpop.f32.mrb[0].mxu0
  %v377 = vadd.f32 %v269, %v376
  %v378 = vpop.f32.mrb[0].mxu0
  %379 = vmatprep.mubr.f32.mxu0 0.0
  %380 = vmatmul.mubr.f32.gmra.mrb[0].mxu0 %v284
  %v381 = vpop.f32.mrb[0].mxu0
  %v382 = vadd.f32 %v269, %v381
  %v383 = vpop.f32.mrb[0].mxu0
  %384 = vmatprep.mubr.f32.mxu0 0.0
  %385 = vmatmul.mubr.f32.gmra.mrb[0].mxu0 %v287
  %v386 = vpop.f32.mrb[0].mxu0
  %v387 = vadd.f32 %v269, %v386
  %v388 = vpop.f32.mrb[0].mxu0
  %389 = vmatprep.mubr.f32.mxu0 0.0
  %390 = vmatmul.mubr.f32.gmra.mrb[0].mxu0 %v290
  %v391 = vpop.f32.mrb[0].mxu0
  %v392 = vadd.f32 %v269, %v391
  %v393 = vpop.f32.mrb[0].mxu0
  %394 = vmatprep.mubr.f32.mxu0 0.0
  %395 = vmatmul.mubr.f32.gmra.mrb[0].mxu0 %v293
  %v396 = vpop.f32.mrb[0].mxu0
  %v397 = vadd.f32 %v269, %v396
  %v398 = vpop.f32.mrb[0].mxu0
  %399 = vdwg.mxu0
  %408 = vrot.lane.b32.xlu0 %v362, 96
  %v409 = vpop.permute.xlu0 %408
  %410 = vrot.lane.b32.xlu0 %v367, 96
  %v411 = vpop.permute.xlu0 %410
  %412 = vrot.lane.b32.xlu0 %v372, 96
  %v413 = vpop.permute.xlu0 %412
  %414 = vrot.lane.b32.xlu0 %v377, 96
  %v415 = vpop.permute.xlu0 %414
  %416 = vrot.lane.b32.xlu0 %v382, 96
  %v417 = vpop.permute.xlu0 %416
  %418 = vrot.lane.b32.xlu0 %v387, 96
  %v419 = vpop.permute.xlu0 %418
  %420 = vrot.lane.b32.xlu0 %v392, 96
  %v421 = vpop.permute.xlu0 %420
  %422 = vrot.lane.b32.xlu0 %v397, 96
  %v423 = vpop.permute.xlu0 %422
  %vm424 = vcmask 130048
  %v425 = vsel %vm424, %v362, 0
  %v427 = vsel %vm424, %v367, 0
  %v429 = vsel %vm424, %v372, 0
  %v431 = vsel %vm424, %v377, 0
  %v433 = vsel %vm424, %v382, 0
  %v435 = vsel %vm424, %v387, 0
  %v437 = vsel %vm424, %v392, 0
  %v439 = vsel %vm424, %v397, 0
  %v441 = vsel %vm424, %v409, 0
  %v443 = vsel %vm424, %v411, 0
  %v445 = vsel %vm424, %v413, 0
  %v447 = vsel %vm424, %v415, 0
  %v449 = vsel %vm424, %v417, 0
  %v451 = vsel %vm424, %v419, 0
  %v453 = vsel %vm424, %v421, 0
  %v455 = vsel %vm424, %v423, 0
  %457 = vmatprep.subr.mxu0 0.0
  %458 = vmatpush1.xpose.msra.mxu0 %v441
  %459 = vmatprep.subr.mxu0 0.0
  %460 = vmatpush1.xpose.msra.mxu0 %v443
  %461 = vmatprep.subr.mxu0 0.0
  %462 = vmatpush1.xpose.msra.mxu0 %v445
  %463 = vmatprep.subr.mxu0 0.0
  %464 = vmatpush1.xpose.msra.mxu0 %v447
  %465 = vmatprep.subr.mxu0 0.0
  %466 = vmatpush1.xpose.msra.mxu0 %v449
  %467 = vmatprep.subr.mxu0 0.0
  %468 = vmatpush1.xpose.msra.mxu0 %v451
  %469 = vmatprep.subr.mxu0 0.0
  %470 = vmatpush1.xpose.msra.mxu0 %v453
  %471 = vmatprep.subr.mxu0 0.0
  %472 = vmatpush1.xpose.msra.mxu0 %v455
  %473 = vmatprep.subr.mxu0 0.0
  %474 = vmatpush1.xpose.msra.mxu0 0.0
  %475 = vmatprep.subr.mxu0 0.0
  %476 = vmatpush1.xpose.msra.mxu0 0.0
  %477 = vmatprep.subr.mxu0 0.0
  %478 = vmatpush1.xpose.msra.mxu0 0.0
  %479 = vmatprep.subr.mxu0 0.0
  %480 = vmatpush1.xpose.msra.mxu0 0.0
  %481 = vmatprep.subr.mxu0 0.0
  %482 = vmatpush1.xpose.msra.mxu0 0.0
  %483 = vmatprep.subr.mxu0 0.0
  %484 = vmatpush1.xpose.msra.mxu0 0.0
  %485 = vmatprep.subr.mxu0 0.0
  %486 = vmatpush1.xpose.msra.mxu0 0.0
  %487 = vmatprep.subr.mxu0 0.0
  %488 = vmatpush1.xpose.msra.mxu0 0.0
  %489 = vmatprep.subr.mxu0 0.0
  %490 = vmatpush1.xpose.msra.mxu0 0.0
  %491 = vmatprep.subr.mxu0 0.0
  %492 = vmatpush1.xpose.msra.mxu0 0.0
  %493 = vmatprep.subr.mxu0 0.0
  %494 = vmatpush1.xpose.msra.mxu0 0.0
  %495 = vmatprep.subr.mxu0 0.0
  %496 = vmatpush1.xpose.msra.mxu0 0.0
  %497 = vmatprep.subr.mxu0 0.0
  %498 = vmatpush1.xpose.msra.mxu0 0.0
  %499 = vmatprep.subr.mxu0 0.0
  %500 = vmatpush1.xpose.msra.mxu0 0.0
  %501 = vmatprep.subr.mxu0 0.0
  %502 = vmatpush1.xpose.msra.mxu0 0.0
  %503 = vmatprep.subr.mxu0 0.0
  %504 = vmatpush1.xpose.msra.mxu0 0.0
  %505 = vmatprep.subr.mxu0 0.0
  %506 = vmatpush1.xpose.msra.mxu0 0.0
  %507 = vmatprep.subr.mxu0 0.0
  %508 = vmatpush1.xpose.msra.mxu0 0.0
  %509 = vmatprep.subr.mxu0 0.0
  %510 = vmatpush1.xpose.msra.mxu0 0.0
  %511 = vmatprep.subr.mxu0 0.0
  %512 = vmatpush1.xpose.msra.mxu0 0.0
  %513 = vmatprep.subr.mxu0 0.0
  %514 = vmatpush1.xpose.msra.mxu0 0.0
  %515 = vmatprep.subr.mxu0 0.0
  %516 = vmatpush1.xpose.msra.mxu0 0.0
  %517 = vmatprep.subr.mxu0 0.0
  %518 = vmatpush1.xpose.msra.mxu0 0.0
  %519 = vmatprep.subr.mxu0 0.0
  %520 = vmatpush1.xpose.msra.mxu0 0.0
  %521 = vmatprep.mubr.f32.mxu0 0.0
  %522 = vmatmul.mubr.f32.gmra.mrb[0].mxu0 %v425
  %v523 = vpop.f32.mrb[0].mxu0
  %v524 = vadd.f32 0.0, %v523
  %v525 = vpop.f32.mrb[0].mxu0
  %526 = vmatprep.mubr.f32.mxu0 0.0
  %527 = vmatmul.mubr.f32.gmra.mrb[0].mxu0 %v427
  %v528 = vpop.f32.mrb[0].mxu0
  %v529 = vadd.f32 0.0, %v528
  %v530 = vpop.f32.mrb[0].mxu0
  %531 = vmatprep.mubr.f32.mxu0 0.0
  %532 = vmatmul.mubr.f32.gmra.mrb[0].mxu0 %v429
  %v533 = vpop.f32.mrb[0].mxu0
  %v534 = vadd.f32 0.0, %v533
  %v535 = vpop.f32.mrb[0].mxu0
  %536 = vmatprep.mubr.f32.mxu0 0.0
  %537 = vmatmul.mubr.f32.gmra.mrb[0].mxu0 %v431
  %v538 = vpop.f32.mrb[0].mxu0
  %v539 = vadd.f32 0.0, %v538
  %v540 = vpop.f32.mrb[0].mxu0
  %541 = vmatprep.mubr.f32.mxu0 0.0
  %542 = vmatmul.mubr.f32.gmra.mrb[0].mxu0 %v433
  %v543 = vpop.f32.mrb[0].mxu0
  %v544 = vadd.f32 0.0, %v543
  %v545 = vpop.f32.mrb[0].mxu0
  %546 = vmatprep.mubr.f32.mxu0 0.0
  %547 = vmatmul.mubr.f32.gmra.mrb[0].mxu0 %v435
  %v548 = vpop.f32.mrb[0].mxu0
  %v549 = vadd.f32 0.0, %v548
  %v550 = vpop.f32.mrb[0].mxu0
  %551 = vmatprep.mubr.f32.mxu0 0.0
  %552 = vmatmul.mubr.f32.gmra.mrb[0].mxu0 %v437
  %v553 = vpop.f32.mrb[0].mxu0
  %v554 = vadd.f32 0.0, %v553
  %v555 = vpop.f32.mrb[0].mxu0
  %556 = vmatprep.mubr.f32.mxu0 0.0
  %557 = vmatmul.mubr.f32.gmra.mrb[0].mxu0 %v439
  %v558 = vpop.f32.mrb[0].mxu0
  %v559 = vadd.f32 0.0, %v558
  %v560 = vpop.f32.mrb[0].mxu0
  %561 = vdwg.mxu0
  %v562 = vmul.f32 %v524, 0.25
  %v563 = vmul.f32 %v529, 0.25
  %v564 = vmul.f32 %v534, 0.25
  %v565 = vmul.f32 %v539, 0.25
  %v566 = vmul.f32 %v544, 0.25
  %v567 = vmul.f32 %v549, 0.25
  %v568 = vmul.f32 %v554, 0.25
  %v569 = vmul.f32 %v559, 0.25
  %v570 = vadd.f32 %v562, %v252
  %v571 = vadd.f32 %v563, %v253
  %v572 = vadd.f32 %v564, %v254
  %v573 = vadd.f32 %v565, %v255
  %v574 = vadd.f32 %v566, %v256
  %v575 = vadd.f32 %v567, %v257
  %v576 = vadd.f32 %v568, %v258
  %v577 = vadd.f32 %v569, %v259
  %vm578 = vcmask 523264
  %v579 = vsel %vm578, %v570, -inf
  %580 = vmax.xlane.f32.xlu0 %v579
  %v581 = vpop.xlane.xlu0 %580
  %v582 = vsel %vm578, %v571, -inf
  %583 = vmax.xlane.f32.xlu0 %v582
  %v584 = vpop.xlane.xlu0 %583
  %v585 = vsel %vm578, %v572, -inf
  %586 = vmax.xlane.f32.xlu0 %v585
  %v587 = vpop.xlane.xlu0 %586
  %v588 = vsel %vm578, %v573, -inf
  %589 = vmax.xlane.f32.xlu0 %v588
  %v590 = vpop.xlane.xlu0 %589
  %v591 = vsel %vm578, %v574, -inf
  %592 = vmax.xlane.f32.xlu0 %v591
  %v593 = vpop.xlane.xlu0 %592
  %v594 = vsel %vm578, %v575, -inf
  %595 = vmax.xlane.f32.xlu0 %v594
  %v596 = vpop.xlane.xlu0 %595
  %v597 = vsel %vm578, %v576, -inf
  %598 = vmax.xlane.f32.xlu0 %v597
  %v599 = vpop.xlane.xlu0 %598
  %v600 = vsel %vm578, %v577, -inf
  %601 = vmax.xlane.f32.xlu0 %v600
  %v602 = vpop.xlane.xlu0 %601
  %v603 = vsub.f32 %v570, %v581
  %v604 = vsub.f32 %v571, %v584
  %v605 = vsub.f32 %v572, %v587
  %v606 = vsub.f32 %v573, %v590
  %v607 = vsub.f32 %v574, %v593
  %v608 = vsub.f32 %v575, %v596
  %v609 = vsub.f32 %v576, %v599
  %v610 = vsub.f32 %v577, %v602
  %v611 = vmul.f32 %v603, 1.442695
  %v612 = vpow.pop %v611
  %v613 = vmul.f32 %v604, 1.442695
  %v614 = vpow.pop %v613
  %v615 = vmul.f32 %v605, 1.442695
  %v616 = vpow.pop %v615
  %v617 = vmul.f32 %v606, 1.442695
  %v618 = vpow.pop %v617
  %v619 = vmul.f32 %v607, 1.442695
  %v620 = vpow.pop %v619
  %v621 = vmul.f32 %v608, 1.442695
  %v622 = vpow.pop %v621
  %v623 = vmul.f32 %v609, 1.442695
  %v624 = vpow.pop %v623
  %v625 = vmul.f32 %v610, 1.442695
  %v626 = vpow.pop %v625
  %v627 = vsel %vm578, %v612, 0.0
  %628 = vadd.xlane.f32.xlu0 %v627
  %v629 = vpop.xlane.xlu0 %628
  %v630 = vsel %vm578, %v614, 0.0
  %631 = vadd.xlane.f32.xlu0 %v630
  %v632 = vpop.xlane.xlu0 %631
  %v633 = vsel %vm578, %v616, 0.0
  %634 = vadd.xlane.f32.xlu0 %v633
  %v635 = vpop.xlane.xlu0 %634
  %v636 = vsel %vm578, %v618, 0.0
  %637 = vadd.xlane.f32.xlu0 %v636
  %v638 = vpop.xlane.xlu0 %637
  %v639 = vsel %vm578, %v620, 0.0
  %640 = vadd.xlane.f32.xlu0 %v639
  %v641 = vpop.xlane.xlu0 %640
  %v642 = vsel %vm578, %v622, 0.0
  %643 = vadd.xlane.f32.xlu0 %v642
  %v644 = vpop.xlane.xlu0 %643
  %v645 = vsel %vm578, %v624, 0.0
  %646 = vadd.xlane.f32.xlu0 %v645
  %v647 = vpop.xlane.xlu0 %646
  %v648 = vsel %vm578, %v626, 0.0
  %649 = vadd.xlane.f32.xlu0 %v648
  %v650 = vpop.xlane.xlu0 %649
  %v651 = vrcp.pop %v629
  %v652 = vrcp.pop %v632
  %v653 = vrcp.pop %v635
  %v654 = vrcp.pop %v638
  %v655 = vrcp.pop %v641
  %v656 = vrcp.pop %v644
  %v657 = vrcp.pop %v647
  %v658 = vrcp.pop %v650
  %v659 = vmul.f32 %v612, %v651
  %v660 = vmul.f32 %v614, %v652
  %v661 = vmul.f32 %v616, %v653
  %v662 = vmul.f32 %v618, %v654
  %v663 = vmul.f32 %v620, %v655
  %v664 = vmul.f32 %v622, %v656
  %v665 = vmul.f32 %v624, %v657
  %v666 = vmul.f32 %v626, %v658
  %667 = vrot.lane.b32.xlu0 %v362, 64
  %v668 = vpop.permute.xlu0 %667
  %669 = vrot.lane.b32.xlu0 %v367, 64
  %v670 = vpop.permute.xlu0 %669
  %671 = vrot.lane.b32.xlu0 %v372, 64
  %v672 = vpop.permute.xlu0 %671
  %673 = vrot.lane.b32.xlu0 %v377, 64
  %v674 = vpop.permute.xlu0 %673
  %675 = vrot.lane.b32.xlu0 %v382, 64
  %v676 = vpop.permute.xlu0 %675
  %677 = vrot.lane.b32.xlu0 %v387, 64
  %v678 = vpop.permute.xlu0 %677
  %679 = vrot.lane.b32.xlu0 %v392, 64
  %v680 = vpop.permute.xlu0 %679
  %681 = vrot.lane.b32.xlu0 %v397, 64
  %v682 = vpop.permute.xlu0 %681
  %v692 = vsel %vm578, %v659, 0
  %v695 = vsel %vm578, %v660, 0
  %v698 = vsel %vm578, %v661, 0
  %v701 = vsel %vm578, %v662, 0
  %v704 = vsel %vm578, %v663, 0
  %v707 = vsel %vm578, %v664, 0
  %v710 = vsel %vm578, %v665, 0
  %v713 = vsel %vm578, %v666, 0
  %715 = vmatprep.subr.mxu0 0.0
  %716 = vmatpush1.msra.mxu0 %v668
  %717 = vmatprep.subr.mxu0 0.0
  %718 = vmatpush1.msra.mxu0 %v670
  %719 = vmatprep.subr.mxu0 0.0
  %720 = vmatpush1.msra.mxu0 %v672
  %721 = vmatprep.subr.mxu0 0.0
  %722 = vmatpush1.msra.mxu0 %v674
  %723 = vmatprep.subr.mxu0 0.0
  %724 = vmatpush1.msra.mxu0 %v676
  %725 = vmatprep.subr.mxu0 0.0
  %726 = vmatpush1.msra.mxu0 %v678
  %727 = vmatprep.subr.mxu0 0.0
  %728 = vmatpush1.msra.mxu0 %v680
  %729 = vmatprep.subr.mxu0 0.0
  %730 = vmatpush1.msra.mxu0 %v682
  %731 = vmatprep.subr.mxu0 0.0
  %732 = vmatpush1.msra.mxu0 0.0
  %733 = vmatprep.subr.mxu0 0.0
  %734 = vmatpush1.msra.mxu0 0.0
  %735 = vmatprep.subr.mxu0 0.0
  %736 = vmatpush1.msra.mxu0 0.0
  %737 = vmatprep.subr.mxu0 0.0
  %738 = vmatpush1.msra.mxu0 0.0
  %739 = vmatprep.subr.mxu0 0.0
  %740 = vmatpush1.msra.mxu0 0.0
  %741 = vmatprep.subr.mxu0 0.0
  %742 = vmatpush1.msra.mxu0 0.0
  %743 = vmatprep.subr.mxu0 0.0
  %744 = vmatpush1.msra.mxu0 0.0
  %745 = vmatprep.subr.mxu0 0.0
  %746 = vmatpush1.msra.mxu0 0.0
  %747 = vmatprep.subr.mxu0 0.0
  %748 = vmatpush1.msra.mxu0 0.0
  %749 = vmatprep.subr.mxu0 0.0
  %750 = vmatpush1.msra.mxu0 0.0
  %751 = vmatprep.subr.mxu0 0.0
  %752 = vmatpush1.msra.mxu0 0.0
  %753 = vmatprep.subr.mxu0 0.0
  %754 = vmatpush1.msra.mxu0 0.0
  %755 = vmatprep.subr.mxu0 0.0
  %756 = vmatpush1.msra.mxu0 0.0
  %757 = vmatprep.subr.mxu0 0.0
  %758 = vmatpush1.msra.mxu0 0.0
  %759 = vmatprep.subr.mxu0 0.0
  %760 = vmatpush1.msra.mxu0 0.0
  %761 = vmatprep.subr.mxu0 0.0
  %762 = vmatpush1.msra.mxu0 0.0
  %763 = vmatprep.subr.mxu0 0.0
  %764 = vmatpush1.msra.mxu0 0.0
  %765 = vmatprep.subr.mxu0 0.0
  %766 = vmatpush1.msra.mxu0 0.0
  %767 = vmatprep.subr.mxu0 0.0
  %768 = vmatpush1.msra.mxu0 0.0
  %769 = vmatprep.subr.mxu0 0.0
  %770 = vmatpush1.msra.mxu0 0.0
  %771 = vmatprep.subr.mxu0 0.0
  %772 = vmatpush1.msra.mxu0 0.0
  %773 = vmatprep.subr.mxu0 0.0
  %774 = vmatpush1.msra.mxu0 0.0
  %775 = vmatprep.subr.mxu0 0.0
  %776 = vmatpush1.msra.mxu0 0.0
  %777 = vmatprep.subr.mxu0 0.0
  %778 = vmatpush1.msra.mxu0 0.0
  %779 = vmatprep.mubr.f32.mxu0 0.0
  %780 = vmatmul.mubr.f32.gmra.mrb[0].mxu0 %v692
  %v781 = vpop.f32.mrb[0].mxu0
  %v782 = vadd.f32 0.0, %v781
  %v783 = vpop.f32.mrb[0].mxu0
  %784 = vmatprep.mubr.f32.mxu0 0.0
  %785 = vmatmul.mubr.f32.gmra.mrb[0].mxu0 %v695
  %v786 = vpop.f32.mrb[0].mxu0
  %v787 = vadd.f32 0.0, %v786
  %v788 = vpop.f32.mrb[0].mxu0
  %789 = vmatprep.mubr.f32.mxu0 0.0
  %790 = vmatmul.mubr.f32.gmra.mrb[0].mxu0 %v698
  %v791 = vpop.f32.mrb[0].mxu0
  %v792 = vadd.f32 0.0, %v791
  %v793 = vpop.f32.mrb[0].mxu0
  %794 = vmatprep.mubr.f32.mxu0 0.0
  %795 = vmatmul.mubr.f32.gmra.mrb[0].mxu0 %v701
  %v796 = vpop.f32.mrb[0].mxu0
  %v797 = vadd.f32 0.0, %v796
  %v798 = vpop.f32.mrb[0].mxu0
  %799 = vmatprep.mubr.f32.mxu0 0.0
  %800 = vmatmul.mubr.f32.gmra.mrb[0].mxu0 %v704
  %v801 = vpop.f32.mrb[0].mxu0
  %v802 = vadd.f32 0.0, %v801
  %v803 = vpop.f32.mrb[0].mxu0
  %804 = vmatprep.mubr.f32.mxu0 0.0
  %805 = vmatmul.mubr.f32.gmra.mrb[0].mxu0 %v707
  %v806 = vpop.f32.mrb[0].mxu0
  %v807 = vadd.f32 0.0, %v806
  %v808 = vpop.f32.mrb[0].mxu0
  %809 = vmatprep.mubr.f32.mxu0 0.0
  %810 = vmatmul.mubr.f32.gmra.mrb[0].mxu0 %v710
  %v811 = vpop.f32.mrb[0].mxu0
  %v812 = vadd.f32 0.0, %v811
  %v813 = vpop.f32.mrb[0].mxu0
  %814 = vmatprep.mubr.f32.mxu0 0.0
  %815 = vmatmul.mubr.f32.gmra.mrb[0].mxu0 %v713
  %v816 = vpop.f32.mrb[0].mxu0
  %v817 = vadd.f32 0.0, %v816
  %v818 = vpop.f32.mrb[0].mxu0
  %819 = vdwg.mxu0
  %820 = vrot.lane.b32.xlu0 %v362, 112
  %v821 = vpop.permute.xlu0 %820
  %822 = vrot.lane.b32.xlu0 %v367, 112
  %v823 = vpop.permute.xlu0 %822
  %824 = vrot.lane.b32.xlu0 %v372, 112
  %v825 = vpop.permute.xlu0 %824
  %826 = vrot.lane.b32.xlu0 %v377, 112
  %v827 = vpop.permute.xlu0 %826
  %828 = vrot.lane.b32.xlu0 %v382, 112
  %v829 = vpop.permute.xlu0 %828
  %830 = vrot.lane.b32.xlu0 %v387, 112
  %v831 = vpop.permute.xlu0 %830
  %832 = vrot.lane.b32.xlu0 %v392, 112
  %v833 = vpop.permute.xlu0 %832
  %834 = vrot.lane.b32.xlu0 %v397, 112
  %v835 = vpop.permute.xlu0 %834
  %836 = vrot.lane.b32.xlu0 %v362, 80
  %v837 = vpop.permute.xlu0 %836
  %838 = vrot.lane.b32.xlu0 %v367, 80
  %v839 = vpop.permute.xlu0 %838
  %840 = vrot.lane.b32.xlu0 %v372, 80
  %v841 = vpop.permute.xlu0 %840
  %842 = vrot.lane.b32.xlu0 %v377, 80
  %v843 = vpop.permute.xlu0 %842
  %844 = vrot.lane.b32.xlu0 %v382, 80
  %v845 = vpop.permute.xlu0 %844
  %846 = vrot.lane.b32.xlu0 %v387, 80
  %v847 = vpop.permute.xlu0 %846
  %848 = vrot.lane.b32.xlu0 %v392, 80
  %v849 = vpop.permute.xlu0 %848
  %850 = vrot.lane.b32.xlu0 %v397, 80
  %v851 = vpop.permute.xlu0 %850
  %v852 = vsel %vm424, %v821, 0
  %v854 = vsel %vm424, %v823, 0
  %v856 = vsel %vm424, %v825, 0
  %v858 = vsel %vm424, %v827, 0
  %v860 = vsel %vm424, %v829, 0
  %v862 = vsel %vm424, %v831, 0
  %v864 = vsel %vm424, %v833, 0
  %v866 = vsel %vm424, %v835, 0
  %v868 = vsel %vm424, %v837, 0
  %v870 = vsel %vm424, %v839, 0
  %v872 = vsel %vm424, %v841, 0
  %v874 = vsel %vm424, %v843, 0
  %v876 = vsel %vm424, %v845, 0
  %v878 = vsel %vm424, %v847, 0
  %v880 = vsel %vm424, %v849, 0
  %v882 = vsel %vm424, %v851, 0
  %884 = vmatprep.subr.mxu0 0.0
  %885 = vmatpush1.xpose.msra.mxu0 %v868
  %886 = vmatprep.subr.mxu0 0.0
  %887 = vmatpush1.xpose.msra.mxu0 %v870
  %888 = vmatprep.subr.mxu0 0.0
  %889 = vmatpush1.xpose.msra.mxu0 %v872
  %890 = vmatprep.subr.mxu0 0.0
  %891 = vmatpush1.xpose.msra.mxu0 %v874
  %892 = vmatprep.subr.mxu0 0.0
  %893 = vmatpush1.xpose.msra.mxu0 %v876
  %894 = vmatprep.subr.mxu0 0.0
  %895 = vmatpush1.xpose.msra.mxu0 %v878
  %896 = vmatprep.subr.mxu0 0.0
  %897 = vmatpush1.xpose.msra.mxu0 %v880
  %898 = vmatprep.subr.mxu0 0.0
  %899 = vmatpush1.xpose.msra.mxu0 %v882
  %900 = vmatprep.subr.mxu0 0.0
  %901 = vmatpush1.xpose.msra.mxu0 0.0
  %902 = vmatprep.subr.mxu0 0.0
  %903 = vmatpush1.xpose.msra.mxu0 0.0
  %904 = vmatprep.subr.mxu0 0.0
  %905 = vmatpush1.xpose.msra.mxu0 0.0
  %906 = vmatprep.subr.mxu0 0.0
  %907 = vmatpush1.xpose.msra.mxu0 0.0
  %908 = vmatprep.subr.mxu0 0.0
  %909 = vmatpush1.xpose.msra.mxu0 0.0
  %910 = vmatprep.subr.mxu0 0.0
  %911 = vmatpush1.xpose.msra.mxu0 0.0
  %912 = vmatprep.subr.mxu0 0.0
  %913 = vmatpush1.xpose.msra.mxu0 0.0
  %914 = vmatprep.subr.mxu0 0.0
  %915 = vmatpush1.xpose.msra.mxu0 0.0
  %916 = vmatprep.subr.mxu0 0.0
  %917 = vmatpush1.xpose.msra.mxu0 0.0
  %918 = vmatprep.subr.mxu0 0.0
  %919 = vmatpush1.xpose.msra.mxu0 0.0
  %920 = vmatprep.subr.mxu0 0.0
  %921 = vmatpush1.xpose.msra.mxu0 0.0
  %922 = vmatprep.subr.mxu0 0.0
  %923 = vmatpush1.xpose.msra.mxu0 0.0
  %924 = vmatprep.subr.mxu0 0.0
  %925 = vmatpush1.xpose.msra.mxu0 0.0
  %926 = vmatprep.subr.mxu0 0.0
  %927 = vmatpush1.xpose.msra.mxu0 0.0
  %928 = vmatprep.subr.mxu0 0.0
  %929 = vmatpush1.xpose.msra.mxu0 0.0
  %930 = vmatprep.subr.mxu0 0.0
  %931 = vmatpush1.xpose.msra.mxu0 0.0
  %932 = vmatprep.subr.mxu0 0.0
  %933 = vmatpush1.xpose.msra.mxu0 0.0
  %934 = vmatprep.subr.mxu0 0.0
  %935 = vmatpush1.xpose.msra.mxu0 0.0
  %936 = vmatprep.subr.mxu0 0.0
  %937 = vmatpush1.xpose.msra.mxu0 0.0
  %938 = vmatprep.subr.mxu0 0.0
  %939 = vmatpush1.xpose.msra.mxu0 0.0
  %940 = vmatprep.subr.mxu0 0.0
  %941 = vmatpush1.xpose.msra.mxu0 0.0
  %942 = vmatprep.subr.mxu0 0.0
  %943 = vmatpush1.xpose.msra.mxu0 0.0
  %944 = vmatprep.subr.mxu0 0.0
  %945 = vmatpush1.xpose.msra.mxu0 0.0
  %946 = vmatprep.subr.mxu0 0.0
  %947 = vmatpush1.xpose.msra.mxu0 0.0
  %948 = vmatprep.mubr.f32.mxu0 0.0
  %949 = vmatmul.mubr.f32.gmra.mrb[0].mxu0 %v852
  %v950 = vpop.f32.mrb[0].mxu0
  %v951 = vadd.f32 0.0, %v950
  %v952 = vpop.f32.mrb[0].mxu0
  %953 = vmatprep.mubr.f32.mxu0 0.0
  %954 = vmatmul.mubr.f32.gmra.mrb[0].mxu0 %v854
  %v955 = vpop.f32.mrb[0].mxu0
  %v956 = vadd.f32 0.0, %v955
  %v957 = vpop.f32.mrb[0].mxu0
  %958 = vmatprep.mubr.f32.mxu0 0.0
  %959 = vmatmul.mubr.f32.gmra.mrb[0].mxu0 %v856
  %v960 = vpop.f32.mrb[0].mxu0
  %v961 = vadd.f32 0.0, %v960
  %v962 = vpop.f32.mrb[0].mxu0
  %963 = vmatprep.mubr.f32.mxu0 0.0
  %964 = vmatmul.mubr.f32.gmra.mrb[0].mxu0 %v858
  %v965 = vpop.f32.mrb[0].mxu0
  %v966 = vadd.f32 0.0, %v965
  %v967 = vpop.f32.mrb[0].mxu0
  %968 = vmatprep.mubr.f32.mxu0 0.0
  %969 = vmatmul.mubr.f32.gmra.mrb[0].mxu0 %v860
  %v970 = vpop.f32.mrb[0].mxu0
  %v971 = vadd.f32 0.0, %v970
  %v972 = vpop.f32.mrb[0].mxu0
  %973 = vmatprep.mubr.f32.mxu0 0.0
  %974 = vmatmul.mubr.f32.gmra.mrb[0].mxu0 %v862
  %v975 = vpop.f32.mrb[0].mxu0
  %v976 = vadd.f32 0.0, %v975
  %v977 = vpop.f32.mrb[0].mxu0
  %978 = vmatprep.mubr.f32.mxu0 0.0
  %979 = vmatmul.mubr.f32.gmra.mrb[0].mxu0 %v864
  %v980 = vpop.f32.mrb[0].mxu0
  %v981 = vadd.f32 0.0, %v980
  %v982 = vpop.f32.mrb[0].mxu0
  %983 = vmatprep.mubr.f32.mxu0 0.0
  %984 = vmatmul.mubr.f32.gmra.mrb[0].mxu0 %v866
  %v985 = vpop.f32.mrb[0].mxu0
  %v986 = vadd.f32 0.0, %v985
  %v987 = vpop.f32.mrb[0].mxu0
  %988 = vdwg.mxu0
  %v989 = vmul.f32 %v951, 0.25
  %v990 = vmul.f32 %v956, 0.25
  %v991 = vmul.f32 %v961, 0.25
  %v992 = vmul.f32 %v966, 0.25
  %v993 = vmul.f32 %v971, 0.25
  %v994 = vmul.f32 %v976, 0.25
  %v995 = vmul.f32 %v981, 0.25
  %v996 = vmul.f32 %v986, 0.25
  %v997 = vadd.f32 %v989, %v252
  %v998 = vadd.f32 %v990, %v253
  %v999 = vadd.f32 %v991, %v254
  %v1000 = vadd.f32 %v992, %v255
  %v1001 = vadd.f32 %v993, %v256
  %v1002 = vadd.f32 %v994, %v257
  %v1003 = vadd.f32 %v995, %v258
  %v1004 = vadd.f32 %v996, %v259
  %v1005 = vsel %vm578, %v997, -inf
  %1006 = vmax.xlane.f32.xlu0 %v1005
  %v1007 = vpop.xlane.xlu0 %1006
  %v1008 = vsel %vm578, %v998, -inf
  %1009 = vmax.xlane.f32.xlu0 %v1008
  %v1010 = vpop.xlane.xlu0 %1009
  %v1011 = vsel %vm578, %v999, -inf
  %1012 = vmax.xlane.f32.xlu0 %v1011
  %v1013 = vpop.xlane.xlu0 %1012
  %v1014 = vsel %vm578, %v1000, -inf
  %1015 = vmax.xlane.f32.xlu0 %v1014
  %v1016 = vpop.xlane.xlu0 %1015
  %v1017 = vsel %vm578, %v1001, -inf
  %1018 = vmax.xlane.f32.xlu0 %v1017
  %v1019 = vpop.xlane.xlu0 %1018
  %v1020 = vsel %vm578, %v1002, -inf
  %1021 = vmax.xlane.f32.xlu0 %v1020
  %v1022 = vpop.xlane.xlu0 %1021
  %v1023 = vsel %vm578, %v1003, -inf
  %1024 = vmax.xlane.f32.xlu0 %v1023
  %v1025 = vpop.xlane.xlu0 %1024
  %v1026 = vsel %vm578, %v1004, -inf
  %1027 = vmax.xlane.f32.xlu0 %v1026
  %v1028 = vpop.xlane.xlu0 %1027
  %v1029 = vsub.f32 %v997, %v1007
  %v1030 = vsub.f32 %v998, %v1010
  %v1031 = vsub.f32 %v999, %v1013
  %v1032 = vsub.f32 %v1000, %v1016
  %v1033 = vsub.f32 %v1001, %v1019
  %v1034 = vsub.f32 %v1002, %v1022
  %v1035 = vsub.f32 %v1003, %v1025
  %v1036 = vsub.f32 %v1004, %v1028
  %v1037 = vmul.f32 %v1029, 1.442695
  %v1038 = vpow.pop %v1037
  %v1039 = vmul.f32 %v1030, 1.442695
  %v1040 = vpow.pop %v1039
  %v1041 = vmul.f32 %v1031, 1.442695
  %v1042 = vpow.pop %v1041
  %v1043 = vmul.f32 %v1032, 1.442695
  %v1044 = vpow.pop %v1043
  %v1045 = vmul.f32 %v1033, 1.442695
  %v1046 = vpow.pop %v1045
  %v1047 = vmul.f32 %v1034, 1.442695
  %v1048 = vpow.pop %v1047
  %v1049 = vmul.f32 %v1035, 1.442695
  %v1050 = vpow.pop %v1049
  %v1051 = vmul.f32 %v1036, 1.442695
  %v1052 = vpow.pop %v1051
  %v1053 = vsel %vm578, %v1038, 0.0
  %1054 = vadd.xlane.f32.xlu0 %v1053
  %v1055 = vpop.xlane.xlu0 %1054
  %v1056 = vsel %vm578, %v1040, 0.0
  %1057 = vadd.xlane.f32.xlu0 %v1056
  %v1058 = vpop.xlane.xlu0 %1057
  %v1059 = vsel %vm578, %v1042, 0.0
  %1060 = vadd.xlane.f32.xlu0 %v1059
  %v1061 = vpop.xlane.xlu0 %1060
  %v1062 = vsel %vm578, %v1044, 0.0
  %1063 = vadd.xlane.f32.xlu0 %v1062
  %v1064 = vpop.xlane.xlu0 %1063
  %v1065 = vsel %vm578, %v1046, 0.0
  %1066 = vadd.xlane.f32.xlu0 %v1065
  %v1067 = vpop.xlane.xlu0 %1066
  %v1068 = vsel %vm578, %v1048, 0.0
  %1069 = vadd.xlane.f32.xlu0 %v1068
  %v1070 = vpop.xlane.xlu0 %1069
  %v1071 = vsel %vm578, %v1050, 0.0
  %1072 = vadd.xlane.f32.xlu0 %v1071
  %v1073 = vpop.xlane.xlu0 %1072
  %v1074 = vsel %vm578, %v1052, 0.0
  %1075 = vadd.xlane.f32.xlu0 %v1074
  %v1076 = vpop.xlane.xlu0 %1075
  %v1077 = vrcp.pop %v1055
  %v1078 = vrcp.pop %v1058
  %v1079 = vrcp.pop %v1061
  %v1080 = vrcp.pop %v1064
  %v1081 = vrcp.pop %v1067
  %v1082 = vrcp.pop %v1070
  %v1083 = vrcp.pop %v1073
  %v1084 = vrcp.pop %v1076
  %v1085 = vmul.f32 %v1038, %v1077
  %v1086 = vmul.f32 %v1040, %v1078
  %v1087 = vmul.f32 %v1042, %v1079
  %v1088 = vmul.f32 %v1044, %v1080
  %v1089 = vmul.f32 %v1046, %v1081
  %v1090 = vmul.f32 %v1048, %v1082
  %v1091 = vmul.f32 %v1050, %v1083
  %v1092 = vmul.f32 %v1052, %v1084
  %1093 = vrot.lane.b32.xlu0 %v362, 48
  %v1094 = vpop.permute.xlu0 %1093
  %1095 = vrot.lane.b32.xlu0 %v367, 48
  %v1096 = vpop.permute.xlu0 %1095
  %1097 = vrot.lane.b32.xlu0 %v372, 48
  %v1098 = vpop.permute.xlu0 %1097
  %1099 = vrot.lane.b32.xlu0 %v377, 48
  %v1100 = vpop.permute.xlu0 %1099
  %1101 = vrot.lane.b32.xlu0 %v382, 48
  %v1102 = vpop.permute.xlu0 %1101
  %1103 = vrot.lane.b32.xlu0 %v387, 48
  %v1104 = vpop.permute.xlu0 %1103
  %1105 = vrot.lane.b32.xlu0 %v392, 48
  %v1106 = vpop.permute.xlu0 %1105
  %1107 = vrot.lane.b32.xlu0 %v397, 48
  %v1108 = vpop.permute.xlu0 %1107
  %v1118 = vsel %vm578, %v1085, 0
  %v1121 = vsel %vm578, %v1086, 0
  %v1124 = vsel %vm578, %v1087, 0
  %v1127 = vsel %vm578, %v1088, 0
  %v1130 = vsel %vm578, %v1089, 0
  %v1133 = vsel %vm578, %v1090, 0
  %v1136 = vsel %vm578, %v1091, 0
  %v1139 = vsel %vm578, %v1092, 0
  %1141 = vmatprep.subr.mxu0 0.0
  %1142 = vmatpush1.msra.mxu0 %v1094
  %1143 = vmatprep.subr.mxu0 0.0
  %1144 = vmatpush1.msra.mxu0 %v1096
  %1145 = vmatprep.subr.mxu0 0.0
  %1146 = vmatpush1.msra.mxu0 %v1098
  %1147 = vmatprep.subr.mxu0 0.0
  %1148 = vmatpush1.msra.mxu0 %v1100
  %1149 = vmatprep.subr.mxu0 0.0
  %1150 = vmatpush1.msra.mxu0 %v1102
  %1151 = vmatprep.subr.mxu0 0.0
  %1152 = vmatpush1.msra.mxu0 %v1104
  %1153 = vmatprep.subr.mxu0 0.0
  %1154 = vmatpush1.msra.mxu0 %v1106
  %1155 = vmatprep.subr.mxu0 0.0
  %1156 = vmatpush1.msra.mxu0 %v1108
  %1157 = vmatprep.subr.mxu0 0.0
  %1158 = vmatpush1.msra.mxu0 0.0
  %1159 = vmatprep.subr.mxu0 0.0
  %1160 = vmatpush1.msra.mxu0 0.0
  %1161 = vmatprep.subr.mxu0 0.0
  %1162 = vmatpush1.msra.mxu0 0.0
  %1163 = vmatprep.subr.mxu0 0.0
  %1164 = vmatpush1.msra.mxu0 0.0
  %1165 = vmatprep.subr.mxu0 0.0
  %1166 = vmatpush1.msra.mxu0 0.0
  %1167 = vmatprep.subr.mxu0 0.0
  %1168 = vmatpush1.msra.mxu0 0.0
  %1169 = vmatprep.subr.mxu0 0.0
  %1170 = vmatpush1.msra.mxu0 0.0
  %1171 = vmatprep.subr.mxu0 0.0
  %1172 = vmatpush1.msra.mxu0 0.0
  %1173 = vmatprep.subr.mxu0 0.0
  %1174 = vmatpush1.msra.mxu0 0.0
  %1175 = vmatprep.subr.mxu0 0.0
  %1176 = vmatpush1.msra.mxu0 0.0
  %1177 = vmatprep.subr.mxu0 0.0
  %1178 = vmatpush1.msra.mxu0 0.0
  %1179 = vmatprep.subr.mxu0 0.0
  %1180 = vmatpush1.msra.mxu0 0.0
  %1181 = vmatprep.subr.mxu0 0.0
  %1182 = vmatpush1.msra.mxu0 0.0
  %1183 = vmatprep.subr.mxu0 0.0
  %1184 = vmatpush1.msra.mxu0 0.0
  %1185 = vmatprep.subr.mxu0 0.0
  %1186 = vmatpush1.msra.mxu0 0.0
  %1187 = vmatprep.subr.mxu0 0.0
  %1188 = vmatpush1.msra.mxu0 0.0
  %1189 = vmatprep.subr.mxu0 0.0
  %1190 = vmatpush1.msra.mxu0 0.0
  %1191 = vmatprep.subr.mxu0 0.0
  %1192 = vmatpush1.msra.mxu0 0.0
  %1193 = vmatprep.subr.mxu0 0.0
  %1194 = vmatpush1.msra.mxu0 0.0
  %1195 = vmatprep.subr.mxu0 0.0
  %1196 = vmatpush1.msra.mxu0 0.0
  %1197 = vmatprep.subr.mxu0 0.0
  %1198 = vmatpush1.msra.mxu0 0.0
  %1199 = vmatprep.subr.mxu0 0.0
  %1200 = vmatpush1.msra.mxu0 0.0
  %1201 = vmatprep.subr.mxu0 0.0
  %1202 = vmatpush1.msra.mxu0 0.0
  %1203 = vmatprep.subr.mxu0 0.0
  %1204 = vmatpush1.msra.mxu0 0.0
  %1205 = vmatprep.mubr.f32.mxu0 0.0
  %1206 = vmatmul.mubr.f32.gmra.mrb[0].mxu0 %v1118
  %v1207 = vpop.f32.mrb[0].mxu0
  %v1208 = vadd.f32 0.0, %v1207
  %v1209 = vpop.f32.mrb[0].mxu0
  %1210 = vmatprep.mubr.f32.mxu0 0.0
  %1211 = vmatmul.mubr.f32.gmra.mrb[0].mxu0 %v1121
  %v1212 = vpop.f32.mrb[0].mxu0
  %v1213 = vadd.f32 0.0, %v1212
  %v1214 = vpop.f32.mrb[0].mxu0
  %1215 = vmatprep.mubr.f32.mxu0 0.0
  %1216 = vmatmul.mubr.f32.gmra.mrb[0].mxu0 %v1124
  %v1217 = vpop.f32.mrb[0].mxu0
  %v1218 = vadd.f32 0.0, %v1217
  %v1219 = vpop.f32.mrb[0].mxu0
  %1220 = vmatprep.mubr.f32.mxu0 0.0
  %1221 = vmatmul.mubr.f32.gmra.mrb[0].mxu0 %v1127
  %v1222 = vpop.f32.mrb[0].mxu0
  %v1223 = vadd.f32 0.0, %v1222
  %v1224 = vpop.f32.mrb[0].mxu0
  %1225 = vmatprep.mubr.f32.mxu0 0.0
  %1226 = vmatmul.mubr.f32.gmra.mrb[0].mxu0 %v1130
  %v1227 = vpop.f32.mrb[0].mxu0
  %v1228 = vadd.f32 0.0, %v1227
  %v1229 = vpop.f32.mrb[0].mxu0
  %1230 = vmatprep.mubr.f32.mxu0 0.0
  %1231 = vmatmul.mubr.f32.gmra.mrb[0].mxu0 %v1133
  %v1232 = vpop.f32.mrb[0].mxu0
  %v1233 = vadd.f32 0.0, %v1232
  %v1234 = vpop.f32.mrb[0].mxu0
  %1235 = vmatprep.mubr.f32.mxu0 0.0
  %1236 = vmatmul.mubr.f32.gmra.mrb[0].mxu0 %v1136
  %v1237 = vpop.f32.mrb[0].mxu0
  %v1238 = vadd.f32 0.0, %v1237
  %v1239 = vpop.f32.mrb[0].mxu0
  %1240 = vmatprep.mubr.f32.mxu0 0.0
  %1241 = vmatmul.mubr.f32.gmra.mrb[0].mxu0 %v1139
  %v1242 = vpop.f32.mrb[0].mxu0
  %v1243 = vadd.f32 0.0, %v1242
  %v1244 = vpop.f32.mrb[0].mxu0
  %1245 = vdwg.mxu0
  %1254 = vrot.lane.b32.xlu0 %v1208, 16
  %v1255 = vpop.permute.xlu0 %1254
  %1256 = vrot.lane.b32.xlu0 %v1213, 16
  %v1257 = vpop.permute.xlu0 %1256
  %1258 = vrot.lane.b32.xlu0 %v1218, 16
  %v1259 = vpop.permute.xlu0 %1258
  %1260 = vrot.lane.b32.xlu0 %v1223, 16
  %v1261 = vpop.permute.xlu0 %1260
  %1262 = vrot.lane.b32.xlu0 %v1228, 16
  %v1263 = vpop.permute.xlu0 %1262
  %1264 = vrot.lane.b32.xlu0 %v1233, 16
  %v1265 = vpop.permute.xlu0 %1264
  %1266 = vrot.lane.b32.xlu0 %v1238, 16
  %v1267 = vpop.permute.xlu0 %1266
  %1268 = vrot.lane.b32.xlu0 %v1243, 16
  %v1269 = vpop.permute.xlu0 %1268
  %v1278 = vsel %vm424, %v782, %v1255
  %v1279 = vsel %vm424, %v787, %v1257
  %v1280 = vsel %vm424, %v792, %v1259
  %v1281 = vsel %vm424, %v797, %v1261
  %v1282 = vsel %vm424, %v802, %v1263
  %v1283 = vsel %vm424, %v807, %v1265
  %v1284 = vsel %vm424, %v812, %v1267
  %v1285 = vsel %vm424, %v817, %v1269
  %v1286 = vld [vmem:[%s7] sm:$0xff]
  %v1287 = vld [vmem:[%s7 + $0x8] sm:$0xff]
  %v1288 = vld [vmem:[%s7 + $0x10] sm:$0xff]
  %v1289 = vld [vmem:[%s7 + $0x18] sm:$0xff]
  %v1290 = vlaneseq
  %v1291 = vshrl.u32 %v1290, 7
  %v1292 = vsub.s32 0, %v1291
  %v1293 = vrot.slane %v261, %v1292
  %v1295 = vsel %vm270, %v1278, 0
  %v1298 = vsel %vm270, %v1279, 0
  %v1301 = vsel %vm270, %v1280, 0
  %v1304 = vsel %vm270, %v1281, 0
  %v1307 = vsel %vm270, %v1282, 0
  %v1310 = vsel %vm270, %v1283, 0
  %v1313 = vsel %vm270, %v1284, 0
  %v1316 = vsel %vm270, %v1285, 0
  %1318 = vmatprep.subr.mxu0 0.0
  %1319 = vmatpush1.msra.mxu0 %v1286
  %1320 = vmatprep.subr.mxu0 0.0
  %1321 = vmatpush1.msra.mxu0 %v1287
  %1322 = vmatprep.subr.mxu0 0.0
  %1323 = vmatpush1.msra.mxu0 %v1288
  %1324 = vmatprep.subr.mxu0 0.0
  %1325 = vmatpush1.msra.mxu0 %v1289
  %1326 = vmatprep.subr.mxu0 0.0
  %1327 = vmatpush1.msra.mxu0 0.0
  %1328 = vmatprep.subr.mxu0 0.0
  %1329 = vmatpush1.msra.mxu0 0.0
  %1330 = vmatprep.subr.mxu0 0.0
  %1331 = vmatpush1.msra.mxu0 0.0
  %1332 = vmatprep.subr.mxu0 0.0
  %1333 = vmatpush1.msra.mxu0 0.0
  %1334 = vmatprep.subr.mxu0 0.0
  %1335 = vmatpush1.msra.mxu0 0.0
  %1336 = vmatprep.subr.mxu0 0.0
  %1337 = vmatpush1.msra.mxu0 0.0
  %1338 = vmatprep.subr.mxu0 0.0
  %1339 = vmatpush1.msra.mxu0 0.0
  %1340 = vmatprep.subr.mxu0 0.0
  %1341 = vmatpush1.msra.mxu0 0.0
  %1342 = vmatprep.subr.mxu0 0.0
  %1343 = vmatpush1.msra.mxu0 0.0
  %1344 = vmatprep.subr.mxu0 0.0
  %1345 = vmatpush1.msra.mxu0 0.0
  %1346 = vmatprep.subr.mxu0 0.0
  %1347 = vmatpush1.msra.mxu0 0.0
  %1348 = vmatprep.subr.mxu0 0.0
  %1349 = vmatpush1.msra.mxu0 0.0
  %1350 = vmatprep.subr.mxu0 0.0
  %1351 = vmatpush1.msra.mxu0 0.0
  %1352 = vmatprep.subr.mxu0 0.0
  %1353 = vmatpush1.msra.mxu0 0.0
  %1354 = vmatprep.subr.mxu0 0.0
  %1355 = vmatpush1.msra.mxu0 0.0
  %1356 = vmatprep.subr.mxu0 0.0
  %1357 = vmatpush1.msra.mxu0 0.0
  %1358 = vmatprep.subr.mxu0 0.0
  %1359 = vmatpush1.msra.mxu0 0.0
  %1360 = vmatprep.subr.mxu0 0.0
  %1361 = vmatpush1.msra.mxu0 0.0
  %1362 = vmatprep.subr.mxu0 0.0
  %1363 = vmatpush1.msra.mxu0 0.0
  %1364 = vmatprep.subr.mxu0 0.0
  %1365 = vmatpush1.msra.mxu0 0.0
  %1366 = vmatprep.subr.mxu0 0.0
  %1367 = vmatpush1.msra.mxu0 0.0
  %1368 = vmatprep.subr.mxu0 0.0
  %1369 = vmatpush1.msra.mxu0 0.0
  %1370 = vmatprep.subr.mxu0 0.0
  %1371 = vmatpush1.msra.mxu0 0.0
  %1372 = vmatprep.subr.mxu0 0.0
  %1373 = vmatpush1.msra.mxu0 0.0
  %1374 = vmatprep.subr.mxu0 0.0
  %1375 = vmatpush1.msra.mxu0 0.0
  %1376 = vmatprep.subr.mxu0 0.0
  %1377 = vmatpush1.msra.mxu0 0.0
  %1378 = vmatprep.subr.mxu0 0.0
  %1379 = vmatpush1.msra.mxu0 0.0
  %1380 = vmatprep.subr.mxu0 0.0
  %1381 = vmatpush1.msra.mxu0 0.0
  %1382 = vmatprep.mubr.f32.mxu0 0.0
  %1383 = vmatmul.mubr.f32.gmra.mrb[0].mxu0 %v1295
  %v1384 = vpop.f32.mrb[0].mxu0
  %v1385 = vadd.f32 %v1293, %v1384
  %v1386 = vpop.f32.mrb[0].mxu0
  %1387 = vmatprep.mubr.f32.mxu0 0.0
  %1388 = vmatmul.mubr.f32.gmra.mrb[0].mxu0 %v1298
  %v1389 = vpop.f32.mrb[0].mxu0
  %v1390 = vadd.f32 %v1293, %v1389
  %v1391 = vpop.f32.mrb[0].mxu0
  %1392 = vmatprep.mubr.f32.mxu0 0.0
  %1393 = vmatmul.mubr.f32.gmra.mrb[0].mxu0 %v1301
  %v1394 = vpop.f32.mrb[0].mxu0
  %v1395 = vadd.f32 %v1293, %v1394
  %v1396 = vpop.f32.mrb[0].mxu0
  %1397 = vmatprep.mubr.f32.mxu0 0.0
  %1398 = vmatmul.mubr.f32.gmra.mrb[0].mxu0 %v1304
  %v1399 = vpop.f32.mrb[0].mxu0
  %v1400 = vadd.f32 %v1293, %v1399
  %v1401 = vpop.f32.mrb[0].mxu0
  %1402 = vmatprep.mubr.f32.mxu0 0.0
  %1403 = vmatmul.mubr.f32.gmra.mrb[0].mxu0 %v1307
  %v1404 = vpop.f32.mrb[0].mxu0
  %v1405 = vadd.f32 %v1293, %v1404
  %v1406 = vpop.f32.mrb[0].mxu0
  %1407 = vmatprep.mubr.f32.mxu0 0.0
  %1408 = vmatmul.mubr.f32.gmra.mrb[0].mxu0 %v1310
  %v1409 = vpop.f32.mrb[0].mxu0
  %v1410 = vadd.f32 %v1293, %v1409
  %v1411 = vpop.f32.mrb[0].mxu0
  %1412 = vmatprep.mubr.f32.mxu0 0.0
  %1413 = vmatmul.mubr.f32.gmra.mrb[0].mxu0 %v1313
  %v1414 = vpop.f32.mrb[0].mxu0
  %v1415 = vadd.f32 %v1293, %v1414
  %v1416 = vpop.f32.mrb[0].mxu0
  %1417 = vmatprep.mubr.f32.mxu0 0.0
  %1418 = vmatmul.mubr.f32.gmra.mrb[0].mxu0 %v1316
  %v1419 = vpop.f32.mrb[0].mxu0
  %v1420 = vadd.f32 %v1293, %v1419
  %v1421 = vpop.f32.mrb[0].mxu0
  %1422 = vdwg.mxu0
  %v1423 = vadd.f32 %v1385, %v59
  %v1424 = vadd.f32 %v1390, %v60
  %v1425 = vadd.f32 %v1395, %v61
  %v1426 = vadd.f32 %v1400, %v62
  %v1427 = vadd.f32 %v1405, %v63
  %v1428 = vadd.f32 %v1410, %v64
  %v1429 = vadd.f32 %v1415, %v65
  %v1430 = vadd.f32 %v1420, %v66
  %v1431 = vld [vmem:[%s17 + $0x2] sm:$0x1]
  %v1432 = vld [vmem:[%s17 + $0x3] sm:$0x1]
  %v1433 = vsel %vm270, %v1423, 0.0
  %1434 = vadd.xlane.f32.xlu0 %v1433
  %v1435 = vpop.xlane.xlu0 %1434
  %v1436 = vsel %vm270, %v1424, 0.0
  %1437 = vadd.xlane.f32.xlu0 %v1436
  %v1438 = vpop.xlane.xlu0 %1437
  %v1439 = vsel %vm270, %v1425, 0.0
  %1440 = vadd.xlane.f32.xlu0 %v1439
  %v1441 = vpop.xlane.xlu0 %1440
  %v1442 = vsel %vm270, %v1426, 0.0
  %1443 = vadd.xlane.f32.xlu0 %v1442
  %v1444 = vpop.xlane.xlu0 %1443
  %v1445 = vsel %vm270, %v1427, 0.0
  %1446 = vadd.xlane.f32.xlu0 %v1445
  %v1447 = vpop.xlane.xlu0 %1446
  %v1448 = vsel %vm270, %v1428, 0.0
  %1449 = vadd.xlane.f32.xlu0 %v1448
  %v1450 = vpop.xlane.xlu0 %1449
  %v1451 = vsel %vm270, %v1429, 0.0
  %1452 = vadd.xlane.f32.xlu0 %v1451
  %v1453 = vpop.xlane.xlu0 %1452
  %v1454 = vsel %vm270, %v1430, 0.0
  %1455 = vadd.xlane.f32.xlu0 %v1454
  %v1456 = vpop.xlane.xlu0 %1455
  %v1457 = vrcp.pop 32.0
  %v1458 = vmul.f32 %v1435, %v1457
  %v1459 = vmul.f32 %v1438, %v1457
  %v1460 = vmul.f32 %v1441, %v1457
  %v1461 = vmul.f32 %v1444, %v1457
  %v1462 = vmul.f32 %v1447, %v1457
  %v1463 = vmul.f32 %v1450, %v1457
  %v1464 = vmul.f32 %v1453, %v1457
  %v1465 = vmul.f32 %v1456, %v1457
  %v1466 = vsub.f32 %v1423, %v1458
  %v1467 = vsub.f32 %v1424, %v1459
  %v1468 = vsub.f32 %v1425, %v1460
  %v1469 = vsub.f32 %v1426, %v1461
  %v1470 = vsub.f32 %v1427, %v1462
  %v1471 = vsub.f32 %v1428, %v1463
  %v1472 = vsub.f32 %v1429, %v1464
  %v1473 = vsub.f32 %v1430, %v1465
  %v1474 = vmul.f32 %v1466, %v1466
  %v1475 = vmul.f32 %v1467, %v1467
  %v1476 = vmul.f32 %v1468, %v1468
  %v1477 = vmul.f32 %v1469, %v1469
  %v1478 = vmul.f32 %v1470, %v1470
  %v1479 = vmul.f32 %v1471, %v1471
  %v1480 = vmul.f32 %v1472, %v1472
  %v1481 = vmul.f32 %v1473, %v1473
  %v1482 = vsel %vm270, %v1474, 0.0
  %1483 = vadd.xlane.f32.xlu0 %v1482
  %v1484 = vpop.xlane.xlu0 %1483
  %v1485 = vsel %vm270, %v1475, 0.0
  %1486 = vadd.xlane.f32.xlu0 %v1485
  %v1487 = vpop.xlane.xlu0 %1486
  %v1488 = vsel %vm270, %v1476, 0.0
  %1489 = vadd.xlane.f32.xlu0 %v1488
  %v1490 = vpop.xlane.xlu0 %1489
  %v1491 = vsel %vm270, %v1477, 0.0
  %1492 = vadd.xlane.f32.xlu0 %v1491
  %v1493 = vpop.xlane.xlu0 %1492
  %v1494 = vsel %vm270, %v1478, 0.0
  %1495 = vadd.xlane.f32.xlu0 %v1494
  %v1496 = vpop.xlane.xlu0 %1495
  %v1497 = vsel %vm270, %v1479, 0.0
  %1498 = vadd.xlane.f32.xlu0 %v1497
  %v1499 = vpop.xlane.xlu0 %1498
  %v1500 = vsel %vm270, %v1480, 0.0
  %1501 = vadd.xlane.f32.xlu0 %v1500
  %v1502 = vpop.xlane.xlu0 %1501
  %v1503 = vsel %vm270, %v1481, 0.0
  %1504 = vadd.xlane.f32.xlu0 %v1503
  %v1505 = vpop.xlane.xlu0 %1504
  %v1506 = vmul.f32 %v1484, %v1457
  %v1507 = vmul.f32 %v1487, %v1457
  %v1508 = vmul.f32 %v1490, %v1457
  %v1509 = vmul.f32 %v1493, %v1457
  %v1510 = vmul.f32 %v1496, %v1457
  %v1511 = vmul.f32 %v1499, %v1457
  %v1512 = vmul.f32 %v1502, %v1457
  %v1513 = vmul.f32 %v1505, %v1457
  %v1514 = vadd.f32 %v1506, 1e-05
  %v1515 = vadd.f32 %v1507, 1e-05
  %v1516 = vadd.f32 %v1508, 1e-05
  %v1517 = vadd.f32 %v1509, 1e-05
  %v1518 = vadd.f32 %v1510, 1e-05
  %v1519 = vadd.f32 %v1511, 1e-05
  %v1520 = vadd.f32 %v1512, 1e-05
  %v1521 = vadd.f32 %v1513, 1e-05
  %v1522 = vrsqrt.pop %v1514
  %v1523 = vrsqrt.pop %v1515
  %v1524 = vrsqrt.pop %v1516
  %v1525 = vrsqrt.pop %v1517
  %v1526 = vrsqrt.pop %v1518
  %v1527 = vrsqrt.pop %v1519
  %v1528 = vrsqrt.pop %v1520
  %v1529 = vrsqrt.pop %v1521
  %v1530 = vmul.f32 %v1466, %v1522
  %v1531 = vmul.f32 %v1467, %v1523
  %v1532 = vmul.f32 %v1468, %v1524
  %v1533 = vmul.f32 %v1469, %v1525
  %v1534 = vmul.f32 %v1470, %v1526
  %v1535 = vmul.f32 %v1471, %v1527
  %v1536 = vmul.f32 %v1472, %v1528
  %v1537 = vmul.f32 %v1473, %v1529
  %v1538 = vlaneseq
  %v1539 = vshrl.u32 %v1538, 7
  %v1540 = vsub.s32 0, %v1539
  %v1541 = vrot.slane %v1431, %v1540
  %v1542 = vmul.f32 %v1530, %v1541
  %v1543 = vmul.f32 %v1531, %v1541
  %v1544 = vmul.f32 %v1532, %v1541
  %v1545 = vmul.f32 %v1533, %v1541
  %v1546 = vmul.f32 %v1534, %v1541
  %v1547 = vmul.f32 %v1535, %v1541
  %v1548 = vmul.f32 %v1536, %v1541
  %v1549 = vmul.f32 %v1537, %v1541
  %v1550 = vlaneseq
  %v1551 = vshrl.u32 %v1550, 7
  %v1552 = vsub.s32 0, %v1551
  %v1553 = vrot.slane %v1432, %v1552
  %v1554 = vadd.f32 %v1542, %v1553
  %v1555 = vadd.f32 %v1543, %v1553
  %v1556 = vadd.f32 %v1544, %v1553
  %v1557 = vadd.f32 %v1545, %v1553
  %v1558 = vadd.f32 %v1546, %v1553
  %v1559 = vadd.f32 %v1547, %v1553
  %v1560 = vadd.f32 %v1548, %v1553
  %v1561 = vadd.f32 %v1549, %v1553
  %v1562 = vld [vmem:[%s17 + $0x4] sm:$0x1]
  %v1563 = vrot.slane %v1554, 7
  %v1564 = vrot.slane %v1555, 7
  %v1565 = vrot.slane %v1556, 7
  %v1566 = vrot.slane %v1557, 7
  %v1567 = vrot.slane %v1558, 7
  %v1568 = vrot.slane %v1559, 7
  %v1569 = vrot.slane %v1560, 7
  %v1570 = vrot.slane %v1561, 7
  %vm1571 = vcmp.lt.s32.totalorder %v68, 1
  %v1572 = vsel %vm1571, %v1569, %v1570
  %v1573 = vsel %vm1571, %v1568, %v1569
  %v1574 = vsel %vm1571, %v1567, %v1568
  %v1575 = vsel %vm1571, %v1566, %v1567
  %v1576 = vsel %vm1571, %v1565, %v1566
  %v1577 = vsel %vm1571, %v1564, %v1565
  %v1578 = vsel %vm1571, %v1563, %v1564
  %v1579 = vsel %vm1571, %v1570, %v1563
  %v1580 = vmul.f32 %v1579, %v100
  %v1581 = vmul.f32 %v1578, %v101
  %v1582 = vmul.f32 %v1577, %v102
  %v1583 = vmul.f32 %v1576, %v103
  %v1584 = vmul.f32 %v1575, %v104
  %v1585 = vmul.f32 %v1574, %v105
  %v1586 = vmul.f32 %v1573, %v106
  %v1587 = vmul.f32 %v1572, %v107
  %v1588 = vrot.slane %v1554, 1
  %v1589 = vrot.slane %v1555, 1
  %v1590 = vrot.slane %v1556, 1
  %v1591 = vrot.slane %v1557, 1
  %v1592 = vrot.slane %v1558, 1
  %v1593 = vrot.slane %v1559, 1
  %v1594 = vrot.slane %v1560, 1
  %v1595 = vrot.slane %v1561, 1
  %vm1596 = vcmp.lt.s32.totalorder %v68, 7
  %v1597 = vsel %vm1596, %v1594, %v1595
  %v1598 = vsel %vm1596, %v1593, %v1594
  %v1599 = vsel %vm1596, %v1592, %v1593
  %v1600 = vsel %vm1596, %v1591, %v1592
  %v1601 = vsel %vm1596, %v1590, %v1591
  %v1602 = vsel %vm1596, %v1589, %v1590
  %v1603 = vsel %vm1596, %v1588, %v1589
  %v1604 = vsel %vm1596, %v1595, %v1588
  %v1605 = vmul.f32 %v1603, %v124
  %v1606 = vmul.f32 %v1602, %v125
  %v1607 = vmul.f32 %v1601, %v126
  %v1608 = vmul.f32 %v1600, %v127
  %v1609 = vmul.f32 %v1599, %v128
  %v1610 = vmul.f32 %v1598, %v129
  %v1611 = vmul.f32 %v1597, %v130
  %v1612 = vmul.f32 %v1604, %v131
  %1621 = vrot.lane.b32.xlu0 %v1554, 32
  %v1622 = vpop.permute.xlu0 %1621
  %1623 = vrot.lane.b32.xlu0 %v1555, 32
  %v1624 = vpop.permute.xlu0 %1623
  %1625 = vrot.lane.b32.xlu0 %v1556, 32
  %v1626 = vpop.permute.xlu0 %1625
  %1627 = vrot.lane.b32.xlu0 %v1557, 32
  %v1628 = vpop.permute.xlu0 %1627
  %1629 = vrot.lane.b32.xlu0 %v1558, 32
  %v1630 = vpop.permute.xlu0 %1629
  %1631 = vrot.lane.b32.xlu0 %v1559, 32
  %v1632 = vpop.permute.xlu0 %1631
  %1633 = vrot.lane.b32.xlu0 %v1560, 32
  %v1634 = vpop.permute.xlu0 %1633
  %1635 = vrot.lane.b32.xlu0 %v1561, 32
  %v1636 = vpop.permute.xlu0 %1635
  %1653 = vrot.lane.b32.xlu0 %v1605, 64
  %v1654 = vpop.permute.xlu0 %1653
  %1655 = vrot.lane.b32.xlu0 %v1606, 64
  %v1656 = vpop.permute.xlu0 %1655
  %1657 = vrot.lane.b32.xlu0 %v1607, 64
  %v1658 = vpop.permute.xlu0 %1657
  %1659 = vrot.lane.b32.xlu0 %v1608, 64
  %v1660 = vpop.permute.xlu0 %1659
  %1661 = vrot.lane.b32.xlu0 %v1609, 64
  %v1662 = vpop.permute.xlu0 %1661
  %1663 = vrot.lane.b32.xlu0 %v1610, 64
  %v1664 = vpop.permute.xlu0 %1663
  %1665 = vrot.lane.b32.xlu0 %v1611, 64
  %v1666 = vpop.permute.xlu0 %1665
  %1667 = vrot.lane.b32.xlu0 %v1612, 64
  %v1668 = vpop.permute.xlu0 %1667
  %v1677 = vsel %vm270, %v1580, %v1622
  %v1678 = vsel %vm270, %v1581, %v1624
  %v1679 = vsel %vm270, %v1582, %v1626
  %v1680 = vsel %vm270, %v1583, %v1628
  %v1681 = vsel %vm270, %v1584, %v1630
  %v1682 = vsel %vm270, %v1585, %v1632
  %v1683 = vsel %vm270, %v1586, %v1634
  %v1684 = vsel %vm270, %v1587, %v1636
  %v1685 = vsel %vm578, %v1677, %v1654
  %v1686 = vsel %vm578, %v1678, %v1656
  %v1687 = vsel %vm578, %v1679, %v1658
  %v1688 = vsel %vm578, %v1680, %v1660
  %v1689 = vsel %vm578, %v1681, %v1662
  %v1690 = vsel %vm578, %v1682, %v1664
  %v1691 = vsel %vm578, %v1683, %v1666
  %v1692 = vsel %vm578, %v1684, %v1668
  %v1693 = vld [vmem:[%s8] sm:$0xff]
  %v1694 = vld [vmem:[%s8 + $0x8] sm:$0xff]
  %v1695 = vld [vmem:[%s8 + $0x10] sm:$0xff]
  %v1696 = vld [vmem:[%s8 + $0x18] sm:$0xff]
  %v1697 = vld [vmem:[%s8 + $0x20] sm:$0xff]
  %v1698 = vld [vmem:[%s8 + $0x28] sm:$0xff]
  %v1699 = vld [vmem:[%s8 + $0x30] sm:$0xff]
  %v1700 = vld [vmem:[%s8 + $0x38] sm:$0xff]
  %v1701 = vld [vmem:[%s8 + $0x40] sm:$0xff]
  %v1702 = vld [vmem:[%s8 + $0x48] sm:$0xff]
  %v1703 = vld [vmem:[%s8 + $0x50] sm:$0xff]
  %v1704 = vld [vmem:[%s8 + $0x58] sm:$0xff]
  %v1705 = vlaneseq
  %v1706 = vshrl.u32 %v1705, 7
  %v1707 = vsub.s32 0, %v1706
  %v1708 = vrot.slane %v1562, %v1707
  %vm1709 = vcmask 785408
  %v1711 = vsel %vm1709, %v1685, 0
  %v1714 = vsel %vm1709, %v1686, 0
  %v1717 = vsel %vm1709, %v1687, 0
  %v1720 = vsel %vm1709, %v1688, 0
  %v1723 = vsel %vm1709, %v1689, 0
  %v1726 = vsel %vm1709, %v1690, 0
  %v1729 = vsel %vm1709, %v1691, 0
  %v1732 = vsel %vm1709, %v1692, 0
  %1734 = vmatprep.subr.mxu0 0.0
  %1735 = vmatpush1.msra.mxu0 %v1693
  %1736 = vmatprep.subr.mxu0 0.0
  %1737 = vmatpush1.msra.mxu0 %v1694
  %1738 = vmatprep.subr.mxu0 0.0
  %1739 = vmatpush1.msra.mxu0 %v1695
  %1740 = vmatprep.subr.mxu0 0.0
  %1741 = vmatpush1.msra.mxu0 %v1696
  %1742 = vmatprep.subr.mxu0 0.0
  %1743 = vmatpush1.msra.mxu0 %v1697
  %1744 = vmatprep.subr.mxu0 0.0
  %1745 = vmatpush1.msra.mxu0 %v1698
  %1746 = vmatprep.subr.mxu0 0.0
  %1747 = vmatpush1.msra.mxu0 %v1699
  %1748 = vmatprep.subr.mxu0 0.0
  %1749 = vmatpush1.msra.mxu0 %v1700
  %1750 = vmatprep.subr.mxu0 0.0
  %1751 = vmatpush1.msra.mxu0 %v1701
  %1752 = vmatprep.subr.mxu0 0.0
  %1753 = vmatpush1.msra.mxu0 %v1702
  %1754 = vmatprep.subr.mxu0 0.0
  %1755 = vmatpush1.msra.mxu0 %v1703
  %1756 = vmatprep.subr.mxu0 0.0
  %1757 = vmatpush1.msra.mxu0 %v1704
  %1758 = vmatprep.subr.mxu0 0.0
  %1759 = vmatpush1.msra.mxu0 0.0
  %1760 = vmatprep.subr.mxu0 0.0
  %1761 = vmatpush1.msra.mxu0 0.0
  %1762 = vmatprep.subr.mxu0 0.0
  %1763 = vmatpush1.msra.mxu0 0.0
  %1764 = vmatprep.subr.mxu0 0.0
  %1765 = vmatpush1.msra.mxu0 0.0
  %1766 = vmatprep.subr.mxu0 0.0
  %1767 = vmatpush1.msra.mxu0 0.0
  %1768 = vmatprep.subr.mxu0 0.0
  %1769 = vmatpush1.msra.mxu0 0.0
  %1770 = vmatprep.subr.mxu0 0.0
  %1771 = vmatpush1.msra.mxu0 0.0
  %1772 = vmatprep.subr.mxu0 0.0
  %1773 = vmatpush1.msra.mxu0 0.0
  %1774 = vmatprep.subr.mxu0 0.0
  %1775 = vmatpush1.msra.mxu0 0.0
  %1776 = vmatprep.subr.mxu0 0.0
  %1777 = vmatpush1.msra.mxu0 0.0
  %1778 = vmatprep.subr.mxu0 0.0
  %1779 = vmatpush1.msra.mxu0 0.0
  %1780 = vmatprep.subr.mxu0 0.0
  %1781 = vmatpush1.msra.mxu0 0.0
  %1782 = vmatprep.subr.mxu0 0.0
  %1783 = vmatpush1.msra.mxu0 0.0
  %1784 = vmatprep.subr.mxu0 0.0
  %1785 = vmatpush1.msra.mxu0 0.0
  %1786 = vmatprep.subr.mxu0 0.0
  %1787 = vmatpush1.msra.mxu0 0.0
  %1788 = vmatprep.subr.mxu0 0.0
  %1789 = vmatpush1.msra.mxu0 0.0
  %1790 = vmatprep.subr.mxu0 0.0
  %1791 = vmatpush1.msra.mxu0 0.0
  %1792 = vmatprep.subr.mxu0 0.0
  %1793 = vmatpush1.msra.mxu0 0.0
  %1794 = vmatprep.subr.mxu0 0.0
  %1795 = vmatpush1.msra.mxu0 0.0
  %1796 = vmatprep.subr.mxu0 0.0
  %1797 = vmatpush1.msra.mxu0 0.0
  %1798 = vmatprep.mubr.f32.mxu0 0.0
  %1799 = vmatmul.mubr.f32.gmra.mrb[0].mxu0 %v1711
  %v1800 = vpop.f32.mrb[0].mxu0
  %v1801 = vadd.f32 %v1708, %v1800
  %v1802 = vpop.f32.mrb[0].mxu0
  %1803 = vmatprep.mubr.f32.mxu0 0.0
  %1804 = vmatmul.mubr.f32.gmra.mrb[0].mxu0 %v1714
  %v1805 = vpop.f32.mrb[0].mxu0
  %v1806 = vadd.f32 %v1708, %v1805
  %v1807 = vpop.f32.mrb[0].mxu0
  %1808 = vmatprep.mubr.f32.mxu0 0.0
  %1809 = vmatmul.mubr.f32.gmra.mrb[0].mxu0 %v1717
  %v1810 = vpop.f32.mrb[0].mxu0
  %v1811 = vadd.f32 %v1708, %v1810
  %v1812 = vpop.f32.mrb[0].mxu0
  %1813 = vmatprep.mubr.f32.mxu0 0.0
  %1814 = vmatmul.mubr.f32.gmra.mrb[0].mxu0 %v1720
  %v1815 = vpop.f32.mrb[0].mxu0
  %v1816 = vadd.f32 %v1708, %v1815
  %v1817 = vpop.f32.mrb[0].mxu0
  %1818 = vmatprep.mubr.f32.mxu0 0.0
  %1819 = vmatmul.mubr.f32.gmra.mrb[0].mxu0 %v1723
  %v1820 = vpop.f32.mrb[0].mxu0
  %v1821 = vadd.f32 %v1708, %v1820
  %v1822 = vpop.f32.mrb[0].mxu0
  %1823 = vmatprep.mubr.f32.mxu0 0.0
  %1824 = vmatmul.mubr.f32.gmra.mrb[0].mxu0 %v1726
  %v1825 = vpop.f32.mrb[0].mxu0
  %v1826 = vadd.f32 %v1708, %v1825
  %v1827 = vpop.f32.mrb[0].mxu0
  %1828 = vmatprep.mubr.f32.mxu0 0.0
  %1829 = vmatmul.mubr.f32.gmra.mrb[0].mxu0 %v1729
  %v1830 = vpop.f32.mrb[0].mxu0
  %v1831 = vadd.f32 %v1708, %v1830
  %v1832 = vpop.f32.mrb[0].mxu0
  %1833 = vmatprep.mubr.f32.mxu0 0.0
  %1834 = vmatmul.mubr.f32.gmra.mrb[0].mxu0 %v1732
  %v1835 = vpop.f32.mrb[0].mxu0
  %v1836 = vadd.f32 %v1708, %v1835
  %v1837 = vpop.f32.mrb[0].mxu0
  %1838 = vdwg.mxu0
  %v1839 = vmax.f32 %v1801, 0.0
  %v1840 = vmax.f32 %v1806, 0.0
  %v1841 = vmax.f32 %v1811, 0.0
  %v1842 = vmax.f32 %v1816, 0.0
  %v1843 = vmax.f32 %v1821, 0.0
  %v1844 = vmax.f32 %v1826, 0.0
  %v1845 = vmax.f32 %v1831, 0.0
  %v1846 = vmax.f32 %v1836, 0.0
  %v1847 = vld [vmem:[%s17 + $0x5] sm:$0x1]
  %v1848 = vrot.slane %v1839, 7
  %v1849 = vrot.slane %v1840, 7
  %v1850 = vrot.slane %v1841, 7
  %v1851 = vrot.slane %v1842, 7
  %v1852 = vrot.slane %v1843, 7
  %v1853 = vrot.slane %v1844, 7
  %v1854 = vrot.slane %v1845, 7
  %v1855 = vrot.slane %v1846, 7
  %v1856 = vsel %vm1571, %v1854, %v1855
  %v1857 = vsel %vm1571, %v1853, %v1854
  %v1858 = vsel %vm1571, %v1852, %v1853
  %v1859 = vsel %vm1571, %v1851, %v1852
  %v1860 = vsel %vm1571, %v1850, %v1851
  %v1861 = vsel %vm1571, %v1849, %v1850
  %v1862 = vsel %vm1571, %v1848, %v1849
  %v1863 = vsel %vm1571, %v1855, %v1848
  %v1864 = vmul.f32 %v1863, %v100
  %v1865 = vmul.f32 %v1862, %v101
  %v1866 = vmul.f32 %v1861, %v102
  %v1867 = vmul.f32 %v1860, %v103
  %v1868 = vmul.f32 %v1859, %v104
  %v1869 = vmul.f32 %v1858, %v105
  %v1870 = vmul.f32 %v1857, %v106
  %v1871 = vmul.f32 %v1856, %v107
  %v1872 = vrot.slane %v1839, 1
  %v1873 = vrot.slane %v1840, 1
  %v1874 = vrot.slane %v1841, 1
  %v1875 = vrot.slane %v1842, 1
  %v1876 = vrot.slane %v1843, 1
  %v1877 = vrot.slane %v1844, 1
  %v1878 = vrot.slane %v1845, 1
  %v1879 = vrot.slane %v1846, 1
  %v1880 = vsel %vm1596, %v1878, %v1879
  %v1881 = vsel %vm1596, %v1877, %v1878
  %v1882 = vsel %vm1596, %v1876, %v1877
  %v1883 = vsel %vm1596, %v1875, %v1876
  %v1884 = vsel %vm1596, %v1874, %v1875
  %v1885 = vsel %vm1596, %v1873, %v1874
  %v1886 = vsel %vm1596, %v1872, %v1873
  %v1887 = vsel %vm1596, %v1879, %v1872
  %v1888 = vmul.f32 %v1886, %v124
  %v1889 = vmul.f32 %v1885, %v125
  %v1890 = vmul.f32 %v1884, %v126
  %v1891 = vmul.f32 %v1883, %v127
  %v1892 = vmul.f32 %v1882, %v128
  %v1893 = vmul.f32 %v1881, %v129
  %v1894 = vmul.f32 %v1880, %v130
  %v1895 = vmul.f32 %v1887, %v131
  %1904 = vrot.lane.b32.xlu0 %v1839, 64
  %v1905 = vpop.permute.xlu0 %1904
  %1906 = vrot.lane.b32.xlu0 %v1840, 64
  %v1907 = vpop.permute.xlu0 %1906
  %1908 = vrot.lane.b32.xlu0 %v1841, 64
  %v1909 = vpop.permute.xlu0 %1908
  %1910 = vrot.lane.b32.xlu0 %v1842, 64
  %v1911 = vpop.permute.xlu0 %1910
  %1912 = vrot.lane.b32.xlu0 %v1843, 64
  %v1913 = vpop.permute.xlu0 %1912
  %1914 = vrot.lane.b32.xlu0 %v1844, 64
  %v1915 = vpop.permute.xlu0 %1914
  %1916 = vrot.lane.b32.xlu0 %v1845, 64
  %v1917 = vpop.permute.xlu0 %1916
  %1918 = vrot.lane.b32.xlu0 %v1846, 64
  %v1919 = vpop.permute.xlu0 %1918
  %v1928 = vsel %vm578, %v1864, %v1905
  %v1929 = vsel %vm578, %v1865, %v1907
  %v1930 = vsel %vm578, %v1866, %v1909
  %v1931 = vsel %vm578, %v1867, %v1911
  %v1932 = vsel %vm578, %v1868, %v1913
  %v1933 = vsel %vm578, %v1869, %v1915
  %v1934 = vsel %vm578, %v1870, %v1917
  %v1935 = vsel %vm578, %v1871, %v1919
  %v1936 = vld [vmem:[%s9] sm:$0xff]
  %v1937 = vld [vmem:[%s9 + $0x8] sm:$0xff]
  %v1938 = vld [vmem:[%s9 + $0x10] sm:$0xff]
  %v1939 = vld [vmem:[%s9 + $0x18] sm:$0xff]
  %v1940 = vld [vmem:[%s9 + $0x20] sm:$0xff]
  %v1941 = vld [vmem:[%s9 + $0x28] sm:$0xff]
  %v1942 = vld [vmem:[%s9 + $0x30] sm:$0xff]
  %v1943 = vld [vmem:[%s9 + $0x38] sm:$0xff]
  %v1944 = vld [vmem:[%s9 + $0x40] sm:$0xff]
  %v1945 = vld [vmem:[%s9 + $0x48] sm:$0xff]
  %v1946 = vld [vmem:[%s9 + $0x50] sm:$0xff]
  %v1947 = vld [vmem:[%s9 + $0x58] sm:$0xff]
  %v1948 = vld [vmem:[%s9 + $0x60] sm:$0xff]
  %v1949 = vld [vmem:[%s9 + $0x68] sm:$0xff]
  %v1950 = vld [vmem:[%s9 + $0x70] sm:$0xff]
  %v1951 = vld [vmem:[%s9 + $0x78] sm:$0xff]
  %v1952 = vld [vmem:[%s9 + $0x80] sm:$0xff]
  %v1953 = vld [vmem:[%s9 + $0x88] sm:$0xff]
  %v1954 = vld [vmem:[%s9 + $0x90] sm:$0xff]
  %v1955 = vld [vmem:[%s9 + $0x98] sm:$0xff]
  %v1956 = vld [vmem:[%s9 + $0xa0] sm:$0xff]
  %v1957 = vld [vmem:[%s9 + $0xa8] sm:$0xff]
  %v1958 = vld [vmem:[%s9 + $0xb0] sm:$0xff]
  %v1959 = vld [vmem:[%s9 + $0xb8] sm:$0xff]
  %v1960 = vlaneseq
  %v1961 = vshrl.u32 %v1960, 7
  %v1962 = vsub.s32 0, %v1961
  %v1963 = vrot.slane %v1847, %v1962
  %v1965 = vsel %vm578, %v1888, 0
  %v1968 = vsel %vm578, %v1889, 0
  %v1971 = vsel %vm578, %v1890, 0
  %v1974 = vsel %vm578, %v1891, 0
  %v1977 = vsel %vm578, %v1892, 0
  %v1980 = vsel %vm578, %v1893, 0
  %v1983 = vsel %vm578, %v1894, 0
  %v1986 = vsel %vm578, %v1895, 0
  %1988 = vmatprep.subr.mxu0 0.0
  %1989 = vmatpush1.msra.mxu0 %v1936
  %1990 = vmatprep.subr.mxu0 0.0
  %1991 = vmatpush1.msra.mxu0 %v1937
  %1992 = vmatprep.subr.mxu0 0.0
  %1993 = vmatpush1.msra.mxu0 %v1938
  %1994 = vmatprep.subr.mxu0 0.0
  %1995 = vmatpush1.msra.mxu0 %v1939
  %1996 = vmatprep.subr.mxu0 0.0
  %1997 = vmatpush1.msra.mxu0 %v1940
  %1998 = vmatprep.subr.mxu0 0.0
  %1999 = vmatpush1.msra.mxu0 %v1941
  %2000 = vmatprep.subr.mxu0 0.0
  %2001 = vmatpush1.msra.mxu0 %v1942
  %2002 = vmatprep.subr.mxu0 0.0
  %2003 = vmatpush1.msra.mxu0 %v1943
  %2004 = vmatprep.subr.mxu0 0.0
  %2005 = vmatpush1.msra.mxu0 %v1944
  %2006 = vmatprep.subr.mxu0 0.0
  %2007 = vmatpush1.msra.mxu0 %v1945
  %2008 = vmatprep.subr.mxu0 0.0
  %2009 = vmatpush1.msra.mxu0 %v1946
  %2010 = vmatprep.subr.mxu0 0.0
  %2011 = vmatpush1.msra.mxu0 %v1947
  %2012 = vmatprep.subr.mxu0 0.0
  %2013 = vmatpush1.msra.mxu0 %v1948
  %2014 = vmatprep.subr.mxu0 0.0
  %2015 = vmatpush1.msra.mxu0 %v1949
  %2016 = vmatprep.subr.mxu0 0.0
  %2017 = vmatpush1.msra.mxu0 %v1950
  %2018 = vmatprep.subr.mxu0 0.0
  %2019 = vmatpush1.msra.mxu0 %v1951
  %2020 = vmatprep.subr.mxu0 0.0
  %2021 = vmatpush1.msra.mxu0 %v1952
  %2022 = vmatprep.subr.mxu0 0.0
  %2023 = vmatpush1.msra.mxu0 %v1953
  %2024 = vmatprep.subr.mxu0 0.0
  %2025 = vmatpush1.msra.mxu0 %v1954
  %2026 = vmatprep.subr.mxu0 0.0
  %2027 = vmatpush1.msra.mxu0 %v1955
  %2028 = vmatprep.subr.mxu0 0.0
  %2029 = vmatpush1.msra.mxu0 %v1956
  %2030 = vmatprep.subr.mxu0 0.0
  %2031 = vmatpush1.msra.mxu0 %v1957
  %2032 = vmatprep.subr.mxu0 0.0
  %2033 = vmatpush1.msra.mxu0 %v1958
  %2034 = vmatprep.subr.mxu0 0.0
  %2035 = vmatpush1.msra.mxu0 %v1959
  %2036 = vmatprep.subr.mxu0 0.0
  %2037 = vmatpush1.msra.mxu0 0.0
  %2038 = vmatprep.subr.mxu0 0.0
  %2039 = vmatpush1.msra.mxu0 0.0
  %2040 = vmatprep.subr.mxu0 0.0
  %2041 = vmatpush1.msra.mxu0 0.0
  %2042 = vmatprep.subr.mxu0 0.0
  %2043 = vmatpush1.msra.mxu0 0.0
  %2044 = vmatprep.subr.mxu0 0.0
  %2045 = vmatpush1.msra.mxu0 0.0
  %2046 = vmatprep.subr.mxu0 0.0
  %2047 = vmatpush1.msra.mxu0 0.0
  %2048 = vmatprep.subr.mxu0 0.0
  %2049 = vmatpush1.msra.mxu0 0.0
  %2050 = vmatprep.subr.mxu0 0.0
  %2051 = vmatpush1.msra.mxu0 0.0
  %2052 = vmatprep.mubr.f32.mxu0 %v1965
  %2053 = vmatmul.mubr.f32.gmra.mrb[0].mxu0 %v1928
  %v2054 = vpop.f32.mrb[0].mxu0
  %v2055 = vadd.f32 %v1963, %v2054
  %v2056 = vpop.f32.mrb[0].mxu0
  %2057 = vmatprep.mubr.f32.mxu0 %v1968
  %2058 = vmatmul.mubr.f32.gmra.mrb[0].mxu0 %v1929
  %v2059 = vpop.f32.mrb[0].mxu0
  %v2060 = vadd.f32 %v1963, %v2059
  %v2061 = vpop.f32.mrb[0].mxu0
  %2062 = vmatprep.mubr.f32.mxu0 %v1971
  %2063 = vmatmul.mubr.f32.gmra.mrb[0].mxu0 %v1930
  %v2064 = vpop.f32.mrb[0].mxu0
  %v2065 = vadd.f32 %v1963, %v2064
  %v2066 = vpop.f32.mrb[0].mxu0
  %2067 = vmatprep.mubr.f32.mxu0 %v1974
  %2068 = vmatmul.mubr.f32.gmra.mrb[0].mxu0 %v1931
  %v2069 = vpop.f32.mrb[0].mxu0
  %v2070 = vadd.f32 %v1963, %v2069
  %v2071 = vpop.f32.mrb[0].mxu0
  %2072 = vmatprep.mubr.f32.mxu0 %v1977
  %2073 = vmatmul.mubr.f32.gmra.mrb[0].mxu0 %v1932
  %v2074 = vpop.f32.mrb[0].mxu0
  %v2075 = vadd.f32 %v1963, %v2074
  %v2076 = vpop.f32.mrb[0].mxu0
  %2077 = vmatprep.mubr.f32.mxu0 %v1980
  %2078 = vmatmul.mubr.f32.gmra.mrb[0].mxu0 %v1933
  %v2079 = vpop.f32.mrb[0].mxu0
  %v2080 = vadd.f32 %v1963, %v2079
  %v2081 = vpop.f32.mrb[0].mxu0
  %2082 = vmatprep.mubr.f32.mxu0 %v1983
  %2083 = vmatmul.mubr.f32.gmra.mrb[0].mxu0 %v1934
  %v2084 = vpop.f32.mrb[0].mxu0
  %v2085 = vadd.f32 %v1963, %v2084
  %v2086 = vpop.f32.mrb[0].mxu0
  %2087 = vmatprep.mubr.f32.mxu0 %v1986
  %2088 = vmatmul.mubr.f32.gmra.mrb[0].mxu0 %v1935
  %v2089 = vpop.f32.mrb[0].mxu0
  %v2090 = vadd.f32 %v1963, %v2089
  %v2091 = vpop.f32.mrb[0].mxu0
  %2092 = vdwg.mxu0
  %v2093 = vadd.f32 %v2055, %v1554
  %v2094 = vadd.f32 %v2060, %v1555
  %v2095 = vadd.f32 %v2065, %v1556
  %v2096 = vadd.f32 %v2070, %v1557
  %v2097 = vadd.f32 %v2075, %v1558
  %v2098 = vadd.f32 %v2080, %v1559
  %v2099 = vadd.f32 %v2085, %v1560
  %v2100 = vadd.f32 %v2090, %v1561
  %v2101 = vld [vmem:[%s17 + $0x6] sm:$0x1]
  %v2102 = vld [vmem:[%s17 + $0x7] sm:$0x1]
  %v2103 = vsel %vm270, %v2093, 0.0
  %2104 = vadd.xlane.f32.xlu0 %v2103
  %v2105 = vpop.xlane.xlu0 %2104
  %v2106 = vsel %vm270, %v2094, 0.0
  %2107 = vadd.xlane.f32.xlu0 %v2106
  %v2108 = vpop.xlane.xlu0 %2107
  %v2109 = vsel %vm270, %v2095, 0.0
  %2110 = vadd.xlane.f32.xlu0 %v2109
  %v2111 = vpop.xlane.xlu0 %2110
  %v2112 = vsel %vm270, %v2096, 0.0
  %2113 = vadd.xlane.f32.xlu0 %v2112
  %v2114 = vpop.xlane.xlu0 %2113
  %v2115 = vsel %vm270, %v2097, 0.0
  %2116 = vadd.xlane.f32.xlu0 %v2115
  %v2117 = vpop.xlane.xlu0 %2116
  %v2118 = vsel %vm270, %v2098, 0.0
  %2119 = vadd.xlane.f32.xlu0 %v2118
  %v2120 = vpop.xlane.xlu0 %2119
  %v2121 = vsel %vm270, %v2099, 0.0
  %2122 = vadd.xlane.f32.xlu0 %v2121
  %v2123 = vpop.xlane.xlu0 %2122
  %v2124 = vsel %vm270, %v2100, 0.0
  %2125 = vadd.xlane.f32.xlu0 %v2124
  %v2126 = vpop.xlane.xlu0 %2125
  %v2127 = vmul.f32 %v2105, %v1457
  %v2128 = vmul.f32 %v2108, %v1457
  %v2129 = vmul.f32 %v2111, %v1457
  %v2130 = vmul.f32 %v2114, %v1457
  %v2131 = vmul.f32 %v2117, %v1457
  %v2132 = vmul.f32 %v2120, %v1457
  %v2133 = vmul.f32 %v2123, %v1457
  %v2134 = vmul.f32 %v2126, %v1457
  %v2135 = vsub.f32 %v2093, %v2127
  %v2136 = vsub.f32 %v2094, %v2128
  %v2137 = vsub.f32 %v2095, %v2129
  %v2138 = vsub.f32 %v2096, %v2130
  %v2139 = vsub.f32 %v2097, %v2131
  %v2140 = vsub.f32 %v2098, %v2132
  %v2141 = vsub.f32 %v2099, %v2133
  %v2142 = vsub.f32 %v2100, %v2134
  %v2143 = vmul.f32 %v2135, %v2135
  %v2144 = vmul.f32 %v2136, %v2136
  %v2145 = vmul.f32 %v2137, %v2137
  %v2146 = vmul.f32 %v2138, %v2138
  %v2147 = vmul.f32 %v2139, %v2139
  %v2148 = vmul.f32 %v2140, %v2140
  %v2149 = vmul.f32 %v2141, %v2141
  %v2150 = vmul.f32 %v2142, %v2142
  %v2151 = vsel %vm270, %v2143, 0.0
  %2152 = vadd.xlane.f32.xlu0 %v2151
  %v2153 = vpop.xlane.xlu0 %2152
  %v2154 = vsel %vm270, %v2144, 0.0
  %2155 = vadd.xlane.f32.xlu0 %v2154
  %v2156 = vpop.xlane.xlu0 %2155
  %v2157 = vsel %vm270, %v2145, 0.0
  %2158 = vadd.xlane.f32.xlu0 %v2157
  %v2159 = vpop.xlane.xlu0 %2158
  %v2160 = vsel %vm270, %v2146, 0.0
  %2161 = vadd.xlane.f32.xlu0 %v2160
  %v2162 = vpop.xlane.xlu0 %2161
  %v2163 = vsel %vm270, %v2147, 0.0
  %2164 = vadd.xlane.f32.xlu0 %v2163
  %v2165 = vpop.xlane.xlu0 %2164
  %v2166 = vsel %vm270, %v2148, 0.0
  %2167 = vadd.xlane.f32.xlu0 %v2166
  %v2168 = vpop.xlane.xlu0 %2167
  %v2169 = vsel %vm270, %v2149, 0.0
  %2170 = vadd.xlane.f32.xlu0 %v2169
  %v2171 = vpop.xlane.xlu0 %2170
  %v2172 = vsel %vm270, %v2150, 0.0
  %2173 = vadd.xlane.f32.xlu0 %v2172
  %v2174 = vpop.xlane.xlu0 %2173
  %v2175 = vmul.f32 %v2153, %v1457
  %v2176 = vmul.f32 %v2156, %v1457
  %v2177 = vmul.f32 %v2159, %v1457
  %v2178 = vmul.f32 %v2162, %v1457
  %v2179 = vmul.f32 %v2165, %v1457
  %v2180 = vmul.f32 %v2168, %v1457
  %v2181 = vmul.f32 %v2171, %v1457
  %v2182 = vmul.f32 %v2174, %v1457
  %v2183 = vadd.f32 %v2175, 1e-05
  %v2184 = vadd.f32 %v2176, 1e-05
  %v2185 = vadd.f32 %v2177, 1e-05
  %v2186 = vadd.f32 %v2178, 1e-05
  %v2187 = vadd.f32 %v2179, 1e-05
  %v2188 = vadd.f32 %v2180, 1e-05
  %v2189 = vadd.f32 %v2181, 1e-05
  %v2190 = vadd.f32 %v2182, 1e-05
  %v2191 = vrsqrt.pop %v2183
  %v2192 = vrsqrt.pop %v2184
  %v2193 = vrsqrt.pop %v2185
  %v2194 = vrsqrt.pop %v2186
  %v2195 = vrsqrt.pop %v2187
  %v2196 = vrsqrt.pop %v2188
  %v2197 = vrsqrt.pop %v2189
  %v2198 = vrsqrt.pop %v2190
  %v2199 = vmul.f32 %v2135, %v2191
  %v2200 = vmul.f32 %v2136, %v2192
  %v2201 = vmul.f32 %v2137, %v2193
  %v2202 = vmul.f32 %v2138, %v2194
  %v2203 = vmul.f32 %v2139, %v2195
  %v2204 = vmul.f32 %v2140, %v2196
  %v2205 = vmul.f32 %v2141, %v2197
  %v2206 = vmul.f32 %v2142, %v2198
  %v2207 = vlaneseq
  %v2208 = vshrl.u32 %v2207, 7
  %v2209 = vsub.s32 0, %v2208
  %v2210 = vrot.slane %v2101, %v2209
  %v2211 = vmul.f32 %v2199, %v2210
  %v2212 = vmul.f32 %v2200, %v2210
  %v2213 = vmul.f32 %v2201, %v2210
  %v2214 = vmul.f32 %v2202, %v2210
  %v2215 = vmul.f32 %v2203, %v2210
  %v2216 = vmul.f32 %v2204, %v2210
  %v2217 = vmul.f32 %v2205, %v2210
  %v2218 = vmul.f32 %v2206, %v2210
  %v2219 = vlaneseq
  %v2220 = vshrl.u32 %v2219, 7
  %v2221 = vsub.s32 0, %v2220
  %v2222 = vrot.slane %v2102, %v2221
  %v2223 = vadd.f32 %v2211, %v2222
  %v2224 = vadd.f32 %v2212, %v2222
  %v2225 = vadd.f32 %v2213, %v2222
  %v2226 = vadd.f32 %v2214, %v2222
  %v2227 = vadd.f32 %v2215, %v2222
  %v2228 = vadd.f32 %v2216, %v2222
  %v2229 = vadd.f32 %v2217, %v2222
  %v2230 = vadd.f32 %v2218, %v2222
  %v2231 = vld [vmem:[%s17 + $0x8] sm:$0x1]
  %v2232 = vrot.slane %v2223, 7
  %v2233 = vrot.slane %v2224, 7
  %v2234 = vrot.slane %v2225, 7
  %v2235 = vrot.slane %v2226, 7
  %v2236 = vrot.slane %v2227, 7
  %v2237 = vrot.slane %v2228, 7
  %v2238 = vrot.slane %v2229, 7
  %v2239 = vrot.slane %v2230, 7
  %v2240 = vsel %vm1571, %v2238, %v2239
  %v2241 = vsel %vm1571, %v2237, %v2238
  %v2242 = vsel %vm1571, %v2236, %v2237
  %v2243 = vsel %vm1571, %v2235, %v2236
  %v2244 = vsel %vm1571, %v2234, %v2235
  %v2245 = vsel %vm1571, %v2233, %v2234
  %v2246 = vsel %vm1571, %v2232, %v2233
  %v2247 = vsel %vm1571, %v2239, %v2232
  %v2248 = vmul.f32 %v2247, %v100
  %v2249 = vmul.f32 %v2246, %v101
  %v2250 = vmul.f32 %v2245, %v102
  %v2251 = vmul.f32 %v2244, %v103
  %v2252 = vmul.f32 %v2243, %v104
  %v2253 = vmul.f32 %v2242, %v105
  %v2254 = vmul.f32 %v2241, %v106
  %v2255 = vmul.f32 %v2240, %v107
  %v2256 = vrot.slane %v2223, 1
  %v2257 = vrot.slane %v2224, 1
  %v2258 = vrot.slane %v2225, 1
  %v2259 = vrot.slane %v2226, 1
  %v2260 = vrot.slane %v2227, 1
  %v2261 = vrot.slane %v2228, 1
  %v2262 = vrot.slane %v2229, 1
  %v2263 = vrot.slane %v2230, 1
  %v2264 = vsel %vm1596, %v2262, %v2263
  %v2265 = vsel %vm1596, %v2261, %v2262
  %v2266 = vsel %vm1596, %v2260, %v2261
  %v2267 = vsel %vm1596, %v2259, %v2260
  %v2268 = vsel %vm1596, %v2258, %v2259
  %v2269 = vsel %vm1596, %v2257, %v2258
  %v2270 = vsel %vm1596, %v2256, %v2257
  %v2271 = vsel %vm1596, %v2263, %v2256
  %v2272 = vmul.f32 %v2270, %v124
  %v2273 = vmul.f32 %v2269, %v125
  %v2274 = vmul.f32 %v2268, %v126
  %v2275 = vmul.f32 %v2267, %v127
  %v2276 = vmul.f32 %v2266, %v128
  %v2277 = vmul.f32 %v2265, %v129
  %v2278 = vmul.f32 %v2264, %v130
  %v2279 = vmul.f32 %v2271, %v131
  %2288 = vrot.lane.b32.xlu0 %v2223, 32
  %v2289 = vpop.permute.xlu0 %2288
  %2290 = vrot.lane.b32.xlu0 %v2224, 32
  %v2291 = vpop.permute.xlu0 %2290
  %2292 = vrot.lane.b32.xlu0 %v2225, 32
  %v2293 = vpop.permute.xlu0 %2292
  %2294 = vrot.lane.b32.xlu0 %v2226, 32
  %v2295 = vpop.permute.xlu0 %2294
  %2296 = vrot.lane.b32.xlu0 %v2227, 32
  %v2297 = vpop.permute.xlu0 %2296
  %2298 = vrot.lane.b32.xlu0 %v2228, 32
  %v2299 = vpop.permute.xlu0 %2298
  %2300 = vrot.lane.b32.xlu0 %v2229, 32
  %v2301 = vpop.permute.xlu0 %2300
  %2302 = vrot.lane.b32.xlu0 %v2230, 32
  %v2303 = vpop.permute.xlu0 %2302
  %2320 = vrot.lane.b32.xlu0 %v2272, 64
  %v2321 = vpop.permute.xlu0 %2320
  %2322 = vrot.lane.b32.xlu0 %v2273, 64
  %v2323 = vpop.permute.xlu0 %2322
  %2324 = vrot.lane.b32.xlu0 %v2274, 64
  %v2325 = vpop.permute.xlu0 %2324
  %2326 = vrot.lane.b32.xlu0 %v2275, 64
  %v2327 = vpop.permute.xlu0 %2326
  %2328 = vrot.lane.b32.xlu0 %v2276, 64
  %v2329 = vpop.permute.xlu0 %2328
  %2330 = vrot.lane.b32.xlu0 %v2277, 64
  %v2331 = vpop.permute.xlu0 %2330
  %2332 = vrot.lane.b32.xlu0 %v2278, 64
  %v2333 = vpop.permute.xlu0 %2332
  %2334 = vrot.lane.b32.xlu0 %v2279, 64
  %v2335 = vpop.permute.xlu0 %2334
  %v2344 = vsel %vm270, %v2248, %v2289
  %v2345 = vsel %vm270, %v2249, %v2291
  %v2346 = vsel %vm270, %v2250, %v2293
  %v2347 = vsel %vm270, %v2251, %v2295
  %v2348 = vsel %vm270, %v2252, %v2297
  %v2349 = vsel %vm270, %v2253, %v2299
  %v2350 = vsel %vm270, %v2254, %v2301
  %v2351 = vsel %vm270, %v2255, %v2303
  %v2352 = vsel %vm578, %v2344, %v2321
  %v2353 = vsel %vm578, %v2345, %v2323
  %v2354 = vsel %vm578, %v2346, %v2325
  %v2355 = vsel %vm578, %v2347, %v2327
  %v2356 = vsel %vm578, %v2348, %v2329
  %v2357 = vsel %vm578, %v2349, %v2331
  %v2358 = vsel %vm578, %v2350, %v2333
  %v2359 = vsel %vm578, %v2351, %v2335
  %v2360 = vld [vmem:[%s10] sm:$0xff]
  %v2361 = vld [vmem:[%s10 + $0x8] sm:$0xff]
  %v2362 = vld [vmem:[%s10 + $0x10] sm:$0xff]
  %v2363 = vld [vmem:[%s10 + $0x18] sm:$0xff]
  %v2364 = vld [vmem:[%s10 + $0x20] sm:$0xff]
  %v2365 = vld [vmem:[%s10 + $0x28] sm:$0xff]
  %v2366 = vld [vmem:[%s10 + $0x30] sm:$0xff]
  %v2367 = vld [vmem:[%s10 + $0x38] sm:$0xff]
  %v2368 = vld [vmem:[%s10 + $0x40] sm:$0xff]
  %v2369 = vld [vmem:[%s10 + $0x48] sm:$0xff]
  %v2370 = vld [vmem:[%s10 + $0x50] sm:$0xff]
  %v2371 = vld [vmem:[%s10 + $0x58] sm:$0xff]
  %v2372 = vlaneseq
  %v2373 = vshrl.u32 %v2372, 7
  %v2374 = vsub.s32 0, %v2373
  %v2375 = vrot.slane %v2231, %v2374
  %v2377 = vsel %vm1709, %v2352, 0
  %v2380 = vsel %vm1709, %v2353, 0
  %v2383 = vsel %vm1709, %v2354, 0
  %v2386 = vsel %vm1709, %v2355, 0
  %v2389 = vsel %vm1709, %v2356, 0
  %v2392 = vsel %vm1709, %v2357, 0
  %v2395 = vsel %vm1709, %v2358, 0
  %v2398 = vsel %vm1709, %v2359, 0
  %2400 = vmatprep.subr.mxu0 0.0
  %2401 = vmatpush1.msra.mxu0 %v2360
  %2402 = vmatprep.subr.mxu0 0.0
  %2403 = vmatpush1.msra.mxu0 %v2361
  %2404 = vmatprep.subr.mxu0 0.0
  %2405 = vmatpush1.msra.mxu0 %v2362
  %2406 = vmatprep.subr.mxu0 0.0
  %2407 = vmatpush1.msra.mxu0 %v2363
  %2408 = vmatprep.subr.mxu0 0.0
  %2409 = vmatpush1.msra.mxu0 %v2364
  %2410 = vmatprep.subr.mxu0 0.0
  %2411 = vmatpush1.msra.mxu0 %v2365
  %2412 = vmatprep.subr.mxu0 0.0
  %2413 = vmatpush1.msra.mxu0 %v2366
  %2414 = vmatprep.subr.mxu0 0.0
  %2415 = vmatpush1.msra.mxu0 %v2367
  %2416 = vmatprep.subr.mxu0 0.0
  %2417 = vmatpush1.msra.mxu0 %v2368
  %2418 = vmatprep.subr.mxu0 0.0
  %2419 = vmatpush1.msra.mxu0 %v2369
  %2420 = vmatprep.subr.mxu0 0.0
  %2421 = vmatpush1.msra.mxu0 %v2370
  %2422 = vmatprep.subr.mxu0 0.0
  %2423 = vmatpush1.msra.mxu0 %v2371
  %2424 = vmatprep.subr.mxu0 0.0
  %2425 = vmatpush1.msra.mxu0 0.0
  %2426 = vmatprep.subr.mxu0 0.0
  %2427 = vmatpush1.msra.mxu0 0.0
  %2428 = vmatprep.subr.mxu0 0.0
  %2429 = vmatpush1.msra.mxu0 0.0
  %2430 = vmatprep.subr.mxu0 0.0
  %2431 = vmatpush1.msra.mxu0 0.0
  %2432 = vmatprep.subr.mxu0 0.0
  %2433 = vmatpush1.msra.mxu0 0.0
  %2434 = vmatprep.subr.mxu0 0.0
  %2435 = vmatpush1.msra.mxu0 0.0
  %2436 = vmatprep.subr.mxu0 0.0
  %2437 = vmatpush1.msra.mxu0 0.0
  %2438 = vmatprep.subr.mxu0 0.0
  %2439 = vmatpush1.msra.mxu0 0.0
  %2440 = vmatprep.subr.mxu0 0.0
  %2441 = vmatpush1.msra.mxu0 0.0
  %2442 = vmatprep.subr.mxu0 0.0
  %2443 = vmatpush1.msra.mxu0 0.0
  %2444 = vmatprep.subr.mxu0 0.0
  %2445 = vmatpush1.msra.mxu0 0.0
  %2446 = vmatprep.subr.mxu0 0.0
  %2447 = vmatpush1.msra.mxu0 0.0
  %2448 = vmatprep.subr.mxu0 0.0
  %2449 = vmatpush1.msra.mxu0 0.0
  %2450 = vmatprep.subr.mxu0 0.0
  %2451 = vmatpush1.msra.mxu0 0.0
  %2452 = vmatprep.subr.mxu0 0.0
  %2453 = vmatpush1.msra.mxu0 0.0
  %2454 = vmatprep.subr.mxu0 0.0
  %2455 = vmatpush1.msra.mxu0 0.0
  %2456 = vmatprep.subr.mxu0 0.0
  %2457 = vmatpush1.msra.mxu0 0.0
  %2458 = vmatprep.subr.mxu0 0.0
  %2459 = vmatpush1.msra.mxu0 0.0
  %2460 = vmatprep.subr.mxu0 0.0
  %2461 = vmatpush1.msra.mxu0 0.0
  %2462 = vmatprep.subr.mxu0 0.0
  %2463 = vmatpush1.msra.mxu0 0.0
  %2464 = vmatprep.mubr.f32.mxu0 0.0
  %2465 = vmatmul.mubr.f32.gmra.mrb[0].mxu0 %v2377
  %v2466 = vpop.f32.mrb[0].mxu0
  %v2467 = vadd.f32 %v2375, %v2466
  %v2468 = vpop.f32.mrb[0].mxu0
  %2469 = vmatprep.mubr.f32.mxu0 0.0
  %2470 = vmatmul.mubr.f32.gmra.mrb[0].mxu0 %v2380
  %v2471 = vpop.f32.mrb[0].mxu0
  %v2472 = vadd.f32 %v2375, %v2471
  %v2473 = vpop.f32.mrb[0].mxu0
  %2474 = vmatprep.mubr.f32.mxu0 0.0
  %2475 = vmatmul.mubr.f32.gmra.mrb[0].mxu0 %v2383
  %v2476 = vpop.f32.mrb[0].mxu0
  %v2477 = vadd.f32 %v2375, %v2476
  %v2478 = vpop.f32.mrb[0].mxu0
  %2479 = vmatprep.mubr.f32.mxu0 0.0
  %2480 = vmatmul.mubr.f32.gmra.mrb[0].mxu0 %v2386
  %v2481 = vpop.f32.mrb[0].mxu0
  %v2482 = vadd.f32 %v2375, %v2481
  %v2483 = vpop.f32.mrb[0].mxu0
  %2484 = vmatprep.mubr.f32.mxu0 0.0
  %2485 = vmatmul.mubr.f32.gmra.mrb[0].mxu0 %v2389
  %v2486 = vpop.f32.mrb[0].mxu0
  %v2487 = vadd.f32 %v2375, %v2486
  %v2488 = vpop.f32.mrb[0].mxu0
  %2489 = vmatprep.mubr.f32.mxu0 0.0
  %2490 = vmatmul.mubr.f32.gmra.mrb[0].mxu0 %v2392
  %v2491 = vpop.f32.mrb[0].mxu0
  %v2492 = vadd.f32 %v2375, %v2491
  %v2493 = vpop.f32.mrb[0].mxu0
  %2494 = vmatprep.mubr.f32.mxu0 0.0
  %2495 = vmatmul.mubr.f32.gmra.mrb[0].mxu0 %v2395
  %v2496 = vpop.f32.mrb[0].mxu0
  %v2497 = vadd.f32 %v2375, %v2496
  %v2498 = vpop.f32.mrb[0].mxu0
  %2499 = vmatprep.mubr.f32.mxu0 0.0
  %2500 = vmatmul.mubr.f32.gmra.mrb[0].mxu0 %v2398
  %v2501 = vpop.f32.mrb[0].mxu0
  %v2502 = vadd.f32 %v2375, %v2501
  %v2503 = vpop.f32.mrb[0].mxu0
  %2504 = vdwg.mxu0
  %v2505 = vmax.f32 %v2467, 0.0
  %v2506 = vmax.f32 %v2472, 0.0
  %v2507 = vmax.f32 %v2477, 0.0
  %v2508 = vmax.f32 %v2482, 0.0
  %v2509 = vmax.f32 %v2487, 0.0
  %v2510 = vmax.f32 %v2492, 0.0
  %v2511 = vmax.f32 %v2497, 0.0
  %v2512 = vmax.f32 %v2502, 0.0
  %v2513 = vld [vmem:[%s17 + $0x9] sm:$0x1]
  %v2514 = vld [vmem:[%s17 + $0xa] sm:$0x1]
  %v2515 = vsel %vm270, %v2505, 0.0
  %2516 = vadd.xlane.f32.xlu0 %v2515
  %v2517 = vpop.xlane.xlu0 %2516
  %v2518 = vsel %vm270, %v2506, 0.0
  %2519 = vadd.xlane.f32.xlu0 %v2518
  %v2520 = vpop.xlane.xlu0 %2519
  %v2521 = vsel %vm270, %v2507, 0.0
  %2522 = vadd.xlane.f32.xlu0 %v2521
  %v2523 = vpop.xlane.xlu0 %2522
  %v2524 = vsel %vm270, %v2508, 0.0
  %2525 = vadd.xlane.f32.xlu0 %v2524
  %v2526 = vpop.xlane.xlu0 %2525
  %v2527 = vsel %vm270, %v2509, 0.0
  %2528 = vadd.xlane.f32.xlu0 %v2527
  %v2529 = vpop.xlane.xlu0 %2528
  %v2530 = vsel %vm270, %v2510, 0.0
  %2531 = vadd.xlane.f32.xlu0 %v2530
  %v2532 = vpop.xlane.xlu0 %2531
  %v2533 = vsel %vm270, %v2511, 0.0
  %2534 = vadd.xlane.f32.xlu0 %v2533
  %v2535 = vpop.xlane.xlu0 %2534
  %v2536 = vsel %vm270, %v2512, 0.0
  %2537 = vadd.xlane.f32.xlu0 %v2536
  %v2538 = vpop.xlane.xlu0 %2537
  %v2539 = vmul.f32 %v2517, %v1457
  %v2540 = vmul.f32 %v2520, %v1457
  %v2541 = vmul.f32 %v2523, %v1457
  %v2542 = vmul.f32 %v2526, %v1457
  %v2543 = vmul.f32 %v2529, %v1457
  %v2544 = vmul.f32 %v2532, %v1457
  %v2545 = vmul.f32 %v2535, %v1457
  %v2546 = vmul.f32 %v2538, %v1457
  %v2547 = vsub.f32 %v2505, %v2539
  %v2548 = vsub.f32 %v2506, %v2540
  %v2549 = vsub.f32 %v2507, %v2541
  %v2550 = vsub.f32 %v2508, %v2542
  %v2551 = vsub.f32 %v2509, %v2543
  %v2552 = vsub.f32 %v2510, %v2544
  %v2553 = vsub.f32 %v2511, %v2545
  %v2554 = vsub.f32 %v2512, %v2546
  %v2555 = vmul.f32 %v2547, %v2547
  %v2556 = vmul.f32 %v2548, %v2548
  %v2557 = vmul.f32 %v2549, %v2549
  %v2558 = vmul.f32 %v2550, %v2550
  %v2559 = vmul.f32 %v2551, %v2551
  %v2560 = vmul.f32 %v2552, %v2552
  %v2561 = vmul.f32 %v2553, %v2553
  %v2562 = vmul.f32 %v2554, %v2554
  %v2563 = vsel %vm270, %v2555, 0.0
  %2564 = vadd.xlane.f32.xlu0 %v2563
  %v2565 = vpop.xlane.xlu0 %2564
  %v2566 = vsel %vm270, %v2556, 0.0
  %2567 = vadd.xlane.f32.xlu0 %v2566
  %v2568 = vpop.xlane.xlu0 %2567
  %v2569 = vsel %vm270, %v2557, 0.0
  %2570 = vadd.xlane.f32.xlu0 %v2569
  %v2571 = vpop.xlane.xlu0 %2570
  %v2572 = vsel %vm270, %v2558, 0.0
  %2573 = vadd.xlane.f32.xlu0 %v2572
  %v2574 = vpop.xlane.xlu0 %2573
  %v2575 = vsel %vm270, %v2559, 0.0
  %2576 = vadd.xlane.f32.xlu0 %v2575
  %v2577 = vpop.xlane.xlu0 %2576
  %v2578 = vsel %vm270, %v2560, 0.0
  %2579 = vadd.xlane.f32.xlu0 %v2578
  %v2580 = vpop.xlane.xlu0 %2579
  %v2581 = vsel %vm270, %v2561, 0.0
  %2582 = vadd.xlane.f32.xlu0 %v2581
  %v2583 = vpop.xlane.xlu0 %2582
  %v2584 = vsel %vm270, %v2562, 0.0
  %2585 = vadd.xlane.f32.xlu0 %v2584
  %v2586 = vpop.xlane.xlu0 %2585
  %v2587 = vmul.f32 %v2565, %v1457
  %v2588 = vmul.f32 %v2568, %v1457
  %v2589 = vmul.f32 %v2571, %v1457
  %v2590 = vmul.f32 %v2574, %v1457
  %v2591 = vmul.f32 %v2577, %v1457
  %v2592 = vmul.f32 %v2580, %v1457
  %v2593 = vmul.f32 %v2583, %v1457
  %v2594 = vmul.f32 %v2586, %v1457
  %v2595 = vadd.f32 %v2587, 1e-05
  %v2596 = vadd.f32 %v2588, 1e-05
  %v2597 = vadd.f32 %v2589, 1e-05
  %v2598 = vadd.f32 %v2590, 1e-05
  %v2599 = vadd.f32 %v2591, 1e-05
  %v2600 = vadd.f32 %v2592, 1e-05
  %v2601 = vadd.f32 %v2593, 1e-05
  %v2602 = vadd.f32 %v2594, 1e-05
  %v2603 = vrsqrt.pop %v2595
  %v2604 = vrsqrt.pop %v2596
  %v2605 = vrsqrt.pop %v2597
  %v2606 = vrsqrt.pop %v2598
  %v2607 = vrsqrt.pop %v2599
  %v2608 = vrsqrt.pop %v2600
  %v2609 = vrsqrt.pop %v2601
  %v2610 = vrsqrt.pop %v2602
  %v2611 = vmul.f32 %v2547, %v2603
  %v2612 = vmul.f32 %v2548, %v2604
  %v2613 = vmul.f32 %v2549, %v2605
  %v2614 = vmul.f32 %v2550, %v2606
  %v2615 = vmul.f32 %v2551, %v2607
  %v2616 = vmul.f32 %v2552, %v2608
  %v2617 = vmul.f32 %v2553, %v2609
  %v2618 = vmul.f32 %v2554, %v2610
  %v2619 = vlaneseq
  %v2620 = vshrl.u32 %v2619, 7
  %v2621 = vsub.s32 0, %v2620
  %v2622 = vrot.slane %v2513, %v2621
  %v2623 = vmul.f32 %v2611, %v2622
  %v2624 = vmul.f32 %v2612, %v2622
  %v2625 = vmul.f32 %v2613, %v2622
  %v2626 = vmul.f32 %v2614, %v2622
  %v2627 = vmul.f32 %v2615, %v2622
  %v2628 = vmul.f32 %v2616, %v2622
  %v2629 = vmul.f32 %v2617, %v2622
  %v2630 = vmul.f32 %v2618, %v2622
  %v2631 = vlaneseq
  %v2632 = vshrl.u32 %v2631, 7
  %v2633 = vsub.s32 0, %v2632
  %v2634 = vrot.slane %v2514, %v2633
  %v2635 = vadd.f32 %v2623, %v2634
  %v2636 = vadd.f32 %v2624, %v2634
  %v2637 = vadd.f32 %v2625, %v2634
  %v2638 = vadd.f32 %v2626, %v2634
  %v2639 = vadd.f32 %v2627, %v2634
  %v2640 = vadd.f32 %v2628, %v2634
  %v2641 = vadd.f32 %v2629, %v2634
  %v2642 = vadd.f32 %v2630, %v2634
  %v2643 = vld [vmem:[%s17 + $0xb] sm:$0x1]
  %v2644 = vrot.slane %v2635, 7
  %v2645 = vrot.slane %v2636, 7
  %v2646 = vrot.slane %v2637, 7
  %v2647 = vrot.slane %v2638, 7
  %v2648 = vrot.slane %v2639, 7
  %v2649 = vrot.slane %v2640, 7
  %v2650 = vrot.slane %v2641, 7
  %v2651 = vrot.slane %v2642, 7
  %v2652 = vsel %vm1571, %v2650, %v2651
  %v2653 = vsel %vm1571, %v2649, %v2650
  %v2654 = vsel %vm1571, %v2648, %v2649
  %v2655 = vsel %vm1571, %v2647, %v2648
  %v2656 = vsel %vm1571, %v2646, %v2647
  %v2657 = vsel %vm1571, %v2645, %v2646
  %v2658 = vsel %vm1571, %v2644, %v2645
  %v2659 = vsel %vm1571, %v2651, %v2644
  %v2660 = vmul.f32 %v2659, %v100
  %v2661 = vmul.f32 %v2658, %v101
  %v2662 = vmul.f32 %v2657, %v102
  %v2663 = vmul.f32 %v2656, %v103
  %v2664 = vmul.f32 %v2655, %v104
  %v2665 = vmul.f32 %v2654, %v105
  %v2666 = vmul.f32 %v2653, %v106
  %v2667 = vmul.f32 %v2652, %v107
  %v2668 = vrot.slane %v2635, 1
  %v2669 = vrot.slane %v2636, 1
  %v2670 = vrot.slane %v2637, 1
  %v2671 = vrot.slane %v2638, 1
  %v2672 = vrot.slane %v2639, 1
  %v2673 = vrot.slane %v2640, 1
  %v2674 = vrot.slane %v2641, 1
  %v2675 = vrot.slane %v2642, 1
  %v2676 = vsel %vm1596, %v2674, %v2675
  %v2677 = vsel %vm1596, %v2673, %v2674
  %v2678 = vsel %vm1596, %v2672, %v2673
  %v2679 = vsel %vm1596, %v2671, %v2672
  %v2680 = vsel %vm1596, %v2670, %v2671
  %v2681 = vsel %vm1596, %v2669, %v2670
  %v2682 = vsel %vm1596, %v2668, %v2669
  %v2683 = vsel %vm1596, %v2675, %v2668
  %v2684 = vmul.f32 %v2682, %v124
  %v2685 = vmul.f32 %v2681, %v125
  %v2686 = vmul.f32 %v2680, %v126
  %v2687 = vmul.f32 %v2679, %v127
  %v2688 = vmul.f32 %v2678, %v128
  %v2689 = vmul.f32 %v2677, %v129
  %v2690 = vmul.f32 %v2676, %v130
  %v2691 = vmul.f32 %v2683, %v131
  %2700 = vrot.lane.b32.xlu0 %v2635, 32
  %v2701 = vpop.permute.xlu0 %2700
  %2702 = vrot.lane.b32.xlu0 %v2636, 32
  %v2703 = vpop.permute.xlu0 %2702
  %2704 = vrot.lane.b32.xlu0 %v2637, 32
  %v2705 = vpop.permute.xlu0 %2704
  %2706 = vrot.lane.b32.xlu0 %v2638, 32
  %v2707 = vpop.permute.xlu0 %2706
  %2708 = vrot.lane.b32.xlu0 %v2639, 32
  %v2709 = vpop.permute.xlu0 %2708
  %2710 = vrot.lane.b32.xlu0 %v2640, 32
  %v2711 = vpop.permute.xlu0 %2710
  %2712 = vrot.lane.b32.xlu0 %v2641, 32
  %v2713 = vpop.permute.xlu0 %2712
  %2714 = vrot.lane.b32.xlu0 %v2642, 32
  %v2715 = vpop.permute.xlu0 %2714
  %2732 = vrot.lane.b32.xlu0 %v2684, 64
  %v2733 = vpop.permute.xlu0 %2732
  %2734 = vrot.lane.b32.xlu0 %v2685, 64
  %v2735 = vpop.permute.xlu0 %2734
  %2736 = vrot.lane.b32.xlu0 %v2686, 64
  %v2737 = vpop.permute.xlu0 %2736
  %2738 = vrot.lane.b32.xlu0 %v2687, 64
  %v2739 = vpop.permute.xlu0 %2738
  %2740 = vrot.lane.b32.xlu0 %v2688, 64
  %v2741 = vpop.permute.xlu0 %2740
  %2742 = vrot.lane.b32.xlu0 %v2689, 64
  %v2743 = vpop.permute.xlu0 %2742
  %2744 = vrot.lane.b32.xlu0 %v2690, 64
  %v2745 = vpop.permute.xlu0 %2744
  %2746 = vrot.lane.b32.xlu0 %v2691, 64
  %v2747 = vpop.permute.xlu0 %2746
  %v2756 = vsel %vm270, %v2660, %v2701
  %v2757 = vsel %vm270, %v2661, %v2703
  %v2758 = vsel %vm270, %v2662, %v2705
  %v2759 = vsel %vm270, %v2663, %v2707
  %v2760 = vsel %vm270, %v2664, %v2709
  %v2761 = vsel %vm270, %v2665, %v2711
  %v2762 = vsel %vm270, %v2666, %v2713
  %v2763 = vsel %vm270, %v2667, %v2715
  %v2764 = vsel %vm578, %v2756, %v2733
  %v2765 = vsel %vm578, %v2757, %v2735
  %v2766 = vsel %vm578, %v2758, %v2737
  %v2767 = vsel %vm578, %v2759, %v2739
  %v2768 = vsel %vm578, %v2760, %v2741
  %v2769 = vsel %vm578, %v2761, %v2743
  %v2770 = vsel %vm578, %v2762, %v2745
  %v2771 = vsel %vm578, %v2763, %v2747
  %v2772 = vld [vmem:[%s11] sm:$0xff]
  %v2773 = vld [vmem:[%s11 + $0x8] sm:$0xff]
  %v2774 = vld [vmem:[%s11 + $0x10] sm:$0xff]
  %v2775 = vld [vmem:[%s11 + $0x18] sm:$0xff]
  %v2776 = vld [vmem:[%s11 + $0x20] sm:$0xff]
  %v2777 = vld [vmem:[%s11 + $0x28] sm:$0xff]
  %v2778 = vld [vmem:[%s11 + $0x30] sm:$0xff]
  %v2779 = vld [vmem:[%s11 + $0x38] sm:$0xff]
  %v2780 = vld [vmem:[%s11 + $0x40] sm:$0xff]
  %v2781 = vld [vmem:[%s11 + $0x48] sm:$0xff]
  %v2782 = vld [vmem:[%s11 + $0x50] sm:$0xff]
  %v2783 = vld [vmem:[%s11 + $0x58] sm:$0xff]
  %v2784 = vlaneseq
  %v2785 = vshrl.u32 %v2784, 7
  %v2786 = vsub.s32 0, %v2785
  %v2787 = vrot.slane %v2643, %v2786
  %v2789 = vsel %vm1709, %v2764, 0
  %v2792 = vsel %vm1709, %v2765, 0
  %v2795 = vsel %vm1709, %v2766, 0
  %v2798 = vsel %vm1709, %v2767, 0
  %v2801 = vsel %vm1709, %v2768, 0
  %v2804 = vsel %vm1709, %v2769, 0
  %v2807 = vsel %vm1709, %v2770, 0
  %v2810 = vsel %vm1709, %v2771, 0
  %2812 = vmatprep.subr.mxu0 0.0
  %2813 = vmatpush1.msra.mxu0 %v2772
  %2814 = vmatprep.subr.mxu0 0.0
  %2815 = vmatpush1.msra.mxu0 %v2773
  %2816 = vmatprep.subr.mxu0 0.0
  %2817 = vmatpush1.msra.mxu0 %v2774
  %2818 = vmatprep.subr.mxu0 0.0
  %2819 = vmatpush1.msra.mxu0 %v2775
  %2820 = vmatprep.subr.mxu0 0.0
  %2821 = vmatpush1.msra.mxu0 %v2776
  %2822 = vmatprep.subr.mxu0 0.0
  %2823 = vmatpush1.msra.mxu0 %v2777
  %2824 = vmatprep.subr.mxu0 0.0
  %2825 = vmatpush1.msra.mxu0 %v2778
  %2826 = vmatprep.subr.mxu0 0.0
  %2827 = vmatpush1.msra.mxu0 %v2779
  %2828 = vmatprep.subr.mxu0 0.0
  %2829 = vmatpush1.msra.mxu0 %v2780
  %2830 = vmatprep.subr.mxu0 0.0
  %2831 = vmatpush1.msra.mxu0 %v2781
  %2832 = vmatprep.subr.mxu0 0.0
  %2833 = vmatpush1.msra.mxu0 %v2782
  %2834 = vmatprep.subr.mxu0 0.0
  %2835 = vmatpush1.msra.mxu0 %v2783
  %2836 = vmatprep.subr.mxu0 0.0
  %2837 = vmatpush1.msra.mxu0 0.0
  %2838 = vmatprep.subr.mxu0 0.0
  %2839 = vmatpush1.msra.mxu0 0.0
  %2840 = vmatprep.subr.mxu0 0.0
  %2841 = vmatpush1.msra.mxu0 0.0
  %2842 = vmatprep.subr.mxu0 0.0
  %2843 = vmatpush1.msra.mxu0 0.0
  %2844 = vmatprep.subr.mxu0 0.0
  %2845 = vmatpush1.msra.mxu0 0.0
  %2846 = vmatprep.subr.mxu0 0.0
  %2847 = vmatpush1.msra.mxu0 0.0
  %2848 = vmatprep.subr.mxu0 0.0
  %2849 = vmatpush1.msra.mxu0 0.0
  %2850 = vmatprep.subr.mxu0 0.0
  %2851 = vmatpush1.msra.mxu0 0.0
  %2852 = vmatprep.subr.mxu0 0.0
  %2853 = vmatpush1.msra.mxu0 0.0
  %2854 = vmatprep.subr.mxu0 0.0
  %2855 = vmatpush1.msra.mxu0 0.0
  %2856 = vmatprep.subr.mxu0 0.0
  %2857 = vmatpush1.msra.mxu0 0.0
  %2858 = vmatprep.subr.mxu0 0.0
  %2859 = vmatpush1.msra.mxu0 0.0
  %2860 = vmatprep.subr.mxu0 0.0
  %2861 = vmatpush1.msra.mxu0 0.0
  %2862 = vmatprep.subr.mxu0 0.0
  %2863 = vmatpush1.msra.mxu0 0.0
  %2864 = vmatprep.subr.mxu0 0.0
  %2865 = vmatpush1.msra.mxu0 0.0
  %2866 = vmatprep.subr.mxu0 0.0
  %2867 = vmatpush1.msra.mxu0 0.0
  %2868 = vmatprep.subr.mxu0 0.0
  %2869 = vmatpush1.msra.mxu0 0.0
  %2870 = vmatprep.subr.mxu0 0.0
  %2871 = vmatpush1.msra.mxu0 0.0
  %2872 = vmatprep.subr.mxu0 0.0
  %2873 = vmatpush1.msra.mxu0 0.0
  %2874 = vmatprep.subr.mxu0 0.0
  %2875 = vmatpush1.msra.mxu0 0.0
  %2876 = vmatprep.mubr.f32.mxu0 0.0
  %2877 = vmatmul.mubr.f32.gmra.mrb[0].mxu0 %v2789
  %v2878 = vpop.f32.mrb[0].mxu0
  %v2879 = vadd.f32 %v2787, %v2878
  %v2880 = vpop.f32.mrb[0].mxu0
  %2881 = vmatprep.mubr.f32.mxu0 0.0
  %2882 = vmatmul.mubr.f32.gmra.mrb[0].mxu0 %v2792
  %v2883 = vpop.f32.mrb[0].mxu0
  %v2884 = vadd.f32 %v2787, %v2883
  %v2885 = vpop.f32.mrb[0].mxu0
  %2886 = vmatprep.mubr.f32.mxu0 0.0
  %2887 = vmatmul.mubr.f32.gmra.mrb[0].mxu0 %v2795
  %v2888 = vpop.f32.mrb[0].mxu0
  %v2889 = vadd.f32 %v2787, %v2888
  %v2890 = vpop.f32.mrb[0].mxu0
  %2891 = vmatprep.mubr.f32.mxu0 0.0
  %2892 = vmatmul.mubr.f32.gmra.mrb[0].mxu0 %v2798
  %v2893 = vpop.f32.mrb[0].mxu0
  %v2894 = vadd.f32 %v2787, %v2893
  %v2895 = vpop.f32.mrb[0].mxu0
  %2896 = vmatprep.mubr.f32.mxu0 0.0
  %2897 = vmatmul.mubr.f32.gmra.mrb[0].mxu0 %v2801
  %v2898 = vpop.f32.mrb[0].mxu0
  %v2899 = vadd.f32 %v2787, %v2898
  %v2900 = vpop.f32.mrb[0].mxu0
  %2901 = vmatprep.mubr.f32.mxu0 0.0
  %2902 = vmatmul.mubr.f32.gmra.mrb[0].mxu0 %v2804
  %v2903 = vpop.f32.mrb[0].mxu0
  %v2904 = vadd.f32 %v2787, %v2903
  %v2905 = vpop.f32.mrb[0].mxu0
  %2906 = vmatprep.mubr.f32.mxu0 0.0
  %2907 = vmatmul.mubr.f32.gmra.mrb[0].mxu0 %v2807
  %v2908 = vpop.f32.mrb[0].mxu0
  %v2909 = vadd.f32 %v2787, %v2908
  %v2910 = vpop.f32.mrb[0].mxu0
  %2911 = vmatprep.mubr.f32.mxu0 0.0
  %2912 = vmatmul.mubr.f32.gmra.mrb[0].mxu0 %v2810
  %v2913 = vpop.f32.mrb[0].mxu0
  %v2914 = vadd.f32 %v2787, %v2913
  %v2915 = vpop.f32.mrb[0].mxu0
  %2916 = vdwg.mxu0
  %v2917 = vmax.f32 %v2879, 0.0
  %v2918 = vmax.f32 %v2884, 0.0
  %v2919 = vmax.f32 %v2889, 0.0
  %v2920 = vmax.f32 %v2894, 0.0
  %v2921 = vmax.f32 %v2899, 0.0
  %v2922 = vmax.f32 %v2904, 0.0
  %v2923 = vmax.f32 %v2909, 0.0
  %v2924 = vmax.f32 %v2914, 0.0
  %v2925 = vld [vmem:[%s17 + $0xc] sm:$0x1]
  %v2926 = vld [vmem:[%s17 + $0xd] sm:$0x1]
  %v2927 = vsel %vm270, %v2917, 0.0
  %2928 = vadd.xlane.f32.xlu0 %v2927
  %v2929 = vpop.xlane.xlu0 %2928
  %v2930 = vsel %vm270, %v2918, 0.0
  %2931 = vadd.xlane.f32.xlu0 %v2930
  %v2932 = vpop.xlane.xlu0 %2931
  %v2933 = vsel %vm270, %v2919, 0.0
  %2934 = vadd.xlane.f32.xlu0 %v2933
  %v2935 = vpop.xlane.xlu0 %2934
  %v2936 = vsel %vm270, %v2920, 0.0
  %2937 = vadd.xlane.f32.xlu0 %v2936
  %v2938 = vpop.xlane.xlu0 %2937
  %v2939 = vsel %vm270, %v2921, 0.0
  %2940 = vadd.xlane.f32.xlu0 %v2939
  %v2941 = vpop.xlane.xlu0 %2940
  %v2942 = vsel %vm270, %v2922, 0.0
  %2943 = vadd.xlane.f32.xlu0 %v2942
  %v2944 = vpop.xlane.xlu0 %2943
  %v2945 = vsel %vm270, %v2923, 0.0
  %2946 = vadd.xlane.f32.xlu0 %v2945
  %v2947 = vpop.xlane.xlu0 %2946
  %v2948 = vsel %vm270, %v2924, 0.0
  %2949 = vadd.xlane.f32.xlu0 %v2948
  %v2950 = vpop.xlane.xlu0 %2949
  %v2951 = vmul.f32 %v2929, %v1457
  %v2952 = vmul.f32 %v2932, %v1457
  %v2953 = vmul.f32 %v2935, %v1457
  %v2954 = vmul.f32 %v2938, %v1457
  %v2955 = vmul.f32 %v2941, %v1457
  %v2956 = vmul.f32 %v2944, %v1457
  %v2957 = vmul.f32 %v2947, %v1457
  %v2958 = vmul.f32 %v2950, %v1457
  %v2959 = vsub.f32 %v2917, %v2951
  %v2960 = vsub.f32 %v2918, %v2952
  %v2961 = vsub.f32 %v2919, %v2953
  %v2962 = vsub.f32 %v2920, %v2954
  %v2963 = vsub.f32 %v2921, %v2955
  %v2964 = vsub.f32 %v2922, %v2956
  %v2965 = vsub.f32 %v2923, %v2957
  %v2966 = vsub.f32 %v2924, %v2958
  %v2967 = vmul.f32 %v2959, %v2959
  %v2968 = vmul.f32 %v2960, %v2960
  %v2969 = vmul.f32 %v2961, %v2961
  %v2970 = vmul.f32 %v2962, %v2962
  %v2971 = vmul.f32 %v2963, %v2963
  %v2972 = vmul.f32 %v2964, %v2964
  %v2973 = vmul.f32 %v2965, %v2965
  %v2974 = vmul.f32 %v2966, %v2966
  %v2975 = vsel %vm270, %v2967, 0.0
  %2976 = vadd.xlane.f32.xlu0 %v2975
  %v2977 = vpop.xlane.xlu0 %2976
  %v2978 = vsel %vm270, %v2968, 0.0
  %2979 = vadd.xlane.f32.xlu0 %v2978
  %v2980 = vpop.xlane.xlu0 %2979
  %v2981 = vsel %vm270, %v2969, 0.0
  %2982 = vadd.xlane.f32.xlu0 %v2981
  %v2983 = vpop.xlane.xlu0 %2982
  %v2984 = vsel %vm270, %v2970, 0.0
  %2985 = vadd.xlane.f32.xlu0 %v2984
  %v2986 = vpop.xlane.xlu0 %2985
  %v2987 = vsel %vm270, %v2971, 0.0
  %2988 = vadd.xlane.f32.xlu0 %v2987
  %v2989 = vpop.xlane.xlu0 %2988
  %v2990 = vsel %vm270, %v2972, 0.0
  %2991 = vadd.xlane.f32.xlu0 %v2990
  %v2992 = vpop.xlane.xlu0 %2991
  %v2993 = vsel %vm270, %v2973, 0.0
  %2994 = vadd.xlane.f32.xlu0 %v2993
  %v2995 = vpop.xlane.xlu0 %2994
  %v2996 = vsel %vm270, %v2974, 0.0
  %2997 = vadd.xlane.f32.xlu0 %v2996
  %v2998 = vpop.xlane.xlu0 %2997
  %v2999 = vmul.f32 %v2977, %v1457
  %v3000 = vmul.f32 %v2980, %v1457
  %v3001 = vmul.f32 %v2983, %v1457
  %v3002 = vmul.f32 %v2986, %v1457
  %v3003 = vmul.f32 %v2989, %v1457
  %v3004 = vmul.f32 %v2992, %v1457
  %v3005 = vmul.f32 %v2995, %v1457
  %v3006 = vmul.f32 %v2998, %v1457
  %v3007 = vadd.f32 %v2999, 1e-05
  %v3008 = vadd.f32 %v3000, 1e-05
  %v3009 = vadd.f32 %v3001, 1e-05
  %v3010 = vadd.f32 %v3002, 1e-05
  %v3011 = vadd.f32 %v3003, 1e-05
  %v3012 = vadd.f32 %v3004, 1e-05
  %v3013 = vadd.f32 %v3005, 1e-05
  %v3014 = vadd.f32 %v3006, 1e-05
  %v3015 = vrsqrt.pop %v3007
  %v3016 = vrsqrt.pop %v3008
  %v3017 = vrsqrt.pop %v3009
  %v3018 = vrsqrt.pop %v3010
  %v3019 = vrsqrt.pop %v3011
  %v3020 = vrsqrt.pop %v3012
  %v3021 = vrsqrt.pop %v3013
  %v3022 = vrsqrt.pop %v3014
  %v3023 = vmul.f32 %v2959, %v3015
  %v3024 = vmul.f32 %v2960, %v3016
  %v3025 = vmul.f32 %v2961, %v3017
  %v3026 = vmul.f32 %v2962, %v3018
  %v3027 = vmul.f32 %v2963, %v3019
  %v3028 = vmul.f32 %v2964, %v3020
  %v3029 = vmul.f32 %v2965, %v3021
  %v3030 = vmul.f32 %v2966, %v3022
  %v3031 = vlaneseq
  %v3032 = vshrl.u32 %v3031, 7
  %v3033 = vsub.s32 0, %v3032
  %v3034 = vrot.slane %v2925, %v3033
  %v3035 = vmul.f32 %v3023, %v3034
  %v3036 = vmul.f32 %v3024, %v3034
  %v3037 = vmul.f32 %v3025, %v3034
  %v3038 = vmul.f32 %v3026, %v3034
  %v3039 = vmul.f32 %v3027, %v3034
  %v3040 = vmul.f32 %v3028, %v3034
  %v3041 = vmul.f32 %v3029, %v3034
  %v3042 = vmul.f32 %v3030, %v3034
  %v3043 = vlaneseq
  %v3044 = vshrl.u32 %v3043, 7
  %v3045 = vsub.s32 0, %v3044
  %v3046 = vrot.slane %v2926, %v3045
  %v3047 = vadd.f32 %v3035, %v3046
  %v3048 = vadd.f32 %v3036, %v3046
  %v3049 = vadd.f32 %v3037, %v3046
  %v3050 = vadd.f32 %v3038, %v3046
  %v3051 = vadd.f32 %v3039, %v3046
  %v3052 = vadd.f32 %v3040, %v3046
  %v3053 = vadd.f32 %v3041, %v3046
  %v3054 = vadd.f32 %v3042, %v3046
  %v3055 = vld [vmem:[%s17 + $0xe] sm:$0x1]
  %v3056 = vld [vmem:[%s17 + $0xf] sm:$0x1]
  %3058 = vset.pattern.permute.xlu0 0
  %3059 = vperm.xlu0 %3058, %v3056
  %v3060 = vpop.permute.xlu0 %3059
  %v3063 = vsel %vm270, %v3055, 0
  %v3066 = vsel %vm270, %v3047, 0
  %v3069 = vsel %vm270, %v3048, 0
  %v3072 = vsel %vm270, %v3049, 0
  %v3075 = vsel %vm270, %v3050, 0
  %v3078 = vsel %vm270, %v3051, 0
  %v3081 = vsel %vm270, %v3052, 0
  %v3084 = vsel %vm270, %v3053, 0
  %v3087 = vsel %vm270, %v3054, 0
  %3089 = vmatprep.subr.mxu0 0.0
  %3090 = vmatpush1.xpose.msra.mxu0 %v3066
  %3091 = vmatprep.subr.mxu0 0.0
  %3092 = vmatpush1.xpose.msra.mxu0 %v3069
  %3093 = vmatprep.subr.mxu0 0.0
  %3094 = vmatpush1.xpose.msra.mxu0 %v3072
  %3095 = vmatprep.subr.mxu0 0.0
  %3096 = vmatpush1.xpose.msra.mxu0 %v3075
  %3097 = vmatprep.subr.mxu0 0.0
  %3098 = vmatpush1.xpose.msra.mxu0 %v3078
  %3099 = vmatprep.subr.mxu0 0.0
  %3100 = vmatpush1.xpose.msra.mxu0 %v3081
  %3101 = vmatprep.subr.mxu0 0.0
  %3102 = vmatpush1.xpose.msra.mxu0 %v3084
  %3103 = vmatprep.subr.mxu0 0.0
  %3104 = vmatpush1.xpose.msra.mxu0 %v3087
  %3105 = vmatprep.subr.mxu0 0.0
  %3106 = vmatpush1.xpose.msra.mxu0 0.0
  %3107 = vmatprep.subr.mxu0 0.0
  %3108 = vmatpush1.xpose.msra.mxu0 0.0
  %3109 = vmatprep.subr.mxu0 0.0
  %3110 = vmatpush1.xpose.msra.mxu0 0.0
  %3111 = vmatprep.subr.mxu0 0.0
  %3112 = vmatpush1.xpose.msra.mxu0 0.0
  %3113 = vmatprep.subr.mxu0 0.0
  %3114 = vmatpush1.xpose.msra.mxu0 0.0
  %3115 = vmatprep.subr.mxu0 0.0
  %3116 = vmatpush1.xpose.msra.mxu0 0.0
  %3117 = vmatprep.subr.mxu0 0.0
  %3118 = vmatpush1.xpose.msra.mxu0 0.0
  %3119 = vmatprep.subr.mxu0 0.0
  %3120 = vmatpush1.xpose.msra.mxu0 0.0
  %3121 = vmatprep.subr.mxu0 0.0
  %3122 = vmatpush1.xpose.msra.mxu0 0.0
  %3123 = vmatprep.subr.mxu0 0.0
  %3124 = vmatpush1.xpose.msra.mxu0 0.0
  %3125 = vmatprep.subr.mxu0 0.0
  %3126 = vmatpush1.xpose.msra.mxu0 0.0
  %3127 = vmatprep.subr.mxu0 0.0
  %3128 = vmatpush1.xpose.msra.mxu0 0.0
  %3129 = vmatprep.subr.mxu0 0.0
  %3130 = vmatpush1.xpose.msra.mxu0 0.0
  %3131 = vmatprep.subr.mxu0 0.0
  %3132 = vmatpush1.xpose.msra.mxu0 0.0
  %3133 = vmatprep.subr.mxu0 0.0
  %3134 = vmatpush1.xpose.msra.mxu0 0.0
  %3135 = vmatprep.subr.mxu0 0.0
  %3136 = vmatpush1.xpose.msra.mxu0 0.0
  %3137 = vmatprep.subr.mxu0 0.0
  %3138 = vmatpush1.xpose.msra.mxu0 0.0
  %3139 = vmatprep.subr.mxu0 0.0
  %3140 = vmatpush1.xpose.msra.mxu0 0.0
  %3141 = vmatprep.subr.mxu0 0.0
  %3142 = vmatpush1.xpose.msra.mxu0 0.0
  %3143 = vmatprep.subr.mxu0 0.0
  %3144 = vmatpush1.xpose.msra.mxu0 0.0
  %3145 = vmatprep.subr.mxu0 0.0
  %3146 = vmatpush1.xpose.msra.mxu0 0.0
  %3147 = vmatprep.subr.mxu0 0.0
  %3148 = vmatpush1.xpose.msra.mxu0 0.0
  %3149 = vmatprep.subr.mxu0 0.0
  %3150 = vmatpush1.xpose.msra.mxu0 0.0
  %3151 = vmatprep.subr.mxu0 0.0
  %3152 = vmatpush1.xpose.msra.mxu0 0.0
  %3153 = vmatprep.mubr.f32.mxu0 0.0
  %3154 = vmatmul.mubr.f32.gmra.mrb[0].mxu0 %v3063
  %v3155 = vpop.f32.mrb[0].mxu0
  %v3156 = vadd.f32 %v3060, %v3155
  %v3157 = vpop.f32.mrb[0].mxu0
  %3158 = vdwg.mxu0
  %v3159 = vmul.f32 %v3156, 1.442695
  %v3160 = vpow.pop %v3159
  %v3161 = vsub.f32 %v3160, 0.5
  %v3162 = vfloor.f32 %v3161
  %v3163 = vmax.f32 %v3162, 1.0
  %v3164 = vmin.f32 %v3163, 3.0
  %v3165 = vld [vmem:[%s4] sm:$0xff]
  %v3166 = vld [vmem:[%s4 + $0x8] sm:$0xff]
  %v3167 = vld [vmem:[%s4 + $0x10] sm:$0xff]
  %v3168 = vld [vmem:[%s4 + $0x18] sm:$0xff]
  %v3169 = vld [vmem:[%s4 + $0x20] sm:$0xff]
  %v3170 = vld [vmem:[%s4 + $0x28] sm:$0xff]
  %v3171 = vld [vmem:[%s4 + $0x30] sm:$0xff]
  %v3172 = vld [vmem:[%s4 + $0x38] sm:$0xff]
  %v3174 = vsel %vm578, %v3164, 0
  %v3177 = vsel %vm578, %v3165, 0
  %v3180 = vsel %vm578, %v3166, 0
  %v3183 = vsel %vm578, %v3167, 0
  %v3186 = vsel %vm578, %v3168, 0
  %v3189 = vsel %vm578, %v3169, 0
  %v3192 = vsel %vm578, %v3170, 0
  %v3195 = vsel %vm578, %v3171, 0
  %v3198 = vsel %vm578, %v3172, 0
  %3200 = vmatprep.subr.mxu0 0.0
  %3201 = vmatpush1.xpose.msra.mxu0 %v3177
  %3202 = vmatprep.subr.mxu0 0.0
  %3203 = vmatpush1.xpose.msra.mxu0 %v3180
  %3204 = vmatprep.subr.mxu0 0.0
  %3205 = vmatpush1.xpose.msra.mxu0 %v3183
  %3206 = vmatprep.subr.mxu0 0.0
  %3207 = vmatpush1.xpose.msra.mxu0 %v3186
  %3208 = vmatprep.subr.mxu0 0.0
  %3209 = vmatpush1.xpose.msra.mxu0 %v3189
  %3210 = vmatprep.subr.mxu0 0.0
  %3211 = vmatpush1.xpose.msra.mxu0 %v3192
  %3212 = vmatprep.subr.mxu0 0.0
  %3213 = vmatpush1.xpose.msra.mxu0 %v3195
  %3214 = vmatprep.subr.mxu0 0.0
  %3215 = vmatpush1.xpose.msra.mxu0 %v3198
  %3216 = vmatprep.subr.mxu0 0.0
  %3217 = vmatpush1.xpose.msra.mxu0 0.0
  %3218 = vmatprep.subr.mxu0 0.0
  %3219 = vmatpush1.xpose.msra.mxu0 0.0
  %3220 = vmatprep.subr.mxu0 0.0
  %3221 = vmatpush1.xpose.msra.mxu0 0.0
  %3222 = vmatprep.subr.mxu0 0.0
  %3223 = vmatpush1.xpose.msra.mxu0 0.0
  %3224 = vmatprep.subr.mxu0 0.0
  %3225 = vmatpush1.xpose.msra.mxu0 0.0
  %3226 = vmatprep.subr.mxu0 0.0
  %3227 = vmatpush1.xpose.msra.mxu0 0.0
  %3228 = vmatprep.subr.mxu0 0.0
  %3229 = vmatpush1.xpose.msra.mxu0 0.0
  %3230 = vmatprep.subr.mxu0 0.0
  %3231 = vmatpush1.xpose.msra.mxu0 0.0
  %3232 = vmatprep.subr.mxu0 0.0
  %3233 = vmatpush1.xpose.msra.mxu0 0.0
  %3234 = vmatprep.subr.mxu0 0.0
  %3235 = vmatpush1.xpose.msra.mxu0 0.0
  %3236 = vmatprep.subr.mxu0 0.0
  %3237 = vmatpush1.xpose.msra.mxu0 0.0
  %3238 = vmatprep.subr.mxu0 0.0
  %3239 = vmatpush1.xpose.msra.mxu0 0.0
  %3240 = vmatprep.subr.mxu0 0.0
  %3241 = vmatpush1.xpose.msra.mxu0 0.0
  %3242 = vmatprep.subr.mxu0 0.0
  %3243 = vmatpush1.xpose.msra.mxu0 0.0
  %3244 = vmatprep.subr.mxu0 0.0
  %3245 = vmatpush1.xpose.msra.mxu0 0.0
  %3246 = vmatprep.subr.mxu0 0.0
  %3247 = vmatpush1.xpose.msra.mxu0 0.0
  %3248 = vmatprep.subr.mxu0 0.0
  %3249 = vmatpush1.xpose.msra.mxu0 0.0
  %3250 = vmatprep.subr.mxu0 0.0
  %3251 = vmatpush1.xpose.msra.mxu0 0.0
  %3252 = vmatprep.subr.mxu0 0.0
  %3253 = vmatpush1.xpose.msra.mxu0 0.0
  %3254 = vmatprep.subr.mxu0 0.0
  %3255 = vmatpush1.xpose.msra.mxu0 0.0
  %3256 = vmatprep.subr.mxu0 0.0
  %3257 = vmatpush1.xpose.msra.mxu0 0.0
  %3258 = vmatprep.subr.mxu0 0.0
  %3259 = vmatpush1.xpose.msra.mxu0 0.0
  %3260 = vmatprep.subr.mxu0 0.0
  %3261 = vmatpush1.xpose.msra.mxu0 0.0
  %3262 = vmatprep.subr.mxu0 0.0
  %3263 = vmatpush1.xpose.msra.mxu0 0.0
  %3264 = vmatprep.mubr.f32.mxu0 0.0
  %3265 = vmatmul.mubr.f32.gmra.mrb[0].mxu0 %v3174
  %v3266 = vpop.f32.mrb[0].mxu0
  %v3267 = vadd.f32 0.0, %v3266
  %v3268 = vpop.f32.mrb[0].mxu0
  %3269 = vdwg.mxu0
  %v3270 = vsub.f32 %v3267, %v3164
  %v3271 = vld [vmem:[%s5] sm:$0xff]
  %v3272 = vld [vmem:[%s5 + $0x8] sm:$0xff]
  %v3273 = vld [vmem:[%s5 + $0x10] sm:$0xff]
  %v3274 = vld [vmem:[%s5 + $0x18] sm:$0xff]
  %v3275 = vld [vmem:[%s5 + $0x20] sm:$0xff]
  %v3276 = vld [vmem:[%s5 + $0x28] sm:$0xff]
  %v3277 = vld [vmem:[%s5 + $0x30] sm:$0xff]
  %v3278 = vld [vmem:[%s5 + $0x38] sm:$0xff]
  %v3279 = vld [vmem:[%s5 + $0x40] sm:$0xff]
  %v3280 = vld [vmem:[%s5 + $0x48] sm:$0xff]
  %v3281 = vld [vmem:[%s5 + $0x50] sm:$0xff]
  %v3282 = vld [vmem:[%s5 + $0x58] sm:$0xff]
  %v3283 = vld [vmem:[%s5 + $0x60] sm:$0xff]
  %v3284 = vld [vmem:[%s5 + $0x68] sm:$0xff]
  %v3285 = vld [vmem:[%s5 + $0x70] sm:$0xff]
  %v3286 = vld [vmem:[%s5 + $0x78] sm:$0xff]
  %v3287 = vlaneseq
  %v3288 = vshrl.u32 %v3287, 7
  %v3289 = vsub.s32 0, %v3288
  %v3290 = vrot.slane %v3270, %v3289
  %vm3291 = vcmp.ge.f32.partialorder %v3271, %v3290
  %vm3292 = vcmp.ge.f32.partialorder %v3272, %v3290
  %vm3293 = vcmp.ge.f32.partialorder %v3273, %v3290
  %vm3294 = vcmp.ge.f32.partialorder %v3274, %v3290
  %vm3295 = vcmp.ge.f32.partialorder %v3275, %v3290
  %vm3296 = vcmp.ge.f32.partialorder %v3276, %v3290
  %vm3297 = vcmp.ge.f32.partialorder %v3277, %v3290
  %vm3298 = vcmp.ge.f32.partialorder %v3278, %v3290
  %vm3299 = vcmp.ge.f32.partialorder %v3279, %v3290
  %vm3300 = vcmp.ge.f32.partialorder %v3280, %v3290
  %vm3301 = vcmp.ge.f32.partialorder %v3281, %v3290
  %vm3302 = vcmp.ge.f32.partialorder %v3282, %v3290
  %vm3303 = vcmp.ge.f32.partialorder %v3283, %v3290
  %vm3304 = vcmp.ge.f32.partialorder %v3284, %v3290
  %vm3305 = vcmp.ge.f32.partialorder %v3285, %v3290
  %vm3306 = vcmp.ge.f32.partialorder %v3286, %v3290
  %v3307 = vsel %vm3291, 1, 0
  %v3308 = vsel %vm3292, 1, 0
  %v3309 = vsel %vm3293, 1, 0
  %v3310 = vsel %vm3294, 1, 0
  %v3311 = vsel %vm3295, 1, 0
  %v3312 = vsel %vm3296, 1, 0
  %v3313 = vsel %vm3297, 1, 0
  %v3314 = vsel %vm3298, 1, 0
  %v3315 = vsel %vm3299, 1, 0
  %v3316 = vsel %vm3300, 1, 0
  %v3317 = vsel %vm3301, 1, 0
  %v3318 = vsel %vm3302, 1, 0
  %v3319 = vsel %vm3303, 1, 0
  %v3320 = vsel %vm3304, 1, 0
  %v3321 = vsel %vm3305, 1, 0
  %v3322 = vsel %vm3306, 1, 0
  %v3323 = vcvt.s32.f32 %v3307
  %v3324 = vcvt.s32.f32 %v3308
  %v3325 = vcvt.s32.f32 %v3309
  %v3326 = vcvt.s32.f32 %v3310
  %v3327 = vcvt.s32.f32 %v3311
  %v3328 = vcvt.s32.f32 %v3312
  %v3329 = vcvt.s32.f32 %v3313
  %v3330 = vcvt.s32.f32 %v3314
  %v3331 = vcvt.s32.f32 %v3315
  %v3332 = vcvt.s32.f32 %v3316
  %v3333 = vcvt.s32.f32 %v3317
  %v3334 = vcvt.s32.f32 %v3318
  %v3335 = vcvt.s32.f32 %v3319
  %v3336 = vcvt.s32.f32 %v3320
  %v3337 = vcvt.s32.f32 %v3321
  %v3338 = vcvt.s32.f32 %v3322
  %v3339 = vlaneseq
  %v3340 = vshrl.u32 %v3339, 7
  %v3341 = vsub.s32 0, %v3340
  %v3342 = vrot.slane %v3267, %v3341
  %vm3343 = vcmp.lt.f32.partialorder %v3271, %v3342
  %vm3344 = vcmp.lt.f32.partialorder %v3272, %v3342
  %vm3345 = vcmp.lt.f32.partialorder %v3273, %v3342
  %vm3346 = vcmp.lt.f32.partialorder %v3274, %v3342
  %vm3347 = vcmp.lt.f32.partialorder %v3275, %v3342
  %vm3348 = vcmp.lt.f32.partialorder %v3276, %v3342
  %vm3349 = vcmp.lt.f32.partialorder %v3277, %v3342
  %vm3350 = vcmp.lt.f32.partialorder %v3278, %v3342
  %vm3351 = vcmp.lt.f32.partialorder %v3279, %v3342
  %vm3352 = vcmp.lt.f32.partialorder %v3280, %v3342
  %vm3353 = vcmp.lt.f32.partialorder %v3281, %v3342
  %vm3354 = vcmp.lt.f32.partialorder %v3282, %v3342
  %vm3355 = vcmp.lt.f32.partialorder %v3283, %v3342
  %vm3356 = vcmp.lt.f32.partialorder %v3284, %v3342
  %vm3357 = vcmp.lt.f32.partialorder %v3285, %v3342
  %vm3358 = vcmp.lt.f32.partialorder %v3286, %v3342
  %v3359 = vsel %vm3343, 1, 0
  %v3360 = vsel %vm3344, 1, 0
  %v3361 = vsel %vm3345, 1, 0
  %v3362 = vsel %vm3346, 1, 0
  %v3363 = vsel %vm3347, 1, 0
  %v3364 = vsel %vm3348, 1, 0
  %v3365 = vsel %vm3349, 1, 0
  %v3366 = vsel %vm3350, 1, 0
  %v3367 = vsel %vm3351, 1, 0
  %v3368 = vsel %vm3352, 1, 0
  %v3369 = vsel %vm3353, 1, 0
  %v3370 = vsel %vm3354, 1, 0
  %v3371 = vsel %vm3355, 1, 0
  %v3372 = vsel %vm3356, 1, 0
  %v3373 = vsel %vm3357, 1, 0
  %v3374 = vsel %vm3358, 1, 0
  %v3375 = vcvt.s32.f32 %v3359
  %v3376 = vcvt.s32.f32 %v3360
  %v3377 = vcvt.s32.f32 %v3361
  %v3378 = vcvt.s32.f32 %v3362
  %v3379 = vcvt.s32.f32 %v3363
  %v3380 = vcvt.s32.f32 %v3364
  %v3381 = vcvt.s32.f32 %v3365
  %v3382 = vcvt.s32.f32 %v3366
  %v3383 = vcvt.s32.f32 %v3367
  %v3384 = vcvt.s32.f32 %v3368
  %v3385 = vcvt.s32.f32 %v3369
  %v3386 = vcvt.s32.f32 %v3370
  %v3387 = vcvt.s32.f32 %v3371
  %v3388 = vcvt.s32.f32 %v3372
  %v3389 = vcvt.s32.f32 %v3373
  %v3390 = vcvt.s32.f32 %v3374
  %v3391 = vmul.f32 %v3323, %v3375
  %v3392 = vmul.f32 %v3324, %v3376
  %v3393 = vmul.f32 %v3325, %v3377
  %v3394 = vmul.f32 %v3326, %v3378
  %v3395 = vmul.f32 %v3327, %v3379
  %v3396 = vmul.f32 %v3328, %v3380
  %v3397 = vmul.f32 %v3329, %v3381
  %v3398 = vmul.f32 %v3330, %v3382
  %v3399 = vmul.f32 %v3331, %v3383
  %v3400 = vmul.f32 %v3332, %v3384
  %v3401 = vmul.f32 %v3333, %v3385
  %v3402 = vmul.f32 %v3334, %v3386
  %v3403 = vmul.f32 %v3335, %v3387
  %v3404 = vmul.f32 %v3336, %v3388
  %v3405 = vmul.f32 %v3337, %v3389
  %v3406 = vmul.f32 %v3338, %v3390
  %v3407 = vsel %vm578, %v3391, 0.0
  %3408 = vadd.xlane.f32.xlu0 %v3407
  %v3409 = vpop.xlane.xlu0 %3408
  %v3410 = vsel %vm578, %v3392, 0.0
  %3411 = vadd.xlane.f32.xlu0 %v3410
  %v3412 = vpop.xlane.xlu0 %3411
  %v3413 = vsel %vm578, %v3393, 0.0
  %3414 = vadd.xlane.f32.xlu0 %v3413
  %v3415 = vpop.xlane.xlu0 %3414
  %v3416 = vsel %vm578, %v3394, 0.0
  %3417 = vadd.xlane.f32.xlu0 %v3416
  %v3418 = vpop.xlane.xlu0 %3417
  %v3419 = vsel %vm578, %v3395, 0.0
  %3420 = vadd.xlane.f32.xlu0 %v3419
  %v3421 = vpop.xlane.xlu0 %3420
  %v3422 = vsel %vm578, %v3396, 0.0
  %3423 = vadd.xlane.f32.xlu0 %v3422
  %v3424 = vpop.xlane.xlu0 %3423
  %v3425 = vsel %vm578, %v3397, 0.0
  %3426 = vadd.xlane.f32.xlu0 %v3425
  %v3427 = vpop.xlane.xlu0 %3426
  %v3428 = vsel %vm578, %v3398, 0.0
  %3429 = vadd.xlane.f32.xlu0 %v3428
  %v3430 = vpop.xlane.xlu0 %3429
  %v3431 = vsel %vm578, %v3399, 0.0
  %3432 = vadd.xlane.f32.xlu0 %v3431
  %v3433 = vpop.xlane.xlu0 %3432
  %v3434 = vsel %vm578, %v3400, 0.0
  %3435 = vadd.xlane.f32.xlu0 %v3434
  %v3436 = vpop.xlane.xlu0 %3435
  %v3437 = vsel %vm578, %v3401, 0.0
  %3438 = vadd.xlane.f32.xlu0 %v3437
  %v3439 = vpop.xlane.xlu0 %3438
  %v3440 = vsel %vm578, %v3402, 0.0
  %3441 = vadd.xlane.f32.xlu0 %v3440
  %v3442 = vpop.xlane.xlu0 %3441
  %v3443 = vsel %vm578, %v3403, 0.0
  %3444 = vadd.xlane.f32.xlu0 %v3443
  %v3445 = vpop.xlane.xlu0 %3444
  %v3446 = vsel %vm578, %v3404, 0.0
  %3447 = vadd.xlane.f32.xlu0 %v3446
  %v3448 = vpop.xlane.xlu0 %3447
  %v3449 = vsel %vm578, %v3405, 0.0
  %3450 = vadd.xlane.f32.xlu0 %v3449
  %v3451 = vpop.xlane.xlu0 %3450
  %v3452 = vsel %vm578, %v3406, 0.0
  %3453 = vadd.xlane.f32.xlu0 %v3452
  %v3454 = vpop.xlane.xlu0 %3453
  %v3455 = vld [vmem:[%s1] sm:$0xff]
  %v3456 = vld [vmem:[%s1 + $0x8] sm:$0xff]
  %v3457 = vld [vmem:[%s1 + $0x10] sm:$0xff]
  %v3458 = vld [vmem:[%s1 + $0x18] sm:$0xff]
  %v3459 = vld [vmem:[%s1 + $0x20] sm:$0xff]
  %v3460 = vld [vmem:[%s1 + $0x28] sm:$0xff]
  %v3461 = vld [vmem:[%s1 + $0x30] sm:$0xff]
  %v3462 = vld [vmem:[%s1 + $0x38] sm:$0xff]
  %v3463 = vld [vmem:[%s1 + $0x40] sm:$0xff]
  %v3464 = vld [vmem:[%s1 + $0x48] sm:$0xff]
  %v3465 = vld [vmem:[%s1 + $0x50] sm:$0xff]
  %v3466 = vld [vmem:[%s1 + $0x58] sm:$0xff]
  %v3467 = vld [vmem:[%s1 + $0x60] sm:$0xff]
  %v3468 = vld [vmem:[%s1 + $0x68] sm:$0xff]
  %v3469 = vld [vmem:[%s1 + $0x70] sm:$0xff]
  %v3470 = vld [vmem:[%s1 + $0x78] sm:$0xff]
  %v3471 = vmul.f32 %v3455, %v3409
  %v3472 = vmul.f32 %v3456, %v3412
  %v3473 = vmul.f32 %v3457, %v3415
  %v3474 = vmul.f32 %v3458, %v3418
  %v3475 = vmul.f32 %v3459, %v3421
  %v3476 = vmul.f32 %v3460, %v3424
  %v3477 = vmul.f32 %v3461, %v3427
  %v3478 = vmul.f32 %v3462, %v3430
  %v3479 = vmul.f32 %v3463, %v3433
  %v3480 = vmul.f32 %v3464, %v3436
  %v3481 = vmul.f32 %v3465, %v3439
  %v3482 = vmul.f32 %v3466, %v3442
  %v3483 = vmul.f32 %v3467, %v3445
  %v3484 = vmul.f32 %v3468, %v3448
  %v3485 = vmul.f32 %v3469, %v3451
  %v3486 = vmul.f32 %v3470, %v3454
  %v3488 = vsel %vm578, %v3391, 0
  %v3491 = vsel %vm578, %v3392, 0
  %v3494 = vsel %vm578, %v3393, 0
  %v3497 = vsel %vm578, %v3394, 0
  %v3500 = vsel %vm578, %v3395, 0
  %v3503 = vsel %vm578, %v3396, 0
  %v3506 = vsel %vm578, %v3397, 0
  %v3509 = vsel %vm578, %v3398, 0
  %v3512 = vsel %vm578, %v3399, 0
  %v3515 = vsel %vm578, %v3400, 0
  %v3518 = vsel %vm578, %v3401, 0
  %v3521 = vsel %vm578, %v3402, 0
  %v3524 = vsel %vm578, %v3403, 0
  %v3527 = vsel %vm578, %v3404, 0
  %v3530 = vsel %vm578, %v3405, 0
  %v3533 = vsel %vm578, %v3406, 0
  %3535 = vmatprep.subr.mxu0 0.0
  %3536 = vmatpush1.msra.mxu0 %v2223
  %3537 = vmatprep.subr.mxu0 0.0
  %3538 = vmatpush1.msra.mxu0 %v2224
  %3539 = vmatprep.subr.mxu0 0.0
  %3540 = vmatpush1.msra.mxu0 %v2225
  %3541 = vmatprep.subr.mxu0 0.0
  %3542 = vmatpush1.msra.mxu0 %v2226
  %3543 = vmatprep.subr.mxu0 0.0
  %3544 = vmatpush1.msra.mxu0 %v2227
  %3545 = vmatprep.subr.mxu0 0.0
  %3546 = vmatpush1.msra.mxu0 %v2228
  %3547 = vmatprep.subr.mxu0 0.0
  %3548 = vmatpush1.msra.mxu0 %v2229
  %3549 = vmatprep.subr.mxu0 0.0
  %3550 = vmatpush1.msra.mxu0 %v2230
  %3551 = vmatprep.subr.mxu0 0.0
  %3552 = vmatpush1.msra.mxu0 0.0
  %3553 = vmatprep.subr.mxu0 0.0
  %3554 = vmatpush1.msra.mxu0 0.0
  %3555 = vmatprep.subr.mxu0 0.0
  %3556 = vmatpush1.msra.mxu0 0.0
  %3557 = vmatprep.subr.mxu0 0.0
  %3558 = vmatpush1.msra.mxu0 0.0
  %3559 = vmatprep.subr.mxu0 0.0
  %3560 = vmatpush1.msra.mxu0 0.0
  %3561 = vmatprep.subr.mxu0 0.0
  %3562 = vmatpush1.msra.mxu0 0.0
  %3563 = vmatprep.subr.mxu0 0.0
  %3564 = vmatpush1.msra.mxu0 0.0
  %3565 = vmatprep.subr.mxu0 0.0
  %3566 = vmatpush1.msra.mxu0 0.0
  %3567 = vmatprep.subr.mxu0 0.0
  %3568 = vmatpush1.msra.mxu0 0.0
  %3569 = vmatprep.subr.mxu0 0.0
  %3570 = vmatpush1.msra.mxu0 0.0
  %3571 = vmatprep.subr.mxu0 0.0
  %3572 = vmatpush1.msra.mxu0 0.0
  %3573 = vmatprep.subr.mxu0 0.0
  %3574 = vmatpush1.msra.mxu0 0.0
  %3575 = vmatprep.subr.mxu0 0.0
  %3576 = vmatpush1.msra.mxu0 0.0
  %3577 = vmatprep.subr.mxu0 0.0
  %3578 = vmatpush1.msra.mxu0 0.0
  %3579 = vmatprep.subr.mxu0 0.0
  %3580 = vmatpush1.msra.mxu0 0.0
  %3581 = vmatprep.subr.mxu0 0.0
  %3582 = vmatpush1.msra.mxu0 0.0
  %3583 = vmatprep.subr.mxu0 0.0
  %3584 = vmatpush1.msra.mxu0 0.0
  %3585 = vmatprep.subr.mxu0 0.0
  %3586 = vmatpush1.msra.mxu0 0.0
  %3587 = vmatprep.subr.mxu0 0.0
  %3588 = vmatpush1.msra.mxu0 0.0
  %3589 = vmatprep.subr.mxu0 0.0
  %3590 = vmatpush1.msra.mxu0 0.0
  %3591 = vmatprep.subr.mxu0 0.0
  %3592 = vmatpush1.msra.mxu0 0.0
  %3593 = vmatprep.subr.mxu0 0.0
  %3594 = vmatpush1.msra.mxu0 0.0
  %3595 = vmatprep.subr.mxu0 0.0
  %3596 = vmatpush1.msra.mxu0 0.0
  %3597 = vmatprep.subr.mxu0 0.0
  %3598 = vmatpush1.msra.mxu0 0.0
  %3599 = vmatprep.mubr.f32.mxu0 0.0
  %3600 = vmatmul.mubr.f32.gmra.mrb[0].mxu0 %v3488
  %v3601 = vpop.f32.mrb[0].mxu0
  %v3602 = vadd.f32 %v3471, %v3601
  %v3603 = vpop.f32.mrb[0].mxu0
  %3604 = vmatprep.mubr.f32.mxu0 0.0
  %3605 = vmatmul.mubr.f32.gmra.mrb[0].mxu0 %v3491
  %v3606 = vpop.f32.mrb[0].mxu0
  %v3607 = vadd.f32 %v3472, %v3606
  %v3608 = vpop.f32.mrb[0].mxu0
  %3609 = vmatprep.mubr.f32.mxu0 0.0
  %3610 = vmatmul.mubr.f32.gmra.mrb[0].mxu0 %v3494
  %v3611 = vpop.f32.mrb[0].mxu0
  %v3612 = vadd.f32 %v3473, %v3611
  %v3613 = vpop.f32.mrb[0].mxu0
  %3614 = vmatprep.mubr.f32.mxu0 0.0
  %3615 = vmatmul.mubr.f32.gmra.mrb[0].mxu0 %v3497
  %v3616 = vpop.f32.mrb[0].mxu0
  %v3617 = vadd.f32 %v3474, %v3616
  %v3618 = vpop.f32.mrb[0].mxu0
  %3619 = vmatprep.mubr.f32.mxu0 0.0
  %3620 = vmatmul.mubr.f32.gmra.mrb[0].mxu0 %v3500
  %v3621 = vpop.f32.mrb[0].mxu0
  %v3622 = vadd.f32 %v3475, %v3621
  %v3623 = vpop.f32.mrb[0].mxu0
  %3624 = vmatprep.mubr.f32.mxu0 0.0
  %3625 = vmatmul.mubr.f32.gmra.mrb[0].mxu0 %v3503
  %v3626 = vpop.f32.mrb[0].mxu0
  %v3627 = vadd.f32 %v3476, %v3626
  %v3628 = vpop.f32.mrb[0].mxu0
  %3629 = vmatprep.mubr.f32.mxu0 0.0
  %3630 = vmatmul.mubr.f32.gmra.mrb[0].mxu0 %v3506
  %v3631 = vpop.f32.mrb[0].mxu0
  %v3632 = vadd.f32 %v3477, %v3631
  %v3633 = vpop.f32.mrb[0].mxu0
  %3634 = vmatprep.mubr.f32.mxu0 0.0
  %3635 = vmatmul.mubr.f32.gmra.mrb[0].mxu0 %v3509
  %v3636 = vpop.f32.mrb[0].mxu0
  %v3637 = vadd.f32 %v3478, %v3636
  %v3638 = vpop.f32.mrb[0].mxu0
  %3639 = vmatprep.mubr.f32.mxu0 0.0
  %3640 = vmatmul.mubr.f32.gmra.mrb[0].mxu0 %v3512
  %v3641 = vpop.f32.mrb[0].mxu0
  %v3642 = vadd.f32 %v3479, %v3641
  %v3643 = vpop.f32.mrb[0].mxu0
  %3644 = vmatprep.mubr.f32.mxu0 0.0
  %3645 = vmatmul.mubr.f32.gmra.mrb[0].mxu0 %v3515
  %v3646 = vpop.f32.mrb[0].mxu0
  %v3647 = vadd.f32 %v3480, %v3646
  %v3648 = vpop.f32.mrb[0].mxu0
  %3649 = vmatprep.mubr.f32.mxu0 0.0
  %3650 = vmatmul.mubr.f32.gmra.mrb[0].mxu0 %v3518
  %v3651 = vpop.f32.mrb[0].mxu0
  %v3652 = vadd.f32 %v3481, %v3651
  %v3653 = vpop.f32.mrb[0].mxu0
  %3654 = vmatprep.mubr.f32.mxu0 0.0
  %3655 = vmatmul.mubr.f32.gmra.mrb[0].mxu0 %v3521
  %v3656 = vpop.f32.mrb[0].mxu0
  %v3657 = vadd.f32 %v3482, %v3656
  %v3658 = vpop.f32.mrb[0].mxu0
  %3659 = vmatprep.mubr.f32.mxu0 0.0
  %3660 = vmatmul.mubr.f32.gmra.mrb[0].mxu0 %v3524
  %v3661 = vpop.f32.mrb[0].mxu0
  %v3662 = vadd.f32 %v3483, %v3661
  %v3663 = vpop.f32.mrb[0].mxu0
  %3664 = vmatprep.mubr.f32.mxu0 0.0
  %3665 = vmatmul.mubr.f32.gmra.mrb[0].mxu0 %v3527
  %v3666 = vpop.f32.mrb[0].mxu0
  %v3667 = vadd.f32 %v3484, %v3666
  %v3668 = vpop.f32.mrb[0].mxu0
  %3669 = vmatprep.mubr.f32.mxu0 0.0
  %3670 = vmatmul.mubr.f32.gmra.mrb[0].mxu0 %v3530
  %v3671 = vpop.f32.mrb[0].mxu0
  %v3672 = vadd.f32 %v3485, %v3671
  %v3673 = vpop.f32.mrb[0].mxu0
  %3674 = vmatprep.mubr.f32.mxu0 0.0
  %3675 = vmatmul.mubr.f32.gmra.mrb[0].mxu0 %v3533
  %v3676 = vpop.f32.mrb[0].mxu0
  %v3677 = vadd.f32 %v3486, %v3676
  %v3678 = vpop.f32.mrb[0].mxu0
  %3679 = vdwg.mxu0
  %vm3680 = vcmask 7168
  %v3682 = vsel %vm3680, 1.0, 0
  %v3685 = vsel %vm3680, %v3409, 0
  %v3688 = vsel %vm3680, %v3412, 0
  %v3691 = vsel %vm3680, %v3415, 0
  %v3694 = vsel %vm3680, %v3418, 0
  %v3697 = vsel %vm3680, %v3421, 0
  %v3700 = vsel %vm3680, %v3424, 0
  %v3703 = vsel %vm3680, %v3427, 0
  %v3706 = vsel %vm3680, %v3430, 0
  %v3709 = vsel %vm3680, %v3433, 0
  %v3712 = vsel %vm3680, %v3436, 0
  %v3715 = vsel %vm3680, %v3439, 0
  %v3718 = vsel %vm3680, %v3442, 0
  %v3721 = vsel %vm3680, %v3445, 0
  %v3724 = vsel %vm3680, %v3448, 0
  %v3727 = vsel %vm3680, %v3451, 0
  %v3730 = vsel %vm3680, %v3454, 0
  %3732 = vmatprep.subr.mxu0 0.0
  %3733 = vmatpush1.xpose.msra.mxu0 %v3685
  %3734 = vmatprep.subr.mxu0 0.0
  %3735 = vmatpush1.xpose.msra.mxu0 %v3688
  %3736 = vmatprep.subr.mxu0 0.0
  %3737 = vmatpush1.xpose.msra.mxu0 %v3691
  %3738 = vmatprep.subr.mxu0 0.0
  %3739 = vmatpush1.xpose.msra.mxu0 %v3694
  %3740 = vmatprep.subr.mxu0 0.0
  %3741 = vmatpush1.xpose.msra.mxu0 %v3697
  %3742 = vmatprep.subr.mxu0 0.0
  %3743 = vmatpush1.xpose.msra.mxu0 %v3700
  %3744 = vmatprep.subr.mxu0 0.0
  %3745 = vmatpush1.xpose.msra.mxu0 %v3703
  %3746 = vmatprep.subr.mxu0 0.0
  %3747 = vmatpush1.xpose.msra.mxu0 %v3706
  %3748 = vmatprep.subr.mxu0 0.0
  %3749 = vmatpush1.xpose.msra.mxu0 %v3709
  %3750 = vmatprep.subr.mxu0 0.0
  %3751 = vmatpush1.xpose.msra.mxu0 %v3712
  %3752 = vmatprep.subr.mxu0 0.0
  %3753 = vmatpush1.xpose.msra.mxu0 %v3715
  %3754 = vmatprep.subr.mxu0 0.0
  %3755 = vmatpush1.xpose.msra.mxu0 %v3718
  %3756 = vmatprep.subr.mxu0 0.0
  %3757 = vmatpush1.xpose.msra.mxu0 %v3721
  %3758 = vmatprep.subr.mxu0 0.0
  %3759 = vmatpush1.xpose.msra.mxu0 %v3724
  %3760 = vmatprep.subr.mxu0 0.0
  %3761 = vmatpush1.xpose.msra.mxu0 %v3727
  %3762 = vmatprep.subr.mxu0 0.0
  %3763 = vmatpush1.xpose.msra.mxu0 %v3730
  %3764 = vmatprep.subr.mxu0 0.0
  %3765 = vmatpush1.xpose.msra.mxu0 0.0
  %3766 = vmatprep.subr.mxu0 0.0
  %3767 = vmatpush1.xpose.msra.mxu0 0.0
  %3768 = vmatprep.subr.mxu0 0.0
  %3769 = vmatpush1.xpose.msra.mxu0 0.0
  %3770 = vmatprep.subr.mxu0 0.0
  %3771 = vmatpush1.xpose.msra.mxu0 0.0
  %3772 = vmatprep.subr.mxu0 0.0
  %3773 = vmatpush1.xpose.msra.mxu0 0.0
  %3774 = vmatprep.subr.mxu0 0.0
  %3775 = vmatpush1.xpose.msra.mxu0 0.0
  %3776 = vmatprep.subr.mxu0 0.0
  %3777 = vmatpush1.xpose.msra.mxu0 0.0
  %3778 = vmatprep.subr.mxu0 0.0
  %3779 = vmatpush1.xpose.msra.mxu0 0.0
  %3780 = vmatprep.subr.mxu0 0.0
  %3781 = vmatpush1.xpose.msra.mxu0 0.0
  %3782 = vmatprep.subr.mxu0 0.0
  %3783 = vmatpush1.xpose.msra.mxu0 0.0
  %3784 = vmatprep.subr.mxu0 0.0
  %3785 = vmatpush1.xpose.msra.mxu0 0.0
  %3786 = vmatprep.subr.mxu0 0.0
  %3787 = vmatpush1.xpose.msra.mxu0 0.0
  %3788 = vmatprep.subr.mxu0 0.0
  %3789 = vmatpush1.xpose.msra.mxu0 0.0
  %3790 = vmatprep.subr.mxu0 0.0
  %3791 = vmatpush1.xpose.msra.mxu0 0.0
  %3792 = vmatprep.subr.mxu0 0.0
  %3793 = vmatpush1.xpose.msra.mxu0 0.0
  %3794 = vmatprep.subr.mxu0 0.0
  %3795 = vmatpush1.xpose.msra.mxu0 0.0
  %3796 = vmatprep.mubr.f32.mxu0 0.0
  %3797 = vmatmul.mubr.f32.gmra.mrb[0].mxu0 %v3682
  %v3798 = vpop.f32.mrb[0].mxu0
  %v3799 = vadd.f32 0.0, %v3798
  %v3800 = vpop.f32.mrb[0].mxu0
  %3801 = vmatprep.mubr.f32.mxu0 0.0
  %3802 = vmatmul.mubr.f32.gmra.mrb[0].mxu0 %v3682
  %v3803 = vpop.f32.mrb[0].mxu0
  %v3804 = vadd.f32 0.0, %v3803
  %v3805 = vpop.f32.mrb[0].mxu0
  %3806 = vmatprep.mubr.f32.mxu0 0.0
  %3807 = vmatmul.mubr.f32.gmra.mrb[0].mxu0 %v3682
  %v3808 = vpop.f32.mrb[0].mxu0
  %v3809 = vadd.f32 0.0, %v3808
  %v3810 = vpop.f32.mrb[0].mxu0
  %3811 = vmatprep.mubr.f32.mxu0 0.0
  %3812 = vmatmul.mubr.f32.gmra.mrb[0].mxu0 %v3682
  %v3813 = vpop.f32.mrb[0].mxu0
  %v3814 = vadd.f32 0.0, %v3813
  %v3815 = vpop.f32.mrb[0].mxu0
  %3816 = vmatprep.mubr.f32.mxu0 0.0
  %3817 = vmatmul.mubr.f32.gmra.mrb[0].mxu0 %v3682
  %v3818 = vpop.f32.mrb[0].mxu0
  %v3819 = vadd.f32 0.0, %v3818
  %v3820 = vpop.f32.mrb[0].mxu0
  %3821 = vmatprep.mubr.f32.mxu0 0.0
  %3822 = vmatmul.mubr.f32.gmra.mrb[0].mxu0 %v3682
  %v3823 = vpop.f32.mrb[0].mxu0
  %v3824 = vadd.f32 0.0, %v3823
  %v3825 = vpop.f32.mrb[0].mxu0
  %3826 = vmatprep.mubr.f32.mxu0 0.0
  %3827 = vmatmul.mubr.f32.gmra.mrb[0].mxu0 %v3682
  %v3828 = vpop.f32.mrb[0].mxu0
  %v3829 = vadd.f32 0.0, %v3828
  %v3830 = vpop.f32.mrb[0].mxu0
  %3831 = vmatprep.mubr.f32.mxu0 0.0
  %3832 = vmatmul.mubr.f32.gmra.mrb[0].mxu0 %v3682
  %v3833 = vpop.f32.mrb[0].mxu0
  %v3834 = vadd.f32 0.0, %v3833
  %v3835 = vpop.f32.mrb[0].mxu0
  %3836 = vmatprep.mubr.f32.mxu0 0.0
  %3837 = vmatmul.mubr.f32.gmra.mrb[0].mxu0 %v3682
  %v3838 = vpop.f32.mrb[0].mxu0
  %v3839 = vadd.f32 0.0, %v3838
  %v3840 = vpop.f32.mrb[0].mxu0
  %3841 = vmatprep.mubr.f32.mxu0 0.0
  %3842 = vmatmul.mubr.f32.gmra.mrb[0].mxu0 %v3682
  %v3843 = vpop.f32.mrb[0].mxu0
  %v3844 = vadd.f32 0.0, %v3843
  %v3845 = vpop.f32.mrb[0].mxu0
  %3846 = vmatprep.mubr.f32.mxu0 0.0
  %3847 = vmatmul.mubr.f32.gmra.mrb[0].mxu0 %v3682
  %v3848 = vpop.f32.mrb[0].mxu0
  %v3849 = vadd.f32 0.0, %v3848
  %v3850 = vpop.f32.mrb[0].mxu0
  %3851 = vmatprep.mubr.f32.mxu0 0.0
  %3852 = vmatmul.mubr.f32.gmra.mrb[0].mxu0 %v3682
  %v3853 = vpop.f32.mrb[0].mxu0
  %v3854 = vadd.f32 0.0, %v3853
  %v3855 = vpop.f32.mrb[0].mxu0
  %3856 = vmatprep.mubr.f32.mxu0 0.0
  %3857 = vmatmul.mubr.f32.gmra.mrb[0].mxu0 %v3682
  %v3858 = vpop.f32.mrb[0].mxu0
  %v3859 = vadd.f32 0.0, %v3858
  %v3860 = vpop.f32.mrb[0].mxu0
  %3861 = vmatprep.mubr.f32.mxu0 0.0
  %3862 = vmatmul.mubr.f32.gmra.mrb[0].mxu0 %v3682
  %v3863 = vpop.f32.mrb[0].mxu0
  %v3864 = vadd.f32 0.0, %v3863
  %v3865 = vpop.f32.mrb[0].mxu0
  %3866 = vmatprep.mubr.f32.mxu0 0.0
  %3867 = vmatmul.mubr.f32.gmra.mrb[0].mxu0 %v3682
  %v3868 = vpop.f32.mrb[0].mxu0
  %v3869 = vadd.f32 0.0, %v3868
  %v3870 = vpop.f32.mrb[0].mxu0
  %3871 = vmatprep.mubr.f32.mxu0 0.0
  %3872 = vmatmul.mubr.f32.gmra.mrb[0].mxu0 %v3682
  %v3873 = vpop.f32.mrb[0].mxu0
  %v3874 = vadd.f32 0.0, %v3873
  %v3875 = vpop.f32.mrb[0].mxu0
  %3876 = vdwg.mxu0
  %v3877 = vld [vmem:[%s3] sm:$0xff]
  %v3878 = vld [vmem:[%s3 + $0x8] sm:$0xff]
  %v3879 = vld [vmem:[%s3 + $0x10] sm:$0xff]
  %v3880 = vld [vmem:[%s3 + $0x18] sm:$0xff]
  %v3881 = vld [vmem:[%s3 + $0x20] sm:$0xff]
  %v3882 = vld [vmem:[%s3 + $0x28] sm:$0xff]
  %v3883 = vld [vmem:[%s3 + $0x30] sm:$0xff]
  %v3884 = vld [vmem:[%s3 + $0x38] sm:$0xff]
  %v3885 = vld [vmem:[%s3 + $0x40] sm:$0xff]
  %v3886 = vld [vmem:[%s3 + $0x48] sm:$0xff]
  %v3887 = vld [vmem:[%s3 + $0x50] sm:$0xff]
  %v3888 = vld [vmem:[%s3 + $0x58] sm:$0xff]
  %v3889 = vld [vmem:[%s3 + $0x60] sm:$0xff]
  %v3890 = vld [vmem:[%s3 + $0x68] sm:$0xff]
  %v3891 = vld [vmem:[%s3 + $0x70] sm:$0xff]
  %v3892 = vld [vmem:[%s3 + $0x78] sm:$0xff]
  %v3893 = vsub.f32 %v3799, 1.0
  %v3894 = vsub.f32 %v3804, 1.0
  %v3895 = vsub.f32 %v3809, 1.0
  %v3896 = vsub.f32 %v3814, 1.0
  %v3897 = vsub.f32 %v3819, 1.0
  %v3898 = vsub.f32 %v3824, 1.0
  %v3899 = vsub.f32 %v3829, 1.0
  %v3900 = vsub.f32 %v3834, 1.0
  %v3901 = vsub.f32 %v3839, 1.0
  %v3902 = vsub.f32 %v3844, 1.0
  %v3903 = vsub.f32 %v3849, 1.0
  %v3904 = vsub.f32 %v3854, 1.0
  %v3905 = vsub.f32 %v3859, 1.0
  %v3906 = vsub.f32 %v3864, 1.0
  %v3907 = vsub.f32 %v3869, 1.0
  %v3908 = vsub.f32 %v3874, 1.0
  %v3909 = vmul.f32 %v3893, 1e+09
  %v3910 = vmul.f32 %v3894, 1e+09
  %v3911 = vmul.f32 %v3895, 1e+09
  %v3912 = vmul.f32 %v3896, 1e+09
  %v3913 = vmul.f32 %v3897, 1e+09
  %v3914 = vmul.f32 %v3898, 1e+09
  %v3915 = vmul.f32 %v3899, 1e+09
  %v3916 = vmul.f32 %v3900, 1e+09
  %v3917 = vmul.f32 %v3901, 1e+09
  %v3918 = vmul.f32 %v3902, 1e+09
  %v3919 = vmul.f32 %v3903, 1e+09
  %v3920 = vmul.f32 %v3904, 1e+09
  %v3921 = vmul.f32 %v3905, 1e+09
  %v3922 = vmul.f32 %v3906, 1e+09
  %v3923 = vmul.f32 %v3907, 1e+09
  %v3924 = vmul.f32 %v3908, 1e+09
  %v3925 = vadd.f32 %v3877, %v3909
  %v3926 = vadd.f32 %v3878, %v3910
  %v3927 = vadd.f32 %v3879, %v3911
  %v3928 = vadd.f32 %v3880, %v3912
  %v3929 = vadd.f32 %v3881, %v3913
  %v3930 = vadd.f32 %v3882, %v3914
  %v3931 = vadd.f32 %v3883, %v3915
  %v3932 = vadd.f32 %v3884, %v3916
  %v3933 = vadd.f32 %v3885, %v3917
  %v3934 = vadd.f32 %v3886, %v3918
  %v3935 = vadd.f32 %v3887, %v3919
  %v3936 = vadd.f32 %v3888, %v3920
  %v3937 = vadd.f32 %v3889, %v3921
  %v3938 = vadd.f32 %v3890, %v3922
  %v3939 = vadd.f32 %v3891, %v3923
  %v3940 = vadd.f32 %v3892, %v3924
  %v3941 = vld [vmem:[%s17 + $0x10] sm:$0x1]
  %v3942 = vld [vmem:[%s17 + $0x11] sm:$0x1]
  %v3943 = vld [vmem:[%s12] sm:$0xff]
  %v3944 = vld [vmem:[%s12 + $0x8] sm:$0xff]
  %v3945 = vld [vmem:[%s12 + $0x10] sm:$0xff]
  %v3946 = vld [vmem:[%s12 + $0x18] sm:$0xff]
  %v3947 = vlaneseq
  %v3948 = vshrl.u32 %v3947, 7
  %v3949 = vsub.s32 0, %v3948
  %v3950 = vrot.slane %v3941, %v3949
  %v3952 = vsel %vm270, %v3602, 0
  %v3955 = vsel %vm270, %v3607, 0
  %v3958 = vsel %vm270, %v3612, 0
  %v3961 = vsel %vm270, %v3617, 0
  %v3964 = vsel %vm270, %v3622, 0
  %v3967 = vsel %vm270, %v3627, 0
  %v3970 = vsel %vm270, %v3632, 0
  %v3973 = vsel %vm270, %v3637, 0
  %v3976 = vsel %vm270, %v3642, 0
  %v3979 = vsel %vm270, %v3647, 0
  %v3982 = vsel %vm270, %v3652, 0
  %v3985 = vsel %vm270, %v3657, 0
  %v3988 = vsel %vm270, %v3662, 0
  %v3991 = vsel %vm270, %v3667, 0
  %v3994 = vsel %vm270, %v3672, 0
  %v3997 = vsel %vm270, %v3677, 0
  %3999 = vmatprep.subr.mxu0 0.0
  %4000 = vmatpush1.msra.mxu0 %v3943
  %4001 = vmatprep.subr.mxu0 0.0
  %4002 = vmatpush1.msra.mxu0 %v3944
  %4003 = vmatprep.subr.mxu0 0.0
  %4004 = vmatpush1.msra.mxu0 %v3945
  %4005 = vmatprep.subr.mxu0 0.0
  %4006 = vmatpush1.msra.mxu0 %v3946
  %4007 = vmatprep.subr.mxu0 0.0
  %4008 = vmatpush1.msra.mxu0 0.0
  %4009 = vmatprep.subr.mxu0 0.0
  %4010 = vmatpush1.msra.mxu0 0.0
  %4011 = vmatprep.subr.mxu0 0.0
  %4012 = vmatpush1.msra.mxu0 0.0
  %4013 = vmatprep.subr.mxu0 0.0
  %4014 = vmatpush1.msra.mxu0 0.0
  %4015 = vmatprep.subr.mxu0 0.0
  %4016 = vmatpush1.msra.mxu0 0.0
  %4017 = vmatprep.subr.mxu0 0.0
  %4018 = vmatpush1.msra.mxu0 0.0
  %4019 = vmatprep.subr.mxu0 0.0
  %4020 = vmatpush1.msra.mxu0 0.0
  %4021 = vmatprep.subr.mxu0 0.0
  %4022 = vmatpush1.msra.mxu0 0.0
  %4023 = vmatprep.subr.mxu0 0.0
  %4024 = vmatpush1.msra.mxu0 0.0
  %4025 = vmatprep.subr.mxu0 0.0
  %4026 = vmatpush1.msra.mxu0 0.0
  %4027 = vmatprep.subr.mxu0 0.0
  %4028 = vmatpush1.msra.mxu0 0.0
  %4029 = vmatprep.subr.mxu0 0.0
  %4030 = vmatpush1.msra.mxu0 0.0
  %4031 = vmatprep.subr.mxu0 0.0
  %4032 = vmatpush1.msra.mxu0 0.0
  %4033 = vmatprep.subr.mxu0 0.0
  %4034 = vmatpush1.msra.mxu0 0.0
  %4035 = vmatprep.subr.mxu0 0.0
  %4036 = vmatpush1.msra.mxu0 0.0
  %4037 = vmatprep.subr.mxu0 0.0
  %4038 = vmatpush1.msra.mxu0 0.0
  %4039 = vmatprep.subr.mxu0 0.0
  %4040 = vmatpush1.msra.mxu0 0.0
  %4041 = vmatprep.subr.mxu0 0.0
  %4042 = vmatpush1.msra.mxu0 0.0
  %4043 = vmatprep.subr.mxu0 0.0
  %4044 = vmatpush1.msra.mxu0 0.0
  %4045 = vmatprep.subr.mxu0 0.0
  %4046 = vmatpush1.msra.mxu0 0.0
  %4047 = vmatprep.subr.mxu0 0.0
  %4048 = vmatpush1.msra.mxu0 0.0
  %4049 = vmatprep.subr.mxu0 0.0
  %4050 = vmatpush1.msra.mxu0 0.0
  %4051 = vmatprep.subr.mxu0 0.0
  %4052 = vmatpush1.msra.mxu0 0.0
  %4053 = vmatprep.subr.mxu0 0.0
  %4054 = vmatpush1.msra.mxu0 0.0
  %4055 = vmatprep.subr.mxu0 0.0
  %4056 = vmatpush1.msra.mxu0 0.0
  %4057 = vmatprep.subr.mxu0 0.0
  %4058 = vmatpush1.msra.mxu0 0.0
  %4059 = vmatprep.subr.mxu0 0.0
  %4060 = vmatpush1.msra.mxu0 0.0
  %4061 = vmatprep.subr.mxu0 0.0
  %4062 = vmatpush1.msra.mxu0 0.0
  %4063 = vmatprep.mubr.f32.mxu0 0.0
  %4064 = vmatmul.mubr.f32.gmra.mrb[0].mxu0 %v3952
  %v4065 = vpop.f32.mrb[0].mxu0
  %v4066 = vadd.f32 %v3950, %v4065
  %v4067 = vpop.f32.mrb[0].mxu0
  %4068 = vmatprep.mubr.f32.mxu0 0.0
  %4069 = vmatmul.mubr.f32.gmra.mrb[0].mxu0 %v3955
  %v4070 = vpop.f32.mrb[0].mxu0
  %v4071 = vadd.f32 %v3950, %v4070
  %v4072 = vpop.f32.mrb[0].mxu0
  %4073 = vmatprep.mubr.f32.mxu0 0.0
  %4074 = vmatmul.mubr.f32.gmra.mrb[0].mxu0 %v3958
  %v4075 = vpop.f32.mrb[0].mxu0
  %v4076 = vadd.f32 %v3950, %v4075
  %v4077 = vpop.f32.mrb[0].mxu0
  %4078 = vmatprep.mubr.f32.mxu0 0.0
  %4079 = vmatmul.mubr.f32.gmra.mrb[0].mxu0 %v3961
  %v4080 = vpop.f32.mrb[0].mxu0
  %v4081 = vadd.f32 %v3950, %v4080
  %v4082 = vpop.f32.mrb[0].mxu0
  %4083 = vmatprep.mubr.f32.mxu0 0.0
  %4084 = vmatmul.mubr.f32.gmra.mrb[0].mxu0 %v3964
  %v4085 = vpop.f32.mrb[0].mxu0
  %v4086 = vadd.f32 %v3950, %v4085
  %v4087 = vpop.f32.mrb[0].mxu0
  %4088 = vmatprep.mubr.f32.mxu0 0.0
  %4089 = vmatmul.mubr.f32.gmra.mrb[0].mxu0 %v3967
  %v4090 = vpop.f32.mrb[0].mxu0
  %v4091 = vadd.f32 %v3950, %v4090
  %v4092 = vpop.f32.mrb[0].mxu0
  %4093 = vmatprep.mubr.f32.mxu0 0.0
  %4094 = vmatmul.mubr.f32.gmra.mrb[0].mxu0 %v3970
  %v4095 = vpop.f32.mrb[0].mxu0
  %v4096 = vadd.f32 %v3950, %v4095
  %v4097 = vpop.f32.mrb[0].mxu0
  %4098 = vmatprep.mubr.f32.mxu0 0.0
  %4099 = vmatmul.mubr.f32.gmra.mrb[0].mxu0 %v3973
  %v4100 = vpop.f32.mrb[0].mxu0
  %v4101 = vadd.f32 %v3950, %v4100
  %v4102 = vpop.f32.mrb[0].mxu0
  %4103 = vmatprep.mubr.f32.mxu0 0.0
  %4104 = vmatmul.mubr.f32.gmra.mrb[0].mxu0 %v3976
  %v4105 = vpop.f32.mrb[0].mxu0
  %v4106 = vadd.f32 %v3950, %v4105
  %v4107 = vpop.f32.mrb[0].mxu0
  %4108 = vmatprep.mubr.f32.mxu0 0.0
  %4109 = vmatmul.mubr.f32.gmra.mrb[0].mxu0 %v3979
  %v4110 = vpop.f32.mrb[0].mxu0
  %v4111 = vadd.f32 %v3950, %v4110
  %v4112 = vpop.f32.mrb[0].mxu0
  %4113 = vmatprep.mubr.f32.mxu0 0.0
  %4114 = vmatmul.mubr.f32.gmra.mrb[0].mxu0 %v3982
  %v4115 = vpop.f32.mrb[0].mxu0
  %v4116 = vadd.f32 %v3950, %v4115
  %v4117 = vpop.f32.mrb[0].mxu0
  %4118 = vmatprep.mubr.f32.mxu0 0.0
  %4119 = vmatmul.mubr.f32.gmra.mrb[0].mxu0 %v3985
  %v4120 = vpop.f32.mrb[0].mxu0
  %v4121 = vadd.f32 %v3950, %v4120
  %v4122 = vpop.f32.mrb[0].mxu0
  %4123 = vmatprep.mubr.f32.mxu0 0.0
  %4124 = vmatmul.mubr.f32.gmra.mrb[0].mxu0 %v3988
  %v4125 = vpop.f32.mrb[0].mxu0
  %v4126 = vadd.f32 %v3950, %v4125
  %v4127 = vpop.f32.mrb[0].mxu0
  %4128 = vmatprep.mubr.f32.mxu0 0.0
  %4129 = vmatmul.mubr.f32.gmra.mrb[0].mxu0 %v3991
  %v4130 = vpop.f32.mrb[0].mxu0
  %v4131 = vadd.f32 %v3950, %v4130
  %v4132 = vpop.f32.mrb[0].mxu0
  %4133 = vmatprep.mubr.f32.mxu0 0.0
  %4134 = vmatmul.mubr.f32.gmra.mrb[0].mxu0 %v3994
  %v4135 = vpop.f32.mrb[0].mxu0
  %v4136 = vadd.f32 %v3950, %v4135
  %v4137 = vpop.f32.mrb[0].mxu0
  %4138 = vmatprep.mubr.f32.mxu0 0.0
  %4139 = vmatmul.mubr.f32.gmra.mrb[0].mxu0 %v3997
  %v4140 = vpop.f32.mrb[0].mxu0
  %v4141 = vadd.f32 %v3950, %v4140
  %v4142 = vpop.f32.mrb[0].mxu0
  %4143 = vdwg.mxu0
  %4160 = vrot.lane.b32.xlu0 %v4066, 96
  %v4161 = vpop.permute.xlu0 %4160
  %4162 = vrot.lane.b32.xlu0 %v4071, 96
  %v4163 = vpop.permute.xlu0 %4162
  %4164 = vrot.lane.b32.xlu0 %v4076, 96
  %v4165 = vpop.permute.xlu0 %4164
  %4166 = vrot.lane.b32.xlu0 %v4081, 96
  %v4167 = vpop.permute.xlu0 %4166
  %4168 = vrot.lane.b32.xlu0 %v4086, 96
  %v4169 = vpop.permute.xlu0 %4168
  %4170 = vrot.lane.b32.xlu0 %v4091, 96
  %v4171 = vpop.permute.xlu0 %4170
  %4172 = vrot.lane.b32.xlu0 %v4096, 96
  %v4173 = vpop.permute.xlu0 %4172
  %4174 = vrot.lane.b32.xlu0 %v4101, 96
  %v4175 = vpop.permute.xlu0 %4174
  %4176 = vrot.lane.b32.xlu0 %v4106, 96
  %v4177 = vpop.permute.xlu0 %4176
  %4178 = vrot.lane.b32.xlu0 %v4111, 96
  %v4179 = vpop.permute.xlu0 %4178
  %4180 = vrot.lane.b32.xlu0 %v4116, 96
  %v4181 = vpop.permute.xlu0 %4180
  %4182 = vrot.lane.b32.xlu0 %v4121, 96
  %v4183 = vpop.permute.xlu0 %4182
  %4184 = vrot.lane.b32.xlu0 %v4126, 96
  %v4185 = vpop.permute.xlu0 %4184
  %4186 = vrot.lane.b32.xlu0 %v4131, 96
  %v4187 = vpop.permute.xlu0 %4186
  %4188 = vrot.lane.b32.xlu0 %v4136, 96
  %v4189 = vpop.permute.xlu0 %4188
  %4190 = vrot.lane.b32.xlu0 %v4141, 96
  %v4191 = vpop.permute.xlu0 %4190
  %v4192 = vsel %vm424, %v4066, 0
  %v4194 = vsel %vm424, %v4071, 0
  %v4196 = vsel %vm424, %v4076, 0
  %v4198 = vsel %vm424, %v4081, 0
  %v4200 = vsel %vm424, %v4086, 0
  %v4202 = vsel %vm424, %v4091, 0
  %v4204 = vsel %vm424, %v4096, 0
  %v4206 = vsel %vm424, %v4101, 0
  %v4208 = vsel %vm424, %v4106, 0
  %v4210 = vsel %vm424, %v4111, 0
  %v4212 = vsel %vm424, %v4116, 0
  %v4214 = vsel %vm424, %v4121, 0
  %v4216 = vsel %vm424, %v4126, 0
  %v4218 = vsel %vm424, %v4131, 0
  %v4220 = vsel %vm424, %v4136, 0
  %v4222 = vsel %vm424, %v4141, 0
  %v4224 = vsel %vm424, %v4161, 0
  %v4226 = vsel %vm424, %v4163, 0
  %v4228 = vsel %vm424, %v4165, 0
  %v4230 = vsel %vm424, %v4167, 0
  %v4232 = vsel %vm424, %v4169, 0
  %v4234 = vsel %vm424, %v4171, 0
  %v4236 = vsel %vm424, %v4173, 0
  %v4238 = vsel %vm424, %v4175, 0
  %v4240 = vsel %vm424, %v4177, 0
  %v4242 = vsel %vm424, %v4179, 0
  %v4244 = vsel %vm424, %v4181, 0
  %v4246 = vsel %vm424, %v4183, 0
  %v4248 = vsel %vm424, %v4185, 0
  %v4250 = vsel %vm424, %v4187, 0
  %v4252 = vsel %vm424, %v4189, 0
  %v4254 = vsel %vm424, %v4191, 0
  %4256 = vmatprep.subr.mxu0 0.0
  %4257 = vmatpush1.xpose.msra.mxu0 %v4224
  %4258 = vmatprep.subr.mxu0 0.0
  %4259 = vmatpush1.xpose.msra.mxu0 %v4226
  %4260 = vmatprep.subr.mxu0 0.0
  %4261 = vmatpush1.xpose.msra.mxu0 %v4228
  %4262 = vmatprep.subr.mxu0 0.0
  %4263 = vmatpush1.xpose.msra.mxu0 %v4230
  %4264 = vmatprep.subr.mxu0 0.0
  %4265 = vmatpush1.xpose.msra.mxu0 %v4232
  %4266 = vmatprep.subr.mxu0 0.0
  %4267 = vmatpush1.xpose.msra.mxu0 %v4234
  %4268 = vmatprep.subr.mxu0 0.0
  %4269 = vmatpush1.xpose.msra.mxu0 %v4236
  %4270 = vmatprep.subr.mxu0 0.0
  %4271 = vmatpush1.xpose.msra.mxu0 %v4238
  %4272 = vmatprep.subr.mxu0 0.0
  %4273 = vmatpush1.xpose.msra.mxu0 %v4240
  %4274 = vmatprep.subr.mxu0 0.0
  %4275 = vmatpush1.xpose.msra.mxu0 %v4242
  %4276 = vmatprep.subr.mxu0 0.0
  %4277 = vmatpush1.xpose.msra.mxu0 %v4244
  %4278 = vmatprep.subr.mxu0 0.0
  %4279 = vmatpush1.xpose.msra.mxu0 %v4246
  %4280 = vmatprep.subr.mxu0 0.0
  %4281 = vmatpush1.xpose.msra.mxu0 %v4248
  %4282 = vmatprep.subr.mxu0 0.0
  %4283 = vmatpush1.xpose.msra.mxu0 %v4250
  %4284 = vmatprep.subr.mxu0 0.0
  %4285 = vmatpush1.xpose.msra.mxu0 %v4252
  %4286 = vmatprep.subr.mxu0 0.0
  %4287 = vmatpush1.xpose.msra.mxu0 %v4254
  %4288 = vmatprep.subr.mxu0 0.0
  %4289 = vmatpush1.xpose.msra.mxu0 0.0
  %4290 = vmatprep.subr.mxu0 0.0
  %4291 = vmatpush1.xpose.msra.mxu0 0.0
  %4292 = vmatprep.subr.mxu0 0.0
  %4293 = vmatpush1.xpose.msra.mxu0 0.0
  %4294 = vmatprep.subr.mxu0 0.0
  %4295 = vmatpush1.xpose.msra.mxu0 0.0
  %4296 = vmatprep.subr.mxu0 0.0
  %4297 = vmatpush1.xpose.msra.mxu0 0.0
  %4298 = vmatprep.subr.mxu0 0.0
  %4299 = vmatpush1.xpose.msra.mxu0 0.0
  %4300 = vmatprep.subr.mxu0 0.0
  %4301 = vmatpush1.xpose.msra.mxu0 0.0
  %4302 = vmatprep.subr.mxu0 0.0
  %4303 = vmatpush1.xpose.msra.mxu0 0.0
  %4304 = vmatprep.subr.mxu0 0.0
  %4305 = vmatpush1.xpose.msra.mxu0 0.0
  %4306 = vmatprep.subr.mxu0 0.0
  %4307 = vmatpush1.xpose.msra.mxu0 0.0
  %4308 = vmatprep.subr.mxu0 0.0
  %4309 = vmatpush1.xpose.msra.mxu0 0.0
  %4310 = vmatprep.subr.mxu0 0.0
  %4311 = vmatpush1.xpose.msra.mxu0 0.0
  %4312 = vmatprep.subr.mxu0 0.0
  %4313 = vmatpush1.xpose.msra.mxu0 0.0
  %4314 = vmatprep.subr.mxu0 0.0
  %4315 = vmatpush1.xpose.msra.mxu0 0.0
  %4316 = vmatprep.subr.mxu0 0.0
  %4317 = vmatpush1.xpose.msra.mxu0 0.0
  %4318 = vmatprep.subr.mxu0 0.0
  %4319 = vmatpush1.xpose.msra.mxu0 0.0
  %4320 = vmatprep.mubr.f32.mxu0 0.0
  %4321 = vmatmul.mubr.f32.gmra.mrb[0].mxu0 %v4192
  %v4322 = vpop.f32.mrb[0].mxu0
  %v4323 = vadd.f32 0.0, %v4322
  %v4324 = vpop.f32.mrb[0].mxu0
  %4325 = vmatprep.mubr.f32.mxu0 0.0
  %4326 = vmatmul.mubr.f32.gmra.mrb[0].mxu0 %v4194
  %v4327 = vpop.f32.mrb[0].mxu0
  %v4328 = vadd.f32 0.0, %v4327
  %v4329 = vpop.f32.mrb[0].mxu0
  %4330 = vmatprep.mubr.f32.mxu0 0.0
  %4331 = vmatmul.mubr.f32.gmra.mrb[0].mxu0 %v4196
  %v4332 = vpop.f32.mrb[0].mxu0
  %v4333 = vadd.f32 0.0, %v4332
  %v4334 = vpop.f32.mrb[0].mxu0
  %4335 = vmatprep.mubr.f32.mxu0 0.0
  %4336 = vmatmul.mubr.f32.gmra.mrb[0].mxu0 %v4198
  %v4337 = vpop.f32.mrb[0].mxu0
  %v4338 = vadd.f32 0.0, %v4337
  %v4339 = vpop.f32.mrb[0].mxu0
  %4340 = vmatprep.mubr.f32.mxu0 0.0
  %4341 = vmatmul.mubr.f32.gmra.mrb[0].mxu0 %v4200
  %v4342 = vpop.f32.mrb[0].mxu0
  %v4343 = vadd.f32 0.0, %v4342
  %v4344 = vpop.f32.mrb[0].mxu0
  %4345 = vmatprep.mubr.f32.mxu0 0.0
  %4346 = vmatmul.mubr.f32.gmra.mrb[0].mxu0 %v4202
  %v4347 = vpop.f32.mrb[0].mxu0
  %v4348 = vadd.f32 0.0, %v4347
  %v4349 = vpop.f32.mrb[0].mxu0
  %4350 = vmatprep.mubr.f32.mxu0 0.0
  %4351 = vmatmul.mubr.f32.gmra.mrb[0].mxu0 %v4204
  %v4352 = vpop.f32.mrb[0].mxu0
  %v4353 = vadd.f32 0.0, %v4352
  %v4354 = vpop.f32.mrb[0].mxu0
  %4355 = vmatprep.mubr.f32.mxu0 0.0
  %4356 = vmatmul.mubr.f32.gmra.mrb[0].mxu0 %v4206
  %v4357 = vpop.f32.mrb[0].mxu0
  %v4358 = vadd.f32 0.0, %v4357
  %v4359 = vpop.f32.mrb[0].mxu0
  %4360 = vmatprep.mubr.f32.mxu0 0.0
  %4361 = vmatmul.mubr.f32.gmra.mrb[0].mxu0 %v4208
  %v4362 = vpop.f32.mrb[0].mxu0
  %v4363 = vadd.f32 0.0, %v4362
  %v4364 = vpop.f32.mrb[0].mxu0
  %4365 = vmatprep.mubr.f32.mxu0 0.0
  %4366 = vmatmul.mubr.f32.gmra.mrb[0].mxu0 %v4210
  %v4367 = vpop.f32.mrb[0].mxu0
  %v4368 = vadd.f32 0.0, %v4367
  %v4369 = vpop.f32.mrb[0].mxu0
  %4370 = vmatprep.mubr.f32.mxu0 0.0
  %4371 = vmatmul.mubr.f32.gmra.mrb[0].mxu0 %v4212
  %v4372 = vpop.f32.mrb[0].mxu0
  %v4373 = vadd.f32 0.0, %v4372
  %v4374 = vpop.f32.mrb[0].mxu0
  %4375 = vmatprep.mubr.f32.mxu0 0.0
  %4376 = vmatmul.mubr.f32.gmra.mrb[0].mxu0 %v4214
  %v4377 = vpop.f32.mrb[0].mxu0
  %v4378 = vadd.f32 0.0, %v4377
  %v4379 = vpop.f32.mrb[0].mxu0
  %4380 = vmatprep.mubr.f32.mxu0 0.0
  %4381 = vmatmul.mubr.f32.gmra.mrb[0].mxu0 %v4216
  %v4382 = vpop.f32.mrb[0].mxu0
  %v4383 = vadd.f32 0.0, %v4382
  %v4384 = vpop.f32.mrb[0].mxu0
  %4385 = vmatprep.mubr.f32.mxu0 0.0
  %4386 = vmatmul.mubr.f32.gmra.mrb[0].mxu0 %v4218
  %v4387 = vpop.f32.mrb[0].mxu0
  %v4388 = vadd.f32 0.0, %v4387
  %v4389 = vpop.f32.mrb[0].mxu0
  %4390 = vmatprep.mubr.f32.mxu0 0.0
  %4391 = vmatmul.mubr.f32.gmra.mrb[0].mxu0 %v4220
  %v4392 = vpop.f32.mrb[0].mxu0
  %v4393 = vadd.f32 0.0, %v4392
  %v4394 = vpop.f32.mrb[0].mxu0
  %4395 = vmatprep.mubr.f32.mxu0 0.0
  %4396 = vmatmul.mubr.f32.gmra.mrb[0].mxu0 %v4222
  %v4397 = vpop.f32.mrb[0].mxu0
  %v4398 = vadd.f32 0.0, %v4397
  %v4399 = vpop.f32.mrb[0].mxu0
  %4400 = vdwg.mxu0
  %v4401 = vmul.f32 %v4323, 0.25
  %v4402 = vmul.f32 %v4328, 0.25
  %v4403 = vmul.f32 %v4333, 0.25
  %v4404 = vmul.f32 %v4338, 0.25
  %v4405 = vmul.f32 %v4343, 0.25
  %v4406 = vmul.f32 %v4348, 0.25
  %v4407 = vmul.f32 %v4353, 0.25
  %v4408 = vmul.f32 %v4358, 0.25
  %v4409 = vmul.f32 %v4363, 0.25
  %v4410 = vmul.f32 %v4368, 0.25
  %v4411 = vmul.f32 %v4373, 0.25
  %v4412 = vmul.f32 %v4378, 0.25
  %v4413 = vmul.f32 %v4383, 0.25
  %v4414 = vmul.f32 %v4388, 0.25
  %v4415 = vmul.f32 %v4393, 0.25
  %v4416 = vmul.f32 %v4398, 0.25
  %v4417 = vadd.f32 %v4401, %v3925
  %v4418 = vadd.f32 %v4402, %v3926
  %v4419 = vadd.f32 %v4403, %v3927
  %v4420 = vadd.f32 %v4404, %v3928
  %v4421 = vadd.f32 %v4405, %v3929
  %v4422 = vadd.f32 %v4406, %v3930
  %v4423 = vadd.f32 %v4407, %v3931
  %v4424 = vadd.f32 %v4408, %v3932
  %v4425 = vadd.f32 %v4409, %v3933
  %v4426 = vadd.f32 %v4410, %v3934
  %v4427 = vadd.f32 %v4411, %v3935
  %v4428 = vadd.f32 %v4412, %v3936
  %v4429 = vadd.f32 %v4413, %v3937
  %v4430 = vadd.f32 %v4414, %v3938
  %v4431 = vadd.f32 %v4415, %v3939
  %v4432 = vadd.f32 %v4416, %v3940
  %4433 = vmax.xlane.f32.xlu0 %v4417
  %v4434 = vpop.xlane.xlu0 %4433
  %4435 = vmax.xlane.f32.xlu0 %v4418
  %v4436 = vpop.xlane.xlu0 %4435
  %4437 = vmax.xlane.f32.xlu0 %v4419
  %v4438 = vpop.xlane.xlu0 %4437
  %4439 = vmax.xlane.f32.xlu0 %v4420
  %v4440 = vpop.xlane.xlu0 %4439
  %4441 = vmax.xlane.f32.xlu0 %v4421
  %v4442 = vpop.xlane.xlu0 %4441
  %4443 = vmax.xlane.f32.xlu0 %v4422
  %v4444 = vpop.xlane.xlu0 %4443
  %4445 = vmax.xlane.f32.xlu0 %v4423
  %v4446 = vpop.xlane.xlu0 %4445
  %4447 = vmax.xlane.f32.xlu0 %v4424
  %v4448 = vpop.xlane.xlu0 %4447
  %4449 = vmax.xlane.f32.xlu0 %v4425
  %v4450 = vpop.xlane.xlu0 %4449
  %4451 = vmax.xlane.f32.xlu0 %v4426
  %v4452 = vpop.xlane.xlu0 %4451
  %4453 = vmax.xlane.f32.xlu0 %v4427
  %v4454 = vpop.xlane.xlu0 %4453
  %4455 = vmax.xlane.f32.xlu0 %v4428
  %v4456 = vpop.xlane.xlu0 %4455
  %4457 = vmax.xlane.f32.xlu0 %v4429
  %v4458 = vpop.xlane.xlu0 %4457
  %4459 = vmax.xlane.f32.xlu0 %v4430
  %v4460 = vpop.xlane.xlu0 %4459
  %4461 = vmax.xlane.f32.xlu0 %v4431
  %v4462 = vpop.xlane.xlu0 %4461
  %4463 = vmax.xlane.f32.xlu0 %v4432
  %v4464 = vpop.xlane.xlu0 %4463
  %v4465 = vsub.f32 %v4417, %v4434
  %v4466 = vsub.f32 %v4418, %v4436
  %v4467 = vsub.f32 %v4419, %v4438
  %v4468 = vsub.f32 %v4420, %v4440
  %v4469 = vsub.f32 %v4421, %v4442
  %v4470 = vsub.f32 %v4422, %v4444
  %v4471 = vsub.f32 %v4423, %v4446
  %v4472 = vsub.f32 %v4424, %v4448
  %v4473 = vsub.f32 %v4425, %v4450
  %v4474 = vsub.f32 %v4426, %v4452
  %v4475 = vsub.f32 %v4427, %v4454
  %v4476 = vsub.f32 %v4428, %v4456
  %v4477 = vsub.f32 %v4429, %v4458
  %v4478 = vsub.f32 %v4430, %v4460
  %v4479 = vsub.f32 %v4431, %v4462
  %v4480 = vsub.f32 %v4432, %v4464
  %v4481 = vmul.f32 %v4465, 1.442695
  %v4482 = vpow.pop %v4481
  %v4483 = vmul.f32 %v4466, 1.442695
  %v4484 = vpow.pop %v4483
  %v4485 = vmul.f32 %v4467, 1.442695
  %v4486 = vpow.pop %v4485
  %v4487 = vmul.f32 %v4468, 1.442695
  %v4488 = vpow.pop %v4487
  %v4489 = vmul.f32 %v4469, 1.442695
  %v4490 = vpow.pop %v4489
  %v4491 = vmul.f32 %v4470, 1.442695
  %v4492 = vpow.pop %v4491
  %v4493 = vmul.f32 %v4471, 1.442695
  %v4494 = vpow.pop %v4493
  %v4495 = vmul.f32 %v4472, 1.442695
  %v4496 = vpow.pop %v4495
  %v4497 = vmul.f32 %v4473, 1.442695
  %v4498 = vpow.pop %v4497
  %v4499 = vmul.f32 %v4474, 1.442695
  %v4500 = vpow.pop %v4499
  %v4501 = vmul.f32 %v4475, 1.442695
  %v4502 = vpow.pop %v4501
  %v4503 = vmul.f32 %v4476, 1.442695
  %v4504 = vpow.pop %v4503
  %v4505 = vmul.f32 %v4477, 1.442695
  %v4506 = vpow.pop %v4505
  %v4507 = vmul.f32 %v4478, 1.442695
  %v4508 = vpow.pop %v4507
  %v4509 = vmul.f32 %v4479, 1.442695
  %v4510 = vpow.pop %v4509
  %v4511 = vmul.f32 %v4480, 1.442695
  %v4512 = vpow.pop %v4511
  %4513 = vadd.xlane.f32.xlu0 %v4482
  %v4514 = vpop.xlane.xlu0 %4513
  %4515 = vadd.xlane.f32.xlu0 %v4484
  %v4516 = vpop.xlane.xlu0 %4515
  %4517 = vadd.xlane.f32.xlu0 %v4486
  %v4518 = vpop.xlane.xlu0 %4517
  %4519 = vadd.xlane.f32.xlu0 %v4488
  %v4520 = vpop.xlane.xlu0 %4519
  %4521 = vadd.xlane.f32.xlu0 %v4490
  %v4522 = vpop.xlane.xlu0 %4521
  %4523 = vadd.xlane.f32.xlu0 %v4492
  %v4524 = vpop.xlane.xlu0 %4523
  %4525 = vadd.xlane.f32.xlu0 %v4494
  %v4526 = vpop.xlane.xlu0 %4525
  %4527 = vadd.xlane.f32.xlu0 %v4496
  %v4528 = vpop.xlane.xlu0 %4527
  %4529 = vadd.xlane.f32.xlu0 %v4498
  %v4530 = vpop.xlane.xlu0 %4529
  %4531 = vadd.xlane.f32.xlu0 %v4500
  %v4532 = vpop.xlane.xlu0 %4531
  %4533 = vadd.xlane.f32.xlu0 %v4502
  %v4534 = vpop.xlane.xlu0 %4533
  %4535 = vadd.xlane.f32.xlu0 %v4504
  %v4536 = vpop.xlane.xlu0 %4535
  %4537 = vadd.xlane.f32.xlu0 %v4506
  %v4538 = vpop.xlane.xlu0 %4537
  %4539 = vadd.xlane.f32.xlu0 %v4508
  %v4540 = vpop.xlane.xlu0 %4539
  %4541 = vadd.xlane.f32.xlu0 %v4510
  %v4542 = vpop.xlane.xlu0 %4541
  %4543 = vadd.xlane.f32.xlu0 %v4512
  %v4544 = vpop.xlane.xlu0 %4543
  %v4545 = vrcp.pop %v4514
  %v4546 = vrcp.pop %v4516
  %v4547 = vrcp.pop %v4518
  %v4548 = vrcp.pop %v4520
  %v4549 = vrcp.pop %v4522
  %v4550 = vrcp.pop %v4524
  %v4551 = vrcp.pop %v4526
  %v4552 = vrcp.pop %v4528
  %v4553 = vrcp.pop %v4530
  %v4554 = vrcp.pop %v4532
  %v4555 = vrcp.pop %v4534
  %v4556 = vrcp.pop %v4536
  %v4557 = vrcp.pop %v4538
  %v4558 = vrcp.pop %v4540
  %v4559 = vrcp.pop %v4542
  %v4560 = vrcp.pop %v4544
  %v4561 = vmul.f32 %v4482, %v4545
  %v4562 = vmul.f32 %v4484, %v4546
  %v4563 = vmul.f32 %v4486, %v4547
  %v4564 = vmul.f32 %v4488, %v4548
  %v4565 = vmul.f32 %v4490, %v4549
  %v4566 = vmul.f32 %v4492, %v4550
  %v4567 = vmul.f32 %v4494, %v4551
  %v4568 = vmul.f32 %v4496, %v4552
  %v4569 = vmul.f32 %v4498, %v4553
  %v4570 = vmul.f32 %v4500, %v4554
  %v4571 = vmul.f32 %v4502, %v4555
  %v4572 = vmul.f32 %v4504, %v4556
  %v4573 = vmul.f32 %v4506, %v4557
  %v4574 = vmul.f32 %v4508, %v4558
  %v4575 = vmul.f32 %v4510, %v4559
  %v4576 = vmul.f32 %v4512, %v4560
  %4577 = vrot.lane.b32.xlu0 %v4066, 64
  %v4578 = vpop.permute.xlu0 %4577
  %4579 = vrot.lane.b32.xlu0 %v4071, 64
  %v4580 = vpop.permute.xlu0 %4579
  %4581 = vrot.lane.b32.xlu0 %v4076, 64
  %v4582 = vpop.permute.xlu0 %4581
  %4583 = vrot.lane.b32.xlu0 %v4081, 64
  %v4584 = vpop.permute.xlu0 %4583
  %4585 = vrot.lane.b32.xlu0 %v4086, 64
  %v4586 = vpop.permute.xlu0 %4585
  %4587 = vrot.lane.b32.xlu0 %v4091, 64
  %v4588 = vpop.permute.xlu0 %4587
  %4589 = vrot.lane.b32.xlu0 %v4096, 64
  %v4590 = vpop.permute.xlu0 %4589
  %4591 = vrot.lane.b32.xlu0 %v4101, 64
  %v4592 = vpop.permute.xlu0 %4591
  %4593 = vrot.lane.b32.xlu0 %v4106, 64
  %v4594 = vpop.permute.xlu0 %4593
  %4595 = vrot.lane.b32.xlu0 %v4111, 64
  %v4596 = vpop.permute.xlu0 %4595
  %4597 = vrot.lane.b32.xlu0 %v4116, 64
  %v4598 = vpop.permute.xlu0 %4597
  %4599 = vrot.lane.b32.xlu0 %v4121, 64
  %v4600 = vpop.permute.xlu0 %4599
  %4601 = vrot.lane.b32.xlu0 %v4126, 64
  %v4602 = vpop.permute.xlu0 %4601
  %4603 = vrot.lane.b32.xlu0 %v4131, 64
  %v4604 = vpop.permute.xlu0 %4603
  %4605 = vrot.lane.b32.xlu0 %v4136, 64
  %v4606 = vpop.permute.xlu0 %4605
  %4607 = vrot.lane.b32.xlu0 %v4141, 64
  %v4608 = vpop.permute.xlu0 %4607
  %4625 = vmatprep.subr.mxu0 0.0
  %4626 = vmatpush1.msra.mxu0 %v4578
  %4627 = vmatprep.subr.mxu0 0.0
  %4628 = vmatpush1.msra.mxu0 %v4580
  %4629 = vmatprep.subr.mxu0 0.0
  %4630 = vmatpush1.msra.mxu0 %v4582
  %4631 = vmatprep.subr.mxu0 0.0
  %4632 = vmatpush1.msra.mxu0 %v4584
  %4633 = vmatprep.subr.mxu0 0.0
  %4634 = vmatpush1.msra.mxu0 %v4586
  %4635 = vmatprep.subr.mxu0 0.0
  %4636 = vmatpush1.msra.mxu0 %v4588
  %4637 = vmatprep.subr.mxu0 0.0
  %4638 = vmatpush1.msra.mxu0 %v4590
  %4639 = vmatprep.subr.mxu0 0.0
  %4640 = vmatpush1.msra.mxu0 %v4592
  %4641 = vmatprep.subr.mxu0 0.0
  %4642 = vmatpush1.msra.mxu0 %v4594
  %4643 = vmatprep.subr.mxu0 0.0
  %4644 = vmatpush1.msra.mxu0 %v4596
  %4645 = vmatprep.subr.mxu0 0.0
  %4646 = vmatpush1.msra.mxu0 %v4598
  %4647 = vmatprep.subr.mxu0 0.0
  %4648 = vmatpush1.msra.mxu0 %v4600
  %4649 = vmatprep.subr.mxu0 0.0
  %4650 = vmatpush1.msra.mxu0 %v4602
  %4651 = vmatprep.subr.mxu0 0.0
  %4652 = vmatpush1.msra.mxu0 %v4604
  %4653 = vmatprep.subr.mxu0 0.0
  %4654 = vmatpush1.msra.mxu0 %v4606
  %4655 = vmatprep.subr.mxu0 0.0
  %4656 = vmatpush1.msra.mxu0 %v4608
  %4657 = vmatprep.subr.mxu0 0.0
  %4658 = vmatpush1.msra.mxu0 0.0
  %4659 = vmatprep.subr.mxu0 0.0
  %4660 = vmatpush1.msra.mxu0 0.0
  %4661 = vmatprep.subr.mxu0 0.0
  %4662 = vmatpush1.msra.mxu0 0.0
  %4663 = vmatprep.subr.mxu0 0.0
  %4664 = vmatpush1.msra.mxu0 0.0
  %4665 = vmatprep.subr.mxu0 0.0
  %4666 = vmatpush1.msra.mxu0 0.0
  %4667 = vmatprep.subr.mxu0 0.0
  %4668 = vmatpush1.msra.mxu0 0.0
  %4669 = vmatprep.subr.mxu0 0.0
  %4670 = vmatpush1.msra.mxu0 0.0
  %4671 = vmatprep.subr.mxu0 0.0
  %4672 = vmatpush1.msra.mxu0 0.0
  %4673 = vmatprep.subr.mxu0 0.0
  %4674 = vmatpush1.msra.mxu0 0.0
  %4675 = vmatprep.subr.mxu0 0.0
  %4676 = vmatpush1.msra.mxu0 0.0
  %4677 = vmatprep.subr.mxu0 0.0
  %4678 = vmatpush1.msra.mxu0 0.0
  %4679 = vmatprep.subr.mxu0 0.0
  %4680 = vmatpush1.msra.mxu0 0.0
  %4681 = vmatprep.subr.mxu0 0.0
  %4682 = vmatpush1.msra.mxu0 0.0
  %4683 = vmatprep.subr.mxu0 0.0
  %4684 = vmatpush1.msra.mxu0 0.0
  %4685 = vmatprep.subr.mxu0 0.0
  %4686 = vmatpush1.msra.mxu0 0.0
  %4687 = vmatprep.subr.mxu0 0.0
  %4688 = vmatpush1.msra.mxu0 0.0
  %4689 = vmatprep.mubr.f32.mxu0 0.0
  %4690 = vmatmul.mubr.f32.gmra.mrb[0].mxu0 %v4561
  %v4691 = vpop.f32.mrb[0].mxu0
  %v4692 = vadd.f32 0.0, %v4691
  %v4693 = vpop.f32.mrb[0].mxu0
  %4694 = vmatprep.mubr.f32.mxu0 0.0
  %4695 = vmatmul.mubr.f32.gmra.mrb[0].mxu0 %v4562
  %v4696 = vpop.f32.mrb[0].mxu0
  %v4697 = vadd.f32 0.0, %v4696
  %v4698 = vpop.f32.mrb[0].mxu0
  %4699 = vmatprep.mubr.f32.mxu0 0.0
  %4700 = vmatmul.mubr.f32.gmra.mrb[0].mxu0 %v4563
  %v4701 = vpop.f32.mrb[0].mxu0
  %v4702 = vadd.f32 0.0, %v4701
  %v4703 = vpop.f32.mrb[0].mxu0
  %4704 = vmatprep.mubr.f32.mxu0 0.0
  %4705 = vmatmul.mubr.f32.gmra.mrb[0].mxu0 %v4564
  %v4706 = vpop.f32.mrb[0].mxu0
  %v4707 = vadd.f32 0.0, %v4706
  %v4708 = vpop.f32.mrb[0].mxu0
  %4709 = vmatprep.mubr.f32.mxu0 0.0
  %4710 = vmatmul.mubr.f32.gmra.mrb[0].mxu0 %v4565
  %v4711 = vpop.f32.mrb[0].mxu0
  %v4712 = vadd.f32 0.0, %v4711
  %v4713 = vpop.f32.mrb[0].mxu0
  %4714 = vmatprep.mubr.f32.mxu0 0.0
  %4715 = vmatmul.mubr.f32.gmra.mrb[0].mxu0 %v4566
  %v4716 = vpop.f32.mrb[0].mxu0
  %v4717 = vadd.f32 0.0, %v4716
  %v4718 = vpop.f32.mrb[0].mxu0
  %4719 = vmatprep.mubr.f32.mxu0 0.0
  %4720 = vmatmul.mubr.f32.gmra.mrb[0].mxu0 %v4567
  %v4721 = vpop.f32.mrb[0].mxu0
  %v4722 = vadd.f32 0.0, %v4721
  %v4723 = vpop.f32.mrb[0].mxu0
  %4724 = vmatprep.mubr.f32.mxu0 0.0
  %4725 = vmatmul.mubr.f32.gmra.mrb[0].mxu0 %v4568
  %v4726 = vpop.f32.mrb[0].mxu0
  %v4727 = vadd.f32 0.0, %v4726
  %v4728 = vpop.f32.mrb[0].mxu0
  %4729 = vmatprep.mubr.f32.mxu0 0.0
  %4730 = vmatmul.mubr.f32.gmra.mrb[0].mxu0 %v4569
  %v4731 = vpop.f32.mrb[0].mxu0
  %v4732 = vadd.f32 0.0, %v4731
  %v4733 = vpop.f32.mrb[0].mxu0
  %4734 = vmatprep.mubr.f32.mxu0 0.0
  %4735 = vmatmul.mubr.f32.gmra.mrb[0].mxu0 %v4570
  %v4736 = vpop.f32.mrb[0].mxu0
  %v4737 = vadd.f32 0.0, %v4736
  %v4738 = vpop.f32.mrb[0].mxu0
  %4739 = vmatprep.mubr.f32.mxu0 0.0
  %4740 = vmatmul.mubr.f32.gmra.mrb[0].mxu0 %v4571
  %v4741 = vpop.f32.mrb[0].mxu0
  %v4742 = vadd.f32 0.0, %v4741
  %v4743 = vpop.f32.mrb[0].mxu0
  %4744 = vmatprep.mubr.f32.mxu0 0.0
  %4745 = vmatmul.mubr.f32.gmra.mrb[0].mxu0 %v4572
  %v4746 = vpop.f32.mrb[0].mxu0
  %v4747 = vadd.f32 0.0, %v4746
  %v4748 = vpop.f32.mrb[0].mxu0
  %4749 = vmatprep.mubr.f32.mxu0 0.0
  %4750 = vmatmul.mubr.f32.gmra.mrb[0].mxu0 %v4573
  %v4751 = vpop.f32.mrb[0].mxu0
  %v4752 = vadd.f32 0.0, %v4751
  %v4753 = vpop.f32.mrb[0].mxu0
  %4754 = vmatprep.mubr.f32.mxu0 0.0
  %4755 = vmatmul.mubr.f32.gmra.mrb[0].mxu0 %v4574
  %v4756 = vpop.f32.mrb[0].mxu0
  %v4757 = vadd.f32 0.0, %v4756
  %v4758 = vpop.f32.mrb[0].mxu0
  %4759 = vmatprep.mubr.f32.mxu0 0.0
  %4760 = vmatmul.mubr.f32.gmra.mrb[0].mxu0 %v4575
  %v4761 = vpop.f32.mrb[0].mxu0
  %v4762 = vadd.f32 0.0, %v4761
  %v4763 = vpop.f32.mrb[0].mxu0
  %4764 = vmatprep.mubr.f32.mxu0 0.0
  %4765 = vmatmul.mubr.f32.gmra.mrb[0].mxu0 %v4576
  %v4766 = vpop.f32.mrb[0].mxu0
  %v4767 = vadd.f32 0.0, %v4766
  %v4768 = vpop.f32.mrb[0].mxu0
  %4769 = vdwg.mxu0
  %4770 = vrot.lane.b32.xlu0 %v4066, 112
  %v4771 = vpop.permute.xlu0 %4770
  %4772 = vrot.lane.b32.xlu0 %v4071, 112
  %v4773 = vpop.permute.xlu0 %4772
  %4774 = vrot.lane.b32.xlu0 %v4076, 112
  %v4775 = vpop.permute.xlu0 %4774
  %4776 = vrot.lane.b32.xlu0 %v4081, 112
  %v4777 = vpop.permute.xlu0 %4776
  %4778 = vrot.lane.b32.xlu0 %v4086, 112
  %v4779 = vpop.permute.xlu0 %4778
  %4780 = vrot.lane.b32.xlu0 %v4091, 112
  %v4781 = vpop.permute.xlu0 %4780
  %4782 = vrot.lane.b32.xlu0 %v4096, 112
  %v4783 = vpop.permute.xlu0 %4782
  %4784 = vrot.lane.b32.xlu0 %v4101, 112
  %v4785 = vpop.permute.xlu0 %4784
  %4786 = vrot.lane.b32.xlu0 %v4106, 112
  %v4787 = vpop.permute.xlu0 %4786
  %4788 = vrot.lane.b32.xlu0 %v4111, 112
  %v4789 = vpop.permute.xlu0 %4788
  %4790 = vrot.lane.b32.xlu0 %v4116, 112
  %v4791 = vpop.permute.xlu0 %4790
  %4792 = vrot.lane.b32.xlu0 %v4121, 112
  %v4793 = vpop.permute.xlu0 %4792
  %4794 = vrot.lane.b32.xlu0 %v4126, 112
  %v4795 = vpop.permute.xlu0 %4794
  %4796 = vrot.lane.b32.xlu0 %v4131, 112
  %v4797 = vpop.permute.xlu0 %4796
  %4798 = vrot.lane.b32.xlu0 %v4136, 112
  %v4799 = vpop.permute.xlu0 %4798
  %4800 = vrot.lane.b32.xlu0 %v4141, 112
  %v4801 = vpop.permute.xlu0 %4800
  %4802 = vrot.lane.b32.xlu0 %v4066, 80
  %v4803 = vpop.permute.xlu0 %4802
  %4804 = vrot.lane.b32.xlu0 %v4071, 80
  %v4805 = vpop.permute.xlu0 %4804
  %4806 = vrot.lane.b32.xlu0 %v4076, 80
  %v4807 = vpop.permute.xlu0 %4806
  %4808 = vrot.lane.b32.xlu0 %v4081, 80
  %v4809 = vpop.permute.xlu0 %4808
  %4810 = vrot.lane.b32.xlu0 %v4086, 80
  %v4811 = vpop.permute.xlu0 %4810
  %4812 = vrot.lane.b32.xlu0 %v4091, 80
  %v4813 = vpop.permute.xlu0 %4812
  %4814 = vrot.lane.b32.xlu0 %v4096, 80
  %v4815 = vpop.permute.xlu0 %4814
  %4816 = vrot.lane.b32.xlu0 %v4101, 80
  %v4817 = vpop.permute.xlu0 %4816
  %4818 = vrot.lane.b32.xlu0 %v4106, 80
  %v4819 = vpop.permute.xlu0 %4818
  %4820 = vrot.lane.b32.xlu0 %v4111, 80
  %v4821 = vpop.permute.xlu0 %4820
  %4822 = vrot.lane.b32.xlu0 %v4116, 80
  %v4823 = vpop.permute.xlu0 %4822
  %4824 = vrot.lane.b32.xlu0 %v4121, 80
  %v4825 = vpop.permute.xlu0 %4824
  %4826 = vrot.lane.b32.xlu0 %v4126, 80
  %v4827 = vpop.permute.xlu0 %4826
  %4828 = vrot.lane.b32.xlu0 %v4131, 80
  %v4829 = vpop.permute.xlu0 %4828
  %4830 = vrot.lane.b32.xlu0 %v4136, 80
  %v4831 = vpop.permute.xlu0 %4830
  %4832 = vrot.lane.b32.xlu0 %v4141, 80
  %v4833 = vpop.permute.xlu0 %4832
  %v4834 = vsel %vm424, %v4771, 0
  %v4836 = vsel %vm424, %v4773, 0
  %v4838 = vsel %vm424, %v4775, 0
  %v4840 = vsel %vm424, %v4777, 0
  %v4842 = vsel %vm424, %v4779, 0
  %v4844 = vsel %vm424, %v4781, 0
  %v4846 = vsel %vm424, %v4783, 0
  %v4848 = vsel %vm424, %v4785, 0
  %v4850 = vsel %vm424, %v4787, 0
  %v4852 = vsel %vm424, %v4789, 0
  %v4854 = vsel %vm424, %v4791, 0
  %v4856 = vsel %vm424, %v4793, 0
  %v4858 = vsel %vm424, %v4795, 0
  %v4860 = vsel %vm424, %v4797, 0
  %v4862 = vsel %vm424, %v4799, 0
  %v4864 = vsel %vm424, %v4801, 0
  %v4866 = vsel %vm424, %v4803, 0
  %v4868 = vsel %vm424, %v4805, 0
  %v4870 = vsel %vm424, %v4807, 0
  %v4872 = vsel %vm424, %v4809, 0
  %v4874 = vsel %vm424, %v4811, 0
  %v4876 = vsel %vm424, %v4813, 0
  %v4878 = vsel %vm424, %v4815, 0
  %v4880 = vsel %vm424, %v4817, 0
  %v4882 = vsel %vm424, %v4819, 0
  %v4884 = vsel %vm424, %v4821, 0
  %v4886 = vsel %vm424, %v4823, 0
  %v4888 = vsel %vm424, %v4825, 0
  %v4890 = vsel %vm424, %v4827, 0
  %v4892 = vsel %vm424, %v4829, 0
  %v4894 = vsel %vm424, %v4831, 0
  %v4896 = vsel %vm424, %v4833, 0
  %4898 = vmatprep.subr.mxu0 0.0
  %4899 = vmatpush1.xpose.msra.mxu0 %v4866
  %4900 = vmatprep.subr.mxu0 0.0
  %4901 = vmatpush1.xpose.msra.mxu0 %v4868
  %4902 = vmatprep.subr.mxu0 0.0
  %4903 = vmatpush1.xpose.msra.mxu0 %v4870
  %4904 = vmatprep.subr.mxu0 0.0
  %4905 = vmatpush1.xpose.msra.mxu0 %v4872
  %4906 = vmatprep.subr.mxu0 0.0
  %4907 = vmatpush1.xpose.msra.mxu0 %v4874
  %4908 = vmatprep.subr.mxu0 0.0
  %4909 = vmatpush1.xpose.msra.mxu0 %v4876
  %4910 = vmatprep.subr.mxu0 0.0
  %4911 = vmatpush1.xpose.msra.mxu0 %v4878
  %4912 = vmatprep.subr.mxu0 0.0
  %4913 = vmatpush1.xpose.msra.mxu0 %v4880
  %4914 = vmatprep.subr.mxu0 0.0
  %4915 = vmatpush1.xpose.msra.mxu0 %v4882
  %4916 = vmatprep.subr.mxu0 0.0
  %4917 = vmatpush1.xpose.msra.mxu0 %v4884
  %4918 = vmatprep.subr.mxu0 0.0
  %4919 = vmatpush1.xpose.msra.mxu0 %v4886
  %4920 = vmatprep.subr.mxu0 0.0
  %4921 = vmatpush1.xpose.msra.mxu0 %v4888
  %4922 = vmatprep.subr.mxu0 0.0
  %4923 = vmatpush1.xpose.msra.mxu0 %v4890
  %4924 = vmatprep.subr.mxu0 0.0
  %4925 = vmatpush1.xpose.msra.mxu0 %v4892
  %4926 = vmatprep.subr.mxu0 0.0
  %4927 = vmatpush1.xpose.msra.mxu0 %v4894
  %4928 = vmatprep.subr.mxu0 0.0
  %4929 = vmatpush1.xpose.msra.mxu0 %v4896
  %4930 = vmatprep.subr.mxu0 0.0
  %4931 = vmatpush1.xpose.msra.mxu0 0.0
  %4932 = vmatprep.subr.mxu0 0.0
  %4933 = vmatpush1.xpose.msra.mxu0 0.0
  %4934 = vmatprep.subr.mxu0 0.0
  %4935 = vmatpush1.xpose.msra.mxu0 0.0
  %4936 = vmatprep.subr.mxu0 0.0
  %4937 = vmatpush1.xpose.msra.mxu0 0.0
  %4938 = vmatprep.subr.mxu0 0.0
  %4939 = vmatpush1.xpose.msra.mxu0 0.0
  %4940 = vmatprep.subr.mxu0 0.0
  %4941 = vmatpush1.xpose.msra.mxu0 0.0
  %4942 = vmatprep.subr.mxu0 0.0
  %4943 = vmatpush1.xpose.msra.mxu0 0.0
  %4944 = vmatprep.subr.mxu0 0.0
  %4945 = vmatpush1.xpose.msra.mxu0 0.0
  %4946 = vmatprep.subr.mxu0 0.0
  %4947 = vmatpush1.xpose.msra.mxu0 0.0
  %4948 = vmatprep.subr.mxu0 0.0
  %4949 = vmatpush1.xpose.msra.mxu0 0.0
  %4950 = vmatprep.subr.mxu0 0.0
  %4951 = vmatpush1.xpose.msra.mxu0 0.0
  %4952 = vmatprep.subr.mxu0 0.0
  %4953 = vmatpush1.xpose.msra.mxu0 0.0
  %4954 = vmatprep.subr.mxu0 0.0
  %4955 = vmatpush1.xpose.msra.mxu0 0.0
  %4956 = vmatprep.subr.mxu0 0.0
  %4957 = vmatpush1.xpose.msra.mxu0 0.0
  %4958 = vmatprep.subr.mxu0 0.0
  %4959 = vmatpush1.xpose.msra.mxu0 0.0
  %4960 = vmatprep.subr.mxu0 0.0
  %4961 = vmatpush1.xpose.msra.mxu0 0.0
  %4962 = vmatprep.mubr.f32.mxu0 0.0
  %4963 = vmatmul.mubr.f32.gmra.mrb[0].mxu0 %v4834
  %v4964 = vpop.f32.mrb[0].mxu0
  %v4965 = vadd.f32 0.0, %v4964
  %v4966 = vpop.f32.mrb[0].mxu0
  %4967 = vmatprep.mubr.f32.mxu0 0.0
  %4968 = vmatmul.mubr.f32.gmra.mrb[0].mxu0 %v4836
  %v4969 = vpop.f32.mrb[0].mxu0
  %v4970 = vadd.f32 0.0, %v4969
  %v4971 = vpop.f32.mrb[0].mxu0
  %4972 = vmatprep.mubr.f32.mxu0 0.0
  %4973 = vmatmul.mubr.f32.gmra.mrb[0].mxu0 %v4838
  %v4974 = vpop.f32.mrb[0].mxu0
  %v4975 = vadd.f32 0.0, %v4974
  %v4976 = vpop.f32.mrb[0].mxu0
  %4977 = vmatprep.mubr.f32.mxu0 0.0
  %4978 = vmatmul.mubr.f32.gmra.mrb[0].mxu0 %v4840
  %v4979 = vpop.f32.mrb[0].mxu0
  %v4980 = vadd.f32 0.0, %v4979
  %v4981 = vpop.f32.mrb[0].mxu0
  %4982 = vmatprep.mubr.f32.mxu0 0.0
  %4983 = vmatmul.mubr.f32.gmra.mrb[0].mxu0 %v4842
  %v4984 = vpop.f32.mrb[0].mxu0
  %v4985 = vadd.f32 0.0, %v4984
  %v4986 = vpop.f32.mrb[0].mxu0
  %4987 = vmatprep.mubr.f32.mxu0 0.0
  %4988 = vmatmul.mubr.f32.gmra.mrb[0].mxu0 %v4844
  %v4989 = vpop.f32.mrb[0].mxu0
  %v4990 = vadd.f32 0.0, %v4989
  %v4991 = vpop.f32.mrb[0].mxu0
  %4992 = vmatprep.mubr.f32.mxu0 0.0
  %4993 = vmatmul.mubr.f32.gmra.mrb[0].mxu0 %v4846
  %v4994 = vpop.f32.mrb[0].mxu0
  %v4995 = vadd.f32 0.0, %v4994
  %v4996 = vpop.f32.mrb[0].mxu0
  %4997 = vmatprep.mubr.f32.mxu0 0.0
  %4998 = vmatmul.mubr.f32.gmra.mrb[0].mxu0 %v4848
  %v4999 = vpop.f32.mrb[0].mxu0
  %v5000 = vadd.f32 0.0, %v4999
  %v5001 = vpop.f32.mrb[0].mxu0
  %5002 = vmatprep.mubr.f32.mxu0 0.0
  %5003 = vmatmul.mubr.f32.gmra.mrb[0].mxu0 %v4850
  %v5004 = vpop.f32.mrb[0].mxu0
  %v5005 = vadd.f32 0.0, %v5004
  %v5006 = vpop.f32.mrb[0].mxu0
  %5007 = vmatprep.mubr.f32.mxu0 0.0
  %5008 = vmatmul.mubr.f32.gmra.mrb[0].mxu0 %v4852
  %v5009 = vpop.f32.mrb[0].mxu0
  %v5010 = vadd.f32 0.0, %v5009
  %v5011 = vpop.f32.mrb[0].mxu0
  %5012 = vmatprep.mubr.f32.mxu0 0.0
  %5013 = vmatmul.mubr.f32.gmra.mrb[0].mxu0 %v4854
  %v5014 = vpop.f32.mrb[0].mxu0
  %v5015 = vadd.f32 0.0, %v5014
  %v5016 = vpop.f32.mrb[0].mxu0
  %5017 = vmatprep.mubr.f32.mxu0 0.0
  %5018 = vmatmul.mubr.f32.gmra.mrb[0].mxu0 %v4856
  %v5019 = vpop.f32.mrb[0].mxu0
  %v5020 = vadd.f32 0.0, %v5019
  %v5021 = vpop.f32.mrb[0].mxu0
  %5022 = vmatprep.mubr.f32.mxu0 0.0
  %5023 = vmatmul.mubr.f32.gmra.mrb[0].mxu0 %v4858
  %v5024 = vpop.f32.mrb[0].mxu0
  %v5025 = vadd.f32 0.0, %v5024
  %v5026 = vpop.f32.mrb[0].mxu0
  %5027 = vmatprep.mubr.f32.mxu0 0.0
  %5028 = vmatmul.mubr.f32.gmra.mrb[0].mxu0 %v4860
  %v5029 = vpop.f32.mrb[0].mxu0
  %v5030 = vadd.f32 0.0, %v5029
  %v5031 = vpop.f32.mrb[0].mxu0
  %5032 = vmatprep.mubr.f32.mxu0 0.0
  %5033 = vmatmul.mubr.f32.gmra.mrb[0].mxu0 %v4862
  %v5034 = vpop.f32.mrb[0].mxu0
  %v5035 = vadd.f32 0.0, %v5034
  %v5036 = vpop.f32.mrb[0].mxu0
  %5037 = vmatprep.mubr.f32.mxu0 0.0
  %5038 = vmatmul.mubr.f32.gmra.mrb[0].mxu0 %v4864
  %v5039 = vpop.f32.mrb[0].mxu0
  %v5040 = vadd.f32 0.0, %v5039
  %v5041 = vpop.f32.mrb[0].mxu0
  %5042 = vdwg.mxu0
  %v5043 = vmul.f32 %v4965, 0.25
  %v5044 = vmul.f32 %v4970, 0.25
  %v5045 = vmul.f32 %v4975, 0.25
  %v5046 = vmul.f32 %v4980, 0.25
  %v5047 = vmul.f32 %v4985, 0.25
  %v5048 = vmul.f32 %v4990, 0.25
  %v5049 = vmul.f32 %v4995, 0.25
  %v5050 = vmul.f32 %v5000, 0.25
  %v5051 = vmul.f32 %v5005, 0.25
  %v5052 = vmul.f32 %v5010, 0.25
  %v5053 = vmul.f32 %v5015, 0.25
  %v5054 = vmul.f32 %v5020, 0.25
  %v5055 = vmul.f32 %v5025, 0.25
  %v5056 = vmul.f32 %v5030, 0.25
  %v5057 = vmul.f32 %v5035, 0.25
  %v5058 = vmul.f32 %v5040, 0.25
  %v5059 = vadd.f32 %v5043, %v3925
  %v5060 = vadd.f32 %v5044, %v3926
  %v5061 = vadd.f32 %v5045, %v3927
  %v5062 = vadd.f32 %v5046, %v3928
  %v5063 = vadd.f32 %v5047, %v3929
  %v5064 = vadd.f32 %v5048, %v3930
  %v5065 = vadd.f32 %v5049, %v3931
  %v5066 = vadd.f32 %v5050, %v3932
  %v5067 = vadd.f32 %v5051, %v3933
  %v5068 = vadd.f32 %v5052, %v3934
  %v5069 = vadd.f32 %v5053, %v3935
  %v5070 = vadd.f32 %v5054, %v3936
  %v5071 = vadd.f32 %v5055, %v3937
  %v5072 = vadd.f32 %v5056, %v3938
  %v5073 = vadd.f32 %v5057, %v3939
  %v5074 = vadd.f32 %v5058, %v3940
  %5075 = vmax.xlane.f32.xlu0 %v5059
  %v5076 = vpop.xlane.xlu0 %5075
  %5077 = vmax.xlane.f32.xlu0 %v5060
  %v5078 = vpop.xlane.xlu0 %5077
  %5079 = vmax.xlane.f32.xlu0 %v5061
  %v5080 = vpop.xlane.xlu0 %5079
  %5081 = vmax.xlane.f32.xlu0 %v5062
  %v5082 = vpop.xlane.xlu0 %5081
  %5083 = vmax.xlane.f32.xlu0 %v5063
  %v5084 = vpop.xlane.xlu0 %5083
  %5085 = vmax.xlane.f32.xlu0 %v5064
  %v5086 = vpop.xlane.xlu0 %5085
  %5087 = vmax.xlane.f32.xlu0 %v5065
  %v5088 = vpop.xlane.xlu0 %5087
  %5089 = vmax.xlane.f32.xlu0 %v5066
  %v5090 = vpop.xlane.xlu0 %5089
  %5091 = vmax.xlane.f32.xlu0 %v5067
  %v5092 = vpop.xlane.xlu0 %5091
  %5093 = vmax.xlane.f32.xlu0 %v5068
  %v5094 = vpop.xlane.xlu0 %5093
  %5095 = vmax.xlane.f32.xlu0 %v5069
  %v5096 = vpop.xlane.xlu0 %5095
  %5097 = vmax.xlane.f32.xlu0 %v5070
  %v5098 = vpop.xlane.xlu0 %5097
  %5099 = vmax.xlane.f32.xlu0 %v5071
  %v5100 = vpop.xlane.xlu0 %5099
  %5101 = vmax.xlane.f32.xlu0 %v5072
  %v5102 = vpop.xlane.xlu0 %5101
  %5103 = vmax.xlane.f32.xlu0 %v5073
  %v5104 = vpop.xlane.xlu0 %5103
  %5105 = vmax.xlane.f32.xlu0 %v5074
  %v5106 = vpop.xlane.xlu0 %5105
  %v5107 = vsub.f32 %v5059, %v5076
  %v5108 = vsub.f32 %v5060, %v5078
  %v5109 = vsub.f32 %v5061, %v5080
  %v5110 = vsub.f32 %v5062, %v5082
  %v5111 = vsub.f32 %v5063, %v5084
  %v5112 = vsub.f32 %v5064, %v5086
  %v5113 = vsub.f32 %v5065, %v5088
  %v5114 = vsub.f32 %v5066, %v5090
  %v5115 = vsub.f32 %v5067, %v5092
  %v5116 = vsub.f32 %v5068, %v5094
  %v5117 = vsub.f32 %v5069, %v5096
  %v5118 = vsub.f32 %v5070, %v5098
  %v5119 = vsub.f32 %v5071, %v5100
  %v5120 = vsub.f32 %v5072, %v5102
  %v5121 = vsub.f32 %v5073, %v5104
  %v5122 = vsub.f32 %v5074, %v5106
  %v5123 = vmul.f32 %v5107, 1.442695
  %v5124 = vpow.pop %v5123
  %v5125 = vmul.f32 %v5108, 1.442695
  %v5126 = vpow.pop %v5125
  %v5127 = vmul.f32 %v5109, 1.442695
  %v5128 = vpow.pop %v5127
  %v5129 = vmul.f32 %v5110, 1.442695
  %v5130 = vpow.pop %v5129
  %v5131 = vmul.f32 %v5111, 1.442695
  %v5132 = vpow.pop %v5131
  %v5133 = vmul.f32 %v5112, 1.442695
  %v5134 = vpow.pop %v5133
  %v5135 = vmul.f32 %v5113, 1.442695
  %v5136 = vpow.pop %v5135
  %v5137 = vmul.f32 %v5114, 1.442695
  %v5138 = vpow.pop %v5137
  %v5139 = vmul.f32 %v5115, 1.442695
  %v5140 = vpow.pop %v5139
  %v5141 = vmul.f32 %v5116, 1.442695
  %v5142 = vpow.pop %v5141
  %v5143 = vmul.f32 %v5117, 1.442695
  %v5144 = vpow.pop %v5143
  %v5145 = vmul.f32 %v5118, 1.442695
  %v5146 = vpow.pop %v5145
  %v5147 = vmul.f32 %v5119, 1.442695
  %v5148 = vpow.pop %v5147
  %v5149 = vmul.f32 %v5120, 1.442695
  %v5150 = vpow.pop %v5149
  %v5151 = vmul.f32 %v5121, 1.442695
  %v5152 = vpow.pop %v5151
  %v5153 = vmul.f32 %v5122, 1.442695
  %v5154 = vpow.pop %v5153
  %5155 = vadd.xlane.f32.xlu0 %v5124
  %v5156 = vpop.xlane.xlu0 %5155
  %5157 = vadd.xlane.f32.xlu0 %v5126
  %v5158 = vpop.xlane.xlu0 %5157
  %5159 = vadd.xlane.f32.xlu0 %v5128
  %v5160 = vpop.xlane.xlu0 %5159
  %5161 = vadd.xlane.f32.xlu0 %v5130
  %v5162 = vpop.xlane.xlu0 %5161
  %5163 = vadd.xlane.f32.xlu0 %v5132
  %v5164 = vpop.xlane.xlu0 %5163
  %5165 = vadd.xlane.f32.xlu0 %v5134
  %v5166 = vpop.xlane.xlu0 %5165
  %5167 = vadd.xlane.f32.xlu0 %v5136
  %v5168 = vpop.xlane.xlu0 %5167
  %5169 = vadd.xlane.f32.xlu0 %v5138
  %v5170 = vpop.xlane.xlu0 %5169
  %5171 = vadd.xlane.f32.xlu0 %v5140
  %v5172 = vpop.xlane.xlu0 %5171
  %5173 = vadd.xlane.f32.xlu0 %v5142
  %v5174 = vpop.xlane.xlu0 %5173
  %5175 = vadd.xlane.f32.xlu0 %v5144
  %v5176 = vpop.xlane.xlu0 %5175
  %5177 = vadd.xlane.f32.xlu0 %v5146
  %v5178 = vpop.xlane.xlu0 %5177
  %5179 = vadd.xlane.f32.xlu0 %v5148
  %v5180 = vpop.xlane.xlu0 %5179
  %5181 = vadd.xlane.f32.xlu0 %v5150
  %v5182 = vpop.xlane.xlu0 %5181
  %5183 = vadd.xlane.f32.xlu0 %v5152
  %v5184 = vpop.xlane.xlu0 %5183
  %5185 = vadd.xlane.f32.xlu0 %v5154
  %v5186 = vpop.xlane.xlu0 %5185
  %v5187 = vrcp.pop %v5156
  %v5188 = vrcp.pop %v5158
  %v5189 = vrcp.pop %v5160
  %v5190 = vrcp.pop %v5162
  %v5191 = vrcp.pop %v5164
  %v5192 = vrcp.pop %v5166
  %v5193 = vrcp.pop %v5168
  %v5194 = vrcp.pop %v5170
  %v5195 = vrcp.pop %v5172
  %v5196 = vrcp.pop %v5174
  %v5197 = vrcp.pop %v5176
  %v5198 = vrcp.pop %v5178
  %v5199 = vrcp.pop %v5180
  %v5200 = vrcp.pop %v5182
  %v5201 = vrcp.pop %v5184
  %v5202 = vrcp.pop %v5186
  %v5203 = vmul.f32 %v5124, %v5187
  %v5204 = vmul.f32 %v5126, %v5188
  %v5205 = vmul.f32 %v5128, %v5189
  %v5206 = vmul.f32 %v5130, %v5190
  %v5207 = vmul.f32 %v5132, %v5191
  %v5208 = vmul.f32 %v5134, %v5192
  %v5209 = vmul.f32 %v5136, %v5193
  %v5210 = vmul.f32 %v5138, %v5194
  %v5211 = vmul.f32 %v5140, %v5195
  %v5212 = vmul.f32 %v5142, %v5196
  %v5213 = vmul.f32 %v5144, %v5197
  %v5214 = vmul.f32 %v5146, %v5198
  %v5215 = vmul.f32 %v5148, %v5199
  %v5216 = vmul.f32 %v5150, %v5200
  %v5217 = vmul.f32 %v5152, %v5201
  %v5218 = vmul.f32 %v5154, %v5202
  %5219 = vrot.lane.b32.xlu0 %v4066, 48
  %v5220 = vpop.permute.xlu0 %5219
  %5221 = vrot.lane.b32.xlu0 %v4071, 48
  %v5222 = vpop.permute.xlu0 %5221
  %5223 = vrot.lane.b32.xlu0 %v4076, 48
  %v5224 = vpop.permute.xlu0 %5223
  %5225 = vrot.lane.b32.xlu0 %v4081, 48
  %v5226 = vpop.permute.xlu0 %5225
  %5227 = vrot.lane.b32.xlu0 %v4086, 48
  %v5228 = vpop.permute.xlu0 %5227
  %5229 = vrot.lane.b32.xlu0 %v4091, 48
  %v5230 = vpop.permute.xlu0 %5229
  %5231 = vrot.lane.b32.xlu0 %v4096, 48
  %v5232 = vpop.permute.xlu0 %5231
  %5233 = vrot.lane.b32.xlu0 %v4101, 48
  %v5234 = vpop.permute.xlu0 %5233
  %5235 = vrot.lane.b32.xlu0 %v4106, 48
  %v5236 = vpop.permute.xlu0 %5235
  %5237 = vrot.lane.b32.xlu0 %v4111, 48
  %v5238 = vpop.permute.xlu0 %5237
  %5239 = vrot.lane.b32.xlu0 %v4116, 48
  %v5240 = vpop.permute.xlu0 %5239
  %5241 = vrot.lane.b32.xlu0 %v4121, 48
  %v5242 = vpop.permute.xlu0 %5241
  %5243 = vrot.lane.b32.xlu0 %v4126, 48
  %v5244 = vpop.permute.xlu0 %5243
  %5245 = vrot.lane.b32.xlu0 %v4131, 48
  %v5246 = vpop.permute.xlu0 %5245
  %5247 = vrot.lane.b32.xlu0 %v4136, 48
  %v5248 = vpop.permute.xlu0 %5247
  %5249 = vrot.lane.b32.xlu0 %v4141, 48
  %v5250 = vpop.permute.xlu0 %5249
  %5267 = vmatprep.subr.mxu0 0.0
  %5268 = vmatpush1.msra.mxu0 %v5220
  %5269 = vmatprep.subr.mxu0 0.0
  %5270 = vmatpush1.msra.mxu0 %v5222
  %5271 = vmatprep.subr.mxu0 0.0
  %5272 = vmatpush1.msra.mxu0 %v5224
  %5273 = vmatprep.subr.mxu0 0.0
  %5274 = vmatpush1.msra.mxu0 %v5226
  %5275 = vmatprep.subr.mxu0 0.0
  %5276 = vmatpush1.msra.mxu0 %v5228
  %5277 = vmatprep.subr.mxu0 0.0
  %5278 = vmatpush1.msra.mxu0 %v5230
  %5279 = vmatprep.subr.mxu0 0.0
  %5280 = vmatpush1.msra.mxu0 %v5232
  %5281 = vmatprep.subr.mxu0 0.0
  %5282 = vmatpush1.msra.mxu0 %v5234
  %5283 = vmatprep.subr.mxu0 0.0
  %5284 = vmatpush1.msra.mxu0 %v5236
  %5285 = vmatprep.subr.mxu0 0.0
  %5286 = vmatpush1.msra.mxu0 %v5238
  %5287 = vmatprep.subr.mxu0 0.0
  %5288 = vmatpush1.msra.mxu0 %v5240
  %5289 = vmatprep.subr.mxu0 0.0
  %5290 = vmatpush1.msra.mxu0 %v5242
  %5291 = vmatprep.subr.mxu0 0.0
  %5292 = vmatpush1.msra.mxu0 %v5244
  %5293 = vmatprep.subr.mxu0 0.0
  %5294 = vmatpush1.msra.mxu0 %v5246
  %5295 = vmatprep.subr.mxu0 0.0
  %5296 = vmatpush1.msra.mxu0 %v5248
  %5297 = vmatprep.subr.mxu0 0.0
  %5298 = vmatpush1.msra.mxu0 %v5250
  %5299 = vmatprep.subr.mxu0 0.0
  %5300 = vmatpush1.msra.mxu0 0.0
  %5301 = vmatprep.subr.mxu0 0.0
  %5302 = vmatpush1.msra.mxu0 0.0
  %5303 = vmatprep.subr.mxu0 0.0
  %5304 = vmatpush1.msra.mxu0 0.0
  %5305 = vmatprep.subr.mxu0 0.0
  %5306 = vmatpush1.msra.mxu0 0.0
  %5307 = vmatprep.subr.mxu0 0.0
  %5308 = vmatpush1.msra.mxu0 0.0
  %5309 = vmatprep.subr.mxu0 0.0
  %5310 = vmatpush1.msra.mxu0 0.0
  %5311 = vmatprep.subr.mxu0 0.0
  %5312 = vmatpush1.msra.mxu0 0.0
  %5313 = vmatprep.subr.mxu0 0.0
  %5314 = vmatpush1.msra.mxu0 0.0
  %5315 = vmatprep.subr.mxu0 0.0
  %5316 = vmatpush1.msra.mxu0 0.0
  %5317 = vmatprep.subr.mxu0 0.0
  %5318 = vmatpush1.msra.mxu0 0.0
  %5319 = vmatprep.subr.mxu0 0.0
  %5320 = vmatpush1.msra.mxu0 0.0
  %5321 = vmatprep.subr.mxu0 0.0
  %5322 = vmatpush1.msra.mxu0 0.0
  %5323 = vmatprep.subr.mxu0 0.0
  %5324 = vmatpush1.msra.mxu0 0.0
  %5325 = vmatprep.subr.mxu0 0.0
  %5326 = vmatpush1.msra.mxu0 0.0
  %5327 = vmatprep.subr.mxu0 0.0
  %5328 = vmatpush1.msra.mxu0 0.0
  %5329 = vmatprep.subr.mxu0 0.0
  %5330 = vmatpush1.msra.mxu0 0.0
  %5331 = vmatprep.mubr.f32.mxu0 0.0
  %5332 = vmatmul.mubr.f32.gmra.mrb[0].mxu0 %v5203
  %v5333 = vpop.f32.mrb[0].mxu0
  %v5334 = vadd.f32 0.0, %v5333
  %v5335 = vpop.f32.mrb[0].mxu0
  %5336 = vmatprep.mubr.f32.mxu0 0.0
  %5337 = vmatmul.mubr.f32.gmra.mrb[0].mxu0 %v5204
  %v5338 = vpop.f32.mrb[0].mxu0
  %v5339 = vadd.f32 0.0, %v5338
  %v5340 = vpop.f32.mrb[0].mxu0
  %5341 = vmatprep.mubr.f32.mxu0 0.0
  %5342 = vmatmul.mubr.f32.gmra.mrb[0].mxu0 %v5205
  %v5343 = vpop.f32.mrb[0].mxu0
  %v5344 = vadd.f32 0.0, %v5343
  %v5345 = vpop.f32.mrb[0].mxu0
  %5346 = vmatprep.mubr.f32.mxu0 0.0
  %5347 = vmatmul.mubr.f32.gmra.mrb[0].mxu0 %v5206
  %v5348 = vpop.f32.mrb[0].mxu0
  %v5349 = vadd.f32 0.0, %v5348
  %v5350 = vpop.f32.mrb[0].mxu0
  %5351 = vmatprep.mubr.f32.mxu0 0.0
  %5352 = vmatmul.mubr.f32.gmra.mrb[0].mxu0 %v5207
  %v5353 = vpop.f32.mrb[0].mxu0
  %v5354 = vadd.f32 0.0, %v5353
  %v5355 = vpop.f32.mrb[0].mxu0
  %5356 = vmatprep.mubr.f32.mxu0 0.0
  %5357 = vmatmul.mubr.f32.gmra.mrb[0].mxu0 %v5208
  %v5358 = vpop.f32.mrb[0].mxu0
  %v5359 = vadd.f32 0.0, %v5358
  %v5360 = vpop.f32.mrb[0].mxu0
  %5361 = vmatprep.mubr.f32.mxu0 0.0
  %5362 = vmatmul.mubr.f32.gmra.mrb[0].mxu0 %v5209
  %v5363 = vpop.f32.mrb[0].mxu0
  %v5364 = vadd.f32 0.0, %v5363
  %v5365 = vpop.f32.mrb[0].mxu0
  %5366 = vmatprep.mubr.f32.mxu0 0.0
  %5367 = vmatmul.mubr.f32.gmra.mrb[0].mxu0 %v5210
  %v5368 = vpop.f32.mrb[0].mxu0
  %v5369 = vadd.f32 0.0, %v5368
  %v5370 = vpop.f32.mrb[0].mxu0
  %5371 = vmatprep.mubr.f32.mxu0 0.0
  %5372 = vmatmul.mubr.f32.gmra.mrb[0].mxu0 %v5211
  %v5373 = vpop.f32.mrb[0].mxu0
  %v5374 = vadd.f32 0.0, %v5373
  %v5375 = vpop.f32.mrb[0].mxu0
  %5376 = vmatprep.mubr.f32.mxu0 0.0
  %5377 = vmatmul.mubr.f32.gmra.mrb[0].mxu0 %v5212
  %v5378 = vpop.f32.mrb[0].mxu0
  %v5379 = vadd.f32 0.0, %v5378
  %v5380 = vpop.f32.mrb[0].mxu0
  %5381 = vmatprep.mubr.f32.mxu0 0.0
  %5382 = vmatmul.mubr.f32.gmra.mrb[0].mxu0 %v5213
  %v5383 = vpop.f32.mrb[0].mxu0
  %v5384 = vadd.f32 0.0, %v5383
  %v5385 = vpop.f32.mrb[0].mxu0
  %5386 = vmatprep.mubr.f32.mxu0 0.0
  %5387 = vmatmul.mubr.f32.gmra.mrb[0].mxu0 %v5214
  %v5388 = vpop.f32.mrb[0].mxu0
  %v5389 = vadd.f32 0.0, %v5388
  %v5390 = vpop.f32.mrb[0].mxu0
  %5391 = vmatprep.mubr.f32.mxu0 0.0
  %5392 = vmatmul.mubr.f32.gmra.mrb[0].mxu0 %v5215
  %v5393 = vpop.f32.mrb[0].mxu0
  %v5394 = vadd.f32 0.0, %v5393
  %v5395 = vpop.f32.mrb[0].mxu0
  %5396 = vmatprep.mubr.f32.mxu0 0.0
  %5397 = vmatmul.mubr.f32.gmra.mrb[0].mxu0 %v5216
  %v5398 = vpop.f32.mrb[0].mxu0
  %v5399 = vadd.f32 0.0, %v5398
  %v5400 = vpop.f32.mrb[0].mxu0
  %5401 = vmatprep.mubr.f32.mxu0 0.0
  %5402 = vmatmul.mubr.f32.gmra.mrb[0].mxu0 %v5217
  %v5403 = vpop.f32.mrb[0].mxu0
  %v5404 = vadd.f32 0.0, %v5403
  %v5405 = vpop.f32.mrb[0].mxu0
  %5406 = vmatprep.mubr.f32.mxu0 0.0
  %5407 = vmatmul.mubr.f32.gmra.mrb[0].mxu0 %v5218
  %v5408 = vpop.f32.mrb[0].mxu0
  %v5409 = vadd.f32 0.0, %v5408
  %v5410 = vpop.f32.mrb[0].mxu0
  %5411 = vdwg.mxu0
  %5428 = vrot.lane.b32.xlu0 %v5334, 16
  %v5429 = vpop.permute.xlu0 %5428
  %5430 = vrot.lane.b32.xlu0 %v5339, 16
  %v5431 = vpop.permute.xlu0 %5430
  %5432 = vrot.lane.b32.xlu0 %v5344, 16
  %v5433 = vpop.permute.xlu0 %5432
  %5434 = vrot.lane.b32.xlu0 %v5349, 16
  %v5435 = vpop.permute.xlu0 %5434
  %5436 = vrot.lane.b32.xlu0 %v5354, 16
  %v5437 = vpop.permute.xlu0 %5436
  %5438 = vrot.lane.b32.xlu0 %v5359, 16
  %v5439 = vpop.permute.xlu0 %5438
  %5440 = vrot.lane.b32.xlu0 %v5364, 16
  %v5441 = vpop.permute.xlu0 %5440
  %5442 = vrot.lane.b32.xlu0 %v5369, 16
  %v5443 = vpop.permute.xlu0 %5442
  %5444 = vrot.lane.b32.xlu0 %v5374, 16
  %v5445 = vpop.permute.xlu0 %5444
  %5446 = vrot.lane.b32.xlu0 %v5379, 16
  %v5447 = vpop.permute.xlu0 %5446
  %5448 = vrot.lane.b32.xlu0 %v5384, 16
  %v5449 = vpop.permute.xlu0 %5448
  %5450 = vrot.lane.b32.xlu0 %v5389, 16
  %v5451 = vpop.permute.xlu0 %5450
  %5452 = vrot.lane.b32.xlu0 %v5394, 16
  %v5453 = vpop.permute.xlu0 %5452
  %5454 = vrot.lane.b32.xlu0 %v5399, 16
  %v5455 = vpop.permute.xlu0 %5454
  %5456 = vrot.lane.b32.xlu0 %v5404, 16
  %v5457 = vpop.permute.xlu0 %5456
  %5458 = vrot.lane.b32.xlu0 %v5409, 16
  %v5459 = vpop.permute.xlu0 %5458
  %v5476 = vsel %vm424, %v4692, %v5429
  %v5477 = vsel %vm424, %v4697, %v5431
  %v5478 = vsel %vm424, %v4702, %v5433
  %v5479 = vsel %vm424, %v4707, %v5435
  %v5480 = vsel %vm424, %v4712, %v5437
  %v5481 = vsel %vm424, %v4717, %v5439
  %v5482 = vsel %vm424, %v4722, %v5441
  %v5483 = vsel %vm424, %v4727, %v5443
  %v5484 = vsel %vm424, %v4732, %v5445
  %v5485 = vsel %vm424, %v4737, %v5447
  %v5486 = vsel %vm424, %v4742, %v5449
  %v5487 = vsel %vm424, %v4747, %v5451
  %v5488 = vsel %vm424, %v4752, %v5453
  %v5489 = vsel %vm424, %v4757, %v5455
  %v5490 = vsel %vm424, %v4762, %v5457
  %v5491 = vsel %vm424, %v4767, %v5459
  %v5492 = vld [vmem:[%s13] sm:$0xff]
  %v5493 = vld [vmem:[%s13 + $0x8] sm:$0xff]
  %v5494 = vld [vmem:[%s13 + $0x10] sm:$0xff]
  %v5495 = vld [vmem:[%s13 + $0x18] sm:$0xff]
  %v5496 = vlaneseq
  %v5497 = vshrl.u32 %v5496, 7
  %v5498 = vsub.s32 0, %v5497
  %v5499 = vrot.slane %v3942, %v5498
  %v5501 = vsel %vm270, %v5476, 0
  %v5504 = vsel %vm270, %v5477, 0
  %v5507 = vsel %vm270, %v5478, 0
  %v5510 = vsel %vm270, %v5479, 0
  %v5513 = vsel %vm270, %v5480, 0
  %v5516 = vsel %vm270, %v5481, 0
  %v5519 = vsel %vm270, %v5482, 0
  %v5522 = vsel %vm270, %v5483, 0
  %v5525 = vsel %vm270, %v5484, 0
  %v5528 = vsel %vm270, %v5485, 0
  %v5531 = vsel %vm270, %v5486, 0
  %v5534 = vsel %vm270, %v5487, 0
  %v5537 = vsel %vm270, %v5488, 0
  %v5540 = vsel %vm270, %v5489, 0
  %v5543 = vsel %vm270, %v5490, 0
  %v5546 = vsel %vm270, %v5491, 0
  %5548 = vmatprep.subr.mxu0 0.0
  %5549 = vmatpush1.msra.mxu0 %v5492
  %5550 = vmatprep.subr.mxu0 0.0
  %5551 = vmatpush1.msra.mxu0 %v5493
  %5552 = vmatprep.subr.mxu0 0.0
  %5553 = vmatpush1.msra.mxu0 %v5494
  %5554 = vmatprep.subr.mxu0 0.0
  %5555 = vmatpush1.msra.mxu0 %v5495
  %5556 = vmatprep.subr.mxu0 0.0
  %5557 = vmatpush1.msra.mxu0 0.0
  %5558 = vmatprep.subr.mxu0 0.0
  %5559 = vmatpush1.msra.mxu0 0.0
  %5560 = vmatprep.subr.mxu0 0.0
  %5561 = vmatpush1.msra.mxu0 0.0
  %5562 = vmatprep.subr.mxu0 0.0
  %5563 = vmatpush1.msra.mxu0 0.0
  %5564 = vmatprep.subr.mxu0 0.0
  %5565 = vmatpush1.msra.mxu0 0.0
  %5566 = vmatprep.subr.mxu0 0.0
  %5567 = vmatpush1.msra.mxu0 0.0
  %5568 = vmatprep.subr.mxu0 0.0
  %5569 = vmatpush1.msra.mxu0 0.0
  %5570 = vmatprep.subr.mxu0 0.0
  %5571 = vmatpush1.msra.mxu0 0.0
  %5572 = vmatprep.subr.mxu0 0.0
  %5573 = vmatpush1.msra.mxu0 0.0
  %5574 = vmatprep.subr.mxu0 0.0
  %5575 = vmatpush1.msra.mxu0 0.0
  %5576 = vmatprep.subr.mxu0 0.0
  %5577 = vmatpush1.msra.mxu0 0.0
  %5578 = vmatprep.subr.mxu0 0.0
  %5579 = vmatpush1.msra.mxu0 0.0
  %5580 = vmatprep.subr.mxu0 0.0
  %5581 = vmatpush1.msra.mxu0 0.0
  %5582 = vmatprep.subr.mxu0 0.0
  %5583 = vmatpush1.msra.mxu0 0.0
  %5584 = vmatprep.subr.mxu0 0.0
  %5585 = vmatpush1.msra.mxu0 0.0
  %5586 = vmatprep.subr.mxu0 0.0
  %5587 = vmatpush1.msra.mxu0 0.0
  %5588 = vmatprep.subr.mxu0 0.0
  %5589 = vmatpush1.msra.mxu0 0.0
  %5590 = vmatprep.subr.mxu0 0.0
  %5591 = vmatpush1.msra.mxu0 0.0
  %5592 = vmatprep.subr.mxu0 0.0
  %5593 = vmatpush1.msra.mxu0 0.0
  %5594 = vmatprep.subr.mxu0 0.0
  %5595 = vmatpush1.msra.mxu0 0.0
  %5596 = vmatprep.subr.mxu0 0.0
  %5597 = vmatpush1.msra.mxu0 0.0
  %5598 = vmatprep.subr.mxu0 0.0
  %5599 = vmatpush1.msra.mxu0 0.0
  %5600 = vmatprep.subr.mxu0 0.0
  %5601 = vmatpush1.msra.mxu0 0.0
  %5602 = vmatprep.subr.mxu0 0.0
  %5603 = vmatpush1.msra.mxu0 0.0
  %5604 = vmatprep.subr.mxu0 0.0
  %5605 = vmatpush1.msra.mxu0 0.0
  %5606 = vmatprep.subr.mxu0 0.0
  %5607 = vmatpush1.msra.mxu0 0.0
  %5608 = vmatprep.subr.mxu0 0.0
  %5609 = vmatpush1.msra.mxu0 0.0
  %5610 = vmatprep.subr.mxu0 0.0
  %5611 = vmatpush1.msra.mxu0 0.0
  %5612 = vmatprep.mubr.f32.mxu0 0.0
  %5613 = vmatmul.mubr.f32.gmra.mrb[0].mxu0 %v5501
  %v5614 = vpop.f32.mrb[0].mxu0
  %v5615 = vadd.f32 %v5499, %v5614
  %v5616 = vpop.f32.mrb[0].mxu0
  %5617 = vmatprep.mubr.f32.mxu0 0.0
  %5618 = vmatmul.mubr.f32.gmra.mrb[0].mxu0 %v5504
  %v5619 = vpop.f32.mrb[0].mxu0
  %v5620 = vadd.f32 %v5499, %v5619
  %v5621 = vpop.f32.mrb[0].mxu0
  %5622 = vmatprep.mubr.f32.mxu0 0.0
  %5623 = vmatmul.mubr.f32.gmra.mrb[0].mxu0 %v5507
  %v5624 = vpop.f32.mrb[0].mxu0
  %v5625 = vadd.f32 %v5499, %v5624
  %v5626 = vpop.f32.mrb[0].mxu0
  %5627 = vmatprep.mubr.f32.mxu0 0.0
  %5628 = vmatmul.mubr.f32.gmra.mrb[0].mxu0 %v5510
  %v5629 = vpop.f32.mrb[0].mxu0
  %v5630 = vadd.f32 %v5499, %v5629
  %v5631 = vpop.f32.mrb[0].mxu0
  %5632 = vmatprep.mubr.f32.mxu0 0.0
  %5633 = vmatmul.mubr.f32.gmra.mrb[0].mxu0 %v5513
  %v5634 = vpop.f32.mrb[0].mxu0
  %v5635 = vadd.f32 %v5499, %v5634
  %v5636 = vpop.f32.mrb[0].mxu0
  %5637 = vmatprep.mubr.f32.mxu0 0.0
  %5638 = vmatmul.mubr.f32.gmra.mrb[0].mxu0 %v5516
  %v5639 = vpop.f32.mrb[0].mxu0
  %v5640 = vadd.f32 %v5499, %v5639
  %v5641 = vpop.f32.mrb[0].mxu0
  %5642 = vmatprep.mubr.f32.mxu0 0.0
  %5643 = vmatmul.mubr.f32.gmra.mrb[0].mxu0 %v5519
  %v5644 = vpop.f32.mrb[0].mxu0
  %v5645 = vadd.f32 %v5499, %v5644
  %v5646 = vpop.f32.mrb[0].mxu0
  %5647 = vmatprep.mubr.f32.mxu0 0.0
  %5648 = vmatmul.mubr.f32.gmra.mrb[0].mxu0 %v5522
  %v5649 = vpop.f32.mrb[0].mxu0
  %v5650 = vadd.f32 %v5499, %v5649
  %v5651 = vpop.f32.mrb[0].mxu0
  %5652 = vmatprep.mubr.f32.mxu0 0.0
  %5653 = vmatmul.mubr.f32.gmra.mrb[0].mxu0 %v5525
  %v5654 = vpop.f32.mrb[0].mxu0
  %v5655 = vadd.f32 %v5499, %v5654
  %v5656 = vpop.f32.mrb[0].mxu0
  %5657 = vmatprep.mubr.f32.mxu0 0.0
  %5658 = vmatmul.mubr.f32.gmra.mrb[0].mxu0 %v5528
  %v5659 = vpop.f32.mrb[0].mxu0
  %v5660 = vadd.f32 %v5499, %v5659
  %v5661 = vpop.f32.mrb[0].mxu0
  %5662 = vmatprep.mubr.f32.mxu0 0.0
  %5663 = vmatmul.mubr.f32.gmra.mrb[0].mxu0 %v5531
  %v5664 = vpop.f32.mrb[0].mxu0
  %v5665 = vadd.f32 %v5499, %v5664
  %v5666 = vpop.f32.mrb[0].mxu0
  %5667 = vmatprep.mubr.f32.mxu0 0.0
  %5668 = vmatmul.mubr.f32.gmra.mrb[0].mxu0 %v5534
  %v5669 = vpop.f32.mrb[0].mxu0
  %v5670 = vadd.f32 %v5499, %v5669
  %v5671 = vpop.f32.mrb[0].mxu0
  %5672 = vmatprep.mubr.f32.mxu0 0.0
  %5673 = vmatmul.mubr.f32.gmra.mrb[0].mxu0 %v5537
  %v5674 = vpop.f32.mrb[0].mxu0
  %v5675 = vadd.f32 %v5499, %v5674
  %v5676 = vpop.f32.mrb[0].mxu0
  %5677 = vmatprep.mubr.f32.mxu0 0.0
  %5678 = vmatmul.mubr.f32.gmra.mrb[0].mxu0 %v5540
  %v5679 = vpop.f32.mrb[0].mxu0
  %v5680 = vadd.f32 %v5499, %v5679
  %v5681 = vpop.f32.mrb[0].mxu0
  %5682 = vmatprep.mubr.f32.mxu0 0.0
  %5683 = vmatmul.mubr.f32.gmra.mrb[0].mxu0 %v5543
  %v5684 = vpop.f32.mrb[0].mxu0
  %v5685 = vadd.f32 %v5499, %v5684
  %v5686 = vpop.f32.mrb[0].mxu0
  %5687 = vmatprep.mubr.f32.mxu0 0.0
  %5688 = vmatmul.mubr.f32.gmra.mrb[0].mxu0 %v5546
  %v5689 = vpop.f32.mrb[0].mxu0
  %v5690 = vadd.f32 %v5499, %v5689
  %v5691 = vpop.f32.mrb[0].mxu0
  %5692 = vdwg.mxu0
  %v5693 = vadd.f32 %v5615, %v3602
  %v5694 = vadd.f32 %v5620, %v3607
  %v5695 = vadd.f32 %v5625, %v3612
  %v5696 = vadd.f32 %v5630, %v3617
  %v5697 = vadd.f32 %v5635, %v3622
  %v5698 = vadd.f32 %v5640, %v3627
  %v5699 = vadd.f32 %v5645, %v3632
  %v5700 = vadd.f32 %v5650, %v3637
  %v5701 = vadd.f32 %v5655, %v3642
  %v5702 = vadd.f32 %v5660, %v3647
  %v5703 = vadd.f32 %v5665, %v3652
  %v5704 = vadd.f32 %v5670, %v3657
  %v5705 = vadd.f32 %v5675, %v3662
  %v5706 = vadd.f32 %v5680, %v3667
  %v5707 = vadd.f32 %v5685, %v3672
  %v5708 = vadd.f32 %v5690, %v3677
  %v5709 = vld [vmem:[%s17 + $0x12] sm:$0x1]
  %v5710 = vld [vmem:[%s17 + $0x13] sm:$0x1]
  %v5711 = vsel %vm270, %v5693, 0.0
  %5712 = vadd.xlane.f32.xlu0 %v5711
  %v5713 = vpop.xlane.xlu0 %5712
  %v5714 = vsel %vm270, %v5694, 0.0
  %5715 = vadd.xlane.f32.xlu0 %v5714
  %v5716 = vpop.xlane.xlu0 %5715
  %v5717 = vsel %vm270, %v5695, 0.0
  %5718 = vadd.xlane.f32.xlu0 %v5717
  %v5719 = vpop.xlane.xlu0 %5718
  %v5720 = vsel %vm270, %v5696, 0.0
  %5721 = vadd.xlane.f32.xlu0 %v5720
  %v5722 = vpop.xlane.xlu0 %5721
  %v5723 = vsel %vm270, %v5697, 0.0
  %5724 = vadd.xlane.f32.xlu0 %v5723
  %v5725 = vpop.xlane.xlu0 %5724
  %v5726 = vsel %vm270, %v5698, 0.0
  %5727 = vadd.xlane.f32.xlu0 %v5726
  %v5728 = vpop.xlane.xlu0 %5727
  %v5729 = vsel %vm270, %v5699, 0.0
  %5730 = vadd.xlane.f32.xlu0 %v5729
  %v5731 = vpop.xlane.xlu0 %5730
  %v5732 = vsel %vm270, %v5700, 0.0
  %5733 = vadd.xlane.f32.xlu0 %v5732
  %v5734 = vpop.xlane.xlu0 %5733
  %v5735 = vsel %vm270, %v5701, 0.0
  %5736 = vadd.xlane.f32.xlu0 %v5735
  %v5737 = vpop.xlane.xlu0 %5736
  %v5738 = vsel %vm270, %v5702, 0.0
  %5739 = vadd.xlane.f32.xlu0 %v5738
  %v5740 = vpop.xlane.xlu0 %5739
  %v5741 = vsel %vm270, %v5703, 0.0
  %5742 = vadd.xlane.f32.xlu0 %v5741
  %v5743 = vpop.xlane.xlu0 %5742
  %v5744 = vsel %vm270, %v5704, 0.0
  %5745 = vadd.xlane.f32.xlu0 %v5744
  %v5746 = vpop.xlane.xlu0 %5745
  %v5747 = vsel %vm270, %v5705, 0.0
  %5748 = vadd.xlane.f32.xlu0 %v5747
  %v5749 = vpop.xlane.xlu0 %5748
  %v5750 = vsel %vm270, %v5706, 0.0
  %5751 = vadd.xlane.f32.xlu0 %v5750
  %v5752 = vpop.xlane.xlu0 %5751
  %v5753 = vsel %vm270, %v5707, 0.0
  %5754 = vadd.xlane.f32.xlu0 %v5753
  %v5755 = vpop.xlane.xlu0 %5754
  %v5756 = vsel %vm270, %v5708, 0.0
  %5757 = vadd.xlane.f32.xlu0 %v5756
  %v5758 = vpop.xlane.xlu0 %5757
  %v5759 = vmul.f32 %v5713, %v1457
  %v5760 = vmul.f32 %v5716, %v1457
  %v5761 = vmul.f32 %v5719, %v1457
  %v5762 = vmul.f32 %v5722, %v1457
  %v5763 = vmul.f32 %v5725, %v1457
  %v5764 = vmul.f32 %v5728, %v1457
  %v5765 = vmul.f32 %v5731, %v1457
  %v5766 = vmul.f32 %v5734, %v1457
  %v5767 = vmul.f32 %v5737, %v1457
  %v5768 = vmul.f32 %v5740, %v1457
  %v5769 = vmul.f32 %v5743, %v1457
  %v5770 = vmul.f32 %v5746, %v1457
  %v5771 = vmul.f32 %v5749, %v1457
  %v5772 = vmul.f32 %v5752, %v1457
  %v5773 = vmul.f32 %v5755, %v1457
  %v5774 = vmul.f32 %v5758, %v1457
  %v5775 = vsub.f32 %v5693, %v5759
  %v5776 = vsub.f32 %v5694, %v5760
  %v5777 = vsub.f32 %v5695, %v5761
  %v5778 = vsub.f32 %v5696, %v5762
  %v5779 = vsub.f32 %v5697, %v5763
  %v5780 = vsub.f32 %v5698, %v5764
  %v5781 = vsub.f32 %v5699, %v5765
  %v5782 = vsub.f32 %v5700, %v5766
  %v5783 = vsub.f32 %v5701, %v5767
  %v5784 = vsub.f32 %v5702, %v5768
  %v5785 = vsub.f32 %v5703, %v5769
  %v5786 = vsub.f32 %v5704, %v5770
  %v5787 = vsub.f32 %v5705, %v5771
  %v5788 = vsub.f32 %v5706, %v5772
  %v5789 = vsub.f32 %v5707, %v5773
  %v5790 = vsub.f32 %v5708, %v5774
  %v5791 = vmul.f32 %v5775, %v5775
  %v5792 = vmul.f32 %v5776, %v5776
  %v5793 = vmul.f32 %v5777, %v5777
  %v5794 = vmul.f32 %v5778, %v5778
  %v5795 = vmul.f32 %v5779, %v5779
  %v5796 = vmul.f32 %v5780, %v5780
  %v5797 = vmul.f32 %v5781, %v5781
  %v5798 = vmul.f32 %v5782, %v5782
  %v5799 = vmul.f32 %v5783, %v5783
  %v5800 = vmul.f32 %v5784, %v5784
  %v5801 = vmul.f32 %v5785, %v5785
  %v5802 = vmul.f32 %v5786, %v5786
  %v5803 = vmul.f32 %v5787, %v5787
  %v5804 = vmul.f32 %v5788, %v5788
  %v5805 = vmul.f32 %v5789, %v5789
  %v5806 = vmul.f32 %v5790, %v5790
  %v5807 = vsel %vm270, %v5791, 0.0
  %5808 = vadd.xlane.f32.xlu0 %v5807
  %v5809 = vpop.xlane.xlu0 %5808
  %v5810 = vsel %vm270, %v5792, 0.0
  %5811 = vadd.xlane.f32.xlu0 %v5810
  %v5812 = vpop.xlane.xlu0 %5811
  %v5813 = vsel %vm270, %v5793, 0.0
  %5814 = vadd.xlane.f32.xlu0 %v5813
  %v5815 = vpop.xlane.xlu0 %5814
  %v5816 = vsel %vm270, %v5794, 0.0
  %5817 = vadd.xlane.f32.xlu0 %v5816
  %v5818 = vpop.xlane.xlu0 %5817
  %v5819 = vsel %vm270, %v5795, 0.0
  %5820 = vadd.xlane.f32.xlu0 %v5819
  %v5821 = vpop.xlane.xlu0 %5820
  %v5822 = vsel %vm270, %v5796, 0.0
  %5823 = vadd.xlane.f32.xlu0 %v5822
  %v5824 = vpop.xlane.xlu0 %5823
  %v5825 = vsel %vm270, %v5797, 0.0
  %5826 = vadd.xlane.f32.xlu0 %v5825
  %v5827 = vpop.xlane.xlu0 %5826
  %v5828 = vsel %vm270, %v5798, 0.0
  %5829 = vadd.xlane.f32.xlu0 %v5828
  %v5830 = vpop.xlane.xlu0 %5829
  %v5831 = vsel %vm270, %v5799, 0.0
  %5832 = vadd.xlane.f32.xlu0 %v5831
  %v5833 = vpop.xlane.xlu0 %5832
  %v5834 = vsel %vm270, %v5800, 0.0
  %5835 = vadd.xlane.f32.xlu0 %v5834
  %v5836 = vpop.xlane.xlu0 %5835
  %v5837 = vsel %vm270, %v5801, 0.0
  %5838 = vadd.xlane.f32.xlu0 %v5837
  %v5839 = vpop.xlane.xlu0 %5838
  %v5840 = vsel %vm270, %v5802, 0.0
  %5841 = vadd.xlane.f32.xlu0 %v5840
  %v5842 = vpop.xlane.xlu0 %5841
  %v5843 = vsel %vm270, %v5803, 0.0
  %5844 = vadd.xlane.f32.xlu0 %v5843
  %v5845 = vpop.xlane.xlu0 %5844
  %v5846 = vsel %vm270, %v5804, 0.0
  %5847 = vadd.xlane.f32.xlu0 %v5846
  %v5848 = vpop.xlane.xlu0 %5847
  %v5849 = vsel %vm270, %v5805, 0.0
  %5850 = vadd.xlane.f32.xlu0 %v5849
  %v5851 = vpop.xlane.xlu0 %5850
  %v5852 = vsel %vm270, %v5806, 0.0
  %5853 = vadd.xlane.f32.xlu0 %v5852
  %v5854 = vpop.xlane.xlu0 %5853
  %v5855 = vmul.f32 %v5809, %v1457
  %v5856 = vmul.f32 %v5812, %v1457
  %v5857 = vmul.f32 %v5815, %v1457
  %v5858 = vmul.f32 %v5818, %v1457
  %v5859 = vmul.f32 %v5821, %v1457
  %v5860 = vmul.f32 %v5824, %v1457
  %v5861 = vmul.f32 %v5827, %v1457
  %v5862 = vmul.f32 %v5830, %v1457
  %v5863 = vmul.f32 %v5833, %v1457
  %v5864 = vmul.f32 %v5836, %v1457
  %v5865 = vmul.f32 %v5839, %v1457
  %v5866 = vmul.f32 %v5842, %v1457
  %v5867 = vmul.f32 %v5845, %v1457
  %v5868 = vmul.f32 %v5848, %v1457
  %v5869 = vmul.f32 %v5851, %v1457
  %v5870 = vmul.f32 %v5854, %v1457
  %v5871 = vadd.f32 %v5855, 1e-05
  %v5872 = vadd.f32 %v5856, 1e-05
  %v5873 = vadd.f32 %v5857, 1e-05
  %v5874 = vadd.f32 %v5858, 1e-05
  %v5875 = vadd.f32 %v5859, 1e-05
  %v5876 = vadd.f32 %v5860, 1e-05
  %v5877 = vadd.f32 %v5861, 1e-05
  %v5878 = vadd.f32 %v5862, 1e-05
  %v5879 = vadd.f32 %v5863, 1e-05
  %v5880 = vadd.f32 %v5864, 1e-05
  %v5881 = vadd.f32 %v5865, 1e-05
  %v5882 = vadd.f32 %v5866, 1e-05
  %v5883 = vadd.f32 %v5867, 1e-05
  %v5884 = vadd.f32 %v5868, 1e-05
  %v5885 = vadd.f32 %v5869, 1e-05
  %v5886 = vadd.f32 %v5870, 1e-05
  %v5887 = vrsqrt.pop %v5871
  %v5888 = vrsqrt.pop %v5872
  %v5889 = vrsqrt.pop %v5873
  %v5890 = vrsqrt.pop %v5874
  %v5891 = vrsqrt.pop %v5875
  %v5892 = vrsqrt.pop %v5876
  %v5893 = vrsqrt.pop %v5877
  %v5894 = vrsqrt.pop %v5878
  %v5895 = vrsqrt.pop %v5879
  %v5896 = vrsqrt.pop %v5880
  %v5897 = vrsqrt.pop %v5881
  %v5898 = vrsqrt.pop %v5882
  %v5899 = vrsqrt.pop %v5883
  %v5900 = vrsqrt.pop %v5884
  %v5901 = vrsqrt.pop %v5885
  %v5902 = vrsqrt.pop %v5886
  %v5903 = vmul.f32 %v5775, %v5887
  %v5904 = vmul.f32 %v5776, %v5888
  %v5905 = vmul.f32 %v5777, %v5889
  %v5906 = vmul.f32 %v5778, %v5890
  %v5907 = vmul.f32 %v5779, %v5891
  %v5908 = vmul.f32 %v5780, %v5892
  %v5909 = vmul.f32 %v5781, %v5893
  %v5910 = vmul.f32 %v5782, %v5894
  %v5911 = vmul.f32 %v5783, %v5895
  %v5912 = vmul.f32 %v5784, %v5896
  %v5913 = vmul.f32 %v5785, %v5897
  %v5914 = vmul.f32 %v5786, %v5898
  %v5915 = vmul.f32 %v5787, %v5899
  %v5916 = vmul.f32 %v5788, %v5900
  %v5917 = vmul.f32 %v5789, %v5901
  %v5918 = vmul.f32 %v5790, %v5902
  %v5919 = vlaneseq
  %v5920 = vshrl.u32 %v5919, 7
  %v5921 = vsub.s32 0, %v5920
  %v5922 = vrot.slane %v5709, %v5921
  %v5923 = vmul.f32 %v5903, %v5922
  %v5924 = vmul.f32 %v5904, %v5922
  %v5925 = vmul.f32 %v5905, %v5922
  %v5926 = vmul.f32 %v5906, %v5922
  %v5927 = vmul.f32 %v5907, %v5922
  %v5928 = vmul.f32 %v5908, %v5922
  %v5929 = vmul.f32 %v5909, %v5922
  %v5930 = vmul.f32 %v5910, %v5922
  %v5931 = vmul.f32 %v5911, %v5922
  %v5932 = vmul.f32 %v5912, %v5922
  %v5933 = vmul.f32 %v5913, %v5922
  %v5934 = vmul.f32 %v5914, %v5922
  %v5935 = vmul.f32 %v5915, %v5922
  %v5936 = vmul.f32 %v5916, %v5922
  %v5937 = vmul.f32 %v5917, %v5922
  %v5938 = vmul.f32 %v5918, %v5922
  %v5939 = vlaneseq
  %v5940 = vshrl.u32 %v5939, 7
  %v5941 = vsub.s32 0, %v5940
  %v5942 = vrot.slane %v5710, %v5941
  %v5943 = vadd.f32 %v5923, %v5942
  %v5944 = vadd.f32 %v5924, %v5942
  %v5945 = vadd.f32 %v5925, %v5942
  %v5946 = vadd.f32 %v5926, %v5942
  %v5947 = vadd.f32 %v5927, %v5942
  %v5948 = vadd.f32 %v5928, %v5942
  %v5949 = vadd.f32 %v5929, %v5942
  %v5950 = vadd.f32 %v5930, %v5942
  %v5951 = vadd.f32 %v5931, %v5942
  %v5952 = vadd.f32 %v5932, %v5942
  %v5953 = vadd.f32 %v5933, %v5942
  %v5954 = vadd.f32 %v5934, %v5942
  %v5955 = vadd.f32 %v5935, %v5942
  %v5956 = vadd.f32 %v5936, %v5942
  %v5957 = vadd.f32 %v5937, %v5942
  %v5958 = vadd.f32 %v5938, %v5942
  %v5959 = vld [vmem:[%s17 + $0x14] sm:$0x1]
  %v5960 = vrot.slane %v5943, 7
  %v5961 = vrot.slane %v5944, 7
  %v5962 = vrot.slane %v5945, 7
  %v5963 = vrot.slane %v5946, 7
  %v5964 = vrot.slane %v5947, 7
  %v5965 = vrot.slane %v5948, 7
  %v5966 = vrot.slane %v5949, 7
  %v5967 = vrot.slane %v5950, 7
  %v5968 = vrot.slane %v5951, 7
  %v5969 = vrot.slane %v5952, 7
  %v5970 = vrot.slane %v5953, 7
  %v5971 = vrot.slane %v5954, 7
  %v5972 = vrot.slane %v5955, 7
  %v5973 = vrot.slane %v5956, 7
  %v5974 = vrot.slane %v5957, 7
  %v5975 = vrot.slane %v5958, 7
  %v5976 = vsel %vm1571, %v5974, %v5975
  %v5977 = vsel %vm1571, %v5973, %v5974
  %v5978 = vsel %vm1571, %v5972, %v5973
  %v5979 = vsel %vm1571, %v5971, %v5972
  %v5980 = vsel %vm1571, %v5970, %v5971
  %v5981 = vsel %vm1571, %v5969, %v5970
  %v5982 = vsel %vm1571, %v5968, %v5969
  %v5983 = vsel %vm1571, %v5967, %v5968
  %v5984 = vsel %vm1571, %v5966, %v5967
  %v5985 = vsel %vm1571, %v5965, %v5966
  %v5986 = vsel %vm1571, %v5964, %v5965
  %v5987 = vsel %vm1571, %v5963, %v5964
  %v5988 = vsel %vm1571, %v5962, %v5963
  %v5989 = vsel %vm1571, %v5961, %v5962
  %v5990 = vsel %vm1571, %v5960, %v5961
  %v5991 = vsel %vm1571, %v5975, %v5960
  %v5992 = vmul.f32 %v5991, %v188
  %v5993 = vmul.f32 %v5990, %v189
  %v5994 = vmul.f32 %v5989, %v190
  %v5995 = vmul.f32 %v5988, %v191
  %v5996 = vmul.f32 %v5987, %v192
  %v5997 = vmul.f32 %v5986, %v193
  %v5998 = vmul.f32 %v5985, %v194
  %v5999 = vmul.f32 %v5984, %v195
  %v6000 = vmul.f32 %v5983, %v196
  %v6001 = vmul.f32 %v5982, %v197
  %v6002 = vmul.f32 %v5981, %v198
  %v6003 = vmul.f32 %v5980, %v199
  %v6004 = vmul.f32 %v5979, %v200
  %v6005 = vmul.f32 %v5978, %v201
  %v6006 = vmul.f32 %v5977, %v202
  %v6007 = vmul.f32 %v5976, %v203
  %v6008 = vrot.slane %v5943, 1
  %v6009 = vrot.slane %v5944, 1
  %v6010 = vrot.slane %v5945, 1
  %v6011 = vrot.slane %v5946, 1
  %v6012 = vrot.slane %v5947, 1
  %v6013 = vrot.slane %v5948, 1
  %v6014 = vrot.slane %v5949, 1
  %v6015 = vrot.slane %v5950, 1
  %v6016 = vrot.slane %v5951, 1
  %v6017 = vrot.slane %v5952, 1
  %v6018 = vrot.slane %v5953, 1
  %v6019 = vrot.slane %v5954, 1
  %v6020 = vrot.slane %v5955, 1
  %v6021 = vrot.slane %v5956, 1
  %v6022 = vrot.slane %v5957, 1
  %v6023 = vrot.slane %v5958, 1
  %v6024 = vsel %vm1596, %v6022, %v6023
  %v6025 = vsel %vm1596, %v6021, %v6022
  %v6026 = vsel %vm1596, %v6020, %v6021
  %v6027 = vsel %vm1596, %v6019, %v6020
  %v6028 = vsel %vm1596, %v6018, %v6019
  %v6029 = vsel %vm1596, %v6017, %v6018
  %v6030 = vsel %vm1596, %v6016, %v6017
  %v6031 = vsel %vm1596, %v6015, %v6016
  %v6032 = vsel %vm1596, %v6014, %v6015
  %v6033 = vsel %vm1596, %v6013, %v6014
  %v6034 = vsel %vm1596, %v6012, %v6013
  %v6035 = vsel %vm1596, %v6011, %v6012
  %v6036 = vsel %vm1596, %v6010, %v6011
  %v6037 = vsel %vm1596, %v6009, %v6010
  %v6038 = vsel %vm1596, %v6008, %v6009
  %v6039 = vsel %vm1596, %v6023, %v6008
  %v6040 = vmul.f32 %v6038, %v236
  %v6041 = vmul.f32 %v6037, %v237
  %v6042 = vmul.f32 %v6036, %v238
  %v6043 = vmul.f32 %v6035, %v239
  %v6044 = vmul.f32 %v6034, %v240
  %v6045 = vmul.f32 %v6033, %v241
  %v6046 = vmul.f32 %v6032, %v242
  %v6047 = vmul.f32 %v6031, %v243
  %v6048 = vmul.f32 %v6030, %v244
  %v6049 = vmul.f32 %v6029, %v245
  %v6050 = vmul.f32 %v6028, %v246
  %v6051 = vmul.f32 %v6027, %v247
  %v6052 = vmul.f32 %v6026, %v248
  %v6053 = vmul.f32 %v6025, %v249
  %v6054 = vmul.f32 %v6024, %v250
  %v6055 = vmul.f32 %v6039, %v251
  %6072 = vrot.lane.b32.xlu0 %v5943, 32
  %v6073 = vpop.permute.xlu0 %6072
  %6074 = vrot.lane.b32.xlu0 %v5944, 32
  %v6075 = vpop.permute.xlu0 %6074
  %6076 = vrot.lane.b32.xlu0 %v5945, 32
  %v6077 = vpop.permute.xlu0 %6076
  %6078 = vrot.lane.b32.xlu0 %v5946, 32
  %v6079 = vpop.permute.xlu0 %6078
  %6080 = vrot.lane.b32.xlu0 %v5947, 32
  %v6081 = vpop.permute.xlu0 %6080
  %6082 = vrot.lane.b32.xlu0 %v5948, 32
  %v6083 = vpop.permute.xlu0 %6082
  %6084 = vrot.lane.b32.xlu0 %v5949, 32
  %v6085 = vpop.permute.xlu0 %6084
  %6086 = vrot.lane.b32.xlu0 %v5950, 32
  %v6087 = vpop.permute.xlu0 %6086
  %6088 = vrot.lane.b32.xlu0 %v5951, 32
  %v6089 = vpop.permute.xlu0 %6088
  %6090 = vrot.lane.b32.xlu0 %v5952, 32
  %v6091 = vpop.permute.xlu0 %6090
  %6092 = vrot.lane.b32.xlu0 %v5953, 32
  %v6093 = vpop.permute.xlu0 %6092
  %6094 = vrot.lane.b32.xlu0 %v5954, 32
  %v6095 = vpop.permute.xlu0 %6094
  %6096 = vrot.lane.b32.xlu0 %v5955, 32
  %v6097 = vpop.permute.xlu0 %6096
  %6098 = vrot.lane.b32.xlu0 %v5956, 32
  %v6099 = vpop.permute.xlu0 %6098
  %6100 = vrot.lane.b32.xlu0 %v5957, 32
  %v6101 = vpop.permute.xlu0 %6100
  %6102 = vrot.lane.b32.xlu0 %v5958, 32
  %v6103 = vpop.permute.xlu0 %6102
  %6136 = vrot.lane.b32.xlu0 %v6040, 64
  %v6137 = vpop.permute.xlu0 %6136
  %6138 = vrot.lane.b32.xlu0 %v6041, 64
  %v6139 = vpop.permute.xlu0 %6138
  %6140 = vrot.lane.b32.xlu0 %v6042, 64
  %v6141 = vpop.permute.xlu0 %6140
  %6142 = vrot.lane.b32.xlu0 %v6043, 64
  %v6143 = vpop.permute.xlu0 %6142
  %6144 = vrot.lane.b32.xlu0 %v6044, 64
  %v6145 = vpop.permute.xlu0 %6144
  %6146 = vrot.lane.b32.xlu0 %v6045, 64
  %v6147 = vpop.permute.xlu0 %6146
  %6148 = vrot.lane.b32.xlu0 %v6046, 64
  %v6149 = vpop.permute.xlu0 %6148
  %6150 = vrot.lane.b32.xlu0 %v6047, 64
  %v6151 = vpop.permute.xlu0 %6150
  %6152 = vrot.lane.b32.xlu0 %v6048, 64
  %v6153 = vpop.permute.xlu0 %6152
  %6154 = vrot.lane.b32.xlu0 %v6049, 64
  %v6155 = vpop.permute.xlu0 %6154
  %6156 = vrot.lane.b32.xlu0 %v6050, 64
  %v6157 = vpop.permute.xlu0 %6156
  %6158 = vrot.lane.b32.xlu0 %v6051, 64
  %v6159 = vpop.permute.xlu0 %6158
  %6160 = vrot.lane.b32.xlu0 %v6052, 64
  %v6161 = vpop.permute.xlu0 %6160
  %6162 = vrot.lane.b32.xlu0 %v6053, 64
  %v6163 = vpop.permute.xlu0 %6162
  %6164 = vrot.lane.b32.xlu0 %v6054, 64
  %v6165 = vpop.permute.xlu0 %6164
  %6166 = vrot.lane.b32.xlu0 %v6055, 64
  %v6167 = vpop.permute.xlu0 %6166
  %v6184 = vsel %vm270, %v5992, %v6073
  %v6185 = vsel %vm270, %v5993, %v6075
  %v6186 = vsel %vm270, %v5994, %v6077
  %v6187 = vsel %vm270, %v5995, %v6079
  %v6188 = vsel %vm270, %v5996, %v6081
  %v6189 = vsel %vm270, %v5997, %v6083
  %v6190 = vsel %vm270, %v5998, %v6085
  %v6191 = vsel %vm270, %v5999, %v6087
  %v6192 = vsel %vm270, %v6000, %v6089
  %v6193 = vsel %vm270, %v6001, %v6091
  %v6194 = vsel %vm270, %v6002, %v6093
  %v6195 = vsel %vm270, %v6003, %v6095
  %v6196 = vsel %vm270, %v6004, %v6097
  %v6197 = vsel %vm270, %v6005, %v6099
  %v6198 = vsel %vm270, %v6006, %v6101
  %v6199 = vsel %vm270, %v6007, %v6103
  %v6200 = vsel %vm578, %v6184, %v6137
  %v6201 = vsel %vm578, %v6185, %v6139
  %v6202 = vsel %vm578, %v6186, %v6141
  %v6203 = vsel %vm578, %v6187, %v6143
  %v6204 = vsel %vm578, %v6188, %v6145
  %v6205 = vsel %vm578, %v6189, %v6147
  %v6206 = vsel %vm578, %v6190, %v6149
  %v6207 = vsel %vm578, %v6191, %v6151
  %v6208 = vsel %vm578, %v6192, %v6153
  %v6209 = vsel %vm578, %v6193, %v6155
  %v6210 = vsel %vm578, %v6194, %v6157
  %v6211 = vsel %vm578, %v6195, %v6159
  %v6212 = vsel %vm578, %v6196, %v6161
  %v6213 = vsel %vm578, %v6197, %v6163
  %v6214 = vsel %vm578, %v6198, %v6165
  %v6215 = vsel %vm578, %v6199, %v6167
  %v6216 = vld [vmem:[%s14] sm:$0xff]
  %v6217 = vld [vmem:[%s14 + $0x8] sm:$0xff]
  %v6218 = vld [vmem:[%s14 + $0x10] sm:$0xff]
  %v6219 = vld [vmem:[%s14 + $0x18] sm:$0xff]
  %v6220 = vld [vmem:[%s14 + $0x20] sm:$0xff]
  %v6221 = vld [vmem:[%s14 + $0x28] sm:$0xff]
  %v6222 = vld [vmem:[%s14 + $0x30] sm:$0xff]
  %v6223 = vld [vmem:[%s14 + $0x38] sm:$0xff]
  %v6224 = vld [vmem:[%s14 + $0x40] sm:$0xff]
  %v6225 = vld [vmem:[%s14 + $0x48] sm:$0xff]
  %v6226 = vld [vmem:[%s14 + $0x50] sm:$0xff]
  %v6227 = vld [vmem:[%s14 + $0x58] sm:$0xff]
  %v6228 = vlaneseq
  %v6229 = vshrl.u32 %v6228, 7
  %v6230 = vsub.s32 0, %v6229
  %v6231 = vrot.slane %v5959, %v6230
  %v6233 = vsel %vm1709, %v6200, 0
  %v6236 = vsel %vm1709, %v6201, 0
  %v6239 = vsel %vm1709, %v6202, 0
  %v6242 = vsel %vm1709, %v6203, 0
  %v6245 = vsel %vm1709, %v6204, 0
  %v6248 = vsel %vm1709, %v6205, 0
  %v6251 = vsel %vm1709, %v6206, 0
  %v6254 = vsel %vm1709, %v6207, 0
  %v6257 = vsel %vm1709, %v6208, 0
  %v6260 = vsel %vm1709, %v6209, 0
  %v6263 = vsel %vm1709, %v6210, 0
  %v6266 = vsel %vm1709, %v6211, 0
  %v6269 = vsel %vm1709, %v6212, 0
  %v6272 = vsel %vm1709, %v6213, 0
  %v6275 = vsel %vm1709, %v6214, 0
  %v6278 = vsel %vm1709, %v6215, 0
  %6280 = vmatprep.subr.mxu0 0.0
  %6281 = vmatpush1.msra.mxu0 %v6216
  %6282 = vmatprep.subr.mxu0 0.0
  %6283 = vmatpush1.msra.mxu0 %v6217
  %6284 = vmatprep.subr.mxu0 0.0
  %6285 = vmatpush1.msra.mxu0 %v6218
  %6286 = vmatprep.subr.mxu0 0.0
  %6287 = vmatpush1.msra.mxu0 %v6219
  %6288 = vmatprep.subr.mxu0 0.0
  %6289 = vmatpush1.msra.mxu0 %v6220
  %6290 = vmatprep.subr.mxu0 0.0
  %6291 = vmatpush1.msra.mxu0 %v6221
  %6292 = vmatprep.subr.mxu0 0.0
  %6293 = vmatpush1.msra.mxu0 %v6222
  %6294 = vmatprep.subr.mxu0 0.0
  %6295 = vmatpush1.msra.mxu0 %v6223
  %6296 = vmatprep.subr.mxu0 0.0
  %6297 = vmatpush1.msra.mxu0 %v6224
  %6298 = vmatprep.subr.mxu0 0.0
  %6299 = vmatpush1.msra.mxu0 %v6225
  %6300 = vmatprep.subr.mxu0 0.0
  %6301 = vmatpush1.msra.mxu0 %v6226
  %6302 = vmatprep.subr.mxu0 0.0
  %6303 = vmatpush1.msra.mxu0 %v6227
  %6304 = vmatprep.subr.mxu0 0.0
  %6305 = vmatpush1.msra.mxu0 0.0
  %6306 = vmatprep.subr.mxu0 0.0
  %6307 = vmatpush1.msra.mxu0 0.0
  %6308 = vmatprep.subr.mxu0 0.0
  %6309 = vmatpush1.msra.mxu0 0.0
  %6310 = vmatprep.subr.mxu0 0.0
  %6311 = vmatpush1.msra.mxu0 0.0
  %6312 = vmatprep.subr.mxu0 0.0
  %6313 = vmatpush1.msra.mxu0 0.0
  %6314 = vmatprep.subr.mxu0 0.0
  %6315 = vmatpush1.msra.mxu0 0.0
  %6316 = vmatprep.subr.mxu0 0.0
  %6317 = vmatpush1.msra.mxu0 0.0
  %6318 = vmatprep.subr.mxu0 0.0
  %6319 = vmatpush1.msra.mxu0 0.0
  %6320 = vmatprep.subr.mxu0 0.0
  %6321 = vmatpush1.msra.mxu0 0.0
  %6322 = vmatprep.subr.mxu0 0.0
  %6323 = vmatpush1.msra.mxu0 0.0
  %6324 = vmatprep.subr.mxu0 0.0
  %6325 = vmatpush1.msra.mxu0 0.0
  %6326 = vmatprep.subr.mxu0 0.0
  %6327 = vmatpush1.msra.mxu0 0.0
  %6328 = vmatprep.subr.mxu0 0.0
  %6329 = vmatpush1.msra.mxu0 0.0
  %6330 = vmatprep.subr.mxu0 0.0
  %6331 = vmatpush1.msra.mxu0 0.0
  %6332 = vmatprep.subr.mxu0 0.0
  %6333 = vmatpush1.msra.mxu0 0.0
  %6334 = vmatprep.subr.mxu0 0.0
  %6335 = vmatpush1.msra.mxu0 0.0
  %6336 = vmatprep.subr.mxu0 0.0
  %6337 = vmatpush1.msra.mxu0 0.0
  %6338 = vmatprep.subr.mxu0 0.0
  %6339 = vmatpush1.msra.mxu0 0.0
  %6340 = vmatprep.subr.mxu0 0.0
  %6341 = vmatpush1.msra.mxu0 0.0
  %6342 = vmatprep.subr.mxu0 0.0
  %6343 = vmatpush1.msra.mxu0 0.0
  %6344 = vmatprep.mubr.f32.mxu0 0.0
  %6345 = vmatmul.mubr.f32.gmra.mrb[0].mxu0 %v6233
  %v6346 = vpop.f32.mrb[0].mxu0
  %v6347 = vadd.f32 %v6231, %v6346
  %v6348 = vpop.f32.mrb[0].mxu0
  %6349 = vmatprep.mubr.f32.mxu0 0.0
  %6350 = vmatmul.mubr.f32.gmra.mrb[0].mxu0 %v6236
  %v6351 = vpop.f32.mrb[0].mxu0
  %v6352 = vadd.f32 %v6231, %v6351
  %v6353 = vpop.f32.mrb[0].mxu0
  %6354 = vmatprep.mubr.f32.mxu0 0.0
  %6355 = vmatmul.mubr.f32.gmra.mrb[0].mxu0 %v6239
  %v6356 = vpop.f32.mrb[0].mxu0
  %v6357 = vadd.f32 %v6231, %v6356
  %v6358 = vpop.f32.mrb[0].mxu0
  %6359 = vmatprep.mubr.f32.mxu0 0.0
  %6360 = vmatmul.mubr.f32.gmra.mrb[0].mxu0 %v6242
  %v6361 = vpop.f32.mrb[0].mxu0
  %v6362 = vadd.f32 %v6231, %v6361
  %v6363 = vpop.f32.mrb[0].mxu0
  %6364 = vmatprep.mubr.f32.mxu0 0.0
  %6365 = vmatmul.mubr.f32.gmra.mrb[0].mxu0 %v6245
  %v6366 = vpop.f32.mrb[0].mxu0
  %v6367 = vadd.f32 %v6231, %v6366
  %v6368 = vpop.f32.mrb[0].mxu0
  %6369 = vmatprep.mubr.f32.mxu0 0.0
  %6370 = vmatmul.mubr.f32.gmra.mrb[0].mxu0 %v6248
  %v6371 = vpop.f32.mrb[0].mxu0
  %v6372 = vadd.f32 %v6231, %v6371
  %v6373 = vpop.f32.mrb[0].mxu0
  %6374 = vmatprep.mubr.f32.mxu0 0.0
  %6375 = vmatmul.mubr.f32.gmra.mrb[0].mxu0 %v6251
  %v6376 = vpop.f32.mrb[0].mxu0
  %v6377 = vadd.f32 %v6231, %v6376
  %v6378 = vpop.f32.mrb[0].mxu0
  %6379 = vmatprep.mubr.f32.mxu0 0.0
  %6380 = vmatmul.mubr.f32.gmra.mrb[0].mxu0 %v6254
  %v6381 = vpop.f32.mrb[0].mxu0
  %v6382 = vadd.f32 %v6231, %v6381
  %v6383 = vpop.f32.mrb[0].mxu0
  %6384 = vmatprep.mubr.f32.mxu0 0.0
  %6385 = vmatmul.mubr.f32.gmra.mrb[0].mxu0 %v6257
  %v6386 = vpop.f32.mrb[0].mxu0
  %v6387 = vadd.f32 %v6231, %v6386
  %v6388 = vpop.f32.mrb[0].mxu0
  %6389 = vmatprep.mubr.f32.mxu0 0.0
  %6390 = vmatmul.mubr.f32.gmra.mrb[0].mxu0 %v6260
  %v6391 = vpop.f32.mrb[0].mxu0
  %v6392 = vadd.f32 %v6231, %v6391
  %v6393 = vpop.f32.mrb[0].mxu0
  %6394 = vmatprep.mubr.f32.mxu0 0.0
  %6395 = vmatmul.mubr.f32.gmra.mrb[0].mxu0 %v6263
  %v6396 = vpop.f32.mrb[0].mxu0
  %v6397 = vadd.f32 %v6231, %v6396
  %v6398 = vpop.f32.mrb[0].mxu0
  %6399 = vmatprep.mubr.f32.mxu0 0.0
  %6400 = vmatmul.mubr.f32.gmra.mrb[0].mxu0 %v6266
  %v6401 = vpop.f32.mrb[0].mxu0
  %v6402 = vadd.f32 %v6231, %v6401
  %v6403 = vpop.f32.mrb[0].mxu0
  %6404 = vmatprep.mubr.f32.mxu0 0.0
  %6405 = vmatmul.mubr.f32.gmra.mrb[0].mxu0 %v6269
  %v6406 = vpop.f32.mrb[0].mxu0
  %v6407 = vadd.f32 %v6231, %v6406
  %v6408 = vpop.f32.mrb[0].mxu0
  %6409 = vmatprep.mubr.f32.mxu0 0.0
  %6410 = vmatmul.mubr.f32.gmra.mrb[0].mxu0 %v6272
  %v6411 = vpop.f32.mrb[0].mxu0
  %v6412 = vadd.f32 %v6231, %v6411
  %v6413 = vpop.f32.mrb[0].mxu0
  %6414 = vmatprep.mubr.f32.mxu0 0.0
  %6415 = vmatmul.mubr.f32.gmra.mrb[0].mxu0 %v6275
  %v6416 = vpop.f32.mrb[0].mxu0
  %v6417 = vadd.f32 %v6231, %v6416
  %v6418 = vpop.f32.mrb[0].mxu0
  %6419 = vmatprep.mubr.f32.mxu0 0.0
  %6420 = vmatmul.mubr.f32.gmra.mrb[0].mxu0 %v6278
  %v6421 = vpop.f32.mrb[0].mxu0
  %v6422 = vadd.f32 %v6231, %v6421
  %v6423 = vpop.f32.mrb[0].mxu0
  %6424 = vdwg.mxu0
  %v6425 = vmax.f32 %v6347, 0.0
  %v6426 = vmax.f32 %v6352, 0.0
  %v6427 = vmax.f32 %v6357, 0.0
  %v6428 = vmax.f32 %v6362, 0.0
  %v6429 = vmax.f32 %v6367, 0.0
  %v6430 = vmax.f32 %v6372, 0.0
  %v6431 = vmax.f32 %v6377, 0.0
  %v6432 = vmax.f32 %v6382, 0.0
  %v6433 = vmax.f32 %v6387, 0.0
  %v6434 = vmax.f32 %v6392, 0.0
  %v6435 = vmax.f32 %v6397, 0.0
  %v6436 = vmax.f32 %v6402, 0.0
  %v6437 = vmax.f32 %v6407, 0.0
  %v6438 = vmax.f32 %v6412, 0.0
  %v6439 = vmax.f32 %v6417, 0.0
  %v6440 = vmax.f32 %v6422, 0.0
  %v6441 = vld [vmem:[%s17 + $0x15] sm:$0x1]
  %v6442 = vrot.slane %v6425, 7
  %v6443 = vrot.slane %v6426, 7
  %v6444 = vrot.slane %v6427, 7
  %v6445 = vrot.slane %v6428, 7
  %v6446 = vrot.slane %v6429, 7
  %v6447 = vrot.slane %v6430, 7
  %v6448 = vrot.slane %v6431, 7
  %v6449 = vrot.slane %v6432, 7
  %v6450 = vrot.slane %v6433, 7
  %v6451 = vrot.slane %v6434, 7
  %v6452 = vrot.slane %v6435, 7
  %v6453 = vrot.slane %v6436, 7
  %v6454 = vrot.slane %v6437, 7
  %v6455 = vrot.slane %v6438, 7
  %v6456 = vrot.slane %v6439, 7
  %v6457 = vrot.slane %v6440, 7
  %v6458 = vsel %vm1571, %v6456, %v6457
  %v6459 = vsel %vm1571, %v6455, %v6456
  %v6460 = vsel %vm1571, %v6454, %v6455
  %v6461 = vsel %vm1571, %v6453, %v6454
  %v6462 = vsel %vm1571, %v6452, %v6453
  %v6463 = vsel %vm1571, %v6451, %v6452
  %v6464 = vsel %vm1571, %v6450, %v6451
  %v6465 = vsel %vm1571, %v6449, %v6450
  %v6466 = vsel %vm1571, %v6448, %v6449
  %v6467 = vsel %vm1571, %v6447, %v6448
  %v6468 = vsel %vm1571, %v6446, %v6447
  %v6469 = vsel %vm1571, %v6445, %v6446
  %v6470 = vsel %vm1571, %v6444, %v6445
  %v6471 = vsel %vm1571, %v6443, %v6444
  %v6472 = vsel %vm1571, %v6442, %v6443
  %v6473 = vsel %vm1571, %v6457, %v6442
  %v6474 = vmul.f32 %v6473, %v188
  %v6475 = vmul.f32 %v6472, %v189
  %v6476 = vmul.f32 %v6471, %v190
  %v6477 = vmul.f32 %v6470, %v191
  %v6478 = vmul.f32 %v6469, %v192
  %v6479 = vmul.f32 %v6468, %v193
  %v6480 = vmul.f32 %v6467, %v194
  %v6481 = vmul.f32 %v6466, %v195
  %v6482 = vmul.f32 %v6465, %v196
  %v6483 = vmul.f32 %v6464, %v197
  %v6484 = vmul.f32 %v6463, %v198
  %v6485 = vmul.f32 %v6462, %v199
  %v6486 = vmul.f32 %v6461, %v200
  %v6487 = vmul.f32 %v6460, %v201
  %v6488 = vmul.f32 %v6459, %v202
  %v6489 = vmul.f32 %v6458, %v203
  %v6490 = vrot.slane %v6425, 1
  %v6491 = vrot.slane %v6426, 1
  %v6492 = vrot.slane %v6427, 1
  %v6493 = vrot.slane %v6428, 1
  %v6494 = vrot.slane %v6429, 1
  %v6495 = vrot.slane %v6430, 1
  %v6496 = vrot.slane %v6431, 1
  %v6497 = vrot.slane %v6432, 1
  %v6498 = vrot.slane %v6433, 1
  %v6499 = vrot.slane %v6434, 1
  %v6500 = vrot.slane %v6435, 1
  %v6501 = vrot.slane %v6436, 1
  %v6502 = vrot.slane %v6437, 1
  %v6503 = vrot.slane %v6438, 1
  %v6504 = vrot.slane %v6439, 1
  %v6505 = vrot.slane %v6440, 1
  %v6506 = vsel %vm1596, %v6504, %v6505
  %v6507 = vsel %vm1596, %v6503, %v6504
  %v6508 = vsel %vm1596, %v6502, %v6503
  %v6509 = vsel %vm1596, %v6501, %v6502
  %v6510 = vsel %vm1596, %v6500, %v6501
  %v6511 = vsel %vm1596, %v6499, %v6500
  %v6512 = vsel %vm1596, %v6498, %v6499
  %v6513 = vsel %vm1596, %v6497, %v6498
  %v6514 = vsel %vm1596, %v6496, %v6497
  %v6515 = vsel %vm1596, %v6495, %v6496
  %v6516 = vsel %vm1596, %v6494, %v6495
  %v6517 = vsel %vm1596, %v6493, %v6494
  %v6518 = vsel %vm1596, %v6492, %v6493
  %v6519 = vsel %vm1596, %v6491, %v6492
  %v6520 = vsel %vm1596, %v6490, %v6491
  %v6521 = vsel %vm1596, %v6505, %v6490
  %v6522 = vmul.f32 %v6520, %v236
  %v6523 = vmul.f32 %v6519, %v237
  %v6524 = vmul.f32 %v6518, %v238
  %v6525 = vmul.f32 %v6517, %v239
  %v6526 = vmul.f32 %v6516, %v240
  %v6527 = vmul.f32 %v6515, %v241
  %v6528 = vmul.f32 %v6514, %v242
  %v6529 = vmul.f32 %v6513, %v243
  %v6530 = vmul.f32 %v6512, %v244
  %v6531 = vmul.f32 %v6511, %v245
  %v6532 = vmul.f32 %v6510, %v246
  %v6533 = vmul.f32 %v6509, %v247
  %v6534 = vmul.f32 %v6508, %v248
  %v6535 = vmul.f32 %v6507, %v249
  %v6536 = vmul.f32 %v6506, %v250
  %v6537 = vmul.f32 %v6521, %v251
  %6554 = vrot.lane.b32.xlu0 %v6425, 64
  %v6555 = vpop.permute.xlu0 %6554
  %6556 = vrot.lane.b32.xlu0 %v6426, 64
  %v6557 = vpop.permute.xlu0 %6556
  %6558 = vrot.lane.b32.xlu0 %v6427, 64
  %v6559 = vpop.permute.xlu0 %6558
  %6560 = vrot.lane.b32.xlu0 %v6428, 64
  %v6561 = vpop.permute.xlu0 %6560
  %6562 = vrot.lane.b32.xlu0 %v6429, 64
  %v6563 = vpop.permute.xlu0 %6562
  %6564 = vrot.lane.b32.xlu0 %v6430, 64
  %v6565 = vpop.permute.xlu0 %6564
  %6566 = vrot.lane.b32.xlu0 %v6431, 64
  %v6567 = vpop.permute.xlu0 %6566
  %6568 = vrot.lane.b32.xlu0 %v6432, 64
  %v6569 = vpop.permute.xlu0 %6568
  %6570 = vrot.lane.b32.xlu0 %v6433, 64
  %v6571 = vpop.permute.xlu0 %6570
  %6572 = vrot.lane.b32.xlu0 %v6434, 64
  %v6573 = vpop.permute.xlu0 %6572
  %6574 = vrot.lane.b32.xlu0 %v6435, 64
  %v6575 = vpop.permute.xlu0 %6574
  %6576 = vrot.lane.b32.xlu0 %v6436, 64
  %v6577 = vpop.permute.xlu0 %6576
  %6578 = vrot.lane.b32.xlu0 %v6437, 64
  %v6579 = vpop.permute.xlu0 %6578
  %6580 = vrot.lane.b32.xlu0 %v6438, 64
  %v6581 = vpop.permute.xlu0 %6580
  %6582 = vrot.lane.b32.xlu0 %v6439, 64
  %v6583 = vpop.permute.xlu0 %6582
  %6584 = vrot.lane.b32.xlu0 %v6440, 64
  %v6585 = vpop.permute.xlu0 %6584
  %v6602 = vsel %vm578, %v6474, %v6555
  %v6603 = vsel %vm578, %v6475, %v6557
  %v6604 = vsel %vm578, %v6476, %v6559
  %v6605 = vsel %vm578, %v6477, %v6561
  %v6606 = vsel %vm578, %v6478, %v6563
  %v6607 = vsel %vm578, %v6479, %v6565
  %v6608 = vsel %vm578, %v6480, %v6567
  %v6609 = vsel %vm578, %v6481, %v6569
  %v6610 = vsel %vm578, %v6482, %v6571
  %v6611 = vsel %vm578, %v6483, %v6573
  %v6612 = vsel %vm578, %v6484, %v6575
  %v6613 = vsel %vm578, %v6485, %v6577
  %v6614 = vsel %vm578, %v6486, %v6579
  %v6615 = vsel %vm578, %v6487, %v6581
  %v6616 = vsel %vm578, %v6488, %v6583
  %v6617 = vsel %vm578, %v6489, %v6585
  %v6618 = vld [vmem:[%s15] sm:$0xff]
  %v6619 = vld [vmem:[%s15 + $0x8] sm:$0xff]
  %v6620 = vld [vmem:[%s15 + $0x10] sm:$0xff]
  %v6621 = vld [vmem:[%s15 + $0x18] sm:$0xff]
  %v6622 = vld [vmem:[%s15 + $0x20] sm:$0xff]
  %v6623 = vld [vmem:[%s15 + $0x28] sm:$0xff]
  %v6624 = vld [vmem:[%s15 + $0x30] sm:$0xff]
  %v6625 = vld [vmem:[%s15 + $0x38] sm:$0xff]
  %v6626 = vld [vmem:[%s15 + $0x40] sm:$0xff]
  %v6627 = vld [vmem:[%s15 + $0x48] sm:$0xff]
  %v6628 = vld [vmem:[%s15 + $0x50] sm:$0xff]
  %v6629 = vld [vmem:[%s15 + $0x58] sm:$0xff]
  %v6630 = vld [vmem:[%s15 + $0x60] sm:$0xff]
  %v6631 = vld [vmem:[%s15 + $0x68] sm:$0xff]
  %v6632 = vld [vmem:[%s15 + $0x70] sm:$0xff]
  %v6633 = vld [vmem:[%s15 + $0x78] sm:$0xff]
  %v6634 = vld [vmem:[%s15 + $0x80] sm:$0xff]
  %v6635 = vld [vmem:[%s15 + $0x88] sm:$0xff]
  %v6636 = vld [vmem:[%s15 + $0x90] sm:$0xff]
  %v6637 = vld [vmem:[%s15 + $0x98] sm:$0xff]
  %v6638 = vld [vmem:[%s15 + $0xa0] sm:$0xff]
  %v6639 = vld [vmem:[%s15 + $0xa8] sm:$0xff]
  %v6640 = vld [vmem:[%s15 + $0xb0] sm:$0xff]
  %v6641 = vld [vmem:[%s15 + $0xb8] sm:$0xff]
  %v6642 = vlaneseq
  %v6643 = vshrl.u32 %v6642, 7
  %v6644 = vsub.s32 0, %v6643
  %v6645 = vrot.slane %v6441, %v6644
  %v6647 = vsel %vm578, %v6522, 0
  %v6650 = vsel %vm578, %v6523, 0
  %v6653 = vsel %vm578, %v6524, 0
  %v6656 = vsel %vm578, %v6525, 0
  %v6659 = vsel %vm578, %v6526, 0
  %v6662 = vsel %vm578, %v6527, 0
  %v6665 = vsel %vm578, %v6528, 0
  %v6668 = vsel %vm578, %v6529, 0
  %v6671 = vsel %vm578, %v6530, 0
  %v6674 = vsel %vm578, %v6531, 0
  %v6677 = vsel %vm578, %v6532, 0
  %v6680 = vsel %vm578, %v6533, 0
  %v6683 = vsel %vm578, %v6534, 0
  %v6686 = vsel %vm578, %v6535, 0
  %v6689 = vsel %vm578, %v6536, 0
  %v6692 = vsel %vm578, %v6537, 0
  %6694 = vmatprep.subr.mxu0 0.0
  %6695 = vmatpush1.msra.mxu0 %v6618
  %6696 = vmatprep.subr.mxu0 0.0
  %6697 = vmatpush1.msra.mxu0 %v6619
  %6698 = vmatprep.subr.mxu0 0.0
  %6699 = vmatpush1.msra.mxu0 %v6620
  %6700 = vmatprep.subr.mxu0 0.0
  %6701 = vmatpush1.msra.mxu0 %v6621
  %6702 = vmatprep.subr.mxu0 0.0
  %6703 = vmatpush1.msra.mxu0 %v6622
  %6704 = vmatprep.subr.mxu0 0.0
  %6705 = vmatpush1.msra.mxu0 %v6623
  %6706 = vmatprep.subr.mxu0 0.0
  %6707 = vmatpush1.msra.mxu0 %v6624
  %6708 = vmatprep.subr.mxu0 0.0
  %6709 = vmatpush1.msra.mxu0 %v6625
  %6710 = vmatprep.subr.mxu0 0.0
  %6711 = vmatpush1.msra.mxu0 %v6626
  %6712 = vmatprep.subr.mxu0 0.0
  %6713 = vmatpush1.msra.mxu0 %v6627
  %6714 = vmatprep.subr.mxu0 0.0
  %6715 = vmatpush1.msra.mxu0 %v6628
  %6716 = vmatprep.subr.mxu0 0.0
  %6717 = vmatpush1.msra.mxu0 %v6629
  %6718 = vmatprep.subr.mxu0 0.0
  %6719 = vmatpush1.msra.mxu0 %v6630
  %6720 = vmatprep.subr.mxu0 0.0
  %6721 = vmatpush1.msra.mxu0 %v6631
  %6722 = vmatprep.subr.mxu0 0.0
  %6723 = vmatpush1.msra.mxu0 %v6632
  %6724 = vmatprep.subr.mxu0 0.0
  %6725 = vmatpush1.msra.mxu0 %v6633
  %6726 = vmatprep.subr.mxu0 0.0
  %6727 = vmatpush1.msra.mxu0 %v6634
  %6728 = vmatprep.subr.mxu0 0.0
  %6729 = vmatpush1.msra.mxu0 %v6635
  %6730 = vmatprep.subr.mxu0 0.0
  %6731 = vmatpush1.msra.mxu0 %v6636
  %6732 = vmatprep.subr.mxu0 0.0
  %6733 = vmatpush1.msra.mxu0 %v6637
  %6734 = vmatprep.subr.mxu0 0.0
  %6735 = vmatpush1.msra.mxu0 %v6638
  %6736 = vmatprep.subr.mxu0 0.0
  %6737 = vmatpush1.msra.mxu0 %v6639
  %6738 = vmatprep.subr.mxu0 0.0
  %6739 = vmatpush1.msra.mxu0 %v6640
  %6740 = vmatprep.subr.mxu0 0.0
  %6741 = vmatpush1.msra.mxu0 %v6641
  %6742 = vmatprep.subr.mxu0 0.0
  %6743 = vmatpush1.msra.mxu0 0.0
  %6744 = vmatprep.subr.mxu0 0.0
  %6745 = vmatpush1.msra.mxu0 0.0
  %6746 = vmatprep.subr.mxu0 0.0
  %6747 = vmatpush1.msra.mxu0 0.0
  %6748 = vmatprep.subr.mxu0 0.0
  %6749 = vmatpush1.msra.mxu0 0.0
  %6750 = vmatprep.subr.mxu0 0.0
  %6751 = vmatpush1.msra.mxu0 0.0
  %6752 = vmatprep.subr.mxu0 0.0
  %6753 = vmatpush1.msra.mxu0 0.0
  %6754 = vmatprep.subr.mxu0 0.0
  %6755 = vmatpush1.msra.mxu0 0.0
  %6756 = vmatprep.subr.mxu0 0.0
  %6757 = vmatpush1.msra.mxu0 0.0
  %6758 = vmatprep.mubr.f32.mxu0 %v6647
  %6759 = vmatmul.mubr.f32.gmra.mrb[0].mxu0 %v6602
  %v6760 = vpop.f32.mrb[0].mxu0
  %v6761 = vadd.f32 %v6645, %v6760
  %v6762 = vpop.f32.mrb[0].mxu0
  %6763 = vmatprep.mubr.f32.mxu0 %v6650
  %6764 = vmatmul.mubr.f32.gmra.mrb[0].mxu0 %v6603
  %v6765 = vpop.f32.mrb[0].mxu0
  %v6766 = vadd.f32 %v6645, %v6765
  %v6767 = vpop.f32.mrb[0].mxu0
  %6768 = vmatprep.mubr.f32.mxu0 %v6653
  %6769 = vmatmul.mubr.f32.gmra.mrb[0].mxu0 %v6604
  %v6770 = vpop.f32.mrb[0].mxu0
  %v6771 = vadd.f32 %v6645, %v6770
  %v6772 = vpop.f32.mrb[0].mxu0
  %6773 = vmatprep.mubr.f32.mxu0 %v6656
  %6774 = vmatmul.mubr.f32.gmra.mrb[0].mxu0 %v6605
  %v6775 = vpop.f32.mrb[0].mxu0
  %v6776 = vadd.f32 %v6645, %v6775
  %v6777 = vpop.f32.mrb[0].mxu0
  %6778 = vmatprep.mubr.f32.mxu0 %v6659
  %6779 = vmatmul.mubr.f32.gmra.mrb[0].mxu0 %v6606
  %v6780 = vpop.f32.mrb[0].mxu0
  %v6781 = vadd.f32 %v6645, %v6780
  %v6782 = vpop.f32.mrb[0].mxu0
  %6783 = vmatprep.mubr.f32.mxu0 %v6662
  %6784 = vmatmul.mubr.f32.gmra.mrb[0].mxu0 %v6607
  %v6785 = vpop.f32.mrb[0].mxu0
  %v6786 = vadd.f32 %v6645, %v6785
  %v6787 = vpop.f32.mrb[0].mxu0
  %6788 = vmatprep.mubr.f32.mxu0 %v6665
  %6789 = vmatmul.mubr.f32.gmra.mrb[0].mxu0 %v6608
  %v6790 = vpop.f32.mrb[0].mxu0
  %v6791 = vadd.f32 %v6645, %v6790
  %v6792 = vpop.f32.mrb[0].mxu0
  %6793 = vmatprep.mubr.f32.mxu0 %v6668
  %6794 = vmatmul.mubr.f32.gmra.mrb[0].mxu0 %v6609
  %v6795 = vpop.f32.mrb[0].mxu0
  %v6796 = vadd.f32 %v6645, %v6795
  %v6797 = vpop.f32.mrb[0].mxu0
  %6798 = vmatprep.mubr.f32.mxu0 %v6671
  %6799 = vmatmul.mubr.f32.gmra.mrb[0].mxu0 %v6610
  %v6800 = vpop.f32.mrb[0].mxu0
  %v6801 = vadd.f32 %v6645, %v6800
  %v6802 = vpop.f32.mrb[0].mxu0
  %6803 = vmatprep.mubr.f32.mxu0 %v6674
  %6804 = vmatmul.mubr.f32.gmra.mrb[0].mxu0 %v6611
  %v6805 = vpop.f32.mrb[0].mxu0
  %v6806 = vadd.f32 %v6645, %v6805
  %v6807 = vpop.f32.mrb[0].mxu0
  %6808 = vmatprep.mubr.f32.mxu0 %v6677
  %6809 = vmatmul.mubr.f32.gmra.mrb[0].mxu0 %v6612
  %v6810 = vpop.f32.mrb[0].mxu0
  %v6811 = vadd.f32 %v6645, %v6810
  %v6812 = vpop.f32.mrb[0].mxu0
  %6813 = vmatprep.mubr.f32.mxu0 %v6680
  %6814 = vmatmul.mubr.f32.gmra.mrb[0].mxu0 %v6613
  %v6815 = vpop.f32.mrb[0].mxu0
  %v6816 = vadd.f32 %v6645, %v6815
  %v6817 = vpop.f32.mrb[0].mxu0
  %6818 = vmatprep.mubr.f32.mxu0 %v6683
  %6819 = vmatmul.mubr.f32.gmra.mrb[0].mxu0 %v6614
  %v6820 = vpop.f32.mrb[0].mxu0
  %v6821 = vadd.f32 %v6645, %v6820
  %v6822 = vpop.f32.mrb[0].mxu0
  %6823 = vmatprep.mubr.f32.mxu0 %v6686
  %6824 = vmatmul.mubr.f32.gmra.mrb[0].mxu0 %v6615
  %v6825 = vpop.f32.mrb[0].mxu0
  %v6826 = vadd.f32 %v6645, %v6825
  %v6827 = vpop.f32.mrb[0].mxu0
  %6828 = vmatprep.mubr.f32.mxu0 %v6689
  %6829 = vmatmul.mubr.f32.gmra.mrb[0].mxu0 %v6616
  %v6830 = vpop.f32.mrb[0].mxu0
  %v6831 = vadd.f32 %v6645, %v6830
  %v6832 = vpop.f32.mrb[0].mxu0
  %6833 = vmatprep.mubr.f32.mxu0 %v6692
  %6834 = vmatmul.mubr.f32.gmra.mrb[0].mxu0 %v6617
  %v6835 = vpop.f32.mrb[0].mxu0
  %v6836 = vadd.f32 %v6645, %v6835
  %v6837 = vpop.f32.mrb[0].mxu0
  %6838 = vdwg.mxu0
  %v6839 = vadd.f32 %v6761, %v5943
  %v6840 = vadd.f32 %v6766, %v5944
  %v6841 = vadd.f32 %v6771, %v5945
  %v6842 = vadd.f32 %v6776, %v5946
  %v6843 = vadd.f32 %v6781, %v5947
  %v6844 = vadd.f32 %v6786, %v5948
  %v6845 = vadd.f32 %v6791, %v5949
  %v6846 = vadd.f32 %v6796, %v5950
  %v6847 = vadd.f32 %v6801, %v5951
  %v6848 = vadd.f32 %v6806, %v5952
  %v6849 = vadd.f32 %v6811, %v5953
  %v6850 = vadd.f32 %v6816, %v5954
  %v6851 = vadd.f32 %v6821, %v5955
  %v6852 = vadd.f32 %v6826, %v5956
  %v6853 = vadd.f32 %v6831, %v5957
  %v6854 = vadd.f32 %v6836, %v5958
  %v6855 = vld [vmem:[%s17 + $0x16] sm:$0x1]
  %v6856 = vld [vmem:[%s17 + $0x17] sm:$0x1]
  %v6857 = vsel %vm270, %v6839, 0.0
  %6858 = vadd.xlane.f32.xlu0 %v6857
  %v6859 = vpop.xlane.xlu0 %6858
  %v6860 = vsel %vm270, %v6840, 0.0
  %6861 = vadd.xlane.f32.xlu0 %v6860
  %v6862 = vpop.xlane.xlu0 %6861
  %v6863 = vsel %vm270, %v6841, 0.0
  %6864 = vadd.xlane.f32.xlu0 %v6863
  %v6865 = vpop.xlane.xlu0 %6864
  %v6866 = vsel %vm270, %v6842, 0.0
  %6867 = vadd.xlane.f32.xlu0 %v6866
  %v6868 = vpop.xlane.xlu0 %6867
  %v6869 = vsel %vm270, %v6843, 0.0
  %6870 = vadd.xlane.f32.xlu0 %v6869
  %v6871 = vpop.xlane.xlu0 %6870
  %v6872 = vsel %vm270, %v6844, 0.0
  %6873 = vadd.xlane.f32.xlu0 %v6872
  %v6874 = vpop.xlane.xlu0 %6873
  %v6875 = vsel %vm270, %v6845, 0.0
  %6876 = vadd.xlane.f32.xlu0 %v6875
  %v6877 = vpop.xlane.xlu0 %6876
  %v6878 = vsel %vm270, %v6846, 0.0
  %6879 = vadd.xlane.f32.xlu0 %v6878
  %v6880 = vpop.xlane.xlu0 %6879
  %v6881 = vsel %vm270, %v6847, 0.0
  %6882 = vadd.xlane.f32.xlu0 %v6881
  %v6883 = vpop.xlane.xlu0 %6882
  %v6884 = vsel %vm270, %v6848, 0.0
  %6885 = vadd.xlane.f32.xlu0 %v6884
  %v6886 = vpop.xlane.xlu0 %6885
  %v6887 = vsel %vm270, %v6849, 0.0
  %6888 = vadd.xlane.f32.xlu0 %v6887
  %v6889 = vpop.xlane.xlu0 %6888
  %v6890 = vsel %vm270, %v6850, 0.0
  %6891 = vadd.xlane.f32.xlu0 %v6890
  %v6892 = vpop.xlane.xlu0 %6891
  %v6893 = vsel %vm270, %v6851, 0.0
  %6894 = vadd.xlane.f32.xlu0 %v6893
  %v6895 = vpop.xlane.xlu0 %6894
  %v6896 = vsel %vm270, %v6852, 0.0
  %6897 = vadd.xlane.f32.xlu0 %v6896
  %v6898 = vpop.xlane.xlu0 %6897
  %v6899 = vsel %vm270, %v6853, 0.0
  %6900 = vadd.xlane.f32.xlu0 %v6899
  %v6901 = vpop.xlane.xlu0 %6900
  %v6902 = vsel %vm270, %v6854, 0.0
  %6903 = vadd.xlane.f32.xlu0 %v6902
  %v6904 = vpop.xlane.xlu0 %6903
  %v6905 = vmul.f32 %v6859, %v1457
  %v6906 = vmul.f32 %v6862, %v1457
  %v6907 = vmul.f32 %v6865, %v1457
  %v6908 = vmul.f32 %v6868, %v1457
  %v6909 = vmul.f32 %v6871, %v1457
  %v6910 = vmul.f32 %v6874, %v1457
  %v6911 = vmul.f32 %v6877, %v1457
  %v6912 = vmul.f32 %v6880, %v1457
  %v6913 = vmul.f32 %v6883, %v1457
  %v6914 = vmul.f32 %v6886, %v1457
  %v6915 = vmul.f32 %v6889, %v1457
  %v6916 = vmul.f32 %v6892, %v1457
  %v6917 = vmul.f32 %v6895, %v1457
  %v6918 = vmul.f32 %v6898, %v1457
  %v6919 = vmul.f32 %v6901, %v1457
  %v6920 = vmul.f32 %v6904, %v1457
  %v6921 = vsub.f32 %v6839, %v6905
  %v6922 = vsub.f32 %v6840, %v6906
  %v6923 = vsub.f32 %v6841, %v6907
  %v6924 = vsub.f32 %v6842, %v6908
  %v6925 = vsub.f32 %v6843, %v6909
  %v6926 = vsub.f32 %v6844, %v6910
  %v6927 = vsub.f32 %v6845, %v6911
  %v6928 = vsub.f32 %v6846, %v6912
  %v6929 = vsub.f32 %v6847, %v6913
  %v6930 = vsub.f32 %v6848, %v6914
  %v6931 = vsub.f32 %v6849, %v6915
  %v6932 = vsub.f32 %v6850, %v6916
  %v6933 = vsub.f32 %v6851, %v6917
  %v6934 = vsub.f32 %v6852, %v6918
  %v6935 = vsub.f32 %v6853, %v6919
  %v6936 = vsub.f32 %v6854, %v6920
  %v6937 = vmul.f32 %v6921, %v6921
  %v6938 = vmul.f32 %v6922, %v6922
  %v6939 = vmul.f32 %v6923, %v6923
  %v6940 = vmul.f32 %v6924, %v6924
  %v6941 = vmul.f32 %v6925, %v6925
  %v6942 = vmul.f32 %v6926, %v6926
  %v6943 = vmul.f32 %v6927, %v6927
  %v6944 = vmul.f32 %v6928, %v6928
  %v6945 = vmul.f32 %v6929, %v6929
  %v6946 = vmul.f32 %v6930, %v6930
  %v6947 = vmul.f32 %v6931, %v6931
  %v6948 = vmul.f32 %v6932, %v6932
  %v6949 = vmul.f32 %v6933, %v6933
  %v6950 = vmul.f32 %v6934, %v6934
  %v6951 = vmul.f32 %v6935, %v6935
  %v6952 = vmul.f32 %v6936, %v6936
  %v6953 = vsel %vm270, %v6937, 0.0
  %6954 = vadd.xlane.f32.xlu0 %v6953
  %v6955 = vpop.xlane.xlu0 %6954
  %v6956 = vsel %vm270, %v6938, 0.0
  %6957 = vadd.xlane.f32.xlu0 %v6956
  %v6958 = vpop.xlane.xlu0 %6957
  %v6959 = vsel %vm270, %v6939, 0.0
  %6960 = vadd.xlane.f32.xlu0 %v6959
  %v6961 = vpop.xlane.xlu0 %6960
  %v6962 = vsel %vm270, %v6940, 0.0
  %6963 = vadd.xlane.f32.xlu0 %v6962
  %v6964 = vpop.xlane.xlu0 %6963
  %v6965 = vsel %vm270, %v6941, 0.0
  %6966 = vadd.xlane.f32.xlu0 %v6965
  %v6967 = vpop.xlane.xlu0 %6966
  %v6968 = vsel %vm270, %v6942, 0.0
  %6969 = vadd.xlane.f32.xlu0 %v6968
  %v6970 = vpop.xlane.xlu0 %6969
  %v6971 = vsel %vm270, %v6943, 0.0
  %6972 = vadd.xlane.f32.xlu0 %v6971
  %v6973 = vpop.xlane.xlu0 %6972
  %v6974 = vsel %vm270, %v6944, 0.0
  %6975 = vadd.xlane.f32.xlu0 %v6974
  %v6976 = vpop.xlane.xlu0 %6975
  %v6977 = vsel %vm270, %v6945, 0.0
  %6978 = vadd.xlane.f32.xlu0 %v6977
  %v6979 = vpop.xlane.xlu0 %6978
  %v6980 = vsel %vm270, %v6946, 0.0
  %6981 = vadd.xlane.f32.xlu0 %v6980
  %v6982 = vpop.xlane.xlu0 %6981
  %v6983 = vsel %vm270, %v6947, 0.0
  %6984 = vadd.xlane.f32.xlu0 %v6983
  %v6985 = vpop.xlane.xlu0 %6984
  %v6986 = vsel %vm270, %v6948, 0.0
  %6987 = vadd.xlane.f32.xlu0 %v6986
  %v6988 = vpop.xlane.xlu0 %6987
  %v6989 = vsel %vm270, %v6949, 0.0
  %6990 = vadd.xlane.f32.xlu0 %v6989
  %v6991 = vpop.xlane.xlu0 %6990
  %v6992 = vsel %vm270, %v6950, 0.0
  %6993 = vadd.xlane.f32.xlu0 %v6992
  %v6994 = vpop.xlane.xlu0 %6993
  %v6995 = vsel %vm270, %v6951, 0.0
  %6996 = vadd.xlane.f32.xlu0 %v6995
  %v6997 = vpop.xlane.xlu0 %6996
  %v6998 = vsel %vm270, %v6952, 0.0
  %6999 = vadd.xlane.f32.xlu0 %v6998
  %v7000 = vpop.xlane.xlu0 %6999
  %v7001 = vmul.f32 %v6955, %v1457
  %v7002 = vmul.f32 %v6958, %v1457
  %v7003 = vmul.f32 %v6961, %v1457
  %v7004 = vmul.f32 %v6964, %v1457
  %v7005 = vmul.f32 %v6967, %v1457
  %v7006 = vmul.f32 %v6970, %v1457
  %v7007 = vmul.f32 %v6973, %v1457
  %v7008 = vmul.f32 %v6976, %v1457
  %v7009 = vmul.f32 %v6979, %v1457
  %v7010 = vmul.f32 %v6982, %v1457
  %v7011 = vmul.f32 %v6985, %v1457
  %v7012 = vmul.f32 %v6988, %v1457
  %v7013 = vmul.f32 %v6991, %v1457
  %v7014 = vmul.f32 %v6994, %v1457
  %v7015 = vmul.f32 %v6997, %v1457
  %v7016 = vmul.f32 %v7000, %v1457
  %v7017 = vadd.f32 %v7001, 1e-05
  %v7018 = vadd.f32 %v7002, 1e-05
  %v7019 = vadd.f32 %v7003, 1e-05
  %v7020 = vadd.f32 %v7004, 1e-05
  %v7021 = vadd.f32 %v7005, 1e-05
  %v7022 = vadd.f32 %v7006, 1e-05
  %v7023 = vadd.f32 %v7007, 1e-05
  %v7024 = vadd.f32 %v7008, 1e-05
  %v7025 = vadd.f32 %v7009, 1e-05
  %v7026 = vadd.f32 %v7010, 1e-05
  %v7027 = vadd.f32 %v7011, 1e-05
  %v7028 = vadd.f32 %v7012, 1e-05
  %v7029 = vadd.f32 %v7013, 1e-05
  %v7030 = vadd.f32 %v7014, 1e-05
  %v7031 = vadd.f32 %v7015, 1e-05
  %v7032 = vadd.f32 %v7016, 1e-05
  %v7033 = vrsqrt.pop %v7017
  %v7034 = vrsqrt.pop %v7018
  %v7035 = vrsqrt.pop %v7019
  %v7036 = vrsqrt.pop %v7020
  %v7037 = vrsqrt.pop %v7021
  %v7038 = vrsqrt.pop %v7022
  %v7039 = vrsqrt.pop %v7023
  %v7040 = vrsqrt.pop %v7024
  %v7041 = vrsqrt.pop %v7025
  %v7042 = vrsqrt.pop %v7026
  %v7043 = vrsqrt.pop %v7027
  %v7044 = vrsqrt.pop %v7028
  %v7045 = vrsqrt.pop %v7029
  %v7046 = vrsqrt.pop %v7030
  %v7047 = vrsqrt.pop %v7031
  %v7048 = vrsqrt.pop %v7032
  %v7049 = vmul.f32 %v6921, %v7033
  %v7050 = vmul.f32 %v6922, %v7034
  %v7051 = vmul.f32 %v6923, %v7035
  %v7052 = vmul.f32 %v6924, %v7036
  %v7053 = vmul.f32 %v6925, %v7037
  %v7054 = vmul.f32 %v6926, %v7038
  %v7055 = vmul.f32 %v6927, %v7039
  %v7056 = vmul.f32 %v6928, %v7040
  %v7057 = vmul.f32 %v6929, %v7041
  %v7058 = vmul.f32 %v6930, %v7042
  %v7059 = vmul.f32 %v6931, %v7043
  %v7060 = vmul.f32 %v6932, %v7044
  %v7061 = vmul.f32 %v6933, %v7045
  %v7062 = vmul.f32 %v6934, %v7046
  %v7063 = vmul.f32 %v6935, %v7047
  %v7064 = vmul.f32 %v6936, %v7048
  %v7065 = vlaneseq
  %v7066 = vshrl.u32 %v7065, 7
  %v7067 = vsub.s32 0, %v7066
  %v7068 = vrot.slane %v6855, %v7067
  %v7069 = vmul.f32 %v7049, %v7068
  %v7070 = vmul.f32 %v7050, %v7068
  %v7071 = vmul.f32 %v7051, %v7068
  %v7072 = vmul.f32 %v7052, %v7068
  %v7073 = vmul.f32 %v7053, %v7068
  %v7074 = vmul.f32 %v7054, %v7068
  %v7075 = vmul.f32 %v7055, %v7068
  %v7076 = vmul.f32 %v7056, %v7068
  %v7077 = vmul.f32 %v7057, %v7068
  %v7078 = vmul.f32 %v7058, %v7068
  %v7079 = vmul.f32 %v7059, %v7068
  %v7080 = vmul.f32 %v7060, %v7068
  %v7081 = vmul.f32 %v7061, %v7068
  %v7082 = vmul.f32 %v7062, %v7068
  %v7083 = vmul.f32 %v7063, %v7068
  %v7084 = vmul.f32 %v7064, %v7068
  %v7085 = vlaneseq
  %v7086 = vshrl.u32 %v7085, 7
  %v7087 = vsub.s32 0, %v7086
  %v7088 = vrot.slane %v6856, %v7087
  %v7089 = vadd.f32 %v7069, %v7088
  %v7090 = vadd.f32 %v7070, %v7088
  %v7091 = vadd.f32 %v7071, %v7088
  %v7092 = vadd.f32 %v7072, %v7088
  %v7093 = vadd.f32 %v7073, %v7088
  %v7094 = vadd.f32 %v7074, %v7088
  %v7095 = vadd.f32 %v7075, %v7088
  %v7096 = vadd.f32 %v7076, %v7088
  %v7097 = vadd.f32 %v7077, %v7088
  %v7098 = vadd.f32 %v7078, %v7088
  %v7099 = vadd.f32 %v7079, %v7088
  %v7100 = vadd.f32 %v7080, %v7088
  %v7101 = vadd.f32 %v7081, %v7088
  %v7102 = vadd.f32 %v7082, %v7088
  %v7103 = vadd.f32 %v7083, %v7088
  %v7104 = vadd.f32 %v7084, %v7088
  %v7105 = vld [vmem:[%s16] sm:$0xff]
  %v7106 = vld [vmem:[%s16 + $0x8] sm:$0xff]
  %v7107 = vld [vmem:[%s16 + $0x10] sm:$0xff]
  %v7108 = vld [vmem:[%s16 + $0x18] sm:$0xff]
  %v7109 = vld [vmem:[%s17 + $0x18] sm:$0x1]
  %v7110 = vlaneseq
  %v7111 = vshrl.u32 %v7110, 7
  %v7112 = vsub.s32 0, %v7111
  %v7113 = vrot.slane %v7109, %v7112
  %v7115 = vsel %vm270, %v7089, 0
  %v7118 = vsel %vm270, %v7090, 0
  %v7121 = vsel %vm270, %v7091, 0
  %v7124 = vsel %vm270, %v7092, 0
  %v7127 = vsel %vm270, %v7093, 0
  %v7130 = vsel %vm270, %v7094, 0
  %v7133 = vsel %vm270, %v7095, 0
  %v7136 = vsel %vm270, %v7096, 0
  %v7139 = vsel %vm270, %v7097, 0
  %v7142 = vsel %vm270, %v7098, 0
  %v7145 = vsel %vm270, %v7099, 0
  %v7148 = vsel %vm270, %v7100, 0
  %v7151 = vsel %vm270, %v7101, 0
  %v7154 = vsel %vm270, %v7102, 0
  %v7157 = vsel %vm270, %v7103, 0
  %v7160 = vsel %vm270, %v7104, 0
  %7162 = vmatprep.subr.mxu0 0.0
  %7163 = vmatpush1.msra.mxu0 %v7105
  %7164 = vmatprep.subr.mxu0 0.0
  %7165 = vmatpush1.msra.mxu0 %v7106
  %7166 = vmatprep.subr.mxu0 0.0
  %7167 = vmatpush1.msra.mxu0 %v7107
  %7168 = vmatprep.subr.mxu0 0.0
  %7169 = vmatpush1.msra.mxu0 %v7108
  %7170 = vmatprep.subr.mxu0 0.0
  %7171 = vmatpush1.msra.mxu0 0.0
  %7172 = vmatprep.subr.mxu0 0.0
  %7173 = vmatpush1.msra.mxu0 0.0
  %7174 = vmatprep.subr.mxu0 0.0
  %7175 = vmatpush1.msra.mxu0 0.0
  %7176 = vmatprep.subr.mxu0 0.0
  %7177 = vmatpush1.msra.mxu0 0.0
  %7178 = vmatprep.subr.mxu0 0.0
  %7179 = vmatpush1.msra.mxu0 0.0
  %7180 = vmatprep.subr.mxu0 0.0
  %7181 = vmatpush1.msra.mxu0 0.0
  %7182 = vmatprep.subr.mxu0 0.0
  %7183 = vmatpush1.msra.mxu0 0.0
  %7184 = vmatprep.subr.mxu0 0.0
  %7185 = vmatpush1.msra.mxu0 0.0
  %7186 = vmatprep.subr.mxu0 0.0
  %7187 = vmatpush1.msra.mxu0 0.0
  %7188 = vmatprep.subr.mxu0 0.0
  %7189 = vmatpush1.msra.mxu0 0.0
  %7190 = vmatprep.subr.mxu0 0.0
  %7191 = vmatpush1.msra.mxu0 0.0
  %7192 = vmatprep.subr.mxu0 0.0
  %7193 = vmatpush1.msra.mxu0 0.0
  %7194 = vmatprep.subr.mxu0 0.0
  %7195 = vmatpush1.msra.mxu0 0.0
  %7196 = vmatprep.subr.mxu0 0.0
  %7197 = vmatpush1.msra.mxu0 0.0
  %7198 = vmatprep.subr.mxu0 0.0
  %7199 = vmatpush1.msra.mxu0 0.0
  %7200 = vmatprep.subr.mxu0 0.0
  %7201 = vmatpush1.msra.mxu0 0.0
  %7202 = vmatprep.subr.mxu0 0.0
  %7203 = vmatpush1.msra.mxu0 0.0
  %7204 = vmatprep.subr.mxu0 0.0
  %7205 = vmatpush1.msra.mxu0 0.0
  %7206 = vmatprep.subr.mxu0 0.0
  %7207 = vmatpush1.msra.mxu0 0.0
  %7208 = vmatprep.subr.mxu0 0.0
  %7209 = vmatpush1.msra.mxu0 0.0
  %7210 = vmatprep.subr.mxu0 0.0
  %7211 = vmatpush1.msra.mxu0 0.0
  %7212 = vmatprep.subr.mxu0 0.0
  %7213 = vmatpush1.msra.mxu0 0.0
  %7214 = vmatprep.subr.mxu0 0.0
  %7215 = vmatpush1.msra.mxu0 0.0
  %7216 = vmatprep.subr.mxu0 0.0
  %7217 = vmatpush1.msra.mxu0 0.0
  %7218 = vmatprep.subr.mxu0 0.0
  %7219 = vmatpush1.msra.mxu0 0.0
  %7220 = vmatprep.subr.mxu0 0.0
  %7221 = vmatpush1.msra.mxu0 0.0
  %7222 = vmatprep.subr.mxu0 0.0
  %7223 = vmatpush1.msra.mxu0 0.0
  %7224 = vmatprep.subr.mxu0 0.0
  %7225 = vmatpush1.msra.mxu0 0.0
  %7226 = vmatprep.mubr.f32.mxu0 0.0
  %7227 = vmatmul.mubr.f32.gmra.mrb[0].mxu0 %v7115
  %v7228 = vpop.f32.mrb[0].mxu0
  %v7229 = vadd.f32 %v7113, %v7228
  %v7230 = vpop.f32.mrb[0].mxu0
  %7231 = vmatprep.mubr.f32.mxu0 0.0
  %7232 = vmatmul.mubr.f32.gmra.mrb[0].mxu0 %v7118
  %v7233 = vpop.f32.mrb[0].mxu0
  %v7234 = vadd.f32 %v7113, %v7233
  %v7235 = vpop.f32.mrb[0].mxu0
  %7236 = vmatprep.mubr.f32.mxu0 0.0
  %7237 = vmatmul.mubr.f32.gmra.mrb[0].mxu0 %v7121
  %v7238 = vpop.f32.mrb[0].mxu0
  %v7239 = vadd.f32 %v7113, %v7238
  %v7240 = vpop.f32.mrb[0].mxu0
  %7241 = vmatprep.mubr.f32.mxu0 0.0
  %7242 = vmatmul.mubr.f32.gmra.mrb[0].mxu0 %v7124
  %v7243 = vpop.f32.mrb[0].mxu0
  %v7244 = vadd.f32 %v7113, %v7243
  %v7245 = vpop.f32.mrb[0].mxu0
  %7246 = vmatprep.mubr.f32.mxu0 0.0
  %7247 = vmatmul.mubr.f32.gmra.mrb[0].mxu0 %v7127
  %v7248 = vpop.f32.mrb[0].mxu0
  %v7249 = vadd.f32 %v7113, %v7248
  %v7250 = vpop.f32.mrb[0].mxu0
  %7251 = vmatprep.mubr.f32.mxu0 0.0
  %7252 = vmatmul.mubr.f32.gmra.mrb[0].mxu0 %v7130
  %v7253 = vpop.f32.mrb[0].mxu0
  %v7254 = vadd.f32 %v7113, %v7253
  %v7255 = vpop.f32.mrb[0].mxu0
  %7256 = vmatprep.mubr.f32.mxu0 0.0
  %7257 = vmatmul.mubr.f32.gmra.mrb[0].mxu0 %v7133
  %v7258 = vpop.f32.mrb[0].mxu0
  %v7259 = vadd.f32 %v7113, %v7258
  %v7260 = vpop.f32.mrb[0].mxu0
  %7261 = vmatprep.mubr.f32.mxu0 0.0
  %7262 = vmatmul.mubr.f32.gmra.mrb[0].mxu0 %v7136
  %v7263 = vpop.f32.mrb[0].mxu0
  %v7264 = vadd.f32 %v7113, %v7263
  %v7265 = vpop.f32.mrb[0].mxu0
  %7266 = vmatprep.mubr.f32.mxu0 0.0
  %7267 = vmatmul.mubr.f32.gmra.mrb[0].mxu0 %v7139
  %v7268 = vpop.f32.mrb[0].mxu0
  %v7269 = vadd.f32 %v7113, %v7268
  %v7270 = vpop.f32.mrb[0].mxu0
  %7271 = vmatprep.mubr.f32.mxu0 0.0
  %7272 = vmatmul.mubr.f32.gmra.mrb[0].mxu0 %v7142
  %v7273 = vpop.f32.mrb[0].mxu0
  %v7274 = vadd.f32 %v7113, %v7273
  %v7275 = vpop.f32.mrb[0].mxu0
  %7276 = vmatprep.mubr.f32.mxu0 0.0
  %7277 = vmatmul.mubr.f32.gmra.mrb[0].mxu0 %v7145
  %v7278 = vpop.f32.mrb[0].mxu0
  %v7279 = vadd.f32 %v7113, %v7278
  %v7280 = vpop.f32.mrb[0].mxu0
  %7281 = vmatprep.mubr.f32.mxu0 0.0
  %7282 = vmatmul.mubr.f32.gmra.mrb[0].mxu0 %v7148
  %v7283 = vpop.f32.mrb[0].mxu0
  %v7284 = vadd.f32 %v7113, %v7283
  %v7285 = vpop.f32.mrb[0].mxu0
  %7286 = vmatprep.mubr.f32.mxu0 0.0
  %7287 = vmatmul.mubr.f32.gmra.mrb[0].mxu0 %v7151
  %v7288 = vpop.f32.mrb[0].mxu0
  %v7289 = vadd.f32 %v7113, %v7288
  %v7290 = vpop.f32.mrb[0].mxu0
  %7291 = vmatprep.mubr.f32.mxu0 0.0
  %7292 = vmatmul.mubr.f32.gmra.mrb[0].mxu0 %v7154
  %v7293 = vpop.f32.mrb[0].mxu0
  %v7294 = vadd.f32 %v7113, %v7293
  %v7295 = vpop.f32.mrb[0].mxu0
  %7296 = vmatprep.mubr.f32.mxu0 0.0
  %7297 = vmatmul.mubr.f32.gmra.mrb[0].mxu0 %v7157
  %v7298 = vpop.f32.mrb[0].mxu0
  %v7299 = vadd.f32 %v7113, %v7298
  %v7300 = vpop.f32.mrb[0].mxu0
  %7301 = vmatprep.mubr.f32.mxu0 0.0
  %7302 = vmatmul.mubr.f32.gmra.mrb[0].mxu0 %v7160
  %v7303 = vpop.f32.mrb[0].mxu0
  %v7304 = vadd.f32 %v7113, %v7303
  %v7305 = vpop.f32.mrb[0].mxu0
  %7306 = vdwg.mxu0
  %v7307 = vmul.f32 %v7229, %v3409
  %v7308 = vmul.f32 %v7234, %v3412
  %v7309 = vmul.f32 %v7239, %v3415
  %v7310 = vmul.f32 %v7244, %v3418
  %v7311 = vmul.f32 %v7249, %v3421
  %v7312 = vmul.f32 %v7254, %v3424
  %v7313 = vmul.f32 %v7259, %v3427
  %v7314 = vmul.f32 %v7264, %v3430
  %v7315 = vmul.f32 %v7269, %v3433
  %v7316 = vmul.f32 %v7274, %v3436
  %v7317 = vmul.f32 %v7279, %v3439
  %v7318 = vmul.f32 %v7284, %v3442
  %v7319 = vmul.f32 %v7289, %v3445
  %v7320 = vmul.f32 %v7294, %v3448
  %v7321 = vmul.f32 %v7299, %v3451
  %v7322 = vmul.f32 %v7304, %v3454
  %7323 = vst.msk [vmem:[%s18] sm:$0xff] %vm424, %v7307
  %7324 = vst.msk [vmem:[%s18 + $0x8] sm:$0xff] %vm424, %v7308
  %7325 = vst.msk [vmem:[%s18 + $0x10] sm:$0xff] %vm424, %v7309
  %7326 = vst.msk [vmem:[%s18 + $0x18] sm:$0xff] %vm424, %v7310
  %7327 = vst.msk [vmem:[%s18 + $0x20] sm:$0xff] %vm424, %v7311
  %7328 = vst.msk [vmem:[%s18 + $0x28] sm:$0xff] %vm424, %v7312
  %7329 = vst.msk [vmem:[%s18 + $0x30] sm:$0xff] %vm424, %v7313
  %7330 = vst.msk [vmem:[%s18 + $0x38] sm:$0xff] %vm424, %v7314
  %7331 = vst.msk [vmem:[%s18 + $0x40] sm:$0xff] %vm424, %v7315
  %7332 = vst.msk [vmem:[%s18 + $0x48] sm:$0xff] %vm424, %v7316
  %7333 = vst.msk [vmem:[%s18 + $0x50] sm:$0xff] %vm424, %v7317
  %7334 = vst.msk [vmem:[%s18 + $0x58] sm:$0xff] %vm424, %v7318
  %7335 = vst.msk [vmem:[%s18 + $0x60] sm:$0xff] %vm424, %v7319
  %7336 = vst.msk [vmem:[%s18 + $0x68] sm:$0xff] %vm424, %v7320
  %7337 = vst.msk [vmem:[%s18 + $0x70] sm:$0xff] %vm424, %v7321
  %7338 = vst.msk [vmem:[%s18 + $0x78] sm:$0xff] %vm424, %v7322
  // Predicated region
  $region74: #{fastspeech_forward.1} parent=0 // pred_check
    _
  $region75: #{fastspeech_forward.1} parent=0 // pred_check_branch
    %7340 = sbr.rel (0) target = $region77
  $region76: #{fastspeech_forward.1} parent=0 // pred_region
    _
  $region77: #{fastspeech_forward.1} parent=0 // pred_fallthru
    _
  // Predicated region
  $region78: #{fastspeech_forward.1} parent=0 // pred_check
    _
  $region79: #{fastspeech_forward.1} parent=0 // pred_check_branch
    %7342 = sbr.rel (0) target = $region81
  $region80: #{fastspeech_forward.1} parent=0 // pred_region
    _
  $region81: #{fastspeech_forward.1} parent=0 // pred_fallthru
    _

</llo_original>
